<compile_context>
chip_gen: v5e
topology: v5e:2x2
jax: 0.10.0
libtpu: 0.0.40
codegen_flags: <defaults>
</compile_context>

<pallas_src>
import functools
import math

import jax
import jax.numpy as jnp
from jax.experimental import pallas as pl
from jax.experimental.pallas import tpu as pltpu


def _sequential_mlp_kernel(x_ref, wb1_ref, wb2_ref, o_ref):
    """Fused Linear -> ReLU -> Linear on one batch tile.

    wb1_ref: (d_in + 1, hidden)  rows [:d_in]  = W1^T, row [d_in]   = b1
    wb2_ref: (hidden + 1, d_out) rows [:hidden] = W2^T, row [hidden] = b2
    Compute is strictly per-row, so garbage rows in a partial final block are
    harmless (their outputs are never written back).
    """
    d_in = x_ref.shape[-1]
    hidden = wb1_ref.shape[-1]

    x = x_ref[...]
    # Module 0: Linear(d_in, hidden)   y = x @ W1^T + b1   (bf16 MXU, f32 acc)
    h = jnp.dot(x, wb1_ref[0:d_in, :], preferred_element_type=jnp.float32)
    h = h + wb1_ref[d_in:d_in + 1, :].astype(jnp.float32)
    # Module 1: ReLU (f32 epilogue on all generations)
    h = jnp.maximum(h, 0.0)
    # Module 2: Linear(hidden, d_out)  o = h @ W2^T + b2
    o = jnp.dot(h.astype(wb2_ref.dtype), wb2_ref[0:hidden, :],
                preferred_element_type=jnp.float32)
    o = o + wb2_ref[hidden:hidden + 1, :].astype(jnp.float32)
    o_ref[...] = o.astype(o_ref.dtype)


# ----------------------------------------------------------------------------
# Parameter packing: done ONCE, outside the per-call hot path.
# ----------------------------------------------------------------------------
def pack_linear(w, b):
    """Pack a PyTorch-layout nn.Linear (w: (out, in), b: (out,)) into a single
    (in + 1, out) slab: rows [:in] are W^T (lane-dense), last row is the bias."""
    return jnp.concatenate([jnp.transpose(w), b.reshape(1, -1)], axis=0)


def init_sequential_params(key, d_in, hidden, d_out, dtype=jnp.bfloat16):
    """Deterministic init matching nn.Linear (U(-1/sqrt(in))), pre-packed into
    the kernel's (in+1, out) slab layout.  bf16 is the recommended I/O dtype
    (full-rate MXU on v5e/v6e/v7x); accumulation stays f32 inside the kernel."""
    k1w, k1b, k2w, k2b = jax.random.split(key, 4)

    def linear(kw, kb, fin, fout):
        bound = 1.0 / math.sqrt(fin)
        w = jax.random.uniform(kw, (fout, fin), jnp.float32, -bound, bound)
        b = jax.random.uniform(kb, (fout,), jnp.float32, -bound, bound)
        return pack_linear(w, b).astype(dtype)

    return linear(k1w, k1b, d_in, hidden), linear(k2w, k2b, hidden, d_out)


# ----------------------------------------------------------------------------
# Forward pass.
# ----------------------------------------------------------------------------
@functools.partial(jax.jit, static_argnames=("tile_b", "xla_batch_threshold"))
def sequential_forward(x, wb1, wb2, *, tile_b=4096, xla_batch_threshold=2048):
    """Sequential(Linear, ReLU, Linear) forward.

    x   : (B, d_in)            bf16 (recommended) or f32
    wb1 : (d_in + 1, hidden)   packed slab (see pack_linear)
    wb2 : (hidden + 1, d_out)  packed slab
    """
    B, d_in = x.shape
    hidden = wb1.shape[1]
    d_out = wb2.shape[1]
    assert wb1.shape[0] == d_in + 1, "wb1 must be a packed (d_in+1, hidden) slab"
    assert wb2.shape[0] == hidden + 1, "wb2 must be a packed (hidden+1, d_out) slab"

    if B < xla_batch_threshold:
        # Dispatch-bound regime: a single fused XLA op beats pallas_call overhead.
        h = jnp.maximum(
            jnp.dot(x, wb1[:d_in], preferred_element_type=jnp.float32) + wb1[d_in],
            0.0)
        o = jnp.dot(h.astype(wb2.dtype), wb2[:hidden],
                    preferred_element_type=jnp.float32) + wb2[hidden]
        return o.astype(x.dtype)

    # ---------------- Batch-tiled Pallas path (no pad, no output slice). ----
    if B <= tile_b:
        tile_b = B               # single full-extent block (divisibility exempt)
    else:
        assert tile_b % 8 == 0, "tile_b must be a multiple of 8 sublanes"
    num_tiles = pl.cdiv(B, tile_b)   # partial final block handled by Pallas

    itemsize = x.dtype.itemsize
    slab_bytes = (wb1.size * wb1.dtype.itemsize + wb2.size * wb2.dtype.itemsize)
    cost = pl.CostEstimate(
        flops=2 * B * (d_in * hidden + hidden * d_out),
        transcendentals=0,
        bytes_accessed=B * (d_in + d_out) * itemsize + slab_bytes,
    )

    return pl.pallas_call(
        _sequential_mlp_kernel,
        out_shape=jax.ShapeDtypeStruct((B, d_out), x.dtype),
        grid=(num_tiles,),
        in_specs=[
            pl.BlockSpec((tile_b, d_in), lambda i: (i, 0)),   # activation tile
            pl.BlockSpec(wb1.shape, lambda i: (0, 0)),        # resident weight slab 1
            pl.BlockSpec(wb2.shape, lambda i: (0, 0)),        # resident weight slab 2
        ],
        out_specs=pl.BlockSpec((tile_b, d_out), lambda i: (i, 0)),
        compiler_params=pltpu.CompilerParams(
            dimension_semantics=("parallel",),   # batch axis shards across TCs (v7x)
            vmem_limit_bytes=48 * 1024 * 1024,   # > v5e's 16 MiB scoped default,
                                                 # < v7x's 64 MiB physical
        ),
        cost_estimate=cost,
    )(x, wb1, wb2)


if __name__ == "__main__":
    key = jax.random.PRNGKey(0)
    k_x, k_p = jax.random.split(key)

    # Feature dims are the module's (32 -> 64 -> 16); batch is chosen just big
    # enough (a few tiles, with a ragged tail) to exercise the Pallas path,
    # the multi-tile grid, and the partial final block.  Still tiny in bytes.
    batch, d_in, hidden, d_out = 8229, 32, 64, 16
    dtype = jnp.bfloat16

    x = jax.random.normal(k_x, (batch, d_in), dtype=jnp.float32).astype(dtype)
    wb1, wb2 = init_sequential_params(k_p, d_in, hidden, d_out, dtype=dtype)

    out = sequential_forward(x, wb1, wb2)
    out = jax.block_until_ready(out)

    # Reference: the same Sequential(Linear, ReLU, Linear) chain in plain JAX,
    # replicating the kernel's dtype flow (bf16 inputs, f32 accumulation,
    # bf16 recast of the hidden activation before the second matmul).
    xf = x.astype(jnp.float32)
    w1t, b1 = wb1[:d_in].astype(jnp.float32), wb1[d_in].astype(jnp.float32)
    w2t, b2 = wb2[:hidden].astype(jnp.float32), wb2[hidden].astype(jnp.float32)
    h_ref = jnp.maximum(xf @ w1t + b1, 0.0)
    ref = h_ref.astype(dtype).astype(jnp.float32) @ w2t + b2

    assert out.shape == (batch, d_out)
    assert out.dtype == dtype
    assert jnp.allclose(out.astype(jnp.float32), ref, atol=3e-2, rtol=3e-2)

    print("KERNEL_OK")
</pallas_src>

<mosaic_0001>
module attributes {stable_mosaic.version = 11 : i64} {
  func.func @_sequential_mlp_kernel(%arg0: i32, %arg1: memref<4096x32xbf16, #tpu.memory_space<vmem>>, %arg2: memref<33x64xbf16, #tpu.memory_space<vmem>>, %arg3: memref<65x16xbf16, #tpu.memory_space<vmem>>, %arg4: memref<4096x16xbf16, #tpu.memory_space<vmem>>) attributes {dimension_semantics = [#tpu.dimension_semantics<parallel>], iteration_bounds = array<i64: 3>, scalar_prefetch = 0 : i64, scratch_operands = 0 : i64, tpu.core_type = #tpu.core_type<tc>, window_params = [{transform_indices = @transform_0, window_bounds = array<i64: 4096, 32>}, {pipeline_mode = #tpu.pipeline_mode<synchronous>, transform_indices = @transform_1, window_bounds = array<i64: 33, 64>}, {pipeline_mode = #tpu.pipeline_mode<synchronous>, transform_indices = @transform_2, window_bounds = array<i64: 65, 16>}, {transform_indices = @transform_3, window_bounds = array<i64: 4096, 16>}]} {
    %c0 = arith.constant 0 : index
    %c0_0 = arith.constant 0 : index
    %0 = vector.load %arg1[%c0, %c0_0] : memref<4096x32xbf16, #tpu.memory_space<vmem>>, vector<4096x32xbf16>
    %c0_1 = arith.constant 0 : index
    %c0_2 = arith.constant 0 : index
    %1 = vector.load %arg2[%c0_1, %c0_2] : memref<33x64xbf16, #tpu.memory_space<vmem>>, vector<32x64xbf16>
    %cst = arith.constant dense<0.000000e+00> : vector<4096x64xf32>
    %2 = tpu.matmul %0, %1, %cst {dimension_numbers = #tpu.dot_dimension_numbers<[1], [0], [0], [1], [0, 0, 1, 1], [], []>} : vector<4096x32xbf16>, vector<32x64xbf16>, vector<4096x64xf32> -> vector<4096x64xf32>
    %c32 = arith.constant 32 : index
    %c0_3 = arith.constant 0 : index
    %3 = vector.load %arg2[%c32, %c0_3] : memref<33x64xbf16, #tpu.memory_space<vmem>>, vector<1x64xbf16>
    %4 = arith.extf %3 : vector<1x64xbf16> to vector<1x64xf32>
    %5 = vector.broadcast %4 : vector<1x64xf32> to vector<4096x64xf32>
    %6 = arith.addf %2, %5 : vector<4096x64xf32>
    %cst_4 = arith.constant 0.000000e+00 : f32
    %7 = vector.broadcast %cst_4 : f32 to vector<4096x64xf32>
    %8 = arith.maximumf %6, %7 : vector<4096x64xf32>
    %9 = arith.truncf %8 : vector<4096x64xf32> to vector<4096x64xbf16>
    %c0_5 = arith.constant 0 : index
    %c0_6 = arith.constant 0 : index
    %10 = vector.load %arg3[%c0_5, %c0_6] : memref<65x16xbf16, #tpu.memory_space<vmem>>, vector<64x16xbf16>
    %cst_7 = arith.constant dense<0.000000e+00> : vector<4096x16xf32>
    %11 = tpu.matmul %9, %10, %cst_7 {dimension_numbers = #tpu.dot_dimension_numbers<[1], [0], [0], [1], [0, 0, 1, 1], [], []>} : vector<4096x64xbf16>, vector<64x16xbf16>, vector<4096x16xf32> -> vector<4096x16xf32>
    %c64 = arith.constant 64 : index
    %c0_8 = arith.constant 0 : index
    %12 = vector.load %arg3[%c64, %c0_8] : memref<65x16xbf16, #tpu.memory_space<vmem>>, vector<1x16xbf16>
    %13 = arith.extf %12 : vector<1x16xbf16> to vector<1x16xf32>
    %14 = vector.broadcast %13 : vector<1x16xf32> to vector<4096x16xf32>
    %15 = arith.addf %11, %14 : vector<4096x16xf32>
    %16 = arith.truncf %15 : vector<4096x16xf32> to vector<4096x16xbf16>
    %c0_9 = arith.constant 0 : index
    %c0_10 = arith.constant 0 : index
    %17 = vector.load %arg4[%c0_9, %c0_10] : memref<4096x16xbf16, #tpu.memory_space<vmem>>, vector<4096x16xbf16>
    tpu.vector_store %arg4[%c0_9, %c0_10], %16 {strides = array<i32>} : memref<4096x16xbf16, #tpu.memory_space<vmem>>, vector<4096x16xbf16>,
    return
  }
  func.func @transform_0(%arg0: i32) -> (i32, i32) {
    %c0_i32 = arith.constant 0 : i32
    %c0_i32_0 = arith.constant 0 : i32
    return %arg0, %c0_i32 : i32, i32
  }
  func.func @transform_1(%arg0: i32) -> (i32, i32) {
    %c0_i32 = arith.constant 0 : i32
    %c0_i32_0 = arith.constant 0 : i32
    %c0_i32_1 = arith.constant 0 : i32
    return %c0_i32, %c0_i32_0 : i32, i32
  }
  func.func @transform_2(%arg0: i32) -> (i32, i32) {
    %c0_i32 = arith.constant 0 : i32
    %c0_i32_0 = arith.constant 0 : i32
    %c0_i32_1 = arith.constant 0 : i32
    return %c0_i32, %c0_i32_0 : i32, i32
  }
  func.func @transform_3(%arg0: i32) -> (i32, i32) {
    %c0_i32 = arith.constant 0 : i32
    %c0_i32_0 = arith.constant 0 : i32
    return %arg0, %c0_i32 : i32, i32
  }
}

</mosaic_0001>

<llo_original>
// kernel: sequential_forward.1
$region0: #{sequential_forward.1}
  #allocation0 [shape = 'u32[]', space=smem, size = 0x4, offset = 0x4, fixed_abs, tag = 'smem constant byte address 0x4 - core index']
  #allocation1 [shape = 'u32[72,128]{1,0:T(1,128)}', space=vmem, size = 0x9000, scoped, tag = 'internal scratch']
  %s0 = inlined_call_operand.vmem [shape: bf16[8229,32], index: 0, kind: input, shape index: {}]
  %s1 = inlined_call_operand.vmem [shape: bf16[33,64], index: 1, kind: input, shape index: {}]
  %s2 = inlined_call_operand.vmem [shape: bf16[65,16], index: 2, kind: input, shape index: {}]
  %s3 = inlined_call_operand.vmem [shape: bf16[8229,16], index: 3, kind: output, shape index: {}]
  %s4 = sld [smem:[#allocation0]]
  $region89: #{sequential_forward.1} parent=0
    _
  %s6 = ssub.s32 1, %s4
  %s7 = scalar_select 0, %s6, %s4
  $region1: #{sequential_forward.1} parent=0
    #allocation2 [shape = 'u8[2097152]{0}', space=vmem, size = 0x200000, scoped, tag = 'output window, operand 0']
    loop: start=0, step=1, limit=5
    $region2: #{sequential_forward.1} parent=1 // loop_pre_header
      _
    $region3: #{sequential_forward.1} parent=1 // loop_header
      %s9 = sphi 0, %s13
      %p10 = scmp.ge.s32.totalorder %s9, 5
      %s19 = sphi 0, %s21
      %s22 = sphi 0, %s19
      %s23 = sphi 0, %s22
      %s39 = sphi 0, %s23
      %s43 = sphi 0, %s43
      %s45 = sphi 0, %s43
      %s46 = sphi 0, %s45
      %s60 = sphi 0, %s46
      %s64 = sphi 0, %s64
      %s66 = sphi 0, %s64
      %s67 = sphi 0, %s66
      %s81 = sphi 0, %s67
      %s87 = sphi 0, %s89
      %s90 = sphi 0, %s87
      %s91 = sphi 0, %s90
      %s107 = sphi 0, %s91
    $region4: #{sequential_forward.1} parent=1 // loop_header_branch
      %12 = sbr.rel (%p10) target = $region8
    $region5: #{sequential_forward.1} parent=1 // loop_body
      %s14 = ssub.s32 %s9, 1
      %s15 = ssub.s32 %s9, 2
      %s16 = sadd.s32 %s9, 1
      %s17 = ssub.s32 %s9, %s16
      %p18 = scmp.eq.s32.totalorder %s17, 0
      %s20 = sadd.s32 %s19, 1
      %s21 = scalar_select %p18, %s19, %s20
      %p24 = pneg %p18
      %p25 = scmp.eq.s32.totalorder %s9, 2
      %p26 = por %p24, %p25
      %p27 = scmp.ne.s32.totalorder %s19, %s22
      %p28 = scmp.eq.s32.totalorder %s9, 0
      %p29 = por %p27, %p28
      %p30 = scmp.ne.s32.totalorder %s19, %s22
      %p31 = scmp.eq.s32.totalorder %s14, 2
      %p32 = por %p30, %p31
      %p33 = scmp.ne.s32.totalorder %s22, %s23
      %p34 = scmp.eq.s32.totalorder %s14, 0
      %p35 = por %p33, %p34
      %p36 = scmp.ne.s32.totalorder %s22, %s23
      %p37 = scmp.eq.s32.totalorder %s15, 2
      %p38 = por %p36, %p37
      %p40 = scmp.ne.s32.totalorder %s23, %s39
      %p41 = scmp.eq.s32.totalorder %s15, 0
      %p42 = por %p40, %p41
      %s44 = sadd.s32 %s43, 1
      %p47 = scmp.eq.s32.totalorder %s9, 2
      %p48 = scmp.ne.s32.totalorder %s43, %s45
      %p49 = scmp.eq.s32.totalorder %s9, 0
      %p50 = por %p48, %p49
      %p51 = scmp.ne.s32.totalorder %s43, %s45
      %p52 = scmp.eq.s32.totalorder %s14, 2
      %p53 = por %p51, %p52
      %p54 = scmp.ne.s32.totalorder %s45, %s46
      %p55 = scmp.eq.s32.totalorder %s14, 0
      %p56 = por %p54, %p55
      %p57 = scmp.ne.s32.totalorder %s45, %s46
      %p58 = scmp.eq.s32.totalorder %s15, 2
      %p59 = por %p57, %p58
      %p61 = scmp.ne.s32.totalorder %s46, %s60
      %p62 = scmp.eq.s32.totalorder %s15, 0
      %p63 = por %p61, %p62
      %s65 = sadd.s32 %s64, 1
      %p68 = scmp.eq.s32.totalorder %s9, 2
      %p69 = scmp.ne.s32.totalorder %s64, %s66
      %p70 = scmp.eq.s32.totalorder %s9, 0
      %p71 = por %p69, %p70
      %p72 = scmp.ne.s32.totalorder %s64, %s66
      %p73 = scmp.eq.s32.totalorder %s14, 2
      %p74 = por %p72, %p73
      %p75 = scmp.ne.s32.totalorder %s66, %s67
      %p76 = scmp.eq.s32.totalorder %s14, 0
      %p77 = por %p75, %p76
      %p78 = scmp.ne.s32.totalorder %s66, %s67
      %p79 = scmp.eq.s32.totalorder %s15, 2
      %p80 = por %p78, %p79
      %p82 = scmp.ne.s32.totalorder %s67, %s81
      %p83 = scmp.eq.s32.totalorder %s15, 0
      %p84 = por %p82, %p83
      %s85 = ssub.s32 %s9, %s16
      %p86 = scmp.eq.s32.totalorder %s85, 0
      %s88 = sadd.s32 %s87, 1
      %s89 = scalar_select %p86, %s87, %s88
      %p92 = pneg %p86
      %p93 = scmp.eq.s32.totalorder %s9, 2
      %p94 = por %p92, %p93
      %p95 = scmp.ne.s32.totalorder %s87, %s90
      %p96 = scmp.eq.s32.totalorder %s9, 0
      %p97 = por %p95, %p96
      %p98 = scmp.ne.s32.totalorder %s87, %s90
      %p99 = scmp.eq.s32.totalorder %s14, 2
      %p100 = por %p98, %p99
      %p101 = scmp.ne.s32.totalorder %s90, %s91
      %p102 = scmp.eq.s32.totalorder %s14, 0
      %p103 = por %p101, %p102
      %p104 = scmp.ne.s32.totalorder %s90, %s91
      %p105 = scmp.eq.s32.totalorder %s15, 2
      %p106 = por %p104, %p105
      %p108 = scmp.ne.s32.totalorder %s91, %s107
      %p109 = scmp.eq.s32.totalorder %s15, 0
      %p110 = por %p108, %p109
      %p111 = scmp.le.s32.totalorder 1, %s9
      %p112 = scmp.lt.s32.totalorder %s9, 4
      %p113 = pnand %p111, %p112
      %p114 = pneg %p113
      // Predicated region
      $region9: #{sequential_forward.1} parent=5 // pred_check
        _
      $region10: #{sequential_forward.1} parent=5 // pred_check_branch
        %116 = sbr.rel (%p113) target = $region12
      $region11: #{sequential_forward.1} parent=5 // pred_region
        %s117 = ssub.s32 %s9, 1
        // Predicated region
        $region13: #{sequential_forward.1} parent=11 // pred_check
          %p118 = pneg %p56
        $region14: #{sequential_forward.1} parent=11 // pred_check_branch
          %120 = sbr.rel (%p118) target = $region16
        $region15: #{sequential_forward.1} parent=11 // pred_region
          _
        $region16: #{sequential_forward.1} parent=11 // pred_fallthru
          _
        // Predicated region
        $region17: #{sequential_forward.1} parent=11 // pred_check
          %p121 = pneg %p77
        $region18: #{sequential_forward.1} parent=11 // pred_check_branch
          %123 = sbr.rel (%p121) target = $region20
        $region19: #{sequential_forward.1} parent=11 // pred_region
          _
        $region20: #{sequential_forward.1} parent=11 // pred_fallthru
          _
      $region12: #{sequential_forward.1} parent=5 // pred_fallthru
        _
      %p124 = scmp.lt.s32.totalorder %s9, 3
      // Predicated region
      $region21: #{sequential_forward.1} parent=5 // pred_check
        %p125 = pneg %p124
      $region22: #{sequential_forward.1} parent=5 // pred_check_branch
        %127 = sbr.rel (%p125) target = $region24
      $region23: #{sequential_forward.1} parent=5 // pred_region
        // Predicated region
        $region25: #{sequential_forward.1} parent=23 // pred_check
          %p128 = pneg %p29
        $region26: #{sequential_forward.1} parent=23 // pred_check_branch
          %130 = sbr.rel (%p128) target = $region28
        $region27: #{sequential_forward.1} parent=23 // pred_region
          %s131 = smul.u32 512, %s9
          %s132 = ssub.s32 1029, %s131
          %p133 = scmp.lt.s32.totalorder %s132, 512
          %s134 = scalar_select %p133, %s132, 512
          %s135 = smul.u32 4, %s134
          %p136 = scmp.lt.s32.totalorder %s131, 1028
          %s137 = scalar_select %p136, %s131, 1028
          %s138 = smul.addr %s137, 4
          %s139 = scalar_lea.vmem %s0, %s138
          %s140 = smul.u32 512, %s9
          %s141 = ssub.s32 1029, %s140
          %p142 = scmp.lt.s32.totalorder %s141, 512
          %s143 = scalar_select %p142, %s141, 512
          %s144 = smul.u32 4, %s143
        $region28: #{sequential_forward.1} parent=23 // pred_fallthru
          _
      $region24: #{sequential_forward.1} parent=5 // pred_fallthru
        _
      %p145 = scmp.le.s32.totalorder 1, %s9
      %p146 = scmp.lt.s32.totalorder %s9, 4
      %p147 = pnand %p145, %p146
      %p148 = pneg %p147
      // Predicated region
      $region29: #{sequential_forward.1} parent=5 // pred_check
        _
      $region30: #{sequential_forward.1} parent=5 // pred_check_branch
        %150 = sbr.rel (%p147) target = $region32
      $region31: #{sequential_forward.1} parent=5 // pred_region
        %s151 = ssub.s32 %s9, 1
        %s152 = smul.u32 512, %s14
        %s153 = ssub.s32 1029, %s152
        %p154 = scmp.lt.s32.totalorder %s153, 512
        %s155 = scalar_select %p154, %s153, 512
        %s156 = smul.u32 4, %s155
        %p157 = scmp.lt.s32.totalorder %s152, 1028
        %s158 = scalar_select %p157, %s152, 1028
        %s159 = smul.addr %s158, 4
        %s160 = scalar_lea.vmem %s0, %s159
        %p161 = pneg %p35
        %p162 = pneg %p32
        %p163 = pneg %p56
        %p164 = pneg %p53
        %p165 = pneg %p77
        %p166 = pneg %p74
        %p167 = pneg %p103
        %p168 = pneg %p100
        %s169 = sand.u32 %s90, 1
        %s170 = sand.u32 %s90, 1
        %s171 = smul.addr %s170, 2048
        %s172 = scalar_lea.vmem [#allocation2], %s171
        %s173 = smul.u32 512, %s14
        %s174 = ssub.s32 1029, %s173
        %p175 = scmp.lt.s32.totalorder %s174, 512
        %s176 = scalar_select %p175, %s174, 512
        %s177 = smul.u32 4, %s176
        %p178 = scmp.lt.s32.totalorder %s173, 1028
        %s179 = scalar_select %p178, %s173, 1028
        %s180 = smul.addr %s179, 4
        %s181 = scalar_lea.vmem %s0, %s180
        %s182 = smul.u32 512, %s14
        %s183 = ssub.s32 1029, %s182
        %p184 = scmp.lt.s32.totalorder %s183, 512
        %s185 = scalar_select %p184, %s183, 512
        %s186 = smul.u32 4, %s185
        %s187 = smul.u32 512, %s14
        %s188 = ssub.s32 1029, %s187
        %p189 = scmp.lt.s32.totalorder %s188, 512
        %s190 = scalar_select %p189, %s188, 512
        %s191 = smul.u32 4, %s190
        %v193 = vld [vmem:[%s181] sm:$0xf]
        %v194 = vld [vmem:[%s181 + $0x4] sm:$0xf]
        %v195 = vld [vmem:[%s181 + $0x8] sm:$0xf]
        %v196 = vld [vmem:[%s181 + $0xc] sm:$0xf]
        %v197 = vld [vmem:[%s181 + $0x10] sm:$0xf]
        %v198 = vld [vmem:[%s181 + $0x14] sm:$0xf]
        %v199 = vld [vmem:[%s181 + $0x18] sm:$0xf]
        %v200 = vld [vmem:[%s181 + $0x1c] sm:$0xf]
        %v201 = vld [vmem:[%s181 + $0x20] sm:$0xf]
        %v202 = vld [vmem:[%s181 + $0x24] sm:$0xf]
        %v203 = vld [vmem:[%s181 + $0x28] sm:$0xf]
        %v204 = vld [vmem:[%s181 + $0x2c] sm:$0xf]
        %v205 = vld [vmem:[%s181 + $0x30] sm:$0xf]
        %v206 = vld [vmem:[%s181 + $0x34] sm:$0xf]
        %v207 = vld [vmem:[%s181 + $0x38] sm:$0xf]
        %v208 = vld [vmem:[%s181 + $0x3c] sm:$0xf]
        %v209 = vld [vmem:[%s181 + $0x40] sm:$0xf]
        %v210 = vld [vmem:[%s181 + $0x44] sm:$0xf]
        %v211 = vld [vmem:[%s181 + $0x48] sm:$0xf]
        %v212 = vld [vmem:[%s181 + $0x4c] sm:$0xf]
        %v213 = vld [vmem:[%s181 + $0x50] sm:$0xf]
        %v214 = vld [vmem:[%s181 + $0x54] sm:$0xf]
        %v215 = vld [vmem:[%s181 + $0x58] sm:$0xf]
        %v216 = vld [vmem:[%s181 + $0x5c] sm:$0xf]
        %v217 = vld [vmem:[%s181 + $0x60] sm:$0xf]
        %v218 = vld [vmem:[%s181 + $0x64] sm:$0xf]
        %v219 = vld [vmem:[%s181 + $0x68] sm:$0xf]
        %v220 = vld [vmem:[%s181 + $0x6c] sm:$0xf]
        %v221 = vld [vmem:[%s181 + $0x70] sm:$0xf]
        %v222 = vld [vmem:[%s181 + $0x74] sm:$0xf]
        %v223 = vld [vmem:[%s181 + $0x78] sm:$0xf]
        %v224 = vld [vmem:[%s181 + $0x7c] sm:$0xf]
        %v225 = vld [vmem:[%s181 + $0x80] sm:$0xf]
        %v226 = vld [vmem:[%s181 + $0x84] sm:$0xf]
        %v227 = vld [vmem:[%s181 + $0x88] sm:$0xf]
        %v228 = vld [vmem:[%s181 + $0x8c] sm:$0xf]
        %v229 = vld [vmem:[%s181 + $0x90] sm:$0xf]
        %v230 = vld [vmem:[%s181 + $0x94] sm:$0xf]
        %v231 = vld [vmem:[%s181 + $0x98] sm:$0xf]
        %v232 = vld [vmem:[%s181 + $0x9c] sm:$0xf]
        %v233 = vld [vmem:[%s181 + $0xa0] sm:$0xf]
        %v234 = vld [vmem:[%s181 + $0xa4] sm:$0xf]
        %v235 = vld [vmem:[%s181 + $0xa8] sm:$0xf]
        %v236 = vld [vmem:[%s181 + $0xac] sm:$0xf]
        %v237 = vld [vmem:[%s181 + $0xb0] sm:$0xf]
        %v238 = vld [vmem:[%s181 + $0xb4] sm:$0xf]
        %v239 = vld [vmem:[%s181 + $0xb8] sm:$0xf]
        %v240 = vld [vmem:[%s181 + $0xbc] sm:$0xf]
        %v241 = vld [vmem:[%s181 + $0xc0] sm:$0xf]
        %v242 = vld [vmem:[%s181 + $0xc4] sm:$0xf]
        %v243 = vld [vmem:[%s181 + $0xc8] sm:$0xf]
        %v244 = vld [vmem:[%s181 + $0xcc] sm:$0xf]
        %v245 = vld [vmem:[%s181 + $0xd0] sm:$0xf]
        %v246 = vld [vmem:[%s181 + $0xd4] sm:$0xf]
        %v247 = vld [vmem:[%s181 + $0xd8] sm:$0xf]
        %v248 = vld [vmem:[%s181 + $0xdc] sm:$0xf]
        %v249 = vld [vmem:[%s181 + $0xe0] sm:$0xf]
        %v250 = vld [vmem:[%s181 + $0xe4] sm:$0xf]
        %v251 = vld [vmem:[%s181 + $0xe8] sm:$0xf]
        %v252 = vld [vmem:[%s181 + $0xec] sm:$0xf]
        %v253 = vld [vmem:[%s181 + $0xf0] sm:$0xf]
        %v254 = vld [vmem:[%s181 + $0xf4] sm:$0xf]
        %v255 = vld [vmem:[%s181 + $0xf8] sm:$0xf]
        %v256 = vld [vmem:[%s181 + $0xfc] sm:$0xf]
        %v257 = vld [vmem:[%s181 + $0x100] sm:$0xf]
        %v258 = vld [vmem:[%s181 + $0x104] sm:$0xf]
        %v259 = vld [vmem:[%s181 + $0x108] sm:$0xf]
        %v260 = vld [vmem:[%s181 + $0x10c] sm:$0xf]
        %v261 = vld [vmem:[%s181 + $0x110] sm:$0xf]
        %v262 = vld [vmem:[%s181 + $0x114] sm:$0xf]
        %v263 = vld [vmem:[%s181 + $0x118] sm:$0xf]
        %v264 = vld [vmem:[%s181 + $0x11c] sm:$0xf]
        %v265 = vld [vmem:[%s181 + $0x120] sm:$0xf]
        %v266 = vld [vmem:[%s181 + $0x124] sm:$0xf]
        %v267 = vld [vmem:[%s181 + $0x128] sm:$0xf]
        %v268 = vld [vmem:[%s181 + $0x12c] sm:$0xf]
        %v269 = vld [vmem:[%s181 + $0x130] sm:$0xf]
        %v270 = vld [vmem:[%s181 + $0x134] sm:$0xf]
        %v271 = vld [vmem:[%s181 + $0x138] sm:$0xf]
        %v272 = vld [vmem:[%s181 + $0x13c] sm:$0xf]
        %v273 = vld [vmem:[%s181 + $0x140] sm:$0xf]
        %v274 = vld [vmem:[%s181 + $0x144] sm:$0xf]
        %v275 = vld [vmem:[%s181 + $0x148] sm:$0xf]
        %v276 = vld [vmem:[%s181 + $0x14c] sm:$0xf]
        %v277 = vld [vmem:[%s181 + $0x150] sm:$0xf]
        %v278 = vld [vmem:[%s181 + $0x154] sm:$0xf]
        %v279 = vld [vmem:[%s181 + $0x158] sm:$0xf]
        %v280 = vld [vmem:[%s181 + $0x15c] sm:$0xf]
        %v281 = vld [vmem:[%s181 + $0x160] sm:$0xf]
        %v282 = vld [vmem:[%s181 + $0x164] sm:$0xf]
        %v283 = vld [vmem:[%s181 + $0x168] sm:$0xf]
        %v284 = vld [vmem:[%s181 + $0x16c] sm:$0xf]
        %v285 = vld [vmem:[%s181 + $0x170] sm:$0xf]
        %v286 = vld [vmem:[%s181 + $0x174] sm:$0xf]
        %v287 = vld [vmem:[%s181 + $0x178] sm:$0xf]
        %v288 = vld [vmem:[%s181 + $0x17c] sm:$0xf]
        %v289 = vld [vmem:[%s181 + $0x180] sm:$0xf]
        %v290 = vld [vmem:[%s181 + $0x184] sm:$0xf]
        %v291 = vld [vmem:[%s181 + $0x188] sm:$0xf]
        %v292 = vld [vmem:[%s181 + $0x18c] sm:$0xf]
        %v293 = vld [vmem:[%s181 + $0x190] sm:$0xf]
        %v294 = vld [vmem:[%s181 + $0x194] sm:$0xf]
        %v295 = vld [vmem:[%s181 + $0x198] sm:$0xf]
        %v296 = vld [vmem:[%s181 + $0x19c] sm:$0xf]
        %v297 = vld [vmem:[%s181 + $0x1a0] sm:$0xf]
        %v298 = vld [vmem:[%s181 + $0x1a4] sm:$0xf]
        %v299 = vld [vmem:[%s181 + $0x1a8] sm:$0xf]
        %v300 = vld [vmem:[%s181 + $0x1ac] sm:$0xf]
        %v301 = vld [vmem:[%s181 + $0x1b0] sm:$0xf]
        %v302 = vld [vmem:[%s181 + $0x1b4] sm:$0xf]
        %v303 = vld [vmem:[%s181 + $0x1b8] sm:$0xf]
        %v304 = vld [vmem:[%s181 + $0x1bc] sm:$0xf]
        %v305 = vld [vmem:[%s181 + $0x1c0] sm:$0xf]
        %v306 = vld [vmem:[%s181 + $0x1c4] sm:$0xf]
        %v307 = vld [vmem:[%s181 + $0x1c8] sm:$0xf]
        %v308 = vld [vmem:[%s181 + $0x1cc] sm:$0xf]
        %v309 = vld [vmem:[%s181 + $0x1d0] sm:$0xf]
        %v310 = vld [vmem:[%s181 + $0x1d4] sm:$0xf]
        %v311 = vld [vmem:[%s181 + $0x1d8] sm:$0xf]
        %v312 = vld [vmem:[%s181 + $0x1dc] sm:$0xf]
        %v313 = vld [vmem:[%s181 + $0x1e0] sm:$0xf]
        %v314 = vld [vmem:[%s181 + $0x1e4] sm:$0xf]
        %v315 = vld [vmem:[%s181 + $0x1e8] sm:$0xf]
        %v316 = vld [vmem:[%s181 + $0x1ec] sm:$0xf]
        %v317 = vld [vmem:[%s181 + $0x1f0] sm:$0xf]
        %v318 = vld [vmem:[%s181 + $0x1f4] sm:$0xf]
        %v319 = vld [vmem:[%s181 + $0x1f8] sm:$0xf]
        %v320 = vld [vmem:[%s181 + $0x1fc] sm:$0xf]
        %v321 = vld [vmem:[%s181 + $0x200] sm:$0xf]
        %v322 = vld [vmem:[%s181 + $0x204] sm:$0xf]
        %v323 = vld [vmem:[%s181 + $0x208] sm:$0xf]
        %v324 = vld [vmem:[%s181 + $0x20c] sm:$0xf]
        %v325 = vld [vmem:[%s181 + $0x210] sm:$0xf]
        %v326 = vld [vmem:[%s181 + $0x214] sm:$0xf]
        %v327 = vld [vmem:[%s181 + $0x218] sm:$0xf]
        %v328 = vld [vmem:[%s181 + $0x21c] sm:$0xf]
        %v329 = vld [vmem:[%s181 + $0x220] sm:$0xf]
        %v330 = vld [vmem:[%s181 + $0x224] sm:$0xf]
        %v331 = vld [vmem:[%s181 + $0x228] sm:$0xf]
        %v332 = vld [vmem:[%s181 + $0x22c] sm:$0xf]
        %v333 = vld [vmem:[%s181 + $0x230] sm:$0xf]
        %v334 = vld [vmem:[%s181 + $0x234] sm:$0xf]
        %v335 = vld [vmem:[%s181 + $0x238] sm:$0xf]
        %v336 = vld [vmem:[%s181 + $0x23c] sm:$0xf]
        %v337 = vld [vmem:[%s181 + $0x240] sm:$0xf]
        %v338 = vld [vmem:[%s181 + $0x244] sm:$0xf]
        %v339 = vld [vmem:[%s181 + $0x248] sm:$0xf]
        %v340 = vld [vmem:[%s181 + $0x24c] sm:$0xf]
        %v341 = vld [vmem:[%s181 + $0x250] sm:$0xf]
        %v342 = vld [vmem:[%s181 + $0x254] sm:$0xf]
        %v343 = vld [vmem:[%s181 + $0x258] sm:$0xf]
        %v344 = vld [vmem:[%s181 + $0x25c] sm:$0xf]
        %v345 = vld [vmem:[%s181 + $0x260] sm:$0xf]
        %v346 = vld [vmem:[%s181 + $0x264] sm:$0xf]
        %v347 = vld [vmem:[%s181 + $0x268] sm:$0xf]
        %v348 = vld [vmem:[%s181 + $0x26c] sm:$0xf]
        %v349 = vld [vmem:[%s181 + $0x270] sm:$0xf]
        %v350 = vld [vmem:[%s181 + $0x274] sm:$0xf]
        %v351 = vld [vmem:[%s181 + $0x278] sm:$0xf]
        %v352 = vld [vmem:[%s181 + $0x27c] sm:$0xf]
        %v353 = vld [vmem:[%s181 + $0x280] sm:$0xf]
        %v354 = vld [vmem:[%s181 + $0x284] sm:$0xf]
        %v355 = vld [vmem:[%s181 + $0x288] sm:$0xf]
        %v356 = vld [vmem:[%s181 + $0x28c] sm:$0xf]
        %v357 = vld [vmem:[%s181 + $0x290] sm:$0xf]
        %v358 = vld [vmem:[%s181 + $0x294] sm:$0xf]
        %v359 = vld [vmem:[%s181 + $0x298] sm:$0xf]
        %v360 = vld [vmem:[%s181 + $0x29c] sm:$0xf]
        %v361 = vld [vmem:[%s181 + $0x2a0] sm:$0xf]
        %v362 = vld [vmem:[%s181 + $0x2a4] sm:$0xf]
        %v363 = vld [vmem:[%s181 + $0x2a8] sm:$0xf]
        %v364 = vld [vmem:[%s181 + $0x2ac] sm:$0xf]
        %v365 = vld [vmem:[%s181 + $0x2b0] sm:$0xf]
        %v366 = vld [vmem:[%s181 + $0x2b4] sm:$0xf]
        %v367 = vld [vmem:[%s181 + $0x2b8] sm:$0xf]
        %v368 = vld [vmem:[%s181 + $0x2bc] sm:$0xf]
        %v369 = vld [vmem:[%s181 + $0x2c0] sm:$0xf]
        %v370 = vld [vmem:[%s181 + $0x2c4] sm:$0xf]
        %v371 = vld [vmem:[%s181 + $0x2c8] sm:$0xf]
        %v372 = vld [vmem:[%s181 + $0x2cc] sm:$0xf]
        %v373 = vld [vmem:[%s181 + $0x2d0] sm:$0xf]
        %v374 = vld [vmem:[%s181 + $0x2d4] sm:$0xf]
        %v375 = vld [vmem:[%s181 + $0x2d8] sm:$0xf]
        %v376 = vld [vmem:[%s181 + $0x2dc] sm:$0xf]
        %v377 = vld [vmem:[%s181 + $0x2e0] sm:$0xf]
        %v378 = vld [vmem:[%s181 + $0x2e4] sm:$0xf]
        %v379 = vld [vmem:[%s181 + $0x2e8] sm:$0xf]
        %v380 = vld [vmem:[%s181 + $0x2ec] sm:$0xf]
        %v381 = vld [vmem:[%s181 + $0x2f0] sm:$0xf]
        %v382 = vld [vmem:[%s181 + $0x2f4] sm:$0xf]
        %v383 = vld [vmem:[%s181 + $0x2f8] sm:$0xf]
        %v384 = vld [vmem:[%s181 + $0x2fc] sm:$0xf]
        %v385 = vld [vmem:[%s181 + $0x300] sm:$0xf]
        %v386 = vld [vmem:[%s181 + $0x304] sm:$0xf]
        %v387 = vld [vmem:[%s181 + $0x308] sm:$0xf]
        %v388 = vld [vmem:[%s181 + $0x30c] sm:$0xf]
        %v389 = vld [vmem:[%s181 + $0x310] sm:$0xf]
        %v390 = vld [vmem:[%s181 + $0x314] sm:$0xf]
        %v391 = vld [vmem:[%s181 + $0x318] sm:$0xf]
        %v392 = vld [vmem:[%s181 + $0x31c] sm:$0xf]
        %v393 = vld [vmem:[%s181 + $0x320] sm:$0xf]
        %v394 = vld [vmem:[%s181 + $0x324] sm:$0xf]
        %v395 = vld [vmem:[%s181 + $0x328] sm:$0xf]
        %v396 = vld [vmem:[%s181 + $0x32c] sm:$0xf]
        %v397 = vld [vmem:[%s181 + $0x330] sm:$0xf]
        %v398 = vld [vmem:[%s181 + $0x334] sm:$0xf]
        %v399 = vld [vmem:[%s181 + $0x338] sm:$0xf]
        %v400 = vld [vmem:[%s181 + $0x33c] sm:$0xf]
        %v401 = vld [vmem:[%s181 + $0x340] sm:$0xf]
        %v402 = vld [vmem:[%s181 + $0x344] sm:$0xf]
        %v403 = vld [vmem:[%s181 + $0x348] sm:$0xf]
        %v404 = vld [vmem:[%s181 + $0x34c] sm:$0xf]
        %v405 = vld [vmem:[%s181 + $0x350] sm:$0xf]
        %v406 = vld [vmem:[%s181 + $0x354] sm:$0xf]
        %v407 = vld [vmem:[%s181 + $0x358] sm:$0xf]
        %v408 = vld [vmem:[%s181 + $0x35c] sm:$0xf]
        %v409 = vld [vmem:[%s181 + $0x360] sm:$0xf]
        %v410 = vld [vmem:[%s181 + $0x364] sm:$0xf]
        %v411 = vld [vmem:[%s181 + $0x368] sm:$0xf]
        %v412 = vld [vmem:[%s181 + $0x36c] sm:$0xf]
        %v413 = vld [vmem:[%s181 + $0x370] sm:$0xf]
        %v414 = vld [vmem:[%s181 + $0x374] sm:$0xf]
        %v415 = vld [vmem:[%s181 + $0x378] sm:$0xf]
        %v416 = vld [vmem:[%s181 + $0x37c] sm:$0xf]
        %v417 = vld [vmem:[%s181 + $0x380] sm:$0xf]
        %v418 = vld [vmem:[%s181 + $0x384] sm:$0xf]
        %v419 = vld [vmem:[%s181 + $0x388] sm:$0xf]
        %v420 = vld [vmem:[%s181 + $0x38c] sm:$0xf]
        %v421 = vld [vmem:[%s181 + $0x390] sm:$0xf]
        %v422 = vld [vmem:[%s181 + $0x394] sm:$0xf]
        %v423 = vld [vmem:[%s181 + $0x398] sm:$0xf]
        %v424 = vld [vmem:[%s181 + $0x39c] sm:$0xf]
        %v425 = vld [vmem:[%s181 + $0x3a0] sm:$0xf]
        %v426 = vld [vmem:[%s181 + $0x3a4] sm:$0xf]
        %v427 = vld [vmem:[%s181 + $0x3a8] sm:$0xf]
        %v428 = vld [vmem:[%s181 + $0x3ac] sm:$0xf]
        %v429 = vld [vmem:[%s181 + $0x3b0] sm:$0xf]
        %v430 = vld [vmem:[%s181 + $0x3b4] sm:$0xf]
        %v431 = vld [vmem:[%s181 + $0x3b8] sm:$0xf]
        %v432 = vld [vmem:[%s181 + $0x3bc] sm:$0xf]
        %v433 = vld [vmem:[%s181 + $0x3c0] sm:$0xf]
        %v434 = vld [vmem:[%s181 + $0x3c4] sm:$0xf]
        %v435 = vld [vmem:[%s181 + $0x3c8] sm:$0xf]
        %v436 = vld [vmem:[%s181 + $0x3cc] sm:$0xf]
        %v437 = vld [vmem:[%s181 + $0x3d0] sm:$0xf]
        %v438 = vld [vmem:[%s181 + $0x3d4] sm:$0xf]
        %v439 = vld [vmem:[%s181 + $0x3d8] sm:$0xf]
        %v440 = vld [vmem:[%s181 + $0x3dc] sm:$0xf]
        %v441 = vld [vmem:[%s181 + $0x3e0] sm:$0xf]
        %v442 = vld [vmem:[%s181 + $0x3e4] sm:$0xf]
        %v443 = vld [vmem:[%s181 + $0x3e8] sm:$0xf]
        %v444 = vld [vmem:[%s181 + $0x3ec] sm:$0xf]
        %v445 = vld [vmem:[%s181 + $0x3f0] sm:$0xf]
        %v446 = vld [vmem:[%s181 + $0x3f4] sm:$0xf]
        %v447 = vld [vmem:[%s181 + $0x3f8] sm:$0xf]
        %v448 = vld [vmem:[%s181 + $0x3fc] sm:$0xf]
        %v449 = vld [vmem:[%s181 + $0x400] sm:$0xf]
        %v450 = vld [vmem:[%s181 + $0x404] sm:$0xf]
        %v451 = vld [vmem:[%s181 + $0x408] sm:$0xf]
        %v452 = vld [vmem:[%s181 + $0x40c] sm:$0xf]
        %v453 = vld [vmem:[%s181 + $0x410] sm:$0xf]
        %v454 = vld [vmem:[%s181 + $0x414] sm:$0xf]
        %v455 = vld [vmem:[%s181 + $0x418] sm:$0xf]
        %v456 = vld [vmem:[%s181 + $0x41c] sm:$0xf]
        %v457 = vld [vmem:[%s181 + $0x420] sm:$0xf]
        %v458 = vld [vmem:[%s181 + $0x424] sm:$0xf]
        %v459 = vld [vmem:[%s181 + $0x428] sm:$0xf]
        %v460 = vld [vmem:[%s181 + $0x42c] sm:$0xf]
        %v461 = vld [vmem:[%s181 + $0x430] sm:$0xf]
        %v462 = vld [vmem:[%s181 + $0x434] sm:$0xf]
        %v463 = vld [vmem:[%s181 + $0x438] sm:$0xf]
        %v464 = vld [vmem:[%s181 + $0x43c] sm:$0xf]
        %v465 = vld [vmem:[%s181 + $0x440] sm:$0xf]
        %v466 = vld [vmem:[%s181 + $0x444] sm:$0xf]
        %v467 = vld [vmem:[%s181 + $0x448] sm:$0xf]
        %v468 = vld [vmem:[%s181 + $0x44c] sm:$0xf]
        %v469 = vld [vmem:[%s181 + $0x450] sm:$0xf]
        %v470 = vld [vmem:[%s181 + $0x454] sm:$0xf]
        %v471 = vld [vmem:[%s181 + $0x458] sm:$0xf]
        %v472 = vld [vmem:[%s181 + $0x45c] sm:$0xf]
        %v473 = vld [vmem:[%s181 + $0x460] sm:$0xf]
        %v474 = vld [vmem:[%s181 + $0x464] sm:$0xf]
        %v475 = vld [vmem:[%s181 + $0x468] sm:$0xf]
        %v476 = vld [vmem:[%s181 + $0x46c] sm:$0xf]
        %v477 = vld [vmem:[%s181 + $0x470] sm:$0xf]
        %v478 = vld [vmem:[%s181 + $0x474] sm:$0xf]
        %v479 = vld [vmem:[%s181 + $0x478] sm:$0xf]
        %v480 = vld [vmem:[%s181 + $0x47c] sm:$0xf]
        %v481 = vld [vmem:[%s181 + $0x480] sm:$0xf]
        %v482 = vld [vmem:[%s181 + $0x484] sm:$0xf]
        %v483 = vld [vmem:[%s181 + $0x488] sm:$0xf]
        %v484 = vld [vmem:[%s181 + $0x48c] sm:$0xf]
        %v485 = vld [vmem:[%s181 + $0x490] sm:$0xf]
        %v486 = vld [vmem:[%s181 + $0x494] sm:$0xf]
        %v487 = vld [vmem:[%s181 + $0x498] sm:$0xf]
        %v488 = vld [vmem:[%s181 + $0x49c] sm:$0xf]
        %v489 = vld [vmem:[%s181 + $0x4a0] sm:$0xf]
        %v490 = vld [vmem:[%s181 + $0x4a4] sm:$0xf]
        %v491 = vld [vmem:[%s181 + $0x4a8] sm:$0xf]
        %v492 = vld [vmem:[%s181 + $0x4ac] sm:$0xf]
        %v493 = vld [vmem:[%s181 + $0x4b0] sm:$0xf]
        %v494 = vld [vmem:[%s181 + $0x4b4] sm:$0xf]
        %v495 = vld [vmem:[%s181 + $0x4b8] sm:$0xf]
        %v496 = vld [vmem:[%s181 + $0x4bc] sm:$0xf]
        %v497 = vld [vmem:[%s181 + $0x4c0] sm:$0xf]
        %v498 = vld [vmem:[%s181 + $0x4c4] sm:$0xf]
        %v499 = vld [vmem:[%s181 + $0x4c8] sm:$0xf]
        %v500 = vld [vmem:[%s181 + $0x4cc] sm:$0xf]
        %v501 = vld [vmem:[%s181 + $0x4d0] sm:$0xf]
        %v502 = vld [vmem:[%s181 + $0x4d4] sm:$0xf]
        %v503 = vld [vmem:[%s181 + $0x4d8] sm:$0xf]
        %v504 = vld [vmem:[%s181 + $0x4dc] sm:$0xf]
        %v505 = vld [vmem:[%s181 + $0x4e0] sm:$0xf]
        %v506 = vld [vmem:[%s181 + $0x4e4] sm:$0xf]
        %v507 = vld [vmem:[%s181 + $0x4e8] sm:$0xf]
        %v508 = vld [vmem:[%s181 + $0x4ec] sm:$0xf]
        %v509 = vld [vmem:[%s181 + $0x4f0] sm:$0xf]
        %v510 = vld [vmem:[%s181 + $0x4f4] sm:$0xf]
        %v511 = vld [vmem:[%s181 + $0x4f8] sm:$0xf]
        %v512 = vld [vmem:[%s181 + $0x4fc] sm:$0xf]
        %v513 = vld [vmem:[%s181 + $0x500] sm:$0xf]
        %v514 = vld [vmem:[%s181 + $0x504] sm:$0xf]
        %v515 = vld [vmem:[%s181 + $0x508] sm:$0xf]
        %v516 = vld [vmem:[%s181 + $0x50c] sm:$0xf]
        %v517 = vld [vmem:[%s181 + $0x510] sm:$0xf]
        %v518 = vld [vmem:[%s181 + $0x514] sm:$0xf]
        %v519 = vld [vmem:[%s181 + $0x518] sm:$0xf]
        %v520 = vld [vmem:[%s181 + $0x51c] sm:$0xf]
        %v521 = vld [vmem:[%s181 + $0x520] sm:$0xf]
        %v522 = vld [vmem:[%s181 + $0x524] sm:$0xf]
        %v523 = vld [vmem:[%s181 + $0x528] sm:$0xf]
        %v524 = vld [vmem:[%s181 + $0x52c] sm:$0xf]
        %v525 = vld [vmem:[%s181 + $0x530] sm:$0xf]
        %v526 = vld [vmem:[%s181 + $0x534] sm:$0xf]
        %v527 = vld [vmem:[%s181 + $0x538] sm:$0xf]
        %v528 = vld [vmem:[%s181 + $0x53c] sm:$0xf]
        %v529 = vld [vmem:[%s181 + $0x540] sm:$0xf]
        %v530 = vld [vmem:[%s181 + $0x544] sm:$0xf]
        %v531 = vld [vmem:[%s181 + $0x548] sm:$0xf]
        %v532 = vld [vmem:[%s181 + $0x54c] sm:$0xf]
        %v533 = vld [vmem:[%s181 + $0x550] sm:$0xf]
        %v534 = vld [vmem:[%s181 + $0x554] sm:$0xf]
        %v535 = vld [vmem:[%s181 + $0x558] sm:$0xf]
        %v536 = vld [vmem:[%s181 + $0x55c] sm:$0xf]
        %v537 = vld [vmem:[%s181 + $0x560] sm:$0xf]
        %v538 = vld [vmem:[%s181 + $0x564] sm:$0xf]
        %v539 = vld [vmem:[%s181 + $0x568] sm:$0xf]
        %v540 = vld [vmem:[%s181 + $0x56c] sm:$0xf]
        %v541 = vld [vmem:[%s181 + $0x570] sm:$0xf]
        %v542 = vld [vmem:[%s181 + $0x574] sm:$0xf]
        %v543 = vld [vmem:[%s181 + $0x578] sm:$0xf]
        %v544 = vld [vmem:[%s181 + $0x57c] sm:$0xf]
        %v545 = vld [vmem:[%s181 + $0x580] sm:$0xf]
        %v546 = vld [vmem:[%s181 + $0x584] sm:$0xf]
        %v547 = vld [vmem:[%s181 + $0x588] sm:$0xf]
        %v548 = vld [vmem:[%s181 + $0x58c] sm:$0xf]
        %v549 = vld [vmem:[%s181 + $0x590] sm:$0xf]
        %v550 = vld [vmem:[%s181 + $0x594] sm:$0xf]
        %v551 = vld [vmem:[%s181 + $0x598] sm:$0xf]
        %v552 = vld [vmem:[%s181 + $0x59c] sm:$0xf]
        %v553 = vld [vmem:[%s181 + $0x5a0] sm:$0xf]
        %v554 = vld [vmem:[%s181 + $0x5a4] sm:$0xf]
        %v555 = vld [vmem:[%s181 + $0x5a8] sm:$0xf]
        %v556 = vld [vmem:[%s181 + $0x5ac] sm:$0xf]
        %v557 = vld [vmem:[%s181 + $0x5b0] sm:$0xf]
        %v558 = vld [vmem:[%s181 + $0x5b4] sm:$0xf]
        %v559 = vld [vmem:[%s181 + $0x5b8] sm:$0xf]
        %v560 = vld [vmem:[%s181 + $0x5bc] sm:$0xf]
        %v561 = vld [vmem:[%s181 + $0x5c0] sm:$0xf]
        %v562 = vld [vmem:[%s181 + $0x5c4] sm:$0xf]
        %v563 = vld [vmem:[%s181 + $0x5c8] sm:$0xf]
        %v564 = vld [vmem:[%s181 + $0x5cc] sm:$0xf]
        %v565 = vld [vmem:[%s181 + $0x5d0] sm:$0xf]
        %v566 = vld [vmem:[%s181 + $0x5d4] sm:$0xf]
        %v567 = vld [vmem:[%s181 + $0x5d8] sm:$0xf]
        %v568 = vld [vmem:[%s181 + $0x5dc] sm:$0xf]
        %v569 = vld [vmem:[%s181 + $0x5e0] sm:$0xf]
        %v570 = vld [vmem:[%s181 + $0x5e4] sm:$0xf]
        %v571 = vld [vmem:[%s181 + $0x5e8] sm:$0xf]
        %v572 = vld [vmem:[%s181 + $0x5ec] sm:$0xf]
        %v573 = vld [vmem:[%s181 + $0x5f0] sm:$0xf]
        %v574 = vld [vmem:[%s181 + $0x5f4] sm:$0xf]
        %v575 = vld [vmem:[%s181 + $0x5f8] sm:$0xf]
        %v576 = vld [vmem:[%s181 + $0x5fc] sm:$0xf]
        %v577 = vld [vmem:[%s181 + $0x600] sm:$0xf]
        %v578 = vld [vmem:[%s181 + $0x604] sm:$0xf]
        %v579 = vld [vmem:[%s181 + $0x608] sm:$0xf]
        %v580 = vld [vmem:[%s181 + $0x60c] sm:$0xf]
        %v581 = vld [vmem:[%s181 + $0x610] sm:$0xf]
        %v582 = vld [vmem:[%s181 + $0x614] sm:$0xf]
        %v583 = vld [vmem:[%s181 + $0x618] sm:$0xf]
        %v584 = vld [vmem:[%s181 + $0x61c] sm:$0xf]
        %v585 = vld [vmem:[%s181 + $0x620] sm:$0xf]
        %v586 = vld [vmem:[%s181 + $0x624] sm:$0xf]
        %v587 = vld [vmem:[%s181 + $0x628] sm:$0xf]
        %v588 = vld [vmem:[%s181 + $0x62c] sm:$0xf]
        %v589 = vld [vmem:[%s181 + $0x630] sm:$0xf]
        %v590 = vld [vmem:[%s181 + $0x634] sm:$0xf]
        %v591 = vld [vmem:[%s181 + $0x638] sm:$0xf]
        %v592 = vld [vmem:[%s181 + $0x63c] sm:$0xf]
        %v593 = vld [vmem:[%s181 + $0x640] sm:$0xf]
        %v594 = vld [vmem:[%s181 + $0x644] sm:$0xf]
        %v595 = vld [vmem:[%s181 + $0x648] sm:$0xf]
        %v596 = vld [vmem:[%s181 + $0x64c] sm:$0xf]
        %v597 = vld [vmem:[%s181 + $0x650] sm:$0xf]
        %v598 = vld [vmem:[%s181 + $0x654] sm:$0xf]
        %v599 = vld [vmem:[%s181 + $0x658] sm:$0xf]
        %v600 = vld [vmem:[%s181 + $0x65c] sm:$0xf]
        %v601 = vld [vmem:[%s181 + $0x660] sm:$0xf]
        %v602 = vld [vmem:[%s181 + $0x664] sm:$0xf]
        %v603 = vld [vmem:[%s181 + $0x668] sm:$0xf]
        %v604 = vld [vmem:[%s181 + $0x66c] sm:$0xf]
        %v605 = vld [vmem:[%s181 + $0x670] sm:$0xf]
        %v606 = vld [vmem:[%s181 + $0x674] sm:$0xf]
        %v607 = vld [vmem:[%s181 + $0x678] sm:$0xf]
        %v608 = vld [vmem:[%s181 + $0x67c] sm:$0xf]
        %v609 = vld [vmem:[%s181 + $0x680] sm:$0xf]
        %v610 = vld [vmem:[%s181 + $0x684] sm:$0xf]
        %v611 = vld [vmem:[%s181 + $0x688] sm:$0xf]
        %v612 = vld [vmem:[%s181 + $0x68c] sm:$0xf]
        %v613 = vld [vmem:[%s181 + $0x690] sm:$0xf]
        %v614 = vld [vmem:[%s181 + $0x694] sm:$0xf]
        %v615 = vld [vmem:[%s181 + $0x698] sm:$0xf]
        %v616 = vld [vmem:[%s181 + $0x69c] sm:$0xf]
        %v617 = vld [vmem:[%s181 + $0x6a0] sm:$0xf]
        %v618 = vld [vmem:[%s181 + $0x6a4] sm:$0xf]
        %v619 = vld [vmem:[%s181 + $0x6a8] sm:$0xf]
        %v620 = vld [vmem:[%s181 + $0x6ac] sm:$0xf]
        %v621 = vld [vmem:[%s181 + $0x6b0] sm:$0xf]
        %v622 = vld [vmem:[%s181 + $0x6b4] sm:$0xf]
        %v623 = vld [vmem:[%s181 + $0x6b8] sm:$0xf]
        %v624 = vld [vmem:[%s181 + $0x6bc] sm:$0xf]
        %v625 = vld [vmem:[%s181 + $0x6c0] sm:$0xf]
        %v626 = vld [vmem:[%s181 + $0x6c4] sm:$0xf]
        %v627 = vld [vmem:[%s181 + $0x6c8] sm:$0xf]
        %v628 = vld [vmem:[%s181 + $0x6cc] sm:$0xf]
        %v629 = vld [vmem:[%s181 + $0x6d0] sm:$0xf]
        %v630 = vld [vmem:[%s181 + $0x6d4] sm:$0xf]
        %v631 = vld [vmem:[%s181 + $0x6d8] sm:$0xf]
        %v632 = vld [vmem:[%s181 + $0x6dc] sm:$0xf]
        %v633 = vld [vmem:[%s181 + $0x6e0] sm:$0xf]
        %v634 = vld [vmem:[%s181 + $0x6e4] sm:$0xf]
        %v635 = vld [vmem:[%s181 + $0x6e8] sm:$0xf]
        %v636 = vld [vmem:[%s181 + $0x6ec] sm:$0xf]
        %v637 = vld [vmem:[%s181 + $0x6f0] sm:$0xf]
        %v638 = vld [vmem:[%s181 + $0x6f4] sm:$0xf]
        %v639 = vld [vmem:[%s181 + $0x6f8] sm:$0xf]
        %v640 = vld [vmem:[%s181 + $0x6fc] sm:$0xf]
        %v641 = vld [vmem:[%s181 + $0x700] sm:$0xf]
        %v642 = vld [vmem:[%s181 + $0x704] sm:$0xf]
        %v643 = vld [vmem:[%s181 + $0x708] sm:$0xf]
        %v644 = vld [vmem:[%s181 + $0x70c] sm:$0xf]
        %v645 = vld [vmem:[%s181 + $0x710] sm:$0xf]
        %v646 = vld [vmem:[%s181 + $0x714] sm:$0xf]
        %v647 = vld [vmem:[%s181 + $0x718] sm:$0xf]
        %v648 = vld [vmem:[%s181 + $0x71c] sm:$0xf]
        %v649 = vld [vmem:[%s181 + $0x720] sm:$0xf]
        %v650 = vld [vmem:[%s181 + $0x724] sm:$0xf]
        %v651 = vld [vmem:[%s181 + $0x728] sm:$0xf]
        %v652 = vld [vmem:[%s181 + $0x72c] sm:$0xf]
        %v653 = vld [vmem:[%s181 + $0x730] sm:$0xf]
        %v654 = vld [vmem:[%s181 + $0x734] sm:$0xf]
        %v655 = vld [vmem:[%s181 + $0x738] sm:$0xf]
        %v656 = vld [vmem:[%s181 + $0x73c] sm:$0xf]
        %v657 = vld [vmem:[%s181 + $0x740] sm:$0xf]
        %v658 = vld [vmem:[%s181 + $0x744] sm:$0xf]
        %v659 = vld [vmem:[%s181 + $0x748] sm:$0xf]
        %v660 = vld [vmem:[%s181 + $0x74c] sm:$0xf]
        %v661 = vld [vmem:[%s181 + $0x750] sm:$0xf]
        %v662 = vld [vmem:[%s181 + $0x754] sm:$0xf]
        %v663 = vld [vmem:[%s181 + $0x758] sm:$0xf]
        %v664 = vld [vmem:[%s181 + $0x75c] sm:$0xf]
        %v665 = vld [vmem:[%s181 + $0x760] sm:$0xf]
        %v666 = vld [vmem:[%s181 + $0x764] sm:$0xf]
        %v667 = vld [vmem:[%s181 + $0x768] sm:$0xf]
        %v668 = vld [vmem:[%s181 + $0x76c] sm:$0xf]
        %v669 = vld [vmem:[%s181 + $0x770] sm:$0xf]
        %v670 = vld [vmem:[%s181 + $0x774] sm:$0xf]
        %v671 = vld [vmem:[%s181 + $0x778] sm:$0xf]
        %v672 = vld [vmem:[%s181 + $0x77c] sm:$0xf]
        %v673 = vld [vmem:[%s181 + $0x780] sm:$0xf]
        %v674 = vld [vmem:[%s181 + $0x784] sm:$0xf]
        %v675 = vld [vmem:[%s181 + $0x788] sm:$0xf]
        %v676 = vld [vmem:[%s181 + $0x78c] sm:$0xf]
        %v677 = vld [vmem:[%s181 + $0x790] sm:$0xf]
        %v678 = vld [vmem:[%s181 + $0x794] sm:$0xf]
        %v679 = vld [vmem:[%s181 + $0x798] sm:$0xf]
        %v680 = vld [vmem:[%s181 + $0x79c] sm:$0xf]
        %v681 = vld [vmem:[%s181 + $0x7a0] sm:$0xf]
        %v682 = vld [vmem:[%s181 + $0x7a4] sm:$0xf]
        %v683 = vld [vmem:[%s181 + $0x7a8] sm:$0xf]
        %v684 = vld [vmem:[%s181 + $0x7ac] sm:$0xf]
        %v685 = vld [vmem:[%s181 + $0x7b0] sm:$0xf]
        %v686 = vld [vmem:[%s181 + $0x7b4] sm:$0xf]
        %v687 = vld [vmem:[%s181 + $0x7b8] sm:$0xf]
        %v688 = vld [vmem:[%s181 + $0x7bc] sm:$0xf]
        %v689 = vld [vmem:[%s181 + $0x7c0] sm:$0xf]
        %v690 = vld [vmem:[%s181 + $0x7c4] sm:$0xf]
        %v691 = vld [vmem:[%s181 + $0x7c8] sm:$0xf]
        %v692 = vld [vmem:[%s181 + $0x7cc] sm:$0xf]
        %v693 = vld [vmem:[%s181 + $0x7d0] sm:$0xf]
        %v694 = vld [vmem:[%s181 + $0x7d4] sm:$0xf]
        %v695 = vld [vmem:[%s181 + $0x7d8] sm:$0xf]
        %v696 = vld [vmem:[%s181 + $0x7dc] sm:$0xf]
        %v697 = vld [vmem:[%s181 + $0x7e0] sm:$0xf]
        %v698 = vld [vmem:[%s181 + $0x7e4] sm:$0xf]
        %v699 = vld [vmem:[%s181 + $0x7e8] sm:$0xf]
        %v700 = vld [vmem:[%s181 + $0x7ec] sm:$0xf]
        %v701 = vld [vmem:[%s181 + $0x7f0] sm:$0xf]
        %v702 = vld [vmem:[%s181 + $0x7f4] sm:$0xf]
        %v703 = vld [vmem:[%s181 + $0x7f8] sm:$0xf]
        %v704 = vld [vmem:[%s181 + $0x7fc] sm:$0xf]
        %v705 = vld [vmem:[%s1] sm:$0xf]
        %v706 = vld [vmem:[%s1 + $0x4] sm:$0xf]
        %v707 = vld [vmem:[%s1 + $0x8] sm:$0xf]
        %v708 = vld [vmem:[%s1 + $0xc] sm:$0xf]
        %v709 = vld [vmem:[%s1 + $0x10] sm:$0x1]
        %v710 = vunpack.c.l.bf16 %v709
        %v711 = vperm.slane %v710, 0
        %v1224 = vunpack.c.l.b16 %v193
        %v1225 = vunpack.c.l.b16 %v194
        %v1226 = vunpack.c.l.b16 %v195
        %v1227 = vunpack.c.l.b16 %v196
        %v1228 = vunpack.c.l.b16 %v197
        %v1229 = vunpack.c.l.b16 %v198
        %v1230 = vunpack.c.l.b16 %v199
        %v1231 = vunpack.c.l.b16 %v200
        %v1232 = vunpack.c.l.b16 %v201
        %v1233 = vunpack.c.l.b16 %v202
        %v1234 = vunpack.c.l.b16 %v203
        %v1235 = vunpack.c.l.b16 %v204
        %v1236 = vunpack.c.l.b16 %v205
        %v1237 = vunpack.c.l.b16 %v206
        %v1238 = vunpack.c.l.b16 %v207
        %v1239 = vunpack.c.l.b16 %v208
        %v1240 = vunpack.c.l.b16 %v209
        %v1241 = vunpack.c.l.b16 %v210
        %v1242 = vunpack.c.l.b16 %v211
        %v1243 = vunpack.c.l.b16 %v212
        %v1244 = vunpack.c.l.b16 %v213
        %v1245 = vunpack.c.l.b16 %v214
        %v1246 = vunpack.c.l.b16 %v215
        %v1247 = vunpack.c.l.b16 %v216
        %v1248 = vunpack.c.l.b16 %v217
        %v1249 = vunpack.c.l.b16 %v218
        %v1250 = vunpack.c.l.b16 %v219
        %v1251 = vunpack.c.l.b16 %v220
        %v1252 = vunpack.c.l.b16 %v221
        %v1253 = vunpack.c.l.b16 %v222
        %v1254 = vunpack.c.l.b16 %v223
        %v1255 = vunpack.c.l.b16 %v224
        %v1256 = vunpack.c.l.b16 %v225
        %v1257 = vunpack.c.l.b16 %v226
        %v1258 = vunpack.c.l.b16 %v227
        %v1259 = vunpack.c.l.b16 %v228
        %v1260 = vunpack.c.l.b16 %v229
        %v1261 = vunpack.c.l.b16 %v230
        %v1262 = vunpack.c.l.b16 %v231
        %v1263 = vunpack.c.l.b16 %v232
        %v1264 = vunpack.c.l.b16 %v233
        %v1265 = vunpack.c.l.b16 %v234
        %v1266 = vunpack.c.l.b16 %v235
        %v1267 = vunpack.c.l.b16 %v236
        %v1268 = vunpack.c.l.b16 %v237
        %v1269 = vunpack.c.l.b16 %v238
        %v1270 = vunpack.c.l.b16 %v239
        %v1271 = vunpack.c.l.b16 %v240
        %v1272 = vunpack.c.l.b16 %v241
        %v1273 = vunpack.c.l.b16 %v242
        %v1274 = vunpack.c.l.b16 %v243
        %v1275 = vunpack.c.l.b16 %v244
        %v1276 = vunpack.c.l.b16 %v245
        %v1277 = vunpack.c.l.b16 %v246
        %v1278 = vunpack.c.l.b16 %v247
        %v1279 = vunpack.c.l.b16 %v248
        %v1280 = vunpack.c.l.b16 %v249
        %v1281 = vunpack.c.l.b16 %v250
        %v1282 = vunpack.c.l.b16 %v251
        %v1283 = vunpack.c.l.b16 %v252
        %v1284 = vunpack.c.l.b16 %v253
        %v1285 = vunpack.c.l.b16 %v254
        %v1286 = vunpack.c.l.b16 %v255
        %v1287 = vunpack.c.l.b16 %v256
        %v1288 = vunpack.c.l.b16 %v257
        %v1289 = vunpack.c.l.b16 %v258
        %v1290 = vunpack.c.l.b16 %v259
        %v1291 = vunpack.c.l.b16 %v260
        %v1292 = vunpack.c.l.b16 %v261
        %v1293 = vunpack.c.l.b16 %v262
        %v1294 = vunpack.c.l.b16 %v263
        %v1295 = vunpack.c.l.b16 %v264
        %v1296 = vunpack.c.l.b16 %v265
        %v1297 = vunpack.c.l.b16 %v266
        %v1298 = vunpack.c.l.b16 %v267
        %v1299 = vunpack.c.l.b16 %v268
        %v1300 = vunpack.c.l.b16 %v269
        %v1301 = vunpack.c.l.b16 %v270
        %v1302 = vunpack.c.l.b16 %v271
        %v1303 = vunpack.c.l.b16 %v272
        %v1304 = vunpack.c.l.b16 %v273
        %v1305 = vunpack.c.l.b16 %v274
        %v1306 = vunpack.c.l.b16 %v275
        %v1307 = vunpack.c.l.b16 %v276
        %v1308 = vunpack.c.l.b16 %v277
        %v1309 = vunpack.c.l.b16 %v278
        %v1310 = vunpack.c.l.b16 %v279
        %v1311 = vunpack.c.l.b16 %v280
        %v1312 = vunpack.c.l.b16 %v281
        %v1313 = vunpack.c.l.b16 %v282
        %v1314 = vunpack.c.l.b16 %v283
        %v1315 = vunpack.c.l.b16 %v284
        %v1316 = vunpack.c.l.b16 %v285
        %v1317 = vunpack.c.l.b16 %v286
        %v1318 = vunpack.c.l.b16 %v287
        %v1319 = vunpack.c.l.b16 %v288
        %v1320 = vunpack.c.l.b16 %v289
        %v1321 = vunpack.c.l.b16 %v290
        %v1322 = vunpack.c.l.b16 %v291
        %v1323 = vunpack.c.l.b16 %v292
        %v1324 = vunpack.c.l.b16 %v293
        %v1325 = vunpack.c.l.b16 %v294
        %v1326 = vunpack.c.l.b16 %v295
        %v1327 = vunpack.c.l.b16 %v296
        %v1328 = vunpack.c.l.b16 %v297
        %v1329 = vunpack.c.l.b16 %v298
        %v1330 = vunpack.c.l.b16 %v299
        %v1331 = vunpack.c.l.b16 %v300
        %v1332 = vunpack.c.l.b16 %v301
        %v1333 = vunpack.c.l.b16 %v302
        %v1334 = vunpack.c.l.b16 %v303
        %v1335 = vunpack.c.l.b16 %v304
        %v1336 = vunpack.c.l.b16 %v305
        %v1337 = vunpack.c.l.b16 %v306
        %v1338 = vunpack.c.l.b16 %v307
        %v1339 = vunpack.c.l.b16 %v308
        %v1340 = vunpack.c.l.b16 %v309
        %v1341 = vunpack.c.l.b16 %v310
        %v1342 = vunpack.c.l.b16 %v311
        %v1343 = vunpack.c.l.b16 %v312
        %v1344 = vunpack.c.l.b16 %v313
        %v1345 = vunpack.c.l.b16 %v314
        %v1346 = vunpack.c.l.b16 %v315
        %v1347 = vunpack.c.l.b16 %v316
        %v1348 = vunpack.c.l.b16 %v317
        %v1349 = vunpack.c.l.b16 %v318
        %v1350 = vunpack.c.l.b16 %v319
        %v1351 = vunpack.c.l.b16 %v320
        %v1352 = vunpack.c.l.b16 %v321
        %v1353 = vunpack.c.l.b16 %v322
        %v1354 = vunpack.c.l.b16 %v323
        %v1355 = vunpack.c.l.b16 %v324
        %v1356 = vunpack.c.l.b16 %v325
        %v1357 = vunpack.c.l.b16 %v326
        %v1358 = vunpack.c.l.b16 %v327
        %v1359 = vunpack.c.l.b16 %v328
        %v1360 = vunpack.c.l.b16 %v329
        %v1361 = vunpack.c.l.b16 %v330
        %v1362 = vunpack.c.l.b16 %v331
        %v1363 = vunpack.c.l.b16 %v332
        %v1364 = vunpack.c.l.b16 %v333
        %v1365 = vunpack.c.l.b16 %v334
        %v1366 = vunpack.c.l.b16 %v335
        %v1367 = vunpack.c.l.b16 %v336
        %v1368 = vunpack.c.l.b16 %v337
        %v1369 = vunpack.c.l.b16 %v338
        %v1370 = vunpack.c.l.b16 %v339
        %v1371 = vunpack.c.l.b16 %v340
        %v1372 = vunpack.c.l.b16 %v341
        %v1373 = vunpack.c.l.b16 %v342
        %v1374 = vunpack.c.l.b16 %v343
        %v1375 = vunpack.c.l.b16 %v344
        %v1376 = vunpack.c.l.b16 %v345
        %v1377 = vunpack.c.l.b16 %v346
        %v1378 = vunpack.c.l.b16 %v347
        %v1379 = vunpack.c.l.b16 %v348
        %v1380 = vunpack.c.l.b16 %v349
        %v1381 = vunpack.c.l.b16 %v350
        %v1382 = vunpack.c.l.b16 %v351
        %v1383 = vunpack.c.l.b16 %v352
        %v1384 = vunpack.c.l.b16 %v353
        %v1385 = vunpack.c.l.b16 %v354
        %v1386 = vunpack.c.l.b16 %v355
        %v1387 = vunpack.c.l.b16 %v356
        %v1388 = vunpack.c.l.b16 %v357
        %v1389 = vunpack.c.l.b16 %v358
        %v1390 = vunpack.c.l.b16 %v359
        %v1391 = vunpack.c.l.b16 %v360
        %v1392 = vunpack.c.l.b16 %v361
        %v1393 = vunpack.c.l.b16 %v362
        %v1394 = vunpack.c.l.b16 %v363
        %v1395 = vunpack.c.l.b16 %v364
        %v1396 = vunpack.c.l.b16 %v365
        %v1397 = vunpack.c.l.b16 %v366
        %v1398 = vunpack.c.l.b16 %v367
        %v1399 = vunpack.c.l.b16 %v368
        %v1400 = vunpack.c.l.b16 %v369
        %v1401 = vunpack.c.l.b16 %v370
        %v1402 = vunpack.c.l.b16 %v371
        %v1403 = vunpack.c.l.b16 %v372
        %v1404 = vunpack.c.l.b16 %v373
        %v1405 = vunpack.c.l.b16 %v374
        %v1406 = vunpack.c.l.b16 %v375
        %v1407 = vunpack.c.l.b16 %v376
        %v1408 = vunpack.c.l.b16 %v377
        %v1409 = vunpack.c.l.b16 %v378
        %v1410 = vunpack.c.l.b16 %v379
        %v1411 = vunpack.c.l.b16 %v380
        %v1412 = vunpack.c.l.b16 %v381
        %v1413 = vunpack.c.l.b16 %v382
        %v1414 = vunpack.c.l.b16 %v383
        %v1415 = vunpack.c.l.b16 %v384
        %v1416 = vunpack.c.l.b16 %v385
        %v1417 = vunpack.c.l.b16 %v386
        %v1418 = vunpack.c.l.b16 %v387
        %v1419 = vunpack.c.l.b16 %v388
        %v1420 = vunpack.c.l.b16 %v389
        %v1421 = vunpack.c.l.b16 %v390
        %v1422 = vunpack.c.l.b16 %v391
        %v1423 = vunpack.c.l.b16 %v392
        %v1424 = vunpack.c.l.b16 %v393
        %v1425 = vunpack.c.l.b16 %v394
        %v1426 = vunpack.c.l.b16 %v395
        %v1427 = vunpack.c.l.b16 %v396
        %v1428 = vunpack.c.l.b16 %v397
        %v1429 = vunpack.c.l.b16 %v398
        %v1430 = vunpack.c.l.b16 %v399
        %v1431 = vunpack.c.l.b16 %v400
        %v1432 = vunpack.c.l.b16 %v401
        %v1433 = vunpack.c.l.b16 %v402
        %v1434 = vunpack.c.l.b16 %v403
        %v1435 = vunpack.c.l.b16 %v404
        %v1436 = vunpack.c.l.b16 %v405
        %v1437 = vunpack.c.l.b16 %v406
        %v1438 = vunpack.c.l.b16 %v407
        %v1439 = vunpack.c.l.b16 %v408
        %v1440 = vunpack.c.l.b16 %v409
        %v1441 = vunpack.c.l.b16 %v410
        %v1442 = vunpack.c.l.b16 %v411
        %v1443 = vunpack.c.l.b16 %v412
        %v1444 = vunpack.c.l.b16 %v413
        %v1445 = vunpack.c.l.b16 %v414
        %v1446 = vunpack.c.l.b16 %v415
        %v1447 = vunpack.c.l.b16 %v416
        %v1448 = vunpack.c.l.b16 %v417
        %v1449 = vunpack.c.l.b16 %v418
        %v1450 = vunpack.c.l.b16 %v419
        %v1451 = vunpack.c.l.b16 %v420
        %v1452 = vunpack.c.l.b16 %v421
        %v1453 = vunpack.c.l.b16 %v422
        %v1454 = vunpack.c.l.b16 %v423
        %v1455 = vunpack.c.l.b16 %v424
        %v1456 = vunpack.c.l.b16 %v425
        %v1457 = vunpack.c.l.b16 %v426
        %v1458 = vunpack.c.l.b16 %v427
        %v1459 = vunpack.c.l.b16 %v428
        %v1460 = vunpack.c.l.b16 %v429
        %v1461 = vunpack.c.l.b16 %v430
        %v1462 = vunpack.c.l.b16 %v431
        %v1463 = vunpack.c.l.b16 %v432
        %v1464 = vunpack.c.l.b16 %v433
        %v1465 = vunpack.c.l.b16 %v434
        %v1466 = vunpack.c.l.b16 %v435
        %v1467 = vunpack.c.l.b16 %v436
        %v1468 = vunpack.c.l.b16 %v437
        %v1469 = vunpack.c.l.b16 %v438
        %v1470 = vunpack.c.l.b16 %v439
        %v1471 = vunpack.c.l.b16 %v440
        %v1472 = vunpack.c.l.b16 %v441
        %v1473 = vunpack.c.l.b16 %v442
        %v1474 = vunpack.c.l.b16 %v443
        %v1475 = vunpack.c.l.b16 %v444
        %v1476 = vunpack.c.l.b16 %v445
        %v1477 = vunpack.c.l.b16 %v446
        %v1478 = vunpack.c.l.b16 %v447
        %v1479 = vunpack.c.l.b16 %v448
        %v1480 = vunpack.c.l.b16 %v449
        %v1481 = vunpack.c.l.b16 %v450
        %v1482 = vunpack.c.l.b16 %v451
        %v1483 = vunpack.c.l.b16 %v452
        %v1484 = vunpack.c.l.b16 %v453
        %v1485 = vunpack.c.l.b16 %v454
        %v1486 = vunpack.c.l.b16 %v455
        %v1487 = vunpack.c.l.b16 %v456
        %v1488 = vunpack.c.l.b16 %v457
        %v1489 = vunpack.c.l.b16 %v458
        %v1490 = vunpack.c.l.b16 %v459
        %v1491 = vunpack.c.l.b16 %v460
        %v1492 = vunpack.c.l.b16 %v461
        %v1493 = vunpack.c.l.b16 %v462
        %v1494 = vunpack.c.l.b16 %v463
        %v1495 = vunpack.c.l.b16 %v464
        %v1496 = vunpack.c.l.b16 %v465
        %v1497 = vunpack.c.l.b16 %v466
        %v1498 = vunpack.c.l.b16 %v467
        %v1499 = vunpack.c.l.b16 %v468
        %v1500 = vunpack.c.l.b16 %v469
        %v1501 = vunpack.c.l.b16 %v470
        %v1502 = vunpack.c.l.b16 %v471
        %v1503 = vunpack.c.l.b16 %v472
        %v1504 = vunpack.c.l.b16 %v473
        %v1505 = vunpack.c.l.b16 %v474
        %v1506 = vunpack.c.l.b16 %v475
        %v1507 = vunpack.c.l.b16 %v476
        %v1508 = vunpack.c.l.b16 %v477
        %v1509 = vunpack.c.l.b16 %v478
        %v1510 = vunpack.c.l.b16 %v479
        %v1511 = vunpack.c.l.b16 %v480
        %v1512 = vunpack.c.l.b16 %v481
        %v1513 = vunpack.c.l.b16 %v482
        %v1514 = vunpack.c.l.b16 %v483
        %v1515 = vunpack.c.l.b16 %v484
        %v1516 = vunpack.c.l.b16 %v485
        %v1517 = vunpack.c.l.b16 %v486
        %v1518 = vunpack.c.l.b16 %v487
        %v1519 = vunpack.c.l.b16 %v488
        %v1520 = vunpack.c.l.b16 %v489
        %v1521 = vunpack.c.l.b16 %v490
        %v1522 = vunpack.c.l.b16 %v491
        %v1523 = vunpack.c.l.b16 %v492
        %v1524 = vunpack.c.l.b16 %v493
        %v1525 = vunpack.c.l.b16 %v494
        %v1526 = vunpack.c.l.b16 %v495
        %v1527 = vunpack.c.l.b16 %v496
        %v1528 = vunpack.c.l.b16 %v497
        %v1529 = vunpack.c.l.b16 %v498
        %v1530 = vunpack.c.l.b16 %v499
        %v1531 = vunpack.c.l.b16 %v500
        %v1532 = vunpack.c.l.b16 %v501
        %v1533 = vunpack.c.l.b16 %v502
        %v1534 = vunpack.c.l.b16 %v503
        %v1535 = vunpack.c.l.b16 %v504
        %v1536 = vunpack.c.l.b16 %v505
        %v1537 = vunpack.c.l.b16 %v506
        %v1538 = vunpack.c.l.b16 %v507
        %v1539 = vunpack.c.l.b16 %v508
        %v1540 = vunpack.c.l.b16 %v509
        %v1541 = vunpack.c.l.b16 %v510
        %v1542 = vunpack.c.l.b16 %v511
        %v1543 = vunpack.c.l.b16 %v512
        %v1544 = vunpack.c.l.b16 %v513
        %v1545 = vunpack.c.l.b16 %v514
        %v1546 = vunpack.c.l.b16 %v515
        %v1547 = vunpack.c.l.b16 %v516
        %v1548 = vunpack.c.l.b16 %v517
        %v1549 = vunpack.c.l.b16 %v518
        %v1550 = vunpack.c.l.b16 %v519
        %v1551 = vunpack.c.l.b16 %v520
        %v1552 = vunpack.c.l.b16 %v521
        %v1553 = vunpack.c.l.b16 %v522
        %v1554 = vunpack.c.l.b16 %v523
        %v1555 = vunpack.c.l.b16 %v524
        %v1556 = vunpack.c.l.b16 %v525
        %v1557 = vunpack.c.l.b16 %v526
        %v1558 = vunpack.c.l.b16 %v527
        %v1559 = vunpack.c.l.b16 %v528
        %v1560 = vunpack.c.l.b16 %v529
        %v1561 = vunpack.c.l.b16 %v530
        %v1562 = vunpack.c.l.b16 %v531
        %v1563 = vunpack.c.l.b16 %v532
        %v1564 = vunpack.c.l.b16 %v533
        %v1565 = vunpack.c.l.b16 %v534
        %v1566 = vunpack.c.l.b16 %v535
        %v1567 = vunpack.c.l.b16 %v536
        %v1568 = vunpack.c.l.b16 %v537
        %v1569 = vunpack.c.l.b16 %v538
        %v1570 = vunpack.c.l.b16 %v539
        %v1571 = vunpack.c.l.b16 %v540
        %v1572 = vunpack.c.l.b16 %v541
        %v1573 = vunpack.c.l.b16 %v542
        %v1574 = vunpack.c.l.b16 %v543
        %v1575 = vunpack.c.l.b16 %v544
        %v1576 = vunpack.c.l.b16 %v545
        %v1577 = vunpack.c.l.b16 %v546
        %v1578 = vunpack.c.l.b16 %v547
        %v1579 = vunpack.c.l.b16 %v548
        %v1580 = vunpack.c.l.b16 %v549
        %v1581 = vunpack.c.l.b16 %v550
        %v1582 = vunpack.c.l.b16 %v551
        %v1583 = vunpack.c.l.b16 %v552
        %v1584 = vunpack.c.l.b16 %v553
        %v1585 = vunpack.c.l.b16 %v554
        %v1586 = vunpack.c.l.b16 %v555
        %v1587 = vunpack.c.l.b16 %v556
        %v1588 = vunpack.c.l.b16 %v557
        %v1589 = vunpack.c.l.b16 %v558
        %v1590 = vunpack.c.l.b16 %v559
        %v1591 = vunpack.c.l.b16 %v560
        %v1592 = vunpack.c.l.b16 %v561
        %v1593 = vunpack.c.l.b16 %v562
        %v1594 = vunpack.c.l.b16 %v563
        %v1595 = vunpack.c.l.b16 %v564
        %v1596 = vunpack.c.l.b16 %v565
        %v1597 = vunpack.c.l.b16 %v566
        %v1598 = vunpack.c.l.b16 %v567
        %v1599 = vunpack.c.l.b16 %v568
        %v1600 = vunpack.c.l.b16 %v569
        %v1601 = vunpack.c.l.b16 %v570
        %v1602 = vunpack.c.l.b16 %v571
        %v1603 = vunpack.c.l.b16 %v572
        %v1604 = vunpack.c.l.b16 %v573
        %v1605 = vunpack.c.l.b16 %v574
        %v1606 = vunpack.c.l.b16 %v575
        %v1607 = vunpack.c.l.b16 %v576
        %v1608 = vunpack.c.l.b16 %v577
        %v1609 = vunpack.c.l.b16 %v578
        %v1610 = vunpack.c.l.b16 %v579
        %v1611 = vunpack.c.l.b16 %v580
        %v1612 = vunpack.c.l.b16 %v581
        %v1613 = vunpack.c.l.b16 %v582
        %v1614 = vunpack.c.l.b16 %v583
        %v1615 = vunpack.c.l.b16 %v584
        %v1616 = vunpack.c.l.b16 %v585
        %v1617 = vunpack.c.l.b16 %v586
        %v1618 = vunpack.c.l.b16 %v587
        %v1619 = vunpack.c.l.b16 %v588
        %v1620 = vunpack.c.l.b16 %v589
        %v1621 = vunpack.c.l.b16 %v590
        %v1622 = vunpack.c.l.b16 %v591
        %v1623 = vunpack.c.l.b16 %v592
        %v1624 = vunpack.c.l.b16 %v593
        %v1625 = vunpack.c.l.b16 %v594
        %v1626 = vunpack.c.l.b16 %v595
        %v1627 = vunpack.c.l.b16 %v596
        %v1628 = vunpack.c.l.b16 %v597
        %v1629 = vunpack.c.l.b16 %v598
        %v1630 = vunpack.c.l.b16 %v599
        %v1631 = vunpack.c.l.b16 %v600
        %v1632 = vunpack.c.l.b16 %v601
        %v1633 = vunpack.c.l.b16 %v602
        %v1634 = vunpack.c.l.b16 %v603
        %v1635 = vunpack.c.l.b16 %v604
        %v1636 = vunpack.c.l.b16 %v605
        %v1637 = vunpack.c.l.b16 %v606
        %v1638 = vunpack.c.l.b16 %v607
        %v1639 = vunpack.c.l.b16 %v608
        %v1640 = vunpack.c.l.b16 %v609
        %v1641 = vunpack.c.l.b16 %v610
        %v1642 = vunpack.c.l.b16 %v611
        %v1643 = vunpack.c.l.b16 %v612
        %v1644 = vunpack.c.l.b16 %v613
        %v1645 = vunpack.c.l.b16 %v614
        %v1646 = vunpack.c.l.b16 %v615
        %v1647 = vunpack.c.l.b16 %v616
        %v1648 = vunpack.c.l.b16 %v617
        %v1649 = vunpack.c.l.b16 %v618
        %v1650 = vunpack.c.l.b16 %v619
        %v1651 = vunpack.c.l.b16 %v620
        %v1652 = vunpack.c.l.b16 %v621
        %v1653 = vunpack.c.l.b16 %v622
        %v1654 = vunpack.c.l.b16 %v623
        %v1655 = vunpack.c.l.b16 %v624
        %v1656 = vunpack.c.l.b16 %v625
        %v1657 = vunpack.c.l.b16 %v626
        %v1658 = vunpack.c.l.b16 %v627
        %v1659 = vunpack.c.l.b16 %v628
        %v1660 = vunpack.c.l.b16 %v629
        %v1661 = vunpack.c.l.b16 %v630
        %v1662 = vunpack.c.l.b16 %v631
        %v1663 = vunpack.c.l.b16 %v632
        %v1664 = vunpack.c.l.b16 %v633
        %v1665 = vunpack.c.l.b16 %v634
        %v1666 = vunpack.c.l.b16 %v635
        %v1667 = vunpack.c.l.b16 %v636
        %v1668 = vunpack.c.l.b16 %v637
        %v1669 = vunpack.c.l.b16 %v638
        %v1670 = vunpack.c.l.b16 %v639
        %v1671 = vunpack.c.l.b16 %v640
        %v1672 = vunpack.c.l.b16 %v641
        %v1673 = vunpack.c.l.b16 %v642
        %v1674 = vunpack.c.l.b16 %v643
        %v1675 = vunpack.c.l.b16 %v644
        %v1676 = vunpack.c.l.b16 %v645
        %v1677 = vunpack.c.l.b16 %v646
        %v1678 = vunpack.c.l.b16 %v647
        %v1679 = vunpack.c.l.b16 %v648
        %v1680 = vunpack.c.l.b16 %v649
        %v1681 = vunpack.c.l.b16 %v650
        %v1682 = vunpack.c.l.b16 %v651
        %v1683 = vunpack.c.l.b16 %v652
        %v1684 = vunpack.c.l.b16 %v653
        %v1685 = vunpack.c.l.b16 %v654
        %v1686 = vunpack.c.l.b16 %v655
        %v1687 = vunpack.c.l.b16 %v656
        %v1688 = vunpack.c.l.b16 %v657
        %v1689 = vunpack.c.l.b16 %v658
        %v1690 = vunpack.c.l.b16 %v659
        %v1691 = vunpack.c.l.b16 %v660
        %v1692 = vunpack.c.l.b16 %v661
        %v1693 = vunpack.c.l.b16 %v662
        %v1694 = vunpack.c.l.b16 %v663
        %v1695 = vunpack.c.l.b16 %v664
        %v1696 = vunpack.c.l.b16 %v665
        %v1697 = vunpack.c.l.b16 %v666
        %v1698 = vunpack.c.l.b16 %v667
        %v1699 = vunpack.c.l.b16 %v668
        %v1700 = vunpack.c.l.b16 %v669
        %v1701 = vunpack.c.l.b16 %v670
        %v1702 = vunpack.c.l.b16 %v671
        %v1703 = vunpack.c.l.b16 %v672
        %v1704 = vunpack.c.l.b16 %v673
        %v1705 = vunpack.c.l.b16 %v674
        %v1706 = vunpack.c.l.b16 %v675
        %v1707 = vunpack.c.l.b16 %v676
        %v1708 = vunpack.c.l.b16 %v677
        %v1709 = vunpack.c.l.b16 %v678
        %v1710 = vunpack.c.l.b16 %v679
        %v1711 = vunpack.c.l.b16 %v680
        %v1712 = vunpack.c.l.b16 %v681
        %v1713 = vunpack.c.l.b16 %v682
        %v1714 = vunpack.c.l.b16 %v683
        %v1715 = vunpack.c.l.b16 %v684
        %v1716 = vunpack.c.l.b16 %v685
        %v1717 = vunpack.c.l.b16 %v686
        %v1718 = vunpack.c.l.b16 %v687
        %v1719 = vunpack.c.l.b16 %v688
        %v1720 = vunpack.c.l.b16 %v689
        %v1721 = vunpack.c.l.b16 %v690
        %v1722 = vunpack.c.l.b16 %v691
        %v1723 = vunpack.c.l.b16 %v692
        %v1724 = vunpack.c.l.b16 %v693
        %v1725 = vunpack.c.l.b16 %v694
        %v1726 = vunpack.c.l.b16 %v695
        %v1727 = vunpack.c.l.b16 %v696
        %v1728 = vunpack.c.l.b16 %v697
        %v1729 = vunpack.c.l.b16 %v698
        %v1730 = vunpack.c.l.b16 %v699
        %v1731 = vunpack.c.l.b16 %v700
        %v1732 = vunpack.c.l.b16 %v701
        %v1733 = vunpack.c.l.b16 %v702
        %v1734 = vunpack.c.l.b16 %v703
        %v1735 = vunpack.c.l.b16 %v704
        %v1736 = vpack.c.b16 %v1225, %v1224
        %v1737 = vpack.c.b16 %v1227, %v1226
        %v1738 = vpack.c.b16 %v1229, %v1228
        %v1739 = vpack.c.b16 %v1231, %v1230
        %v1740 = vpack.c.b16 %v1233, %v1232
        %v1741 = vpack.c.b16 %v1235, %v1234
        %v1742 = vpack.c.b16 %v1237, %v1236
        %v1743 = vpack.c.b16 %v1239, %v1238
        %v1744 = vpack.c.b16 %v1241, %v1240
        %v1745 = vpack.c.b16 %v1243, %v1242
        %v1746 = vpack.c.b16 %v1245, %v1244
        %v1747 = vpack.c.b16 %v1247, %v1246
        %v1748 = vpack.c.b16 %v1249, %v1248
        %v1749 = vpack.c.b16 %v1251, %v1250
        %v1750 = vpack.c.b16 %v1253, %v1252
        %v1751 = vpack.c.b16 %v1255, %v1254
        %v1752 = vpack.c.b16 %v1257, %v1256
        %v1753 = vpack.c.b16 %v1259, %v1258
        %v1754 = vpack.c.b16 %v1261, %v1260
        %v1755 = vpack.c.b16 %v1263, %v1262
        %v1756 = vpack.c.b16 %v1265, %v1264
        %v1757 = vpack.c.b16 %v1267, %v1266
        %v1758 = vpack.c.b16 %v1269, %v1268
        %v1759 = vpack.c.b16 %v1271, %v1270
        %v1760 = vpack.c.b16 %v1273, %v1272
        %v1761 = vpack.c.b16 %v1275, %v1274
        %v1762 = vpack.c.b16 %v1277, %v1276
        %v1763 = vpack.c.b16 %v1279, %v1278
        %v1764 = vpack.c.b16 %v1281, %v1280
        %v1765 = vpack.c.b16 %v1283, %v1282
        %v1766 = vpack.c.b16 %v1285, %v1284
        %v1767 = vpack.c.b16 %v1287, %v1286
        %v1768 = vpack.c.b16 %v1289, %v1288
        %v1769 = vpack.c.b16 %v1291, %v1290
        %v1770 = vpack.c.b16 %v1293, %v1292
        %v1771 = vpack.c.b16 %v1295, %v1294
        %v1772 = vpack.c.b16 %v1297, %v1296
        %v1773 = vpack.c.b16 %v1299, %v1298
        %v1774 = vpack.c.b16 %v1301, %v1300
        %v1775 = vpack.c.b16 %v1303, %v1302
        %v1776 = vpack.c.b16 %v1305, %v1304
        %v1777 = vpack.c.b16 %v1307, %v1306
        %v1778 = vpack.c.b16 %v1309, %v1308
        %v1779 = vpack.c.b16 %v1311, %v1310
        %v1780 = vpack.c.b16 %v1313, %v1312
        %v1781 = vpack.c.b16 %v1315, %v1314
        %v1782 = vpack.c.b16 %v1317, %v1316
        %v1783 = vpack.c.b16 %v1319, %v1318
        %v1784 = vpack.c.b16 %v1321, %v1320
        %v1785 = vpack.c.b16 %v1323, %v1322
        %v1786 = vpack.c.b16 %v1325, %v1324
        %v1787 = vpack.c.b16 %v1327, %v1326
        %v1788 = vpack.c.b16 %v1329, %v1328
        %v1789 = vpack.c.b16 %v1331, %v1330
        %v1790 = vpack.c.b16 %v1333, %v1332
        %v1791 = vpack.c.b16 %v1335, %v1334
        %v1792 = vpack.c.b16 %v1337, %v1336
        %v1793 = vpack.c.b16 %v1339, %v1338
        %v1794 = vpack.c.b16 %v1341, %v1340
        %v1795 = vpack.c.b16 %v1343, %v1342
        %v1796 = vpack.c.b16 %v1345, %v1344
        %v1797 = vpack.c.b16 %v1347, %v1346
        %v1798 = vpack.c.b16 %v1349, %v1348
        %v1799 = vpack.c.b16 %v1351, %v1350
        %v1800 = vpack.c.b16 %v1353, %v1352
        %v1801 = vpack.c.b16 %v1355, %v1354
        %v1802 = vpack.c.b16 %v1357, %v1356
        %v1803 = vpack.c.b16 %v1359, %v1358
        %v1804 = vpack.c.b16 %v1361, %v1360
        %v1805 = vpack.c.b16 %v1363, %v1362
        %v1806 = vpack.c.b16 %v1365, %v1364
        %v1807 = vpack.c.b16 %v1367, %v1366
        %v1808 = vpack.c.b16 %v1369, %v1368
        %v1809 = vpack.c.b16 %v1371, %v1370
        %v1810 = vpack.c.b16 %v1373, %v1372
        %v1811 = vpack.c.b16 %v1375, %v1374
        %v1812 = vpack.c.b16 %v1377, %v1376
        %v1813 = vpack.c.b16 %v1379, %v1378
        %v1814 = vpack.c.b16 %v1381, %v1380
        %v1815 = vpack.c.b16 %v1383, %v1382
        %v1816 = vpack.c.b16 %v1385, %v1384
        %v1817 = vpack.c.b16 %v1387, %v1386
        %v1818 = vpack.c.b16 %v1389, %v1388
        %v1819 = vpack.c.b16 %v1391, %v1390
        %v1820 = vpack.c.b16 %v1393, %v1392
        %v1821 = vpack.c.b16 %v1395, %v1394
        %v1822 = vpack.c.b16 %v1397, %v1396
        %v1823 = vpack.c.b16 %v1399, %v1398
        %v1824 = vpack.c.b16 %v1401, %v1400
        %v1825 = vpack.c.b16 %v1403, %v1402
        %v1826 = vpack.c.b16 %v1405, %v1404
        %v1827 = vpack.c.b16 %v1407, %v1406
        %v1828 = vpack.c.b16 %v1409, %v1408
        %v1829 = vpack.c.b16 %v1411, %v1410
        %v1830 = vpack.c.b16 %v1413, %v1412
        %v1831 = vpack.c.b16 %v1415, %v1414
        %v1832 = vpack.c.b16 %v1417, %v1416
        %v1833 = vpack.c.b16 %v1419, %v1418
        %v1834 = vpack.c.b16 %v1421, %v1420
        %v1835 = vpack.c.b16 %v1423, %v1422
        %v1836 = vpack.c.b16 %v1425, %v1424
        %v1837 = vpack.c.b16 %v1427, %v1426
        %v1838 = vpack.c.b16 %v1429, %v1428
        %v1839 = vpack.c.b16 %v1431, %v1430
        %v1840 = vpack.c.b16 %v1433, %v1432
        %v1841 = vpack.c.b16 %v1435, %v1434
        %v1842 = vpack.c.b16 %v1437, %v1436
        %v1843 = vpack.c.b16 %v1439, %v1438
        %v1844 = vpack.c.b16 %v1441, %v1440
        %v1845 = vpack.c.b16 %v1443, %v1442
        %v1846 = vpack.c.b16 %v1445, %v1444
        %v1847 = vpack.c.b16 %v1447, %v1446
        %v1848 = vpack.c.b16 %v1449, %v1448
        %v1849 = vpack.c.b16 %v1451, %v1450
        %v1850 = vpack.c.b16 %v1453, %v1452
        %v1851 = vpack.c.b16 %v1455, %v1454
        %v1852 = vpack.c.b16 %v1457, %v1456
        %v1853 = vpack.c.b16 %v1459, %v1458
        %v1854 = vpack.c.b16 %v1461, %v1460
        %v1855 = vpack.c.b16 %v1463, %v1462
        %v1856 = vpack.c.b16 %v1465, %v1464
        %v1857 = vpack.c.b16 %v1467, %v1466
        %v1858 = vpack.c.b16 %v1469, %v1468
        %v1859 = vpack.c.b16 %v1471, %v1470
        %v1860 = vpack.c.b16 %v1473, %v1472
        %v1861 = vpack.c.b16 %v1475, %v1474
        %v1862 = vpack.c.b16 %v1477, %v1476
        %v1863 = vpack.c.b16 %v1479, %v1478
        %v1864 = vpack.c.b16 %v1481, %v1480
        %v1865 = vpack.c.b16 %v1483, %v1482
        %v1866 = vpack.c.b16 %v1485, %v1484
        %v1867 = vpack.c.b16 %v1487, %v1486
        %v1868 = vpack.c.b16 %v1489, %v1488
        %v1869 = vpack.c.b16 %v1491, %v1490
        %v1870 = vpack.c.b16 %v1493, %v1492
        %v1871 = vpack.c.b16 %v1495, %v1494
        %v1872 = vpack.c.b16 %v1497, %v1496
        %v1873 = vpack.c.b16 %v1499, %v1498
        %v1874 = vpack.c.b16 %v1501, %v1500
        %v1875 = vpack.c.b16 %v1503, %v1502
        %v1876 = vpack.c.b16 %v1505, %v1504
        %v1877 = vpack.c.b16 %v1507, %v1506
        %v1878 = vpack.c.b16 %v1509, %v1508
        %v1879 = vpack.c.b16 %v1511, %v1510
        %v1880 = vpack.c.b16 %v1513, %v1512
        %v1881 = vpack.c.b16 %v1515, %v1514
        %v1882 = vpack.c.b16 %v1517, %v1516
        %v1883 = vpack.c.b16 %v1519, %v1518
        %v1884 = vpack.c.b16 %v1521, %v1520
        %v1885 = vpack.c.b16 %v1523, %v1522
        %v1886 = vpack.c.b16 %v1525, %v1524
        %v1887 = vpack.c.b16 %v1527, %v1526
        %v1888 = vpack.c.b16 %v1529, %v1528
        %v1889 = vpack.c.b16 %v1531, %v1530
        %v1890 = vpack.c.b16 %v1533, %v1532
        %v1891 = vpack.c.b16 %v1535, %v1534
        %v1892 = vpack.c.b16 %v1537, %v1536
        %v1893 = vpack.c.b16 %v1539, %v1538
        %v1894 = vpack.c.b16 %v1541, %v1540
        %v1895 = vpack.c.b16 %v1543, %v1542
        %v1896 = vpack.c.b16 %v1545, %v1544
        %v1897 = vpack.c.b16 %v1547, %v1546
        %v1898 = vpack.c.b16 %v1549, %v1548
        %v1899 = vpack.c.b16 %v1551, %v1550
        %v1900 = vpack.c.b16 %v1553, %v1552
        %v1901 = vpack.c.b16 %v1555, %v1554
        %v1902 = vpack.c.b16 %v1557, %v1556
        %v1903 = vpack.c.b16 %v1559, %v1558
        %v1904 = vpack.c.b16 %v1561, %v1560
        %v1905 = vpack.c.b16 %v1563, %v1562
        %v1906 = vpack.c.b16 %v1565, %v1564
        %v1907 = vpack.c.b16 %v1567, %v1566
        %v1908 = vpack.c.b16 %v1569, %v1568
        %v1909 = vpack.c.b16 %v1571, %v1570
        %v1910 = vpack.c.b16 %v1573, %v1572
        %v1911 = vpack.c.b16 %v1575, %v1574
        %v1912 = vpack.c.b16 %v1577, %v1576
        %v1913 = vpack.c.b16 %v1579, %v1578
        %v1914 = vpack.c.b16 %v1581, %v1580
        %v1915 = vpack.c.b16 %v1583, %v1582
        %v1916 = vpack.c.b16 %v1585, %v1584
        %v1917 = vpack.c.b16 %v1587, %v1586
        %v1918 = vpack.c.b16 %v1589, %v1588
        %v1919 = vpack.c.b16 %v1591, %v1590
        %v1920 = vpack.c.b16 %v1593, %v1592
        %v1921 = vpack.c.b16 %v1595, %v1594
        %v1922 = vpack.c.b16 %v1597, %v1596
        %v1923 = vpack.c.b16 %v1599, %v1598
        %v1924 = vpack.c.b16 %v1601, %v1600
        %v1925 = vpack.c.b16 %v1603, %v1602
        %v1926 = vpack.c.b16 %v1605, %v1604
        %v1927 = vpack.c.b16 %v1607, %v1606
        %v1928 = vpack.c.b16 %v1609, %v1608
        %v1929 = vpack.c.b16 %v1611, %v1610
        %v1930 = vpack.c.b16 %v1613, %v1612
        %v1931 = vpack.c.b16 %v1615, %v1614
        %v1932 = vpack.c.b16 %v1617, %v1616
        %v1933 = vpack.c.b16 %v1619, %v1618
        %v1934 = vpack.c.b16 %v1621, %v1620
        %v1935 = vpack.c.b16 %v1623, %v1622
        %v1936 = vpack.c.b16 %v1625, %v1624
        %v1937 = vpack.c.b16 %v1627, %v1626
        %v1938 = vpack.c.b16 %v1629, %v1628
        %v1939 = vpack.c.b16 %v1631, %v1630
        %v1940 = vpack.c.b16 %v1633, %v1632
        %v1941 = vpack.c.b16 %v1635, %v1634
        %v1942 = vpack.c.b16 %v1637, %v1636
        %v1943 = vpack.c.b16 %v1639, %v1638
        %v1944 = vpack.c.b16 %v1641, %v1640
        %v1945 = vpack.c.b16 %v1643, %v1642
        %v1946 = vpack.c.b16 %v1645, %v1644
        %v1947 = vpack.c.b16 %v1647, %v1646
        %v1948 = vpack.c.b16 %v1649, %v1648
        %v1949 = vpack.c.b16 %v1651, %v1650
        %v1950 = vpack.c.b16 %v1653, %v1652
        %v1951 = vpack.c.b16 %v1655, %v1654
        %v1952 = vpack.c.b16 %v1657, %v1656
        %v1953 = vpack.c.b16 %v1659, %v1658
        %v1954 = vpack.c.b16 %v1661, %v1660
        %v1955 = vpack.c.b16 %v1663, %v1662
        %v1956 = vpack.c.b16 %v1665, %v1664
        %v1957 = vpack.c.b16 %v1667, %v1666
        %v1958 = vpack.c.b16 %v1669, %v1668
        %v1959 = vpack.c.b16 %v1671, %v1670
        %v1960 = vpack.c.b16 %v1673, %v1672
        %v1961 = vpack.c.b16 %v1675, %v1674
        %v1962 = vpack.c.b16 %v1677, %v1676
        %v1963 = vpack.c.b16 %v1679, %v1678
        %v1964 = vpack.c.b16 %v1681, %v1680
        %v1965 = vpack.c.b16 %v1683, %v1682
        %v1966 = vpack.c.b16 %v1685, %v1684
        %v1967 = vpack.c.b16 %v1687, %v1686
        %v1968 = vpack.c.b16 %v1689, %v1688
        %v1969 = vpack.c.b16 %v1691, %v1690
        %v1970 = vpack.c.b16 %v1693, %v1692
        %v1971 = vpack.c.b16 %v1695, %v1694
        %v1972 = vpack.c.b16 %v1697, %v1696
        %v1973 = vpack.c.b16 %v1699, %v1698
        %v1974 = vpack.c.b16 %v1701, %v1700
        %v1975 = vpack.c.b16 %v1703, %v1702
        %v1976 = vpack.c.b16 %v1705, %v1704
        %v1977 = vpack.c.b16 %v1707, %v1706
        %v1978 = vpack.c.b16 %v1709, %v1708
        %v1979 = vpack.c.b16 %v1711, %v1710
        %v1980 = vpack.c.b16 %v1713, %v1712
        %v1981 = vpack.c.b16 %v1715, %v1714
        %v1982 = vpack.c.b16 %v1717, %v1716
        %v1983 = vpack.c.b16 %v1719, %v1718
        %v1984 = vpack.c.b16 %v1721, %v1720
        %v1985 = vpack.c.b16 %v1723, %v1722
        %v1986 = vpack.c.b16 %v1725, %v1724
        %v1987 = vpack.c.b16 %v1727, %v1726
        %v1988 = vpack.c.b16 %v1729, %v1728
        %v1989 = vpack.c.b16 %v1731, %v1730
        %v1990 = vpack.c.b16 %v1733, %v1732
        %v1991 = vpack.c.b16 %v1735, %v1734
        %v1996 = vunpack.c.l.b16 %v705
        %v1997 = vunpack.c.l.b16 %v706
        %v1998 = vunpack.c.l.b16 %v707
        %v1999 = vunpack.c.l.b16 %v708
        %v2000 = vpack.c.b16 %v1997, %v1996
        %v2001 = vpack.c.b16 %v1999, %v1998
        %vm2004 = vcmask 261120
        %v2006 = vsel %vm2004, %v1736, 0
        %v2009 = vsel %vm2004, %v1737, 0
        %v2012 = vsel %vm2004, %v1738, 0
        %v2015 = vsel %vm2004, %v1739, 0
        %v2018 = vsel %vm2004, %v1740, 0
        %v2021 = vsel %vm2004, %v1741, 0
        %v2024 = vsel %vm2004, %v1742, 0
        %v2027 = vsel %vm2004, %v1743, 0
        %v2030 = vsel %vm2004, %v1744, 0
        %v2033 = vsel %vm2004, %v1745, 0
        %v2036 = vsel %vm2004, %v1746, 0
        %v2039 = vsel %vm2004, %v1747, 0
        %v2042 = vsel %vm2004, %v1748, 0
        %v2045 = vsel %vm2004, %v1749, 0
        %v2048 = vsel %vm2004, %v1750, 0
        %v2051 = vsel %vm2004, %v1751, 0
        %v2054 = vsel %vm2004, %v1752, 0
        %v2057 = vsel %vm2004, %v1753, 0
        %v2060 = vsel %vm2004, %v1754, 0
        %v2063 = vsel %vm2004, %v1755, 0
        %v2066 = vsel %vm2004, %v1756, 0
        %v2069 = vsel %vm2004, %v1757, 0
        %v2072 = vsel %vm2004, %v1758, 0
        %v2075 = vsel %vm2004, %v1759, 0
        %v2078 = vsel %vm2004, %v1760, 0
        %v2081 = vsel %vm2004, %v1761, 0
        %v2084 = vsel %vm2004, %v1762, 0
        %v2087 = vsel %vm2004, %v1763, 0
        %v2090 = vsel %vm2004, %v1764, 0
        %v2093 = vsel %vm2004, %v1765, 0
        %v2096 = vsel %vm2004, %v1766, 0
        %v2099 = vsel %vm2004, %v1767, 0
        %v2102 = vsel %vm2004, %v1768, 0
        %v2105 = vsel %vm2004, %v1769, 0
        %v2108 = vsel %vm2004, %v1770, 0
        %v2111 = vsel %vm2004, %v1771, 0
        %v2114 = vsel %vm2004, %v1772, 0
        %v2117 = vsel %vm2004, %v1773, 0
        %v2120 = vsel %vm2004, %v1774, 0
        %v2123 = vsel %vm2004, %v1775, 0
        %v2126 = vsel %vm2004, %v1776, 0
        %v2129 = vsel %vm2004, %v1777, 0
        %v2132 = vsel %vm2004, %v1778, 0
        %v2135 = vsel %vm2004, %v1779, 0
        %v2138 = vsel %vm2004, %v1780, 0
        %v2141 = vsel %vm2004, %v1781, 0
        %v2144 = vsel %vm2004, %v1782, 0
        %v2147 = vsel %vm2004, %v1783, 0
        %v2150 = vsel %vm2004, %v1784, 0
        %v2153 = vsel %vm2004, %v1785, 0
        %v2156 = vsel %vm2004, %v1786, 0
        %v2159 = vsel %vm2004, %v1787, 0
        %v2162 = vsel %vm2004, %v1788, 0
        %v2165 = vsel %vm2004, %v1789, 0
        %v2168 = vsel %vm2004, %v1790, 0
        %v2171 = vsel %vm2004, %v1791, 0
        %v2174 = vsel %vm2004, %v1792, 0
        %v2177 = vsel %vm2004, %v1793, 0
        %v2180 = vsel %vm2004, %v1794, 0
        %v2183 = vsel %vm2004, %v1795, 0
        %v2186 = vsel %vm2004, %v1796, 0
        %v2189 = vsel %vm2004, %v1797, 0
        %v2192 = vsel %vm2004, %v1798, 0
        %v2195 = vsel %vm2004, %v1799, 0
        %v2198 = vsel %vm2004, %v1800, 0
        %v2201 = vsel %vm2004, %v1801, 0
        %v2204 = vsel %vm2004, %v1802, 0
        %v2207 = vsel %vm2004, %v1803, 0
        %v2210 = vsel %vm2004, %v1804, 0
        %v2213 = vsel %vm2004, %v1805, 0
        %v2216 = vsel %vm2004, %v1806, 0
        %v2219 = vsel %vm2004, %v1807, 0
        %v2222 = vsel %vm2004, %v1808, 0
        %v2225 = vsel %vm2004, %v1809, 0
        %v2228 = vsel %vm2004, %v1810, 0
        %v2231 = vsel %vm2004, %v1811, 0
        %v2234 = vsel %vm2004, %v1812, 0
        %v2237 = vsel %vm2004, %v1813, 0
        %v2240 = vsel %vm2004, %v1814, 0
        %v2243 = vsel %vm2004, %v1815, 0
        %v2246 = vsel %vm2004, %v1816, 0
        %v2249 = vsel %vm2004, %v1817, 0
        %v2252 = vsel %vm2004, %v1818, 0
        %v2255 = vsel %vm2004, %v1819, 0
        %v2258 = vsel %vm2004, %v1820, 0
        %v2261 = vsel %vm2004, %v1821, 0
        %v2264 = vsel %vm2004, %v1822, 0
        %v2267 = vsel %vm2004, %v1823, 0
        %v2270 = vsel %vm2004, %v1824, 0
        %v2273 = vsel %vm2004, %v1825, 0
        %v2276 = vsel %vm2004, %v1826, 0
        %v2279 = vsel %vm2004, %v1827, 0
        %v2282 = vsel %vm2004, %v1828, 0
        %v2285 = vsel %vm2004, %v1829, 0
        %v2288 = vsel %vm2004, %v1830, 0
        %v2291 = vsel %vm2004, %v1831, 0
        %v2294 = vsel %vm2004, %v1832, 0
        %v2297 = vsel %vm2004, %v1833, 0
        %v2300 = vsel %vm2004, %v1834, 0
        %v2303 = vsel %vm2004, %v1835, 0
        %v2306 = vsel %vm2004, %v1836, 0
        %v2309 = vsel %vm2004, %v1837, 0
        %v2312 = vsel %vm2004, %v1838, 0
        %v2315 = vsel %vm2004, %v1839, 0
        %v2318 = vsel %vm2004, %v1840, 0
        %v2321 = vsel %vm2004, %v1841, 0
        %v2324 = vsel %vm2004, %v1842, 0
        %v2327 = vsel %vm2004, %v1843, 0
        %v2330 = vsel %vm2004, %v1844, 0
        %v2333 = vsel %vm2004, %v1845, 0
        %v2336 = vsel %vm2004, %v1846, 0
        %v2339 = vsel %vm2004, %v1847, 0
        %v2342 = vsel %vm2004, %v1848, 0
        %v2345 = vsel %vm2004, %v1849, 0
        %v2348 = vsel %vm2004, %v1850, 0
        %v2351 = vsel %vm2004, %v1851, 0
        %v2354 = vsel %vm2004, %v1852, 0
        %v2357 = vsel %vm2004, %v1853, 0
        %v2360 = vsel %vm2004, %v1854, 0
        %v2363 = vsel %vm2004, %v1855, 0
        %v2366 = vsel %vm2004, %v1856, 0
        %v2369 = vsel %vm2004, %v1857, 0
        %v2372 = vsel %vm2004, %v1858, 0
        %v2375 = vsel %vm2004, %v1859, 0
        %v2378 = vsel %vm2004, %v1860, 0
        %v2381 = vsel %vm2004, %v1861, 0
        %v2384 = vsel %vm2004, %v1862, 0
        %v2387 = vsel %vm2004, %v1863, 0
        %v2390 = vsel %vm2004, %v1864, 0
        %v2393 = vsel %vm2004, %v1865, 0
        %v2396 = vsel %vm2004, %v1866, 0
        %v2399 = vsel %vm2004, %v1867, 0
        %v2402 = vsel %vm2004, %v1868, 0
        %v2405 = vsel %vm2004, %v1869, 0
        %v2408 = vsel %vm2004, %v1870, 0
        %v2411 = vsel %vm2004, %v1871, 0
        %v2414 = vsel %vm2004, %v1872, 0
        %v2417 = vsel %vm2004, %v1873, 0
        %v2420 = vsel %vm2004, %v1874, 0
        %v2423 = vsel %vm2004, %v1875, 0
        %v2426 = vsel %vm2004, %v1876, 0
        %v2429 = vsel %vm2004, %v1877, 0
        %v2432 = vsel %vm2004, %v1878, 0
        %v2435 = vsel %vm2004, %v1879, 0
        %v2438 = vsel %vm2004, %v1880, 0
        %v2441 = vsel %vm2004, %v1881, 0
        %v2444 = vsel %vm2004, %v1882, 0
        %v2447 = vsel %vm2004, %v1883, 0
        %v2450 = vsel %vm2004, %v1884, 0
        %v2453 = vsel %vm2004, %v1885, 0
        %v2456 = vsel %vm2004, %v1886, 0
        %v2459 = vsel %vm2004, %v1887, 0
        %v2462 = vsel %vm2004, %v1888, 0
        %v2465 = vsel %vm2004, %v1889, 0
        %v2468 = vsel %vm2004, %v1890, 0
        %v2471 = vsel %vm2004, %v1891, 0
        %v2474 = vsel %vm2004, %v1892, 0
        %v2477 = vsel %vm2004, %v1893, 0
        %v2480 = vsel %vm2004, %v1894, 0
        %v2483 = vsel %vm2004, %v1895, 0
        %v2486 = vsel %vm2004, %v1896, 0
        %v2489 = vsel %vm2004, %v1897, 0
        %v2492 = vsel %vm2004, %v1898, 0
        %v2495 = vsel %vm2004, %v1899, 0
        %v2498 = vsel %vm2004, %v1900, 0
        %v2501 = vsel %vm2004, %v1901, 0
        %v2504 = vsel %vm2004, %v1902, 0
        %v2507 = vsel %vm2004, %v1903, 0
        %v2510 = vsel %vm2004, %v1904, 0
        %v2513 = vsel %vm2004, %v1905, 0
        %v2516 = vsel %vm2004, %v1906, 0
        %v2519 = vsel %vm2004, %v1907, 0
        %v2522 = vsel %vm2004, %v1908, 0
        %v2525 = vsel %vm2004, %v1909, 0
        %v2528 = vsel %vm2004, %v1910, 0
        %v2531 = vsel %vm2004, %v1911, 0
        %v2534 = vsel %vm2004, %v1912, 0
        %v2537 = vsel %vm2004, %v1913, 0
        %v2540 = vsel %vm2004, %v1914, 0
        %v2543 = vsel %vm2004, %v1915, 0
        %v2546 = vsel %vm2004, %v1916, 0
        %v2549 = vsel %vm2004, %v1917, 0
        %v2552 = vsel %vm2004, %v1918, 0
        %v2555 = vsel %vm2004, %v1919, 0
        %v2558 = vsel %vm2004, %v1920, 0
        %v2561 = vsel %vm2004, %v1921, 0
        %v2564 = vsel %vm2004, %v1922, 0
        %v2567 = vsel %vm2004, %v1923, 0
        %v2570 = vsel %vm2004, %v1924, 0
        %v2573 = vsel %vm2004, %v1925, 0
        %v2576 = vsel %vm2004, %v1926, 0
        %v2579 = vsel %vm2004, %v1927, 0
        %v2582 = vsel %vm2004, %v1928, 0
        %v2585 = vsel %vm2004, %v1929, 0
        %v2588 = vsel %vm2004, %v1930, 0
        %v2591 = vsel %vm2004, %v1931, 0
        %v2594 = vsel %vm2004, %v1932, 0
        %v2597 = vsel %vm2004, %v1933, 0
        %v2600 = vsel %vm2004, %v1934, 0
        %v2603 = vsel %vm2004, %v1935, 0
        %v2606 = vsel %vm2004, %v1936, 0
        %v2609 = vsel %vm2004, %v1937, 0
        %v2612 = vsel %vm2004, %v1938, 0
        %v2615 = vsel %vm2004, %v1939, 0
        %v2618 = vsel %vm2004, %v1940, 0
        %v2621 = vsel %vm2004, %v1941, 0
        %v2624 = vsel %vm2004, %v1942, 0
        %v2627 = vsel %vm2004, %v1943, 0
        %v2630 = vsel %vm2004, %v1944, 0
        %v2633 = vsel %vm2004, %v1945, 0
        %v2636 = vsel %vm2004, %v1946, 0
        %v2639 = vsel %vm2004, %v1947, 0
        %v2642 = vsel %vm2004, %v1948, 0
        %v2645 = vsel %vm2004, %v1949, 0
        %v2648 = vsel %vm2004, %v1950, 0
        %v2651 = vsel %vm2004, %v1951, 0
        %v2654 = vsel %vm2004, %v1952, 0
        %v2657 = vsel %vm2004, %v1953, 0
        %v2660 = vsel %vm2004, %v1954, 0
        %v2663 = vsel %vm2004, %v1955, 0
        %v2666 = vsel %vm2004, %v1956, 0
        %v2669 = vsel %vm2004, %v1957, 0
        %v2672 = vsel %vm2004, %v1958, 0
        %v2675 = vsel %vm2004, %v1959, 0
        %v2678 = vsel %vm2004, %v1960, 0
        %v2681 = vsel %vm2004, %v1961, 0
        %v2684 = vsel %vm2004, %v1962, 0
        %v2687 = vsel %vm2004, %v1963, 0
        %v2690 = vsel %vm2004, %v1964, 0
        %v2693 = vsel %vm2004, %v1965, 0
        %v2696 = vsel %vm2004, %v1966, 0
        %v2699 = vsel %vm2004, %v1967, 0
        %v2702 = vsel %vm2004, %v1968, 0
        %v2705 = vsel %vm2004, %v1969, 0
        %v2708 = vsel %vm2004, %v1970, 0
        %v2711 = vsel %vm2004, %v1971, 0
        %v2714 = vsel %vm2004, %v1972, 0
        %v2717 = vsel %vm2004, %v1973, 0
        %v2720 = vsel %vm2004, %v1974, 0
        %v2723 = vsel %vm2004, %v1975, 0
        %v2726 = vsel %vm2004, %v1976, 0
        %v2729 = vsel %vm2004, %v1977, 0
        %v2732 = vsel %vm2004, %v1978, 0
        %v2735 = vsel %vm2004, %v1979, 0
        %v2738 = vsel %vm2004, %v1980, 0
        %v2741 = vsel %vm2004, %v1981, 0
        %v2744 = vsel %vm2004, %v1982, 0
        %v2747 = vsel %vm2004, %v1983, 0
        %v2750 = vsel %vm2004, %v1984, 0
        %v2753 = vsel %vm2004, %v1985, 0
        %v2756 = vsel %vm2004, %v1986, 0
        %v2759 = vsel %vm2004, %v1987, 0
        %v2762 = vsel %vm2004, %v1988, 0
        %v2765 = vsel %vm2004, %v1989, 0
        %v2768 = vsel %vm2004, %v1990, 0
        %v2771 = vsel %vm2004, %v1991, 0
        %2773 = vmatpush.bf16.msra.mxu0 0
        %2774 = vmatpush.bf16.msra.mxu0 0
        %2775 = vmatpush.bf16.msra.mxu0 0
        %2776 = vmatpush.bf16.msra.mxu0 0
        %2777 = vmatpush.bf16.msra.mxu0 0
        %2778 = vmatpush.bf16.msra.mxu0 0
        %2779 = vmatpush.bf16.msra.mxu0 %v2001
        %2780 = vmatpush.bf16.msra.mxu0 %v2000
        %2781 = vmatmul.bf16.gmra.mxu0 %v2006
        %v2782 = vpop.f32.mrf.mxu0
        %v2783 = vadd.f32 %v711, %v2782
        %v2784 = vpop.f32.mrf.mxu0
        %v2785 = vadd.f32 %v711, %v2784
        %2786 = vmatmul.bf16.gmra.mxu0 %v2009
        %v2787 = vpop.f32.mrf.mxu0
        %v2788 = vadd.f32 %v711, %v2787
        %v2789 = vpop.f32.mrf.mxu0
        %v2790 = vadd.f32 %v711, %v2789
        %2791 = vmatmul.bf16.gmra.mxu0 %v2012
        %v2792 = vpop.f32.mrf.mxu0
        %v2793 = vadd.f32 %v711, %v2792
        %v2794 = vpop.f32.mrf.mxu0
        %v2795 = vadd.f32 %v711, %v2794
        %2796 = vmatmul.bf16.gmra.mxu0 %v2015
        %v2797 = vpop.f32.mrf.mxu0
        %v2798 = vadd.f32 %v711, %v2797
        %v2799 = vpop.f32.mrf.mxu0
        %v2800 = vadd.f32 %v711, %v2799
        %2801 = vmatmul.bf16.gmra.mxu0 %v2018
        %v2802 = vpop.f32.mrf.mxu0
        %v2803 = vadd.f32 %v711, %v2802
        %v2804 = vpop.f32.mrf.mxu0
        %v2805 = vadd.f32 %v711, %v2804
        %2806 = vmatmul.bf16.gmra.mxu0 %v2021
        %v2807 = vpop.f32.mrf.mxu0
        %v2808 = vadd.f32 %v711, %v2807
        %v2809 = vpop.f32.mrf.mxu0
        %v2810 = vadd.f32 %v711, %v2809
        %2811 = vmatmul.bf16.gmra.mxu0 %v2024
        %v2812 = vpop.f32.mrf.mxu0
        %v2813 = vadd.f32 %v711, %v2812
        %v2814 = vpop.f32.mrf.mxu0
        %v2815 = vadd.f32 %v711, %v2814
        %2816 = vmatmul.bf16.gmra.mxu0 %v2027
        %v2817 = vpop.f32.mrf.mxu0
        %v2818 = vadd.f32 %v711, %v2817
        %v2819 = vpop.f32.mrf.mxu0
        %v2820 = vadd.f32 %v711, %v2819
        %2821 = vmatmul.bf16.gmra.mxu0 %v2030
        %v2822 = vpop.f32.mrf.mxu0
        %v2823 = vadd.f32 %v711, %v2822
        %v2824 = vpop.f32.mrf.mxu0
        %v2825 = vadd.f32 %v711, %v2824
        %2826 = vmatmul.bf16.gmra.mxu0 %v2033
        %v2827 = vpop.f32.mrf.mxu0
        %v2828 = vadd.f32 %v711, %v2827
        %v2829 = vpop.f32.mrf.mxu0
        %v2830 = vadd.f32 %v711, %v2829
        %2831 = vmatmul.bf16.gmra.mxu0 %v2036
        %v2832 = vpop.f32.mrf.mxu0
        %v2833 = vadd.f32 %v711, %v2832
        %v2834 = vpop.f32.mrf.mxu0
        %v2835 = vadd.f32 %v711, %v2834
        %2836 = vmatmul.bf16.gmra.mxu0 %v2039
        %v2837 = vpop.f32.mrf.mxu0
        %v2838 = vadd.f32 %v711, %v2837
        %v2839 = vpop.f32.mrf.mxu0
        %v2840 = vadd.f32 %v711, %v2839
        %2841 = vmatmul.bf16.gmra.mxu0 %v2042
        %v2842 = vpop.f32.mrf.mxu0
        %v2843 = vadd.f32 %v711, %v2842
        %v2844 = vpop.f32.mrf.mxu0
        %v2845 = vadd.f32 %v711, %v2844
        %2846 = vmatmul.bf16.gmra.mxu0 %v2045
        %v2847 = vpop.f32.mrf.mxu0
        %v2848 = vadd.f32 %v711, %v2847
        %v2849 = vpop.f32.mrf.mxu0
        %v2850 = vadd.f32 %v711, %v2849
        %2851 = vmatmul.bf16.gmra.mxu0 %v2048
        %v2852 = vpop.f32.mrf.mxu0
        %v2853 = vadd.f32 %v711, %v2852
        %v2854 = vpop.f32.mrf.mxu0
        %v2855 = vadd.f32 %v711, %v2854
        %2856 = vmatmul.bf16.gmra.mxu0 %v2051
        %v2857 = vpop.f32.mrf.mxu0
        %v2858 = vadd.f32 %v711, %v2857
        %v2859 = vpop.f32.mrf.mxu0
        %v2860 = vadd.f32 %v711, %v2859
        %2861 = vmatmul.bf16.gmra.mxu0 %v2054
        %v2862 = vpop.f32.mrf.mxu0
        %v2863 = vadd.f32 %v711, %v2862
        %v2864 = vpop.f32.mrf.mxu0
        %v2865 = vadd.f32 %v711, %v2864
        %2866 = vmatmul.bf16.gmra.mxu0 %v2057
        %v2867 = vpop.f32.mrf.mxu0
        %v2868 = vadd.f32 %v711, %v2867
        %v2869 = vpop.f32.mrf.mxu0
        %v2870 = vadd.f32 %v711, %v2869
        %2871 = vmatmul.bf16.gmra.mxu0 %v2060
        %v2872 = vpop.f32.mrf.mxu0
        %v2873 = vadd.f32 %v711, %v2872
        %v2874 = vpop.f32.mrf.mxu0
        %v2875 = vadd.f32 %v711, %v2874
        %2876 = vmatmul.bf16.gmra.mxu0 %v2063
        %v2877 = vpop.f32.mrf.mxu0
        %v2878 = vadd.f32 %v711, %v2877
        %v2879 = vpop.f32.mrf.mxu0
        %v2880 = vadd.f32 %v711, %v2879
        %2881 = vmatmul.bf16.gmra.mxu0 %v2066
        %v2882 = vpop.f32.mrf.mxu0
        %v2883 = vadd.f32 %v711, %v2882
        %v2884 = vpop.f32.mrf.mxu0
        %v2885 = vadd.f32 %v711, %v2884
        %2886 = vmatmul.bf16.gmra.mxu0 %v2069
        %v2887 = vpop.f32.mrf.mxu0
        %v2888 = vadd.f32 %v711, %v2887
        %v2889 = vpop.f32.mrf.mxu0
        %v2890 = vadd.f32 %v711, %v2889
        %2891 = vmatmul.bf16.gmra.mxu0 %v2072
        %v2892 = vpop.f32.mrf.mxu0
        %v2893 = vadd.f32 %v711, %v2892
        %v2894 = vpop.f32.mrf.mxu0
        %v2895 = vadd.f32 %v711, %v2894
        %2896 = vmatmul.bf16.gmra.mxu0 %v2075
        %v2897 = vpop.f32.mrf.mxu0
        %v2898 = vadd.f32 %v711, %v2897
        %v2899 = vpop.f32.mrf.mxu0
        %v2900 = vadd.f32 %v711, %v2899
        %2901 = vmatmul.bf16.gmra.mxu0 %v2078
        %v2902 = vpop.f32.mrf.mxu0
        %v2903 = vadd.f32 %v711, %v2902
        %v2904 = vpop.f32.mrf.mxu0
        %v2905 = vadd.f32 %v711, %v2904
        %2906 = vmatmul.bf16.gmra.mxu0 %v2081
        %v2907 = vpop.f32.mrf.mxu0
        %v2908 = vadd.f32 %v711, %v2907
        %v2909 = vpop.f32.mrf.mxu0
        %v2910 = vadd.f32 %v711, %v2909
        %2911 = vmatmul.bf16.gmra.mxu0 %v2084
        %v2912 = vpop.f32.mrf.mxu0
        %v2913 = vadd.f32 %v711, %v2912
        %v2914 = vpop.f32.mrf.mxu0
        %v2915 = vadd.f32 %v711, %v2914
        %2916 = vmatmul.bf16.gmra.mxu0 %v2087
        %v2917 = vpop.f32.mrf.mxu0
        %v2918 = vadd.f32 %v711, %v2917
        %v2919 = vpop.f32.mrf.mxu0
        %v2920 = vadd.f32 %v711, %v2919
        %2921 = vmatmul.bf16.gmra.mxu0 %v2090
        %v2922 = vpop.f32.mrf.mxu0
        %v2923 = vadd.f32 %v711, %v2922
        %v2924 = vpop.f32.mrf.mxu0
        %v2925 = vadd.f32 %v711, %v2924
        %2926 = vmatmul.bf16.gmra.mxu0 %v2093
        %v2927 = vpop.f32.mrf.mxu0
        %v2928 = vadd.f32 %v711, %v2927
        %v2929 = vpop.f32.mrf.mxu0
        %v2930 = vadd.f32 %v711, %v2929
        %2931 = vmatmul.bf16.gmra.mxu0 %v2096
        %v2932 = vpop.f32.mrf.mxu0
        %v2933 = vadd.f32 %v711, %v2932
        %v2934 = vpop.f32.mrf.mxu0
        %v2935 = vadd.f32 %v711, %v2934
        %2936 = vmatmul.bf16.gmra.mxu0 %v2099
        %v2937 = vpop.f32.mrf.mxu0
        %v2938 = vadd.f32 %v711, %v2937
        %v2939 = vpop.f32.mrf.mxu0
        %v2940 = vadd.f32 %v711, %v2939
        %2941 = vmatmul.bf16.gmra.mxu0 %v2102
        %v2942 = vpop.f32.mrf.mxu0
        %v2943 = vadd.f32 %v711, %v2942
        %v2944 = vpop.f32.mrf.mxu0
        %v2945 = vadd.f32 %v711, %v2944
        %2946 = vmatmul.bf16.gmra.mxu0 %v2105
        %v2947 = vpop.f32.mrf.mxu0
        %v2948 = vadd.f32 %v711, %v2947
        %v2949 = vpop.f32.mrf.mxu0
        %v2950 = vadd.f32 %v711, %v2949
        %2951 = vmatmul.bf16.gmra.mxu0 %v2108
        %v2952 = vpop.f32.mrf.mxu0
        %v2953 = vadd.f32 %v711, %v2952
        %v2954 = vpop.f32.mrf.mxu0
        %v2955 = vadd.f32 %v711, %v2954
        %2956 = vmatmul.bf16.gmra.mxu0 %v2111
        %v2957 = vpop.f32.mrf.mxu0
        %v2958 = vadd.f32 %v711, %v2957
        %v2959 = vpop.f32.mrf.mxu0
        %v2960 = vadd.f32 %v711, %v2959
        %2961 = vmatmul.bf16.gmra.mxu0 %v2114
        %v2962 = vpop.f32.mrf.mxu0
        %v2963 = vadd.f32 %v711, %v2962
        %v2964 = vpop.f32.mrf.mxu0
        %v2965 = vadd.f32 %v711, %v2964
        %2966 = vmatmul.bf16.gmra.mxu0 %v2117
        %v2967 = vpop.f32.mrf.mxu0
        %v2968 = vadd.f32 %v711, %v2967
        %v2969 = vpop.f32.mrf.mxu0
        %v2970 = vadd.f32 %v711, %v2969
        %2971 = vmatmul.bf16.gmra.mxu0 %v2120
        %v2972 = vpop.f32.mrf.mxu0
        %v2973 = vadd.f32 %v711, %v2972
        %v2974 = vpop.f32.mrf.mxu0
        %v2975 = vadd.f32 %v711, %v2974
        %2976 = vmatmul.bf16.gmra.mxu0 %v2123
        %v2977 = vpop.f32.mrf.mxu0
        %v2978 = vadd.f32 %v711, %v2977
        %v2979 = vpop.f32.mrf.mxu0
        %v2980 = vadd.f32 %v711, %v2979
        %2981 = vmatmul.bf16.gmra.mxu0 %v2126
        %v2982 = vpop.f32.mrf.mxu0
        %v2983 = vadd.f32 %v711, %v2982
        %v2984 = vpop.f32.mrf.mxu0
        %v2985 = vadd.f32 %v711, %v2984
        %2986 = vmatmul.bf16.gmra.mxu0 %v2129
        %v2987 = vpop.f32.mrf.mxu0
        %v2988 = vadd.f32 %v711, %v2987
        %v2989 = vpop.f32.mrf.mxu0
        %v2990 = vadd.f32 %v711, %v2989
        %2991 = vmatmul.bf16.gmra.mxu0 %v2132
        %v2992 = vpop.f32.mrf.mxu0
        %v2993 = vadd.f32 %v711, %v2992
        %v2994 = vpop.f32.mrf.mxu0
        %v2995 = vadd.f32 %v711, %v2994
        %2996 = vmatmul.bf16.gmra.mxu0 %v2135
        %v2997 = vpop.f32.mrf.mxu0
        %v2998 = vadd.f32 %v711, %v2997
        %v2999 = vpop.f32.mrf.mxu0
        %v3000 = vadd.f32 %v711, %v2999
        %3001 = vmatmul.bf16.gmra.mxu0 %v2138
        %v3002 = vpop.f32.mrf.mxu0
        %v3003 = vadd.f32 %v711, %v3002
        %v3004 = vpop.f32.mrf.mxu0
        %v3005 = vadd.f32 %v711, %v3004
        %3006 = vmatmul.bf16.gmra.mxu0 %v2141
        %v3007 = vpop.f32.mrf.mxu0
        %v3008 = vadd.f32 %v711, %v3007
        %v3009 = vpop.f32.mrf.mxu0
        %v3010 = vadd.f32 %v711, %v3009
        %3011 = vmatmul.bf16.gmra.mxu0 %v2144
        %v3012 = vpop.f32.mrf.mxu0
        %v3013 = vadd.f32 %v711, %v3012
        %v3014 = vpop.f32.mrf.mxu0
        %v3015 = vadd.f32 %v711, %v3014
        %3016 = vmatmul.bf16.gmra.mxu0 %v2147
        %v3017 = vpop.f32.mrf.mxu0
        %v3018 = vadd.f32 %v711, %v3017
        %v3019 = vpop.f32.mrf.mxu0
        %v3020 = vadd.f32 %v711, %v3019
        %3021 = vmatmul.bf16.gmra.mxu0 %v2150
        %v3022 = vpop.f32.mrf.mxu0
        %v3023 = vadd.f32 %v711, %v3022
        %v3024 = vpop.f32.mrf.mxu0
        %v3025 = vadd.f32 %v711, %v3024
        %3026 = vmatmul.bf16.gmra.mxu0 %v2153
        %v3027 = vpop.f32.mrf.mxu0
        %v3028 = vadd.f32 %v711, %v3027
        %v3029 = vpop.f32.mrf.mxu0
        %v3030 = vadd.f32 %v711, %v3029
        %3031 = vmatmul.bf16.gmra.mxu0 %v2156
        %v3032 = vpop.f32.mrf.mxu0
        %v3033 = vadd.f32 %v711, %v3032
        %v3034 = vpop.f32.mrf.mxu0
        %v3035 = vadd.f32 %v711, %v3034
        %3036 = vmatmul.bf16.gmra.mxu0 %v2159
        %v3037 = vpop.f32.mrf.mxu0
        %v3038 = vadd.f32 %v711, %v3037
        %v3039 = vpop.f32.mrf.mxu0
        %v3040 = vadd.f32 %v711, %v3039
        %3041 = vmatmul.bf16.gmra.mxu0 %v2162
        %v3042 = vpop.f32.mrf.mxu0
        %v3043 = vadd.f32 %v711, %v3042
        %v3044 = vpop.f32.mrf.mxu0
        %v3045 = vadd.f32 %v711, %v3044
        %3046 = vmatmul.bf16.gmra.mxu0 %v2165
        %v3047 = vpop.f32.mrf.mxu0
        %v3048 = vadd.f32 %v711, %v3047
        %v3049 = vpop.f32.mrf.mxu0
        %v3050 = vadd.f32 %v711, %v3049
        %3051 = vmatmul.bf16.gmra.mxu0 %v2168
        %v3052 = vpop.f32.mrf.mxu0
        %v3053 = vadd.f32 %v711, %v3052
        %v3054 = vpop.f32.mrf.mxu0
        %v3055 = vadd.f32 %v711, %v3054
        %3056 = vmatmul.bf16.gmra.mxu0 %v2171
        %v3057 = vpop.f32.mrf.mxu0
        %v3058 = vadd.f32 %v711, %v3057
        %v3059 = vpop.f32.mrf.mxu0
        %v3060 = vadd.f32 %v711, %v3059
        %3061 = vmatmul.bf16.gmra.mxu0 %v2174
        %v3062 = vpop.f32.mrf.mxu0
        %v3063 = vadd.f32 %v711, %v3062
        %v3064 = vpop.f32.mrf.mxu0
        %v3065 = vadd.f32 %v711, %v3064
        %3066 = vmatmul.bf16.gmra.mxu0 %v2177
        %v3067 = vpop.f32.mrf.mxu0
        %v3068 = vadd.f32 %v711, %v3067
        %v3069 = vpop.f32.mrf.mxu0
        %v3070 = vadd.f32 %v711, %v3069
        %3071 = vmatmul.bf16.gmra.mxu0 %v2180
        %v3072 = vpop.f32.mrf.mxu0
        %v3073 = vadd.f32 %v711, %v3072
        %v3074 = vpop.f32.mrf.mxu0
        %v3075 = vadd.f32 %v711, %v3074
        %3076 = vmatmul.bf16.gmra.mxu0 %v2183
        %v3077 = vpop.f32.mrf.mxu0
        %v3078 = vadd.f32 %v711, %v3077
        %v3079 = vpop.f32.mrf.mxu0
        %v3080 = vadd.f32 %v711, %v3079
        %3081 = vmatmul.bf16.gmra.mxu0 %v2186
        %v3082 = vpop.f32.mrf.mxu0
        %v3083 = vadd.f32 %v711, %v3082
        %v3084 = vpop.f32.mrf.mxu0
        %v3085 = vadd.f32 %v711, %v3084
        %3086 = vmatmul.bf16.gmra.mxu0 %v2189
        %v3087 = vpop.f32.mrf.mxu0
        %v3088 = vadd.f32 %v711, %v3087
        %v3089 = vpop.f32.mrf.mxu0
        %v3090 = vadd.f32 %v711, %v3089
        %3091 = vmatmul.bf16.gmra.mxu0 %v2192
        %v3092 = vpop.f32.mrf.mxu0
        %v3093 = vadd.f32 %v711, %v3092
        %v3094 = vpop.f32.mrf.mxu0
        %v3095 = vadd.f32 %v711, %v3094
        %3096 = vmatmul.bf16.gmra.mxu0 %v2195
        %v3097 = vpop.f32.mrf.mxu0
        %v3098 = vadd.f32 %v711, %v3097
        %v3099 = vpop.f32.mrf.mxu0
        %v3100 = vadd.f32 %v711, %v3099
        %3101 = vmatmul.bf16.gmra.mxu0 %v2198
        %v3102 = vpop.f32.mrf.mxu0
        %v3103 = vadd.f32 %v711, %v3102
        %v3104 = vpop.f32.mrf.mxu0
        %v3105 = vadd.f32 %v711, %v3104
        %3106 = vmatmul.bf16.gmra.mxu0 %v2201
        %v3107 = vpop.f32.mrf.mxu0
        %v3108 = vadd.f32 %v711, %v3107
        %v3109 = vpop.f32.mrf.mxu0
        %v3110 = vadd.f32 %v711, %v3109
        %3111 = vmatmul.bf16.gmra.mxu0 %v2204
        %v3112 = vpop.f32.mrf.mxu0
        %v3113 = vadd.f32 %v711, %v3112
        %v3114 = vpop.f32.mrf.mxu0
        %v3115 = vadd.f32 %v711, %v3114
        %3116 = vmatmul.bf16.gmra.mxu0 %v2207
        %v3117 = vpop.f32.mrf.mxu0
        %v3118 = vadd.f32 %v711, %v3117
        %v3119 = vpop.f32.mrf.mxu0
        %v3120 = vadd.f32 %v711, %v3119
        %3121 = vmatmul.bf16.gmra.mxu0 %v2210
        %v3122 = vpop.f32.mrf.mxu0
        %v3123 = vadd.f32 %v711, %v3122
        %v3124 = vpop.f32.mrf.mxu0
        %v3125 = vadd.f32 %v711, %v3124
        %3126 = vmatmul.bf16.gmra.mxu0 %v2213
        %v3127 = vpop.f32.mrf.mxu0
        %v3128 = vadd.f32 %v711, %v3127
        %v3129 = vpop.f32.mrf.mxu0
        %v3130 = vadd.f32 %v711, %v3129
        %3131 = vmatmul.bf16.gmra.mxu0 %v2216
        %v3132 = vpop.f32.mrf.mxu0
        %v3133 = vadd.f32 %v711, %v3132
        %v3134 = vpop.f32.mrf.mxu0
        %v3135 = vadd.f32 %v711, %v3134
        %3136 = vmatmul.bf16.gmra.mxu0 %v2219
        %v3137 = vpop.f32.mrf.mxu0
        %v3138 = vadd.f32 %v711, %v3137
        %v3139 = vpop.f32.mrf.mxu0
        %v3140 = vadd.f32 %v711, %v3139
        %3141 = vmatmul.bf16.gmra.mxu0 %v2222
        %v3142 = vpop.f32.mrf.mxu0
        %v3143 = vadd.f32 %v711, %v3142
        %v3144 = vpop.f32.mrf.mxu0
        %v3145 = vadd.f32 %v711, %v3144
        %3146 = vmatmul.bf16.gmra.mxu0 %v2225
        %v3147 = vpop.f32.mrf.mxu0
        %v3148 = vadd.f32 %v711, %v3147
        %v3149 = vpop.f32.mrf.mxu0
        %v3150 = vadd.f32 %v711, %v3149
        %3151 = vmatmul.bf16.gmra.mxu0 %v2228
        %v3152 = vpop.f32.mrf.mxu0
        %v3153 = vadd.f32 %v711, %v3152
        %v3154 = vpop.f32.mrf.mxu0
        %v3155 = vadd.f32 %v711, %v3154
        %3156 = vmatmul.bf16.gmra.mxu0 %v2231
        %v3157 = vpop.f32.mrf.mxu0
        %v3158 = vadd.f32 %v711, %v3157
        %v3159 = vpop.f32.mrf.mxu0
        %v3160 = vadd.f32 %v711, %v3159
        %3161 = vmatmul.bf16.gmra.mxu0 %v2234
        %v3162 = vpop.f32.mrf.mxu0
        %v3163 = vadd.f32 %v711, %v3162
        %v3164 = vpop.f32.mrf.mxu0
        %v3165 = vadd.f32 %v711, %v3164
        %3166 = vmatmul.bf16.gmra.mxu0 %v2237
        %v3167 = vpop.f32.mrf.mxu0
        %v3168 = vadd.f32 %v711, %v3167
        %v3169 = vpop.f32.mrf.mxu0
        %v3170 = vadd.f32 %v711, %v3169
        %3171 = vmatmul.bf16.gmra.mxu0 %v2240
        %v3172 = vpop.f32.mrf.mxu0
        %v3173 = vadd.f32 %v711, %v3172
        %v3174 = vpop.f32.mrf.mxu0
        %v3175 = vadd.f32 %v711, %v3174
        %3176 = vmatmul.bf16.gmra.mxu0 %v2243
        %v3177 = vpop.f32.mrf.mxu0
        %v3178 = vadd.f32 %v711, %v3177
        %v3179 = vpop.f32.mrf.mxu0
        %v3180 = vadd.f32 %v711, %v3179
        %3181 = vmatmul.bf16.gmra.mxu0 %v2246
        %v3182 = vpop.f32.mrf.mxu0
        %v3183 = vadd.f32 %v711, %v3182
        %v3184 = vpop.f32.mrf.mxu0
        %v3185 = vadd.f32 %v711, %v3184
        %3186 = vmatmul.bf16.gmra.mxu0 %v2249
        %v3187 = vpop.f32.mrf.mxu0
        %v3188 = vadd.f32 %v711, %v3187
        %v3189 = vpop.f32.mrf.mxu0
        %v3190 = vadd.f32 %v711, %v3189
        %3191 = vmatmul.bf16.gmra.mxu0 %v2252
        %v3192 = vpop.f32.mrf.mxu0
        %v3193 = vadd.f32 %v711, %v3192
        %v3194 = vpop.f32.mrf.mxu0
        %v3195 = vadd.f32 %v711, %v3194
        %3196 = vmatmul.bf16.gmra.mxu0 %v2255
        %v3197 = vpop.f32.mrf.mxu0
        %v3198 = vadd.f32 %v711, %v3197
        %v3199 = vpop.f32.mrf.mxu0
        %v3200 = vadd.f32 %v711, %v3199
        %3201 = vmatmul.bf16.gmra.mxu0 %v2258
        %v3202 = vpop.f32.mrf.mxu0
        %v3203 = vadd.f32 %v711, %v3202
        %v3204 = vpop.f32.mrf.mxu0
        %v3205 = vadd.f32 %v711, %v3204
        %3206 = vmatmul.bf16.gmra.mxu0 %v2261
        %v3207 = vpop.f32.mrf.mxu0
        %v3208 = vadd.f32 %v711, %v3207
        %v3209 = vpop.f32.mrf.mxu0
        %v3210 = vadd.f32 %v711, %v3209
        %3211 = vmatmul.bf16.gmra.mxu0 %v2264
        %v3212 = vpop.f32.mrf.mxu0
        %v3213 = vadd.f32 %v711, %v3212
        %v3214 = vpop.f32.mrf.mxu0
        %v3215 = vadd.f32 %v711, %v3214
        %3216 = vmatmul.bf16.gmra.mxu0 %v2267
        %v3217 = vpop.f32.mrf.mxu0
        %v3218 = vadd.f32 %v711, %v3217
        %v3219 = vpop.f32.mrf.mxu0
        %v3220 = vadd.f32 %v711, %v3219
        %3221 = vmatmul.bf16.gmra.mxu0 %v2270
        %v3222 = vpop.f32.mrf.mxu0
        %v3223 = vadd.f32 %v711, %v3222
        %v3224 = vpop.f32.mrf.mxu0
        %v3225 = vadd.f32 %v711, %v3224
        %3226 = vmatmul.bf16.gmra.mxu0 %v2273
        %v3227 = vpop.f32.mrf.mxu0
        %v3228 = vadd.f32 %v711, %v3227
        %v3229 = vpop.f32.mrf.mxu0
        %v3230 = vadd.f32 %v711, %v3229
        %3231 = vmatmul.bf16.gmra.mxu0 %v2276
        %v3232 = vpop.f32.mrf.mxu0
        %v3233 = vadd.f32 %v711, %v3232
        %v3234 = vpop.f32.mrf.mxu0
        %v3235 = vadd.f32 %v711, %v3234
        %3236 = vmatmul.bf16.gmra.mxu0 %v2279
        %v3237 = vpop.f32.mrf.mxu0
        %v3238 = vadd.f32 %v711, %v3237
        %v3239 = vpop.f32.mrf.mxu0
        %v3240 = vadd.f32 %v711, %v3239
        %3241 = vmatmul.bf16.gmra.mxu0 %v2282
        %v3242 = vpop.f32.mrf.mxu0
        %v3243 = vadd.f32 %v711, %v3242
        %v3244 = vpop.f32.mrf.mxu0
        %v3245 = vadd.f32 %v711, %v3244
        %3246 = vmatmul.bf16.gmra.mxu0 %v2285
        %v3247 = vpop.f32.mrf.mxu0
        %v3248 = vadd.f32 %v711, %v3247
        %v3249 = vpop.f32.mrf.mxu0
        %v3250 = vadd.f32 %v711, %v3249
        %3251 = vmatmul.bf16.gmra.mxu0 %v2288
        %v3252 = vpop.f32.mrf.mxu0
        %v3253 = vadd.f32 %v711, %v3252
        %v3254 = vpop.f32.mrf.mxu0
        %v3255 = vadd.f32 %v711, %v3254
        %3256 = vmatmul.bf16.gmra.mxu0 %v2291
        %v3257 = vpop.f32.mrf.mxu0
        %v3258 = vadd.f32 %v711, %v3257
        %v3259 = vpop.f32.mrf.mxu0
        %v3260 = vadd.f32 %v711, %v3259
        %3261 = vmatmul.bf16.gmra.mxu0 %v2294
        %v3262 = vpop.f32.mrf.mxu0
        %v3263 = vadd.f32 %v711, %v3262
        %v3264 = vpop.f32.mrf.mxu0
        %v3265 = vadd.f32 %v711, %v3264
        %3266 = vmatmul.bf16.gmra.mxu0 %v2297
        %v3267 = vpop.f32.mrf.mxu0
        %v3268 = vadd.f32 %v711, %v3267
        %v3269 = vpop.f32.mrf.mxu0
        %v3270 = vadd.f32 %v711, %v3269
        %3271 = vmatmul.bf16.gmra.mxu0 %v2300
        %v3272 = vpop.f32.mrf.mxu0
        %v3273 = vadd.f32 %v711, %v3272
        %v3274 = vpop.f32.mrf.mxu0
        %v3275 = vadd.f32 %v711, %v3274
        %3276 = vmatmul.bf16.gmra.mxu0 %v2303
        %v3277 = vpop.f32.mrf.mxu0
        %v3278 = vadd.f32 %v711, %v3277
        %v3279 = vpop.f32.mrf.mxu0
        %v3280 = vadd.f32 %v711, %v3279
        %3281 = vmatmul.bf16.gmra.mxu0 %v2306
        %v3282 = vpop.f32.mrf.mxu0
        %v3283 = vadd.f32 %v711, %v3282
        %v3284 = vpop.f32.mrf.mxu0
        %v3285 = vadd.f32 %v711, %v3284
        %3286 = vmatmul.bf16.gmra.mxu0 %v2309
        %v3287 = vpop.f32.mrf.mxu0
        %v3288 = vadd.f32 %v711, %v3287
        %v3289 = vpop.f32.mrf.mxu0
        %v3290 = vadd.f32 %v711, %v3289
        %3291 = vmatmul.bf16.gmra.mxu0 %v2312
        %v3292 = vpop.f32.mrf.mxu0
        %v3293 = vadd.f32 %v711, %v3292
        %v3294 = vpop.f32.mrf.mxu0
        %v3295 = vadd.f32 %v711, %v3294
        %3296 = vmatmul.bf16.gmra.mxu0 %v2315
        %v3297 = vpop.f32.mrf.mxu0
        %v3298 = vadd.f32 %v711, %v3297
        %v3299 = vpop.f32.mrf.mxu0
        %v3300 = vadd.f32 %v711, %v3299
        %3301 = vmatmul.bf16.gmra.mxu0 %v2318
        %v3302 = vpop.f32.mrf.mxu0
        %v3303 = vadd.f32 %v711, %v3302
        %v3304 = vpop.f32.mrf.mxu0
        %v3305 = vadd.f32 %v711, %v3304
        %3306 = vmatmul.bf16.gmra.mxu0 %v2321
        %v3307 = vpop.f32.mrf.mxu0
        %v3308 = vadd.f32 %v711, %v3307
        %v3309 = vpop.f32.mrf.mxu0
        %v3310 = vadd.f32 %v711, %v3309
        %3311 = vmatmul.bf16.gmra.mxu0 %v2324
        %v3312 = vpop.f32.mrf.mxu0
        %v3313 = vadd.f32 %v711, %v3312
        %v3314 = vpop.f32.mrf.mxu0
        %v3315 = vadd.f32 %v711, %v3314
        %3316 = vmatmul.bf16.gmra.mxu0 %v2327
        %v3317 = vpop.f32.mrf.mxu0
        %v3318 = vadd.f32 %v711, %v3317
        %v3319 = vpop.f32.mrf.mxu0
        %v3320 = vadd.f32 %v711, %v3319
        %3321 = vmatmul.bf16.gmra.mxu0 %v2330
        %v3322 = vpop.f32.mrf.mxu0
        %v3323 = vadd.f32 %v711, %v3322
        %v3324 = vpop.f32.mrf.mxu0
        %v3325 = vadd.f32 %v711, %v3324
        %3326 = vmatmul.bf16.gmra.mxu0 %v2333
        %v3327 = vpop.f32.mrf.mxu0
        %v3328 = vadd.f32 %v711, %v3327
        %v3329 = vpop.f32.mrf.mxu0
        %v3330 = vadd.f32 %v711, %v3329
        %3331 = vmatmul.bf16.gmra.mxu0 %v2336
        %v3332 = vpop.f32.mrf.mxu0
        %v3333 = vadd.f32 %v711, %v3332
        %v3334 = vpop.f32.mrf.mxu0
        %v3335 = vadd.f32 %v711, %v3334
        %3336 = vmatmul.bf16.gmra.mxu0 %v2339
        %v3337 = vpop.f32.mrf.mxu0
        %v3338 = vadd.f32 %v711, %v3337
        %v3339 = vpop.f32.mrf.mxu0
        %v3340 = vadd.f32 %v711, %v3339
        %3341 = vmatmul.bf16.gmra.mxu0 %v2342
        %v3342 = vpop.f32.mrf.mxu0
        %v3343 = vadd.f32 %v711, %v3342
        %v3344 = vpop.f32.mrf.mxu0
        %v3345 = vadd.f32 %v711, %v3344
        %3346 = vmatmul.bf16.gmra.mxu0 %v2345
        %v3347 = vpop.f32.mrf.mxu0
        %v3348 = vadd.f32 %v711, %v3347
        %v3349 = vpop.f32.mrf.mxu0
        %v3350 = vadd.f32 %v711, %v3349
        %3351 = vmatmul.bf16.gmra.mxu0 %v2348
        %v3352 = vpop.f32.mrf.mxu0
        %v3353 = vadd.f32 %v711, %v3352
        %v3354 = vpop.f32.mrf.mxu0
        %v3355 = vadd.f32 %v711, %v3354
        %3356 = vmatmul.bf16.gmra.mxu0 %v2351
        %v3357 = vpop.f32.mrf.mxu0
        %v3358 = vadd.f32 %v711, %v3357
        %v3359 = vpop.f32.mrf.mxu0
        %v3360 = vadd.f32 %v711, %v3359
        %3361 = vmatmul.bf16.gmra.mxu0 %v2354
        %v3362 = vpop.f32.mrf.mxu0
        %v3363 = vadd.f32 %v711, %v3362
        %v3364 = vpop.f32.mrf.mxu0
        %v3365 = vadd.f32 %v711, %v3364
        %3366 = vmatmul.bf16.gmra.mxu0 %v2357
        %v3367 = vpop.f32.mrf.mxu0
        %v3368 = vadd.f32 %v711, %v3367
        %v3369 = vpop.f32.mrf.mxu0
        %v3370 = vadd.f32 %v711, %v3369
        %3371 = vmatmul.bf16.gmra.mxu0 %v2360
        %v3372 = vpop.f32.mrf.mxu0
        %v3373 = vadd.f32 %v711, %v3372
        %v3374 = vpop.f32.mrf.mxu0
        %v3375 = vadd.f32 %v711, %v3374
        %3376 = vmatmul.bf16.gmra.mxu0 %v2363
        %v3377 = vpop.f32.mrf.mxu0
        %v3378 = vadd.f32 %v711, %v3377
        %v3379 = vpop.f32.mrf.mxu0
        %v3380 = vadd.f32 %v711, %v3379
        %3381 = vmatmul.bf16.gmra.mxu0 %v2366
        %v3382 = vpop.f32.mrf.mxu0
        %v3383 = vadd.f32 %v711, %v3382
        %v3384 = vpop.f32.mrf.mxu0
        %v3385 = vadd.f32 %v711, %v3384
        %3386 = vmatmul.bf16.gmra.mxu0 %v2369
        %v3387 = vpop.f32.mrf.mxu0
        %v3388 = vadd.f32 %v711, %v3387
        %v3389 = vpop.f32.mrf.mxu0
        %v3390 = vadd.f32 %v711, %v3389
        %3391 = vmatmul.bf16.gmra.mxu0 %v2372
        %v3392 = vpop.f32.mrf.mxu0
        %v3393 = vadd.f32 %v711, %v3392
        %v3394 = vpop.f32.mrf.mxu0
        %v3395 = vadd.f32 %v711, %v3394
        %3396 = vmatmul.bf16.gmra.mxu0 %v2375
        %v3397 = vpop.f32.mrf.mxu0
        %v3398 = vadd.f32 %v711, %v3397
        %v3399 = vpop.f32.mrf.mxu0
        %v3400 = vadd.f32 %v711, %v3399
        %3401 = vmatmul.bf16.gmra.mxu0 %v2378
        %v3402 = vpop.f32.mrf.mxu0
        %v3403 = vadd.f32 %v711, %v3402
        %v3404 = vpop.f32.mrf.mxu0
        %v3405 = vadd.f32 %v711, %v3404
        %3406 = vmatmul.bf16.gmra.mxu0 %v2381
        %v3407 = vpop.f32.mrf.mxu0
        %v3408 = vadd.f32 %v711, %v3407
        %v3409 = vpop.f32.mrf.mxu0
        %v3410 = vadd.f32 %v711, %v3409
        %3411 = vmatmul.bf16.gmra.mxu0 %v2384
        %v3412 = vpop.f32.mrf.mxu0
        %v3413 = vadd.f32 %v711, %v3412
        %v3414 = vpop.f32.mrf.mxu0
        %v3415 = vadd.f32 %v711, %v3414
        %3416 = vmatmul.bf16.gmra.mxu0 %v2387
        %v3417 = vpop.f32.mrf.mxu0
        %v3418 = vadd.f32 %v711, %v3417
        %v3419 = vpop.f32.mrf.mxu0
        %v3420 = vadd.f32 %v711, %v3419
        %3421 = vmatmul.bf16.gmra.mxu0 %v2390
        %v3422 = vpop.f32.mrf.mxu0
        %v3423 = vadd.f32 %v711, %v3422
        %v3424 = vpop.f32.mrf.mxu0
        %v3425 = vadd.f32 %v711, %v3424
        %3426 = vmatmul.bf16.gmra.mxu0 %v2393
        %v3427 = vpop.f32.mrf.mxu0
        %v3428 = vadd.f32 %v711, %v3427
        %v3429 = vpop.f32.mrf.mxu0
        %v3430 = vadd.f32 %v711, %v3429
        %3431 = vmatmul.bf16.gmra.mxu0 %v2396
        %v3432 = vpop.f32.mrf.mxu0
        %v3433 = vadd.f32 %v711, %v3432
        %v3434 = vpop.f32.mrf.mxu0
        %v3435 = vadd.f32 %v711, %v3434
        %3436 = vmatmul.bf16.gmra.mxu0 %v2399
        %v3437 = vpop.f32.mrf.mxu0
        %v3438 = vadd.f32 %v711, %v3437
        %v3439 = vpop.f32.mrf.mxu0
        %v3440 = vadd.f32 %v711, %v3439
        %3441 = vmatmul.bf16.gmra.mxu0 %v2402
        %v3442 = vpop.f32.mrf.mxu0
        %v3443 = vadd.f32 %v711, %v3442
        %v3444 = vpop.f32.mrf.mxu0
        %v3445 = vadd.f32 %v711, %v3444
        %3446 = vmatmul.bf16.gmra.mxu0 %v2405
        %v3447 = vpop.f32.mrf.mxu0
        %v3448 = vadd.f32 %v711, %v3447
        %v3449 = vpop.f32.mrf.mxu0
        %v3450 = vadd.f32 %v711, %v3449
        %3451 = vmatmul.bf16.gmra.mxu0 %v2408
        %v3452 = vpop.f32.mrf.mxu0
        %v3453 = vadd.f32 %v711, %v3452
        %v3454 = vpop.f32.mrf.mxu0
        %v3455 = vadd.f32 %v711, %v3454
        %3456 = vmatmul.bf16.gmra.mxu0 %v2411
        %v3457 = vpop.f32.mrf.mxu0
        %v3458 = vadd.f32 %v711, %v3457
        %v3459 = vpop.f32.mrf.mxu0
        %v3460 = vadd.f32 %v711, %v3459
        %3461 = vmatmul.bf16.gmra.mxu0 %v2414
        %v3462 = vpop.f32.mrf.mxu0
        %v3463 = vadd.f32 %v711, %v3462
        %v3464 = vpop.f32.mrf.mxu0
        %v3465 = vadd.f32 %v711, %v3464
        %3466 = vmatmul.bf16.gmra.mxu0 %v2417
        %v3467 = vpop.f32.mrf.mxu0
        %v3468 = vadd.f32 %v711, %v3467
        %v3469 = vpop.f32.mrf.mxu0
        %v3470 = vadd.f32 %v711, %v3469
        %3471 = vmatmul.bf16.gmra.mxu0 %v2420
        %v3472 = vpop.f32.mrf.mxu0
        %v3473 = vadd.f32 %v711, %v3472
        %v3474 = vpop.f32.mrf.mxu0
        %v3475 = vadd.f32 %v711, %v3474
        %3476 = vmatmul.bf16.gmra.mxu0 %v2423
        %v3477 = vpop.f32.mrf.mxu0
        %v3478 = vadd.f32 %v711, %v3477
        %v3479 = vpop.f32.mrf.mxu0
        %v3480 = vadd.f32 %v711, %v3479
        %3481 = vmatmul.bf16.gmra.mxu0 %v2426
        %v3482 = vpop.f32.mrf.mxu0
        %v3483 = vadd.f32 %v711, %v3482
        %v3484 = vpop.f32.mrf.mxu0
        %v3485 = vadd.f32 %v711, %v3484
        %3486 = vmatmul.bf16.gmra.mxu0 %v2429
        %v3487 = vpop.f32.mrf.mxu0
        %v3488 = vadd.f32 %v711, %v3487
        %v3489 = vpop.f32.mrf.mxu0
        %v3490 = vadd.f32 %v711, %v3489
        %3491 = vmatmul.bf16.gmra.mxu0 %v2432
        %v3492 = vpop.f32.mrf.mxu0
        %v3493 = vadd.f32 %v711, %v3492
        %v3494 = vpop.f32.mrf.mxu0
        %v3495 = vadd.f32 %v711, %v3494
        %3496 = vmatmul.bf16.gmra.mxu0 %v2435
        %v3497 = vpop.f32.mrf.mxu0
        %v3498 = vadd.f32 %v711, %v3497
        %v3499 = vpop.f32.mrf.mxu0
        %v3500 = vadd.f32 %v711, %v3499
        %3501 = vmatmul.bf16.gmra.mxu0 %v2438
        %v3502 = vpop.f32.mrf.mxu0
        %v3503 = vadd.f32 %v711, %v3502
        %v3504 = vpop.f32.mrf.mxu0
        %v3505 = vadd.f32 %v711, %v3504
        %3506 = vmatmul.bf16.gmra.mxu0 %v2441
        %v3507 = vpop.f32.mrf.mxu0
        %v3508 = vadd.f32 %v711, %v3507
        %v3509 = vpop.f32.mrf.mxu0
        %v3510 = vadd.f32 %v711, %v3509
        %3511 = vmatmul.bf16.gmra.mxu0 %v2444
        %v3512 = vpop.f32.mrf.mxu0
        %v3513 = vadd.f32 %v711, %v3512
        %v3514 = vpop.f32.mrf.mxu0
        %v3515 = vadd.f32 %v711, %v3514
        %3516 = vmatmul.bf16.gmra.mxu0 %v2447
        %v3517 = vpop.f32.mrf.mxu0
        %v3518 = vadd.f32 %v711, %v3517
        %v3519 = vpop.f32.mrf.mxu0
        %v3520 = vadd.f32 %v711, %v3519
        %3521 = vmatmul.bf16.gmra.mxu0 %v2450
        %v3522 = vpop.f32.mrf.mxu0
        %v3523 = vadd.f32 %v711, %v3522
        %v3524 = vpop.f32.mrf.mxu0
        %v3525 = vadd.f32 %v711, %v3524
        %3526 = vmatmul.bf16.gmra.mxu0 %v2453
        %v3527 = vpop.f32.mrf.mxu0
        %v3528 = vadd.f32 %v711, %v3527
        %v3529 = vpop.f32.mrf.mxu0
        %v3530 = vadd.f32 %v711, %v3529
        %3531 = vmatmul.bf16.gmra.mxu0 %v2456
        %v3532 = vpop.f32.mrf.mxu0
        %v3533 = vadd.f32 %v711, %v3532
        %v3534 = vpop.f32.mrf.mxu0
        %v3535 = vadd.f32 %v711, %v3534
        %3536 = vmatmul.bf16.gmra.mxu0 %v2459
        %v3537 = vpop.f32.mrf.mxu0
        %v3538 = vadd.f32 %v711, %v3537
        %v3539 = vpop.f32.mrf.mxu0
        %v3540 = vadd.f32 %v711, %v3539
        %3541 = vmatmul.bf16.gmra.mxu0 %v2462
        %v3542 = vpop.f32.mrf.mxu0
        %v3543 = vadd.f32 %v711, %v3542
        %v3544 = vpop.f32.mrf.mxu0
        %v3545 = vadd.f32 %v711, %v3544
        %3546 = vmatmul.bf16.gmra.mxu0 %v2465
        %v3547 = vpop.f32.mrf.mxu0
        %v3548 = vadd.f32 %v711, %v3547
        %v3549 = vpop.f32.mrf.mxu0
        %v3550 = vadd.f32 %v711, %v3549
        %3551 = vmatmul.bf16.gmra.mxu0 %v2468
        %v3552 = vpop.f32.mrf.mxu0
        %v3553 = vadd.f32 %v711, %v3552
        %v3554 = vpop.f32.mrf.mxu0
        %v3555 = vadd.f32 %v711, %v3554
        %3556 = vmatmul.bf16.gmra.mxu0 %v2471
        %v3557 = vpop.f32.mrf.mxu0
        %v3558 = vadd.f32 %v711, %v3557
        %v3559 = vpop.f32.mrf.mxu0
        %v3560 = vadd.f32 %v711, %v3559
        %3561 = vmatmul.bf16.gmra.mxu0 %v2474
        %v3562 = vpop.f32.mrf.mxu0
        %v3563 = vadd.f32 %v711, %v3562
        %v3564 = vpop.f32.mrf.mxu0
        %v3565 = vadd.f32 %v711, %v3564
        %3566 = vmatmul.bf16.gmra.mxu0 %v2477
        %v3567 = vpop.f32.mrf.mxu0
        %v3568 = vadd.f32 %v711, %v3567
        %v3569 = vpop.f32.mrf.mxu0
        %v3570 = vadd.f32 %v711, %v3569
        %3571 = vmatmul.bf16.gmra.mxu0 %v2480
        %v3572 = vpop.f32.mrf.mxu0
        %v3573 = vadd.f32 %v711, %v3572
        %v3574 = vpop.f32.mrf.mxu0
        %v3575 = vadd.f32 %v711, %v3574
        %3576 = vmatmul.bf16.gmra.mxu0 %v2483
        %v3577 = vpop.f32.mrf.mxu0
        %v3578 = vadd.f32 %v711, %v3577
        %v3579 = vpop.f32.mrf.mxu0
        %v3580 = vadd.f32 %v711, %v3579
        %3581 = vmatmul.bf16.gmra.mxu0 %v2486
        %v3582 = vpop.f32.mrf.mxu0
        %v3583 = vadd.f32 %v711, %v3582
        %v3584 = vpop.f32.mrf.mxu0
        %v3585 = vadd.f32 %v711, %v3584
        %3586 = vmatmul.bf16.gmra.mxu0 %v2489
        %v3587 = vpop.f32.mrf.mxu0
        %v3588 = vadd.f32 %v711, %v3587
        %v3589 = vpop.f32.mrf.mxu0
        %v3590 = vadd.f32 %v711, %v3589
        %3591 = vmatmul.bf16.gmra.mxu0 %v2492
        %v3592 = vpop.f32.mrf.mxu0
        %v3593 = vadd.f32 %v711, %v3592
        %v3594 = vpop.f32.mrf.mxu0
        %v3595 = vadd.f32 %v711, %v3594
        %3596 = vmatmul.bf16.gmra.mxu0 %v2495
        %v3597 = vpop.f32.mrf.mxu0
        %v3598 = vadd.f32 %v711, %v3597
        %v3599 = vpop.f32.mrf.mxu0
        %v3600 = vadd.f32 %v711, %v3599
        %3601 = vmatmul.bf16.gmra.mxu0 %v2498
        %v3602 = vpop.f32.mrf.mxu0
        %v3603 = vadd.f32 %v711, %v3602
        %v3604 = vpop.f32.mrf.mxu0
        %v3605 = vadd.f32 %v711, %v3604
        %3606 = vmatmul.bf16.gmra.mxu0 %v2501
        %v3607 = vpop.f32.mrf.mxu0
        %v3608 = vadd.f32 %v711, %v3607
        %v3609 = vpop.f32.mrf.mxu0
        %v3610 = vadd.f32 %v711, %v3609
        %3611 = vmatmul.bf16.gmra.mxu0 %v2504
        %v3612 = vpop.f32.mrf.mxu0
        %v3613 = vadd.f32 %v711, %v3612
        %v3614 = vpop.f32.mrf.mxu0
        %v3615 = vadd.f32 %v711, %v3614
        %3616 = vmatmul.bf16.gmra.mxu0 %v2507
        %v3617 = vpop.f32.mrf.mxu0
        %v3618 = vadd.f32 %v711, %v3617
        %v3619 = vpop.f32.mrf.mxu0
        %v3620 = vadd.f32 %v711, %v3619
        %3621 = vmatmul.bf16.gmra.mxu0 %v2510
        %v3622 = vpop.f32.mrf.mxu0
        %v3623 = vadd.f32 %v711, %v3622
        %v3624 = vpop.f32.mrf.mxu0
        %v3625 = vadd.f32 %v711, %v3624
        %3626 = vmatmul.bf16.gmra.mxu0 %v2513
        %v3627 = vpop.f32.mrf.mxu0
        %v3628 = vadd.f32 %v711, %v3627
        %v3629 = vpop.f32.mrf.mxu0
        %v3630 = vadd.f32 %v711, %v3629
        %3631 = vmatmul.bf16.gmra.mxu0 %v2516
        %v3632 = vpop.f32.mrf.mxu0
        %v3633 = vadd.f32 %v711, %v3632
        %v3634 = vpop.f32.mrf.mxu0
        %v3635 = vadd.f32 %v711, %v3634
        %3636 = vmatmul.bf16.gmra.mxu0 %v2519
        %v3637 = vpop.f32.mrf.mxu0
        %v3638 = vadd.f32 %v711, %v3637
        %v3639 = vpop.f32.mrf.mxu0
        %v3640 = vadd.f32 %v711, %v3639
        %3641 = vmatmul.bf16.gmra.mxu0 %v2522
        %v3642 = vpop.f32.mrf.mxu0
        %v3643 = vadd.f32 %v711, %v3642
        %v3644 = vpop.f32.mrf.mxu0
        %v3645 = vadd.f32 %v711, %v3644
        %3646 = vmatmul.bf16.gmra.mxu0 %v2525
        %v3647 = vpop.f32.mrf.mxu0
        %v3648 = vadd.f32 %v711, %v3647
        %v3649 = vpop.f32.mrf.mxu0
        %v3650 = vadd.f32 %v711, %v3649
        %3651 = vmatmul.bf16.gmra.mxu0 %v2528
        %v3652 = vpop.f32.mrf.mxu0
        %v3653 = vadd.f32 %v711, %v3652
        %v3654 = vpop.f32.mrf.mxu0
        %v3655 = vadd.f32 %v711, %v3654
        %3656 = vmatmul.bf16.gmra.mxu0 %v2531
        %v3657 = vpop.f32.mrf.mxu0
        %v3658 = vadd.f32 %v711, %v3657
        %v3659 = vpop.f32.mrf.mxu0
        %v3660 = vadd.f32 %v711, %v3659
        %3661 = vmatmul.bf16.gmra.mxu0 %v2534
        %v3662 = vpop.f32.mrf.mxu0
        %v3663 = vadd.f32 %v711, %v3662
        %v3664 = vpop.f32.mrf.mxu0
        %v3665 = vadd.f32 %v711, %v3664
        %3666 = vmatmul.bf16.gmra.mxu0 %v2537
        %v3667 = vpop.f32.mrf.mxu0
        %v3668 = vadd.f32 %v711, %v3667
        %v3669 = vpop.f32.mrf.mxu0
        %v3670 = vadd.f32 %v711, %v3669
        %3671 = vmatmul.bf16.gmra.mxu0 %v2540
        %v3672 = vpop.f32.mrf.mxu0
        %v3673 = vadd.f32 %v711, %v3672
        %v3674 = vpop.f32.mrf.mxu0
        %v3675 = vadd.f32 %v711, %v3674
        %3676 = vmatmul.bf16.gmra.mxu0 %v2543
        %v3677 = vpop.f32.mrf.mxu0
        %v3678 = vadd.f32 %v711, %v3677
        %v3679 = vpop.f32.mrf.mxu0
        %v3680 = vadd.f32 %v711, %v3679
        %3681 = vmatmul.bf16.gmra.mxu0 %v2546
        %v3682 = vpop.f32.mrf.mxu0
        %v3683 = vadd.f32 %v711, %v3682
        %v3684 = vpop.f32.mrf.mxu0
        %v3685 = vadd.f32 %v711, %v3684
        %3686 = vmatmul.bf16.gmra.mxu0 %v2549
        %v3687 = vpop.f32.mrf.mxu0
        %v3688 = vadd.f32 %v711, %v3687
        %v3689 = vpop.f32.mrf.mxu0
        %v3690 = vadd.f32 %v711, %v3689
        %3691 = vmatmul.bf16.gmra.mxu0 %v2552
        %v3692 = vpop.f32.mrf.mxu0
        %v3693 = vadd.f32 %v711, %v3692
        %v3694 = vpop.f32.mrf.mxu0
        %v3695 = vadd.f32 %v711, %v3694
        %3696 = vmatmul.bf16.gmra.mxu0 %v2555
        %v3697 = vpop.f32.mrf.mxu0
        %v3698 = vadd.f32 %v711, %v3697
        %v3699 = vpop.f32.mrf.mxu0
        %v3700 = vadd.f32 %v711, %v3699
        %3701 = vmatmul.bf16.gmra.mxu0 %v2558
        %v3702 = vpop.f32.mrf.mxu0
        %v3703 = vadd.f32 %v711, %v3702
        %v3704 = vpop.f32.mrf.mxu0
        %v3705 = vadd.f32 %v711, %v3704
        %3706 = vmatmul.bf16.gmra.mxu0 %v2561
        %v3707 = vpop.f32.mrf.mxu0
        %v3708 = vadd.f32 %v711, %v3707
        %v3709 = vpop.f32.mrf.mxu0
        %v3710 = vadd.f32 %v711, %v3709
        %3711 = vmatmul.bf16.gmra.mxu0 %v2564
        %v3712 = vpop.f32.mrf.mxu0
        %v3713 = vadd.f32 %v711, %v3712
        %v3714 = vpop.f32.mrf.mxu0
        %v3715 = vadd.f32 %v711, %v3714
        %3716 = vmatmul.bf16.gmra.mxu0 %v2567
        %v3717 = vpop.f32.mrf.mxu0
        %v3718 = vadd.f32 %v711, %v3717
        %v3719 = vpop.f32.mrf.mxu0
        %v3720 = vadd.f32 %v711, %v3719
        %3721 = vmatmul.bf16.gmra.mxu0 %v2570
        %v3722 = vpop.f32.mrf.mxu0
        %v3723 = vadd.f32 %v711, %v3722
        %v3724 = vpop.f32.mrf.mxu0
        %v3725 = vadd.f32 %v711, %v3724
        %3726 = vmatmul.bf16.gmra.mxu0 %v2573
        %v3727 = vpop.f32.mrf.mxu0
        %v3728 = vadd.f32 %v711, %v3727
        %v3729 = vpop.f32.mrf.mxu0
        %v3730 = vadd.f32 %v711, %v3729
        %3731 = vmatmul.bf16.gmra.mxu0 %v2576
        %v3732 = vpop.f32.mrf.mxu0
        %v3733 = vadd.f32 %v711, %v3732
        %v3734 = vpop.f32.mrf.mxu0
        %v3735 = vadd.f32 %v711, %v3734
        %3736 = vmatmul.bf16.gmra.mxu0 %v2579
        %v3737 = vpop.f32.mrf.mxu0
        %v3738 = vadd.f32 %v711, %v3737
        %v3739 = vpop.f32.mrf.mxu0
        %v3740 = vadd.f32 %v711, %v3739
        %3741 = vmatmul.bf16.gmra.mxu0 %v2582
        %v3742 = vpop.f32.mrf.mxu0
        %v3743 = vadd.f32 %v711, %v3742
        %v3744 = vpop.f32.mrf.mxu0
        %v3745 = vadd.f32 %v711, %v3744
        %3746 = vmatmul.bf16.gmra.mxu0 %v2585
        %v3747 = vpop.f32.mrf.mxu0
        %v3748 = vadd.f32 %v711, %v3747
        %v3749 = vpop.f32.mrf.mxu0
        %v3750 = vadd.f32 %v711, %v3749
        %3751 = vmatmul.bf16.gmra.mxu0 %v2588
        %v3752 = vpop.f32.mrf.mxu0
        %v3753 = vadd.f32 %v711, %v3752
        %v3754 = vpop.f32.mrf.mxu0
        %v3755 = vadd.f32 %v711, %v3754
        %3756 = vmatmul.bf16.gmra.mxu0 %v2591
        %v3757 = vpop.f32.mrf.mxu0
        %v3758 = vadd.f32 %v711, %v3757
        %v3759 = vpop.f32.mrf.mxu0
        %v3760 = vadd.f32 %v711, %v3759
        %3761 = vmatmul.bf16.gmra.mxu0 %v2594
        %v3762 = vpop.f32.mrf.mxu0
        %v3763 = vadd.f32 %v711, %v3762
        %v3764 = vpop.f32.mrf.mxu0
        %v3765 = vadd.f32 %v711, %v3764
        %3766 = vmatmul.bf16.gmra.mxu0 %v2597
        %v3767 = vpop.f32.mrf.mxu0
        %v3768 = vadd.f32 %v711, %v3767
        %v3769 = vpop.f32.mrf.mxu0
        %v3770 = vadd.f32 %v711, %v3769
        %3771 = vmatmul.bf16.gmra.mxu0 %v2600
        %v3772 = vpop.f32.mrf.mxu0
        %v3773 = vadd.f32 %v711, %v3772
        %v3774 = vpop.f32.mrf.mxu0
        %v3775 = vadd.f32 %v711, %v3774
        %3776 = vmatmul.bf16.gmra.mxu0 %v2603
        %v3777 = vpop.f32.mrf.mxu0
        %v3778 = vadd.f32 %v711, %v3777
        %v3779 = vpop.f32.mrf.mxu0
        %v3780 = vadd.f32 %v711, %v3779
        %3781 = vmatmul.bf16.gmra.mxu0 %v2606
        %v3782 = vpop.f32.mrf.mxu0
        %v3783 = vadd.f32 %v711, %v3782
        %v3784 = vpop.f32.mrf.mxu0
        %v3785 = vadd.f32 %v711, %v3784
        %3786 = vmatmul.bf16.gmra.mxu0 %v2609
        %v3787 = vpop.f32.mrf.mxu0
        %v3788 = vadd.f32 %v711, %v3787
        %v3789 = vpop.f32.mrf.mxu0
        %v3790 = vadd.f32 %v711, %v3789
        %3791 = vmatmul.bf16.gmra.mxu0 %v2612
        %v3792 = vpop.f32.mrf.mxu0
        %v3793 = vadd.f32 %v711, %v3792
        %v3794 = vpop.f32.mrf.mxu0
        %v3795 = vadd.f32 %v711, %v3794
        %3796 = vmatmul.bf16.gmra.mxu0 %v2615
        %v3797 = vpop.f32.mrf.mxu0
        %v3798 = vadd.f32 %v711, %v3797
        %v3799 = vpop.f32.mrf.mxu0
        %v3800 = vadd.f32 %v711, %v3799
        %3801 = vmatmul.bf16.gmra.mxu0 %v2618
        %v3802 = vpop.f32.mrf.mxu0
        %v3803 = vadd.f32 %v711, %v3802
        %v3804 = vpop.f32.mrf.mxu0
        %v3805 = vadd.f32 %v711, %v3804
        %3806 = vmatmul.bf16.gmra.mxu0 %v2621
        %v3807 = vpop.f32.mrf.mxu0
        %v3808 = vadd.f32 %v711, %v3807
        %v3809 = vpop.f32.mrf.mxu0
        %v3810 = vadd.f32 %v711, %v3809
        %3811 = vmatmul.bf16.gmra.mxu0 %v2624
        %v3812 = vpop.f32.mrf.mxu0
        %v3813 = vadd.f32 %v711, %v3812
        %v3814 = vpop.f32.mrf.mxu0
        %v3815 = vadd.f32 %v711, %v3814
        %3816 = vmatmul.bf16.gmra.mxu0 %v2627
        %v3817 = vpop.f32.mrf.mxu0
        %v3818 = vadd.f32 %v711, %v3817
        %v3819 = vpop.f32.mrf.mxu0
        %v3820 = vadd.f32 %v711, %v3819
        %3821 = vmatmul.bf16.gmra.mxu0 %v2630
        %v3822 = vpop.f32.mrf.mxu0
        %v3823 = vadd.f32 %v711, %v3822
        %v3824 = vpop.f32.mrf.mxu0
        %v3825 = vadd.f32 %v711, %v3824
        %3826 = vmatmul.bf16.gmra.mxu0 %v2633
        %v3827 = vpop.f32.mrf.mxu0
        %v3828 = vadd.f32 %v711, %v3827
        %v3829 = vpop.f32.mrf.mxu0
        %v3830 = vadd.f32 %v711, %v3829
        %3831 = vmatmul.bf16.gmra.mxu0 %v2636
        %v3832 = vpop.f32.mrf.mxu0
        %v3833 = vadd.f32 %v711, %v3832
        %v3834 = vpop.f32.mrf.mxu0
        %v3835 = vadd.f32 %v711, %v3834
        %3836 = vmatmul.bf16.gmra.mxu0 %v2639
        %v3837 = vpop.f32.mrf.mxu0
        %v3838 = vadd.f32 %v711, %v3837
        %v3839 = vpop.f32.mrf.mxu0
        %v3840 = vadd.f32 %v711, %v3839
        %3841 = vmatmul.bf16.gmra.mxu0 %v2642
        %v3842 = vpop.f32.mrf.mxu0
        %v3843 = vadd.f32 %v711, %v3842
        %v3844 = vpop.f32.mrf.mxu0
        %v3845 = vadd.f32 %v711, %v3844
        %3846 = vmatmul.bf16.gmra.mxu0 %v2645
        %v3847 = vpop.f32.mrf.mxu0
        %v3848 = vadd.f32 %v711, %v3847
        %v3849 = vpop.f32.mrf.mxu0
        %v3850 = vadd.f32 %v711, %v3849
        %3851 = vmatmul.bf16.gmra.mxu0 %v2648
        %v3852 = vpop.f32.mrf.mxu0
        %v3853 = vadd.f32 %v711, %v3852
        %v3854 = vpop.f32.mrf.mxu0
        %v3855 = vadd.f32 %v711, %v3854
        %3856 = vmatmul.bf16.gmra.mxu0 %v2651
        %v3857 = vpop.f32.mrf.mxu0
        %v3858 = vadd.f32 %v711, %v3857
        %v3859 = vpop.f32.mrf.mxu0
        %v3860 = vadd.f32 %v711, %v3859
        %3861 = vmatmul.bf16.gmra.mxu0 %v2654
        %v3862 = vpop.f32.mrf.mxu0
        %v3863 = vadd.f32 %v711, %v3862
        %v3864 = vpop.f32.mrf.mxu0
        %v3865 = vadd.f32 %v711, %v3864
        %3866 = vmatmul.bf16.gmra.mxu0 %v2657
        %v3867 = vpop.f32.mrf.mxu0
        %v3868 = vadd.f32 %v711, %v3867
        %v3869 = vpop.f32.mrf.mxu0
        %v3870 = vadd.f32 %v711, %v3869
        %3871 = vmatmul.bf16.gmra.mxu0 %v2660
        %v3872 = vpop.f32.mrf.mxu0
        %v3873 = vadd.f32 %v711, %v3872
        %v3874 = vpop.f32.mrf.mxu0
        %v3875 = vadd.f32 %v711, %v3874
        %3876 = vmatmul.bf16.gmra.mxu0 %v2663
        %v3877 = vpop.f32.mrf.mxu0
        %v3878 = vadd.f32 %v711, %v3877
        %v3879 = vpop.f32.mrf.mxu0
        %v3880 = vadd.f32 %v711, %v3879
        %3881 = vmatmul.bf16.gmra.mxu0 %v2666
        %v3882 = vpop.f32.mrf.mxu0
        %v3883 = vadd.f32 %v711, %v3882
        %v3884 = vpop.f32.mrf.mxu0
        %v3885 = vadd.f32 %v711, %v3884
        %3886 = vmatmul.bf16.gmra.mxu0 %v2669
        %v3887 = vpop.f32.mrf.mxu0
        %v3888 = vadd.f32 %v711, %v3887
        %v3889 = vpop.f32.mrf.mxu0
        %v3890 = vadd.f32 %v711, %v3889
        %3891 = vmatmul.bf16.gmra.mxu0 %v2672
        %v3892 = vpop.f32.mrf.mxu0
        %v3893 = vadd.f32 %v711, %v3892
        %v3894 = vpop.f32.mrf.mxu0
        %v3895 = vadd.f32 %v711, %v3894
        %3896 = vmatmul.bf16.gmra.mxu0 %v2675
        %v3897 = vpop.f32.mrf.mxu0
        %v3898 = vadd.f32 %v711, %v3897
        %v3899 = vpop.f32.mrf.mxu0
        %v3900 = vadd.f32 %v711, %v3899
        %3901 = vmatmul.bf16.gmra.mxu0 %v2678
        %v3902 = vpop.f32.mrf.mxu0
        %v3903 = vadd.f32 %v711, %v3902
        %v3904 = vpop.f32.mrf.mxu0
        %v3905 = vadd.f32 %v711, %v3904
        %3906 = vmatmul.bf16.gmra.mxu0 %v2681
        %v3907 = vpop.f32.mrf.mxu0
        %v3908 = vadd.f32 %v711, %v3907
        %v3909 = vpop.f32.mrf.mxu0
        %v3910 = vadd.f32 %v711, %v3909
        %3911 = vmatmul.bf16.gmra.mxu0 %v2684
        %v3912 = vpop.f32.mrf.mxu0
        %v3913 = vadd.f32 %v711, %v3912
        %v3914 = vpop.f32.mrf.mxu0
        %v3915 = vadd.f32 %v711, %v3914
        %3916 = vmatmul.bf16.gmra.mxu0 %v2687
        %v3917 = vpop.f32.mrf.mxu0
        %v3918 = vadd.f32 %v711, %v3917
        %v3919 = vpop.f32.mrf.mxu0
        %v3920 = vadd.f32 %v711, %v3919
        %3921 = vmatmul.bf16.gmra.mxu0 %v2690
        %v3922 = vpop.f32.mrf.mxu0
        %v3923 = vadd.f32 %v711, %v3922
        %v3924 = vpop.f32.mrf.mxu0
        %v3925 = vadd.f32 %v711, %v3924
        %3926 = vmatmul.bf16.gmra.mxu0 %v2693
        %v3927 = vpop.f32.mrf.mxu0
        %v3928 = vadd.f32 %v711, %v3927
        %v3929 = vpop.f32.mrf.mxu0
        %v3930 = vadd.f32 %v711, %v3929
        %3931 = vmatmul.bf16.gmra.mxu0 %v2696
        %v3932 = vpop.f32.mrf.mxu0
        %v3933 = vadd.f32 %v711, %v3932
        %v3934 = vpop.f32.mrf.mxu0
        %v3935 = vadd.f32 %v711, %v3934
        %3936 = vmatmul.bf16.gmra.mxu0 %v2699
        %v3937 = vpop.f32.mrf.mxu0
        %v3938 = vadd.f32 %v711, %v3937
        %v3939 = vpop.f32.mrf.mxu0
        %v3940 = vadd.f32 %v711, %v3939
        %3941 = vmatmul.bf16.gmra.mxu0 %v2702
        %v3942 = vpop.f32.mrf.mxu0
        %v3943 = vadd.f32 %v711, %v3942
        %v3944 = vpop.f32.mrf.mxu0
        %v3945 = vadd.f32 %v711, %v3944
        %3946 = vmatmul.bf16.gmra.mxu0 %v2705
        %v3947 = vpop.f32.mrf.mxu0
        %v3948 = vadd.f32 %v711, %v3947
        %v3949 = vpop.f32.mrf.mxu0
        %v3950 = vadd.f32 %v711, %v3949
        %3951 = vmatmul.bf16.gmra.mxu0 %v2708
        %v3952 = vpop.f32.mrf.mxu0
        %v3953 = vadd.f32 %v711, %v3952
        %v3954 = vpop.f32.mrf.mxu0
        %v3955 = vadd.f32 %v711, %v3954
        %3956 = vmatmul.bf16.gmra.mxu0 %v2711
        %v3957 = vpop.f32.mrf.mxu0
        %v3958 = vadd.f32 %v711, %v3957
        %v3959 = vpop.f32.mrf.mxu0
        %v3960 = vadd.f32 %v711, %v3959
        %3961 = vmatmul.bf16.gmra.mxu0 %v2714
        %v3962 = vpop.f32.mrf.mxu0
        %v3963 = vadd.f32 %v711, %v3962
        %v3964 = vpop.f32.mrf.mxu0
        %v3965 = vadd.f32 %v711, %v3964
        %3966 = vmatmul.bf16.gmra.mxu0 %v2717
        %v3967 = vpop.f32.mrf.mxu0
        %v3968 = vadd.f32 %v711, %v3967
        %v3969 = vpop.f32.mrf.mxu0
        %v3970 = vadd.f32 %v711, %v3969
        %3971 = vmatmul.bf16.gmra.mxu0 %v2720
        %v3972 = vpop.f32.mrf.mxu0
        %v3973 = vadd.f32 %v711, %v3972
        %v3974 = vpop.f32.mrf.mxu0
        %v3975 = vadd.f32 %v711, %v3974
        %3976 = vmatmul.bf16.gmra.mxu0 %v2723
        %v3977 = vpop.f32.mrf.mxu0
        %v3978 = vadd.f32 %v711, %v3977
        %v3979 = vpop.f32.mrf.mxu0
        %v3980 = vadd.f32 %v711, %v3979
        %3981 = vmatmul.bf16.gmra.mxu0 %v2726
        %v3982 = vpop.f32.mrf.mxu0
        %v3983 = vadd.f32 %v711, %v3982
        %v3984 = vpop.f32.mrf.mxu0
        %v3985 = vadd.f32 %v711, %v3984
        %3986 = vmatmul.bf16.gmra.mxu0 %v2729
        %v3987 = vpop.f32.mrf.mxu0
        %v3988 = vadd.f32 %v711, %v3987
        %v3989 = vpop.f32.mrf.mxu0
        %v3990 = vadd.f32 %v711, %v3989
        %3991 = vmatmul.bf16.gmra.mxu0 %v2732
        %v3992 = vpop.f32.mrf.mxu0
        %v3993 = vadd.f32 %v711, %v3992
        %v3994 = vpop.f32.mrf.mxu0
        %v3995 = vadd.f32 %v711, %v3994
        %3996 = vmatmul.bf16.gmra.mxu0 %v2735
        %v3997 = vpop.f32.mrf.mxu0
        %v3998 = vadd.f32 %v711, %v3997
        %v3999 = vpop.f32.mrf.mxu0
        %v4000 = vadd.f32 %v711, %v3999
        %4001 = vmatmul.bf16.gmra.mxu0 %v2738
        %v4002 = vpop.f32.mrf.mxu0
        %v4003 = vadd.f32 %v711, %v4002
        %v4004 = vpop.f32.mrf.mxu0
        %v4005 = vadd.f32 %v711, %v4004
        %4006 = vmatmul.bf16.gmra.mxu0 %v2741
        %v4007 = vpop.f32.mrf.mxu0
        %v4008 = vadd.f32 %v711, %v4007
        %v4009 = vpop.f32.mrf.mxu0
        %v4010 = vadd.f32 %v711, %v4009
        %4011 = vmatmul.bf16.gmra.mxu0 %v2744
        %v4012 = vpop.f32.mrf.mxu0
        %v4013 = vadd.f32 %v711, %v4012
        %v4014 = vpop.f32.mrf.mxu0
        %v4015 = vadd.f32 %v711, %v4014
        %4016 = vmatmul.bf16.gmra.mxu0 %v2747
        %v4017 = vpop.f32.mrf.mxu0
        %v4018 = vadd.f32 %v711, %v4017
        %v4019 = vpop.f32.mrf.mxu0
        %v4020 = vadd.f32 %v711, %v4019
        %4021 = vmatmul.bf16.gmra.mxu0 %v2750
        %v4022 = vpop.f32.mrf.mxu0
        %v4023 = vadd.f32 %v711, %v4022
        %v4024 = vpop.f32.mrf.mxu0
        %v4025 = vadd.f32 %v711, %v4024
        %4026 = vmatmul.bf16.gmra.mxu0 %v2753
        %v4027 = vpop.f32.mrf.mxu0
        %v4028 = vadd.f32 %v711, %v4027
        %v4029 = vpop.f32.mrf.mxu0
        %v4030 = vadd.f32 %v711, %v4029
        %4031 = vmatmul.bf16.gmra.mxu0 %v2756
        %v4032 = vpop.f32.mrf.mxu0
        %v4033 = vadd.f32 %v711, %v4032
        %v4034 = vpop.f32.mrf.mxu0
        %v4035 = vadd.f32 %v711, %v4034
        %4036 = vmatmul.bf16.gmra.mxu0 %v2759
        %v4037 = vpop.f32.mrf.mxu0
        %v4038 = vadd.f32 %v711, %v4037
        %v4039 = vpop.f32.mrf.mxu0
        %v4040 = vadd.f32 %v711, %v4039
        %4041 = vmatmul.bf16.gmra.mxu0 %v2762
        %v4042 = vpop.f32.mrf.mxu0
        %v4043 = vadd.f32 %v711, %v4042
        %v4044 = vpop.f32.mrf.mxu0
        %v4045 = vadd.f32 %v711, %v4044
        %4046 = vmatmul.bf16.gmra.mxu0 %v2765
        %v4047 = vpop.f32.mrf.mxu0
        %v4048 = vadd.f32 %v711, %v4047
        %v4049 = vpop.f32.mrf.mxu0
        %v4050 = vadd.f32 %v711, %v4049
        %4051 = vmatmul.bf16.gmra.mxu0 %v2768
        %v4052 = vpop.f32.mrf.mxu0
        %v4053 = vadd.f32 %v711, %v4052
        %v4054 = vpop.f32.mrf.mxu0
        %v4055 = vadd.f32 %v711, %v4054
        %4056 = vmatmul.bf16.gmra.mxu0 %v2771
        %v4057 = vpop.f32.mrf.mxu0
        %v4058 = vadd.f32 %v711, %v4057
        %v4059 = vpop.f32.mrf.mxu0
        %v4060 = vadd.f32 %v711, %v4059
        %4061 = vdwg.mxu0
        %v4062 = vmax.f32 %v2783, 0.0
        %v4063 = vmax.f32 %v2785, 0.0
        %v4064 = vmax.f32 %v2788, 0.0
        %v4065 = vmax.f32 %v2790, 0.0
        %v4066 = vmax.f32 %v2793, 0.0
        %v4067 = vmax.f32 %v2795, 0.0
        %v4068 = vmax.f32 %v2798, 0.0
        %v4069 = vmax.f32 %v2800, 0.0
        %v4070 = vmax.f32 %v2803, 0.0
        %v4071 = vmax.f32 %v2805, 0.0
        %v4072 = vmax.f32 %v2808, 0.0
        %v4073 = vmax.f32 %v2810, 0.0
        %v4074 = vmax.f32 %v2813, 0.0
        %v4075 = vmax.f32 %v2815, 0.0
        %v4076 = vmax.f32 %v2818, 0.0
        %v4077 = vmax.f32 %v2820, 0.0
        %v4078 = vmax.f32 %v2823, 0.0
        %v4079 = vmax.f32 %v2825, 0.0
        %v4080 = vmax.f32 %v2828, 0.0
        %v4081 = vmax.f32 %v2830, 0.0
        %v4082 = vmax.f32 %v2833, 0.0
        %v4083 = vmax.f32 %v2835, 0.0
        %v4084 = vmax.f32 %v2838, 0.0
        %v4085 = vmax.f32 %v2840, 0.0
        %v4086 = vmax.f32 %v2843, 0.0
        %v4087 = vmax.f32 %v2845, 0.0
        %v4088 = vmax.f32 %v2848, 0.0
        %v4089 = vmax.f32 %v2850, 0.0
        %v4090 = vmax.f32 %v2853, 0.0
        %v4091 = vmax.f32 %v2855, 0.0
        %v4092 = vmax.f32 %v2858, 0.0
        %v4093 = vmax.f32 %v2860, 0.0
        %v4094 = vmax.f32 %v2863, 0.0
        %v4095 = vmax.f32 %v2865, 0.0
        %v4096 = vmax.f32 %v2868, 0.0
        %v4097 = vmax.f32 %v2870, 0.0
        %v4098 = vmax.f32 %v2873, 0.0
        %v4099 = vmax.f32 %v2875, 0.0
        %v4100 = vmax.f32 %v2878, 0.0
        %v4101 = vmax.f32 %v2880, 0.0
        %v4102 = vmax.f32 %v2883, 0.0
        %v4103 = vmax.f32 %v2885, 0.0
        %v4104 = vmax.f32 %v2888, 0.0
        %v4105 = vmax.f32 %v2890, 0.0
        %v4106 = vmax.f32 %v2893, 0.0
        %v4107 = vmax.f32 %v2895, 0.0
        %v4108 = vmax.f32 %v2898, 0.0
        %v4109 = vmax.f32 %v2900, 0.0
        %v4110 = vmax.f32 %v2903, 0.0
        %v4111 = vmax.f32 %v2905, 0.0
        %v4112 = vmax.f32 %v2908, 0.0
        %v4113 = vmax.f32 %v2910, 0.0
        %v4114 = vmax.f32 %v2913, 0.0
        %v4115 = vmax.f32 %v2915, 0.0
        %v4116 = vmax.f32 %v2918, 0.0
        %v4117 = vmax.f32 %v2920, 0.0
        %v4118 = vmax.f32 %v2923, 0.0
        %v4119 = vmax.f32 %v2925, 0.0
        %v4120 = vmax.f32 %v2928, 0.0
        %v4121 = vmax.f32 %v2930, 0.0
        %v4122 = vmax.f32 %v2933, 0.0
        %v4123 = vmax.f32 %v2935, 0.0
        %v4124 = vmax.f32 %v2938, 0.0
        %v4125 = vmax.f32 %v2940, 0.0
        %v4126 = vmax.f32 %v2943, 0.0
        %v4127 = vmax.f32 %v2945, 0.0
        %v4128 = vmax.f32 %v2948, 0.0
        %v4129 = vmax.f32 %v2950, 0.0
        %v4130 = vmax.f32 %v2953, 0.0
        %v4131 = vmax.f32 %v2955, 0.0
        %v4132 = vmax.f32 %v2958, 0.0
        %v4133 = vmax.f32 %v2960, 0.0
        %v4134 = vmax.f32 %v2963, 0.0
        %v4135 = vmax.f32 %v2965, 0.0
        %v4136 = vmax.f32 %v2968, 0.0
        %v4137 = vmax.f32 %v2970, 0.0
        %v4138 = vmax.f32 %v2973, 0.0
        %v4139 = vmax.f32 %v2975, 0.0
        %v4140 = vmax.f32 %v2978, 0.0
        %v4141 = vmax.f32 %v2980, 0.0
        %v4142 = vmax.f32 %v2983, 0.0
        %v4143 = vmax.f32 %v2985, 0.0
        %v4144 = vmax.f32 %v2988, 0.0
        %v4145 = vmax.f32 %v2990, 0.0
        %v4146 = vmax.f32 %v2993, 0.0
        %v4147 = vmax.f32 %v2995, 0.0
        %v4148 = vmax.f32 %v2998, 0.0
        %v4149 = vmax.f32 %v3000, 0.0
        %v4150 = vmax.f32 %v3003, 0.0
        %v4151 = vmax.f32 %v3005, 0.0
        %v4152 = vmax.f32 %v3008, 0.0
        %v4153 = vmax.f32 %v3010, 0.0
        %v4154 = vmax.f32 %v3013, 0.0
        %v4155 = vmax.f32 %v3015, 0.0
        %v4156 = vmax.f32 %v3018, 0.0
        %v4157 = vmax.f32 %v3020, 0.0
        %v4158 = vmax.f32 %v3023, 0.0
        %v4159 = vmax.f32 %v3025, 0.0
        %v4160 = vmax.f32 %v3028, 0.0
        %v4161 = vmax.f32 %v3030, 0.0
        %v4162 = vmax.f32 %v3033, 0.0
        %v4163 = vmax.f32 %v3035, 0.0
        %v4164 = vmax.f32 %v3038, 0.0
        %v4165 = vmax.f32 %v3040, 0.0
        %v4166 = vmax.f32 %v3043, 0.0
        %v4167 = vmax.f32 %v3045, 0.0
        %v4168 = vmax.f32 %v3048, 0.0
        %v4169 = vmax.f32 %v3050, 0.0
        %v4170 = vmax.f32 %v3053, 0.0
        %v4171 = vmax.f32 %v3055, 0.0
        %v4172 = vmax.f32 %v3058, 0.0
        %v4173 = vmax.f32 %v3060, 0.0
        %v4174 = vmax.f32 %v3063, 0.0
        %v4175 = vmax.f32 %v3065, 0.0
        %v4176 = vmax.f32 %v3068, 0.0
        %v4177 = vmax.f32 %v3070, 0.0
        %v4178 = vmax.f32 %v3073, 0.0
        %v4179 = vmax.f32 %v3075, 0.0
        %v4180 = vmax.f32 %v3078, 0.0
        %v4181 = vmax.f32 %v3080, 0.0
        %v4182 = vmax.f32 %v3083, 0.0
        %v4183 = vmax.f32 %v3085, 0.0
        %v4184 = vmax.f32 %v3088, 0.0
        %v4185 = vmax.f32 %v3090, 0.0
        %v4186 = vmax.f32 %v3093, 0.0
        %v4187 = vmax.f32 %v3095, 0.0
        %v4188 = vmax.f32 %v3098, 0.0
        %v4189 = vmax.f32 %v3100, 0.0
        %v4190 = vmax.f32 %v3103, 0.0
        %v4191 = vmax.f32 %v3105, 0.0
        %v4192 = vmax.f32 %v3108, 0.0
        %v4193 = vmax.f32 %v3110, 0.0
        %v4194 = vmax.f32 %v3113, 0.0
        %v4195 = vmax.f32 %v3115, 0.0
        %v4196 = vmax.f32 %v3118, 0.0
        %v4197 = vmax.f32 %v3120, 0.0
        %v4198 = vmax.f32 %v3123, 0.0
        %v4199 = vmax.f32 %v3125, 0.0
        %v4200 = vmax.f32 %v3128, 0.0
        %v4201 = vmax.f32 %v3130, 0.0
        %v4202 = vmax.f32 %v3133, 0.0
        %v4203 = vmax.f32 %v3135, 0.0
        %v4204 = vmax.f32 %v3138, 0.0
        %v4205 = vmax.f32 %v3140, 0.0
        %v4206 = vmax.f32 %v3143, 0.0
        %v4207 = vmax.f32 %v3145, 0.0
        %v4208 = vmax.f32 %v3148, 0.0
        %v4209 = vmax.f32 %v3150, 0.0
        %v4210 = vmax.f32 %v3153, 0.0
        %v4211 = vmax.f32 %v3155, 0.0
        %v4212 = vmax.f32 %v3158, 0.0
        %v4213 = vmax.f32 %v3160, 0.0
        %v4214 = vmax.f32 %v3163, 0.0
        %v4215 = vmax.f32 %v3165, 0.0
        %v4216 = vmax.f32 %v3168, 0.0
        %v4217 = vmax.f32 %v3170, 0.0
        %v4218 = vmax.f32 %v3173, 0.0
        %v4219 = vmax.f32 %v3175, 0.0
        %v4220 = vmax.f32 %v3178, 0.0
        %v4221 = vmax.f32 %v3180, 0.0
        %v4222 = vmax.f32 %v3183, 0.0
        %v4223 = vmax.f32 %v3185, 0.0
        %v4224 = vmax.f32 %v3188, 0.0
        %v4225 = vmax.f32 %v3190, 0.0
        %v4226 = vmax.f32 %v3193, 0.0
        %v4227 = vmax.f32 %v3195, 0.0
        %v4228 = vmax.f32 %v3198, 0.0
        %v4229 = vmax.f32 %v3200, 0.0
        %v4230 = vmax.f32 %v3203, 0.0
        %v4231 = vmax.f32 %v3205, 0.0
        %v4232 = vmax.f32 %v3208, 0.0
        %v4233 = vmax.f32 %v3210, 0.0
        %v4234 = vmax.f32 %v3213, 0.0
        %v4235 = vmax.f32 %v3215, 0.0
        %v4236 = vmax.f32 %v3218, 0.0
        %v4237 = vmax.f32 %v3220, 0.0
        %v4238 = vmax.f32 %v3223, 0.0
        %v4239 = vmax.f32 %v3225, 0.0
        %v4240 = vmax.f32 %v3228, 0.0
        %v4241 = vmax.f32 %v3230, 0.0
        %v4242 = vmax.f32 %v3233, 0.0
        %v4243 = vmax.f32 %v3235, 0.0
        %v4244 = vmax.f32 %v3238, 0.0
        %v4245 = vmax.f32 %v3240, 0.0
        %v4246 = vmax.f32 %v3243, 0.0
        %v4247 = vmax.f32 %v3245, 0.0
        %v4248 = vmax.f32 %v3248, 0.0
        %v4249 = vmax.f32 %v3250, 0.0
        %v4250 = vmax.f32 %v3253, 0.0
        %v4251 = vmax.f32 %v3255, 0.0
        %v4252 = vmax.f32 %v3258, 0.0
        %v4253 = vmax.f32 %v3260, 0.0
        %v4254 = vmax.f32 %v3263, 0.0
        %v4255 = vmax.f32 %v3265, 0.0
        %v4256 = vmax.f32 %v3268, 0.0
        %v4257 = vmax.f32 %v3270, 0.0
        %v4258 = vmax.f32 %v3273, 0.0
        %v4259 = vmax.f32 %v3275, 0.0
        %v4260 = vmax.f32 %v3278, 0.0
        %v4261 = vmax.f32 %v3280, 0.0
        %v4262 = vmax.f32 %v3283, 0.0
        %v4263 = vmax.f32 %v3285, 0.0
        %v4264 = vmax.f32 %v3288, 0.0
        %v4265 = vmax.f32 %v3290, 0.0
        %v4266 = vmax.f32 %v3293, 0.0
        %v4267 = vmax.f32 %v3295, 0.0
        %v4268 = vmax.f32 %v3298, 0.0
        %v4269 = vmax.f32 %v3300, 0.0
        %v4270 = vmax.f32 %v3303, 0.0
        %v4271 = vmax.f32 %v3305, 0.0
        %v4272 = vmax.f32 %v3308, 0.0
        %v4273 = vmax.f32 %v3310, 0.0
        %v4274 = vmax.f32 %v3313, 0.0
        %v4275 = vmax.f32 %v3315, 0.0
        %v4276 = vmax.f32 %v3318, 0.0
        %v4277 = vmax.f32 %v3320, 0.0
        %v4278 = vmax.f32 %v3323, 0.0
        %v4279 = vmax.f32 %v3325, 0.0
        %v4280 = vmax.f32 %v3328, 0.0
        %v4281 = vmax.f32 %v3330, 0.0
        %v4282 = vmax.f32 %v3333, 0.0
        %v4283 = vmax.f32 %v3335, 0.0
        %v4284 = vmax.f32 %v3338, 0.0
        %v4285 = vmax.f32 %v3340, 0.0
        %v4286 = vmax.f32 %v3343, 0.0
        %v4287 = vmax.f32 %v3345, 0.0
        %v4288 = vmax.f32 %v3348, 0.0
        %v4289 = vmax.f32 %v3350, 0.0
        %v4290 = vmax.f32 %v3353, 0.0
        %v4291 = vmax.f32 %v3355, 0.0
        %v4292 = vmax.f32 %v3358, 0.0
        %v4293 = vmax.f32 %v3360, 0.0
        %v4294 = vmax.f32 %v3363, 0.0
        %v4295 = vmax.f32 %v3365, 0.0
        %v4296 = vmax.f32 %v3368, 0.0
        %v4297 = vmax.f32 %v3370, 0.0
        %v4298 = vmax.f32 %v3373, 0.0
        %v4299 = vmax.f32 %v3375, 0.0
        %v4300 = vmax.f32 %v3378, 0.0
        %v4301 = vmax.f32 %v3380, 0.0
        %v4302 = vmax.f32 %v3383, 0.0
        %v4303 = vmax.f32 %v3385, 0.0
        %v4304 = vmax.f32 %v3388, 0.0
        %v4305 = vmax.f32 %v3390, 0.0
        %v4306 = vmax.f32 %v3393, 0.0
        %v4307 = vmax.f32 %v3395, 0.0
        %v4308 = vmax.f32 %v3398, 0.0
        %v4309 = vmax.f32 %v3400, 0.0
        %v4310 = vmax.f32 %v3403, 0.0
        %v4311 = vmax.f32 %v3405, 0.0
        %v4312 = vmax.f32 %v3408, 0.0
        %v4313 = vmax.f32 %v3410, 0.0
        %v4314 = vmax.f32 %v3413, 0.0
        %v4315 = vmax.f32 %v3415, 0.0
        %v4316 = vmax.f32 %v3418, 0.0
        %v4317 = vmax.f32 %v3420, 0.0
        %v4318 = vmax.f32 %v3423, 0.0
        %v4319 = vmax.f32 %v3425, 0.0
        %v4320 = vmax.f32 %v3428, 0.0
        %v4321 = vmax.f32 %v3430, 0.0
        %v4322 = vmax.f32 %v3433, 0.0
        %v4323 = vmax.f32 %v3435, 0.0
        %v4324 = vmax.f32 %v3438, 0.0
        %v4325 = vmax.f32 %v3440, 0.0
        %v4326 = vmax.f32 %v3443, 0.0
        %v4327 = vmax.f32 %v3445, 0.0
        %v4328 = vmax.f32 %v3448, 0.0
        %v4329 = vmax.f32 %v3450, 0.0
        %v4330 = vmax.f32 %v3453, 0.0
        %v4331 = vmax.f32 %v3455, 0.0
        %v4332 = vmax.f32 %v3458, 0.0
        %v4333 = vmax.f32 %v3460, 0.0
        %v4334 = vmax.f32 %v3463, 0.0
        %v4335 = vmax.f32 %v3465, 0.0
        %v4336 = vmax.f32 %v3468, 0.0
        %v4337 = vmax.f32 %v3470, 0.0
        %v4338 = vmax.f32 %v3473, 0.0
        %v4339 = vmax.f32 %v3475, 0.0
        %v4340 = vmax.f32 %v3478, 0.0
        %v4341 = vmax.f32 %v3480, 0.0
        %v4342 = vmax.f32 %v3483, 0.0
        %v4343 = vmax.f32 %v3485, 0.0
        %v4344 = vmax.f32 %v3488, 0.0
        %v4345 = vmax.f32 %v3490, 0.0
        %v4346 = vmax.f32 %v3493, 0.0
        %v4347 = vmax.f32 %v3495, 0.0
        %v4348 = vmax.f32 %v3498, 0.0
        %v4349 = vmax.f32 %v3500, 0.0
        %v4350 = vmax.f32 %v3503, 0.0
        %v4351 = vmax.f32 %v3505, 0.0
        %v4352 = vmax.f32 %v3508, 0.0
        %v4353 = vmax.f32 %v3510, 0.0
        %v4354 = vmax.f32 %v3513, 0.0
        %v4355 = vmax.f32 %v3515, 0.0
        %v4356 = vmax.f32 %v3518, 0.0
        %v4357 = vmax.f32 %v3520, 0.0
        %v4358 = vmax.f32 %v3523, 0.0
        %v4359 = vmax.f32 %v3525, 0.0
        %v4360 = vmax.f32 %v3528, 0.0
        %v4361 = vmax.f32 %v3530, 0.0
        %v4362 = vmax.f32 %v3533, 0.0
        %v4363 = vmax.f32 %v3535, 0.0
        %v4364 = vmax.f32 %v3538, 0.0
        %v4365 = vmax.f32 %v3540, 0.0
        %v4366 = vmax.f32 %v3543, 0.0
        %v4367 = vmax.f32 %v3545, 0.0
        %v4368 = vmax.f32 %v3548, 0.0
        %v4369 = vmax.f32 %v3550, 0.0
        %v4370 = vmax.f32 %v3553, 0.0
        %v4371 = vmax.f32 %v3555, 0.0
        %v4372 = vmax.f32 %v3558, 0.0
        %v4373 = vmax.f32 %v3560, 0.0
        %v4374 = vmax.f32 %v3563, 0.0
        %v4375 = vmax.f32 %v3565, 0.0
        %v4376 = vmax.f32 %v3568, 0.0
        %v4377 = vmax.f32 %v3570, 0.0
        %v4378 = vmax.f32 %v3573, 0.0
        %v4379 = vmax.f32 %v3575, 0.0
        %v4380 = vmax.f32 %v3578, 0.0
        %v4381 = vmax.f32 %v3580, 0.0
        %v4382 = vmax.f32 %v3583, 0.0
        %v4383 = vmax.f32 %v3585, 0.0
        %v4384 = vmax.f32 %v3588, 0.0
        %v4385 = vmax.f32 %v3590, 0.0
        %v4386 = vmax.f32 %v3593, 0.0
        %v4387 = vmax.f32 %v3595, 0.0
        %v4388 = vmax.f32 %v3598, 0.0
        %v4389 = vmax.f32 %v3600, 0.0
        %v4390 = vmax.f32 %v3603, 0.0
        %v4391 = vmax.f32 %v3605, 0.0
        %v4392 = vmax.f32 %v3608, 0.0
        %v4393 = vmax.f32 %v3610, 0.0
        %v4394 = vmax.f32 %v3613, 0.0
        %v4395 = vmax.f32 %v3615, 0.0
        %v4396 = vmax.f32 %v3618, 0.0
        %v4397 = vmax.f32 %v3620, 0.0
        %v4398 = vmax.f32 %v3623, 0.0
        %v4399 = vmax.f32 %v3625, 0.0
        %v4400 = vmax.f32 %v3628, 0.0
        %v4401 = vmax.f32 %v3630, 0.0
        %v4402 = vmax.f32 %v3633, 0.0
        %v4403 = vmax.f32 %v3635, 0.0
        %v4404 = vmax.f32 %v3638, 0.0
        %v4405 = vmax.f32 %v3640, 0.0
        %v4406 = vmax.f32 %v3643, 0.0
        %v4407 = vmax.f32 %v3645, 0.0
        %v4408 = vmax.f32 %v3648, 0.0
        %v4409 = vmax.f32 %v3650, 0.0
        %v4410 = vmax.f32 %v3653, 0.0
        %v4411 = vmax.f32 %v3655, 0.0
        %v4412 = vmax.f32 %v3658, 0.0
        %v4413 = vmax.f32 %v3660, 0.0
        %v4414 = vmax.f32 %v3663, 0.0
        %v4415 = vmax.f32 %v3665, 0.0
        %v4416 = vmax.f32 %v3668, 0.0
        %v4417 = vmax.f32 %v3670, 0.0
        %v4418 = vmax.f32 %v3673, 0.0
        %v4419 = vmax.f32 %v3675, 0.0
        %v4420 = vmax.f32 %v3678, 0.0
        %v4421 = vmax.f32 %v3680, 0.0
        %v4422 = vmax.f32 %v3683, 0.0
        %v4423 = vmax.f32 %v3685, 0.0
        %v4424 = vmax.f32 %v3688, 0.0
        %v4425 = vmax.f32 %v3690, 0.0
        %v4426 = vmax.f32 %v3693, 0.0
        %v4427 = vmax.f32 %v3695, 0.0
        %v4428 = vmax.f32 %v3698, 0.0
        %v4429 = vmax.f32 %v3700, 0.0
        %v4430 = vmax.f32 %v3703, 0.0
        %v4431 = vmax.f32 %v3705, 0.0
        %v4432 = vmax.f32 %v3708, 0.0
        %v4433 = vmax.f32 %v3710, 0.0
        %v4434 = vmax.f32 %v3713, 0.0
        %v4435 = vmax.f32 %v3715, 0.0
        %v4436 = vmax.f32 %v3718, 0.0
        %v4437 = vmax.f32 %v3720, 0.0
        %v4438 = vmax.f32 %v3723, 0.0
        %v4439 = vmax.f32 %v3725, 0.0
        %v4440 = vmax.f32 %v3728, 0.0
        %v4441 = vmax.f32 %v3730, 0.0
        %v4442 = vmax.f32 %v3733, 0.0
        %v4443 = vmax.f32 %v3735, 0.0
        %v4444 = vmax.f32 %v3738, 0.0
        %v4445 = vmax.f32 %v3740, 0.0
        %v4446 = vmax.f32 %v3743, 0.0
        %v4447 = vmax.f32 %v3745, 0.0
        %v4448 = vmax.f32 %v3748, 0.0
        %v4449 = vmax.f32 %v3750, 0.0
        %v4450 = vmax.f32 %v3753, 0.0
        %v4451 = vmax.f32 %v3755, 0.0
        %v4452 = vmax.f32 %v3758, 0.0
        %v4453 = vmax.f32 %v3760, 0.0
        %v4454 = vmax.f32 %v3763, 0.0
        %v4455 = vmax.f32 %v3765, 0.0
        %v4456 = vmax.f32 %v3768, 0.0
        %v4457 = vmax.f32 %v3770, 0.0
        %v4458 = vmax.f32 %v3773, 0.0
        %v4459 = vmax.f32 %v3775, 0.0
        %v4460 = vmax.f32 %v3778, 0.0
        %v4461 = vmax.f32 %v3780, 0.0
        %v4462 = vmax.f32 %v3783, 0.0
        %v4463 = vmax.f32 %v3785, 0.0
        %v4464 = vmax.f32 %v3788, 0.0
        %v4465 = vmax.f32 %v3790, 0.0
        %v4466 = vmax.f32 %v3793, 0.0
        %v4467 = vmax.f32 %v3795, 0.0
        %v4468 = vmax.f32 %v3798, 0.0
        %v4469 = vmax.f32 %v3800, 0.0
        %v4470 = vmax.f32 %v3803, 0.0
        %v4471 = vmax.f32 %v3805, 0.0
        %v4472 = vmax.f32 %v3808, 0.0
        %v4473 = vmax.f32 %v3810, 0.0
        %v4474 = vmax.f32 %v3813, 0.0
        %v4475 = vmax.f32 %v3815, 0.0
        %v4476 = vmax.f32 %v3818, 0.0
        %v4477 = vmax.f32 %v3820, 0.0
        %v4478 = vmax.f32 %v3823, 0.0
        %v4479 = vmax.f32 %v3825, 0.0
        %v4480 = vmax.f32 %v3828, 0.0
        %v4481 = vmax.f32 %v3830, 0.0
        %v4482 = vmax.f32 %v3833, 0.0
        %v4483 = vmax.f32 %v3835, 0.0
        %v4484 = vmax.f32 %v3838, 0.0
        %v4485 = vmax.f32 %v3840, 0.0
        %v4486 = vmax.f32 %v3843, 0.0
        %v4487 = vmax.f32 %v3845, 0.0
        %v4488 = vmax.f32 %v3848, 0.0
        %v4489 = vmax.f32 %v3850, 0.0
        %v4490 = vmax.f32 %v3853, 0.0
        %v4491 = vmax.f32 %v3855, 0.0
        %v4492 = vmax.f32 %v3858, 0.0
        %v4493 = vmax.f32 %v3860, 0.0
        %v4494 = vmax.f32 %v3863, 0.0
        %v4495 = vmax.f32 %v3865, 0.0
        %v4496 = vmax.f32 %v3868, 0.0
        %v4497 = vmax.f32 %v3870, 0.0
        %v4498 = vmax.f32 %v3873, 0.0
        %v4499 = vmax.f32 %v3875, 0.0
        %v4500 = vmax.f32 %v3878, 0.0
        %v4501 = vmax.f32 %v3880, 0.0
        %v4502 = vmax.f32 %v3883, 0.0
        %v4503 = vmax.f32 %v3885, 0.0
        %v4504 = vmax.f32 %v3888, 0.0
        %v4505 = vmax.f32 %v3890, 0.0
        %v4506 = vmax.f32 %v3893, 0.0
        %v4507 = vmax.f32 %v3895, 0.0
        %v4508 = vmax.f32 %v3898, 0.0
        %v4509 = vmax.f32 %v3900, 0.0
        %v4510 = vmax.f32 %v3903, 0.0
        %v4511 = vmax.f32 %v3905, 0.0
        %v4512 = vmax.f32 %v3908, 0.0
        %v4513 = vmax.f32 %v3910, 0.0
        %v4514 = vmax.f32 %v3913, 0.0
        %v4515 = vmax.f32 %v3915, 0.0
        %v4516 = vmax.f32 %v3918, 0.0
        %v4517 = vmax.f32 %v3920, 0.0
        %v4518 = vmax.f32 %v3923, 0.0
        %v4519 = vmax.f32 %v3925, 0.0
        %v4520 = vmax.f32 %v3928, 0.0
        %v4521 = vmax.f32 %v3930, 0.0
        %v4522 = vmax.f32 %v3933, 0.0
        %v4523 = vmax.f32 %v3935, 0.0
        %v4524 = vmax.f32 %v3938, 0.0
        %v4525 = vmax.f32 %v3940, 0.0
        %v4526 = vmax.f32 %v3943, 0.0
        %v4527 = vmax.f32 %v3945, 0.0
        %v4528 = vmax.f32 %v3948, 0.0
        %v4529 = vmax.f32 %v3950, 0.0
        %v4530 = vmax.f32 %v3953, 0.0
        %v4531 = vmax.f32 %v3955, 0.0
        %v4532 = vmax.f32 %v3958, 0.0
        %v4533 = vmax.f32 %v3960, 0.0
        %v4534 = vmax.f32 %v3963, 0.0
        %v4535 = vmax.f32 %v3965, 0.0
        %v4536 = vmax.f32 %v3968, 0.0
        %v4537 = vmax.f32 %v3970, 0.0
        %v4538 = vmax.f32 %v3973, 0.0
        %v4539 = vmax.f32 %v3975, 0.0
        %v4540 = vmax.f32 %v3978, 0.0
        %v4541 = vmax.f32 %v3980, 0.0
        %v4542 = vmax.f32 %v3983, 0.0
        %v4543 = vmax.f32 %v3985, 0.0
        %v4544 = vmax.f32 %v3988, 0.0
        %v4545 = vmax.f32 %v3990, 0.0
        %v4546 = vmax.f32 %v3993, 0.0
        %v4547 = vmax.f32 %v3995, 0.0
        %v4548 = vmax.f32 %v3998, 0.0
        %v4549 = vmax.f32 %v4000, 0.0
        %v4550 = vmax.f32 %v4003, 0.0
        %v4551 = vmax.f32 %v4005, 0.0
        %v4552 = vmax.f32 %v4008, 0.0
        %v4553 = vmax.f32 %v4010, 0.0
        %v4554 = vmax.f32 %v4013, 0.0
        %v4555 = vmax.f32 %v4015, 0.0
        %v4556 = vmax.f32 %v4018, 0.0
        %v4557 = vmax.f32 %v4020, 0.0
        %v4558 = vmax.f32 %v4023, 0.0
        %v4559 = vmax.f32 %v4025, 0.0
        %v4560 = vmax.f32 %v4028, 0.0
        %v4561 = vmax.f32 %v4030, 0.0
        %v4562 = vmax.f32 %v4033, 0.0
        %v4563 = vmax.f32 %v4035, 0.0
        %v4564 = vmax.f32 %v4038, 0.0
        %v4565 = vmax.f32 %v4040, 0.0
        %v4566 = vmax.f32 %v4043, 0.0
        %v4567 = vmax.f32 %v4045, 0.0
        %v4568 = vmax.f32 %v4048, 0.0
        %v4569 = vmax.f32 %v4050, 0.0
        %v4570 = vmax.f32 %v4053, 0.0
        %v4571 = vmax.f32 %v4055, 0.0
        %v4572 = vmax.f32 %v4058, 0.0
        %v4573 = vmax.f32 %v4060, 0.0
        %v4574 = vpack.c.bf16 %v4063, %v4062
        %v4575 = vpack.c.bf16 %v4065, %v4064
        %v4576 = vpack.c.bf16 %v4067, %v4066
        %v4577 = vpack.c.bf16 %v4069, %v4068
        %v4578 = vpack.c.bf16 %v4071, %v4070
        %v4579 = vpack.c.bf16 %v4073, %v4072
        %v4580 = vpack.c.bf16 %v4075, %v4074
        %v4581 = vpack.c.bf16 %v4077, %v4076
        %v4582 = vpack.c.bf16 %v4079, %v4078
        %v4583 = vpack.c.bf16 %v4081, %v4080
        %v4584 = vpack.c.bf16 %v4083, %v4082
        %v4585 = vpack.c.bf16 %v4085, %v4084
        %v4586 = vpack.c.bf16 %v4087, %v4086
        %v4587 = vpack.c.bf16 %v4089, %v4088
        %v4588 = vpack.c.bf16 %v4091, %v4090
        %v4589 = vpack.c.bf16 %v4093, %v4092
        %v4590 = vpack.c.bf16 %v4095, %v4094
        %v4591 = vpack.c.bf16 %v4097, %v4096
        %v4592 = vpack.c.bf16 %v4099, %v4098
        %v4593 = vpack.c.bf16 %v4101, %v4100
        %v4594 = vpack.c.bf16 %v4103, %v4102
        %v4595 = vpack.c.bf16 %v4105, %v4104
        %v4596 = vpack.c.bf16 %v4107, %v4106
        %v4597 = vpack.c.bf16 %v4109, %v4108
        %v4598 = vpack.c.bf16 %v4111, %v4110
        %v4599 = vpack.c.bf16 %v4113, %v4112
        %v4600 = vpack.c.bf16 %v4115, %v4114
        %v4601 = vpack.c.bf16 %v4117, %v4116
        %v4602 = vpack.c.bf16 %v4119, %v4118
        %v4603 = vpack.c.bf16 %v4121, %v4120
        %v4604 = vpack.c.bf16 %v4123, %v4122
        %v4605 = vpack.c.bf16 %v4125, %v4124
        %v4606 = vpack.c.bf16 %v4127, %v4126
        %v4607 = vpack.c.bf16 %v4129, %v4128
        %v4608 = vpack.c.bf16 %v4131, %v4130
        %v4609 = vpack.c.bf16 %v4133, %v4132
        %v4610 = vpack.c.bf16 %v4135, %v4134
        %v4611 = vpack.c.bf16 %v4137, %v4136
        %v4612 = vpack.c.bf16 %v4139, %v4138
        %v4613 = vpack.c.bf16 %v4141, %v4140
        %v4614 = vpack.c.bf16 %v4143, %v4142
        %v4615 = vpack.c.bf16 %v4145, %v4144
        %v4616 = vpack.c.bf16 %v4147, %v4146
        %v4617 = vpack.c.bf16 %v4149, %v4148
        %v4618 = vpack.c.bf16 %v4151, %v4150
        %v4619 = vpack.c.bf16 %v4153, %v4152
        %v4620 = vpack.c.bf16 %v4155, %v4154
        %v4621 = vpack.c.bf16 %v4157, %v4156
        %v4622 = vpack.c.bf16 %v4159, %v4158
        %v4623 = vpack.c.bf16 %v4161, %v4160
        %v4624 = vpack.c.bf16 %v4163, %v4162
        %v4625 = vpack.c.bf16 %v4165, %v4164
        %v4626 = vpack.c.bf16 %v4167, %v4166
        %v4627 = vpack.c.bf16 %v4169, %v4168
        %v4628 = vpack.c.bf16 %v4171, %v4170
        %v4629 = vpack.c.bf16 %v4173, %v4172
        %v4630 = vpack.c.bf16 %v4175, %v4174
        %v4631 = vpack.c.bf16 %v4177, %v4176
        %v4632 = vpack.c.bf16 %v4179, %v4178
        %v4633 = vpack.c.bf16 %v4181, %v4180
        %v4634 = vpack.c.bf16 %v4183, %v4182
        %v4635 = vpack.c.bf16 %v4185, %v4184
        %v4636 = vpack.c.bf16 %v4187, %v4186
        %v4637 = vpack.c.bf16 %v4189, %v4188
        %v4638 = vpack.c.bf16 %v4191, %v4190
        %v4639 = vpack.c.bf16 %v4193, %v4192
        %v4640 = vpack.c.bf16 %v4195, %v4194
        %v4641 = vpack.c.bf16 %v4197, %v4196
        %v4642 = vpack.c.bf16 %v4199, %v4198
        %v4643 = vpack.c.bf16 %v4201, %v4200
        %v4644 = vpack.c.bf16 %v4203, %v4202
        %v4645 = vpack.c.bf16 %v4205, %v4204
        %v4646 = vpack.c.bf16 %v4207, %v4206
        %v4647 = vpack.c.bf16 %v4209, %v4208
        %v4648 = vpack.c.bf16 %v4211, %v4210
        %v4649 = vpack.c.bf16 %v4213, %v4212
        %v4650 = vpack.c.bf16 %v4215, %v4214
        %v4651 = vpack.c.bf16 %v4217, %v4216
        %v4652 = vpack.c.bf16 %v4219, %v4218
        %v4653 = vpack.c.bf16 %v4221, %v4220
        %v4654 = vpack.c.bf16 %v4223, %v4222
        %v4655 = vpack.c.bf16 %v4225, %v4224
        %v4656 = vpack.c.bf16 %v4227, %v4226
        %v4657 = vpack.c.bf16 %v4229, %v4228
        %v4658 = vpack.c.bf16 %v4231, %v4230
        %v4659 = vpack.c.bf16 %v4233, %v4232
        %v4660 = vpack.c.bf16 %v4235, %v4234
        %v4661 = vpack.c.bf16 %v4237, %v4236
        %v4662 = vpack.c.bf16 %v4239, %v4238
        %v4663 = vpack.c.bf16 %v4241, %v4240
        %v4664 = vpack.c.bf16 %v4243, %v4242
        %v4665 = vpack.c.bf16 %v4245, %v4244
        %v4666 = vpack.c.bf16 %v4247, %v4246
        %v4667 = vpack.c.bf16 %v4249, %v4248
        %v4668 = vpack.c.bf16 %v4251, %v4250
        %v4669 = vpack.c.bf16 %v4253, %v4252
        %v4670 = vpack.c.bf16 %v4255, %v4254
        %v4671 = vpack.c.bf16 %v4257, %v4256
        %v4672 = vpack.c.bf16 %v4259, %v4258
        %v4673 = vpack.c.bf16 %v4261, %v4260
        %v4674 = vpack.c.bf16 %v4263, %v4262
        %v4675 = vpack.c.bf16 %v4265, %v4264
        %v4676 = vpack.c.bf16 %v4267, %v4266
        %v4677 = vpack.c.bf16 %v4269, %v4268
        %v4678 = vpack.c.bf16 %v4271, %v4270
        %v4679 = vpack.c.bf16 %v4273, %v4272
        %v4680 = vpack.c.bf16 %v4275, %v4274
        %v4681 = vpack.c.bf16 %v4277, %v4276
        %v4682 = vpack.c.bf16 %v4279, %v4278
        %v4683 = vpack.c.bf16 %v4281, %v4280
        %v4684 = vpack.c.bf16 %v4283, %v4282
        %v4685 = vpack.c.bf16 %v4285, %v4284
        %v4686 = vpack.c.bf16 %v4287, %v4286
        %v4687 = vpack.c.bf16 %v4289, %v4288
        %v4688 = vpack.c.bf16 %v4291, %v4290
        %v4689 = vpack.c.bf16 %v4293, %v4292
        %v4690 = vpack.c.bf16 %v4295, %v4294
        %v4691 = vpack.c.bf16 %v4297, %v4296
        %v4692 = vpack.c.bf16 %v4299, %v4298
        %v4693 = vpack.c.bf16 %v4301, %v4300
        %v4694 = vpack.c.bf16 %v4303, %v4302
        %v4695 = vpack.c.bf16 %v4305, %v4304
        %v4696 = vpack.c.bf16 %v4307, %v4306
        %v4697 = vpack.c.bf16 %v4309, %v4308
        %v4698 = vpack.c.bf16 %v4311, %v4310
        %v4699 = vpack.c.bf16 %v4313, %v4312
        %v4700 = vpack.c.bf16 %v4315, %v4314
        %v4701 = vpack.c.bf16 %v4317, %v4316
        %v4702 = vpack.c.bf16 %v4319, %v4318
        %v4703 = vpack.c.bf16 %v4321, %v4320
        %v4704 = vpack.c.bf16 %v4323, %v4322
        %v4705 = vpack.c.bf16 %v4325, %v4324
        %v4706 = vpack.c.bf16 %v4327, %v4326
        %v4707 = vpack.c.bf16 %v4329, %v4328
        %v4708 = vpack.c.bf16 %v4331, %v4330
        %v4709 = vpack.c.bf16 %v4333, %v4332
        %v4710 = vpack.c.bf16 %v4335, %v4334
        %v4711 = vpack.c.bf16 %v4337, %v4336
        %v4712 = vpack.c.bf16 %v4339, %v4338
        %v4713 = vpack.c.bf16 %v4341, %v4340
        %v4714 = vpack.c.bf16 %v4343, %v4342
        %v4715 = vpack.c.bf16 %v4345, %v4344
        %v4716 = vpack.c.bf16 %v4347, %v4346
        %v4717 = vpack.c.bf16 %v4349, %v4348
        %v4718 = vpack.c.bf16 %v4351, %v4350
        %v4719 = vpack.c.bf16 %v4353, %v4352
        %v4720 = vpack.c.bf16 %v4355, %v4354
        %v4721 = vpack.c.bf16 %v4357, %v4356
        %v4722 = vpack.c.bf16 %v4359, %v4358
        %v4723 = vpack.c.bf16 %v4361, %v4360
        %v4724 = vpack.c.bf16 %v4363, %v4362
        %v4725 = vpack.c.bf16 %v4365, %v4364
        %v4726 = vpack.c.bf16 %v4367, %v4366
        %v4727 = vpack.c.bf16 %v4369, %v4368
        %v4728 = vpack.c.bf16 %v4371, %v4370
        %v4729 = vpack.c.bf16 %v4373, %v4372
        %v4730 = vpack.c.bf16 %v4375, %v4374
        %v4731 = vpack.c.bf16 %v4377, %v4376
        %v4732 = vpack.c.bf16 %v4379, %v4378
        %v4733 = vpack.c.bf16 %v4381, %v4380
        %v4734 = vpack.c.bf16 %v4383, %v4382
        %v4735 = vpack.c.bf16 %v4385, %v4384
        %v4736 = vpack.c.bf16 %v4387, %v4386
        %v4737 = vpack.c.bf16 %v4389, %v4388
        %v4738 = vpack.c.bf16 %v4391, %v4390
        %v4739 = vpack.c.bf16 %v4393, %v4392
        %v4740 = vpack.c.bf16 %v4395, %v4394
        %v4741 = vpack.c.bf16 %v4397, %v4396
        %v4742 = vpack.c.bf16 %v4399, %v4398
        %v4743 = vpack.c.bf16 %v4401, %v4400
        %v4744 = vpack.c.bf16 %v4403, %v4402
        %v4745 = vpack.c.bf16 %v4405, %v4404
        %v4746 = vpack.c.bf16 %v4407, %v4406
        %v4747 = vpack.c.bf16 %v4409, %v4408
        %v4748 = vpack.c.bf16 %v4411, %v4410
        %v4749 = vpack.c.bf16 %v4413, %v4412
        %v4750 = vpack.c.bf16 %v4415, %v4414
        %v4751 = vpack.c.bf16 %v4417, %v4416
        %v4752 = vpack.c.bf16 %v4419, %v4418
        %v4753 = vpack.c.bf16 %v4421, %v4420
        %v4754 = vpack.c.bf16 %v4423, %v4422
        %v4755 = vpack.c.bf16 %v4425, %v4424
        %v4756 = vpack.c.bf16 %v4427, %v4426
        %v4757 = vpack.c.bf16 %v4429, %v4428
        %v4758 = vpack.c.bf16 %v4431, %v4430
        %v4759 = vpack.c.bf16 %v4433, %v4432
        %v4760 = vpack.c.bf16 %v4435, %v4434
        %v4761 = vpack.c.bf16 %v4437, %v4436
        %v4762 = vpack.c.bf16 %v4439, %v4438
        %v4763 = vpack.c.bf16 %v4441, %v4440
        %v4764 = vpack.c.bf16 %v4443, %v4442
        %v4765 = vpack.c.bf16 %v4445, %v4444
        %v4766 = vpack.c.bf16 %v4447, %v4446
        %v4767 = vpack.c.bf16 %v4449, %v4448
        %v4768 = vpack.c.bf16 %v4451, %v4450
        %v4769 = vpack.c.bf16 %v4453, %v4452
        %v4770 = vpack.c.bf16 %v4455, %v4454
        %v4771 = vpack.c.bf16 %v4457, %v4456
        %v4772 = vpack.c.bf16 %v4459, %v4458
        %v4773 = vpack.c.bf16 %v4461, %v4460
        %v4774 = vpack.c.bf16 %v4463, %v4462
        %v4775 = vpack.c.bf16 %v4465, %v4464
        %v4776 = vpack.c.bf16 %v4467, %v4466
        %v4777 = vpack.c.bf16 %v4469, %v4468
        %v4778 = vpack.c.bf16 %v4471, %v4470
        %v4779 = vpack.c.bf16 %v4473, %v4472
        %v4780 = vpack.c.bf16 %v4475, %v4474
        %v4781 = vpack.c.bf16 %v4477, %v4476
        %v4782 = vpack.c.bf16 %v4479, %v4478
        %v4783 = vpack.c.bf16 %v4481, %v4480
        %v4784 = vpack.c.bf16 %v4483, %v4482
        %v4785 = vpack.c.bf16 %v4485, %v4484
        %v4786 = vpack.c.bf16 %v4487, %v4486
        %v4787 = vpack.c.bf16 %v4489, %v4488
        %v4788 = vpack.c.bf16 %v4491, %v4490
        %v4789 = vpack.c.bf16 %v4493, %v4492
        %v4790 = vpack.c.bf16 %v4495, %v4494
        %v4791 = vpack.c.bf16 %v4497, %v4496
        %v4792 = vpack.c.bf16 %v4499, %v4498
        %v4793 = vpack.c.bf16 %v4501, %v4500
        %v4794 = vpack.c.bf16 %v4503, %v4502
        %v4795 = vpack.c.bf16 %v4505, %v4504
        %v4796 = vpack.c.bf16 %v4507, %v4506
        %v4797 = vpack.c.bf16 %v4509, %v4508
        %v4798 = vpack.c.bf16 %v4511, %v4510
        %v4799 = vpack.c.bf16 %v4513, %v4512
        %v4800 = vpack.c.bf16 %v4515, %v4514
        %v4801 = vpack.c.bf16 %v4517, %v4516
        %v4802 = vpack.c.bf16 %v4519, %v4518
        %v4803 = vpack.c.bf16 %v4521, %v4520
        %v4804 = vpack.c.bf16 %v4523, %v4522
        %v4805 = vpack.c.bf16 %v4525, %v4524
        %v4806 = vpack.c.bf16 %v4527, %v4526
        %v4807 = vpack.c.bf16 %v4529, %v4528
        %v4808 = vpack.c.bf16 %v4531, %v4530
        %v4809 = vpack.c.bf16 %v4533, %v4532
        %v4810 = vpack.c.bf16 %v4535, %v4534
        %v4811 = vpack.c.bf16 %v4537, %v4536
        %v4812 = vpack.c.bf16 %v4539, %v4538
        %v4813 = vpack.c.bf16 %v4541, %v4540
        %v4814 = vpack.c.bf16 %v4543, %v4542
        %v4815 = vpack.c.bf16 %v4545, %v4544
        %v4816 = vpack.c.bf16 %v4547, %v4546
        %v4817 = vpack.c.bf16 %v4549, %v4548
        %v4818 = vpack.c.bf16 %v4551, %v4550
        %v4819 = vpack.c.bf16 %v4553, %v4552
        %v4820 = vpack.c.bf16 %v4555, %v4554
        %v4821 = vpack.c.bf16 %v4557, %v4556
        %v4822 = vpack.c.bf16 %v4559, %v4558
        %v4823 = vpack.c.bf16 %v4561, %v4560
        %v4824 = vpack.c.bf16 %v4563, %v4562
        %v4825 = vpack.c.bf16 %v4565, %v4564
        %v4826 = vpack.c.bf16 %v4567, %v4566
        %v4827 = vpack.c.bf16 %v4569, %v4568
        %v4828 = vpack.c.bf16 %v4571, %v4570
        %v4829 = vpack.c.bf16 %v4573, %v4572
        %v4830 = vld [vmem:[%s2] sm:$0xf]
        %v4831 = vld [vmem:[%s2 + $0x4] sm:$0xf]
        %v4832 = vld [vmem:[%s2 + $0x8] sm:$0xf]
        %v4833 = vld [vmem:[%s2 + $0xc] sm:$0xf]
        %v4834 = vld [vmem:[%s2 + $0x10] sm:$0xf]
        %v4835 = vld [vmem:[%s2 + $0x14] sm:$0xf]
        %v4836 = vld [vmem:[%s2 + $0x18] sm:$0xf]
        %v4837 = vld [vmem:[%s2 + $0x1c] sm:$0xf]
        %v4838 = vld [vmem:[%s2 + $0x20] sm:$0x1]
        %v4839 = vunpack.c.l.bf16 %v4838
        %v4840 = vperm.slane %v4839, 0
        %v4849 = vunpack.c.l.b16 %v4830
        %v4850 = vunpack.c.l.b16 %v4831
        %v4851 = vunpack.c.l.b16 %v4832
        %v4852 = vunpack.c.l.b16 %v4833
        %v4853 = vunpack.c.l.b16 %v4834
        %v4854 = vunpack.c.l.b16 %v4835
        %v4855 = vunpack.c.l.b16 %v4836
        %v4856 = vunpack.c.l.b16 %v4837
        %v4857 = vpack.c.b16 %v4850, %v4849
        %v4858 = vpack.c.b16 %v4852, %v4851
        %v4859 = vpack.c.b16 %v4854, %v4853
        %v4860 = vpack.c.b16 %v4856, %v4855
        %vm4865 = vcmask 523264
        %v4867 = vsel %vm4865, %v4574, 0
        %v4870 = vsel %vm4865, %v4575, 0
        %v4873 = vsel %vm4865, %v4576, 0
        %v4876 = vsel %vm4865, %v4577, 0
        %v4879 = vsel %vm4865, %v4578, 0
        %v4882 = vsel %vm4865, %v4579, 0
        %v4885 = vsel %vm4865, %v4580, 0
        %v4888 = vsel %vm4865, %v4581, 0
        %v4891 = vsel %vm4865, %v4582, 0
        %v4894 = vsel %vm4865, %v4583, 0
        %v4897 = vsel %vm4865, %v4584, 0
        %v4900 = vsel %vm4865, %v4585, 0
        %v4903 = vsel %vm4865, %v4586, 0
        %v4906 = vsel %vm4865, %v4587, 0
        %v4909 = vsel %vm4865, %v4588, 0
        %v4912 = vsel %vm4865, %v4589, 0
        %v4915 = vsel %vm4865, %v4590, 0
        %v4918 = vsel %vm4865, %v4591, 0
        %v4921 = vsel %vm4865, %v4592, 0
        %v4924 = vsel %vm4865, %v4593, 0
        %v4927 = vsel %vm4865, %v4594, 0
        %v4930 = vsel %vm4865, %v4595, 0
        %v4933 = vsel %vm4865, %v4596, 0
        %v4936 = vsel %vm4865, %v4597, 0
        %v4939 = vsel %vm4865, %v4598, 0
        %v4942 = vsel %vm4865, %v4599, 0
        %v4945 = vsel %vm4865, %v4600, 0
        %v4948 = vsel %vm4865, %v4601, 0
        %v4951 = vsel %vm4865, %v4602, 0
        %v4954 = vsel %vm4865, %v4603, 0
        %v4957 = vsel %vm4865, %v4604, 0
        %v4960 = vsel %vm4865, %v4605, 0
        %v4963 = vsel %vm4865, %v4606, 0
        %v4966 = vsel %vm4865, %v4607, 0
        %v4969 = vsel %vm4865, %v4608, 0
        %v4972 = vsel %vm4865, %v4609, 0
        %v4975 = vsel %vm4865, %v4610, 0
        %v4978 = vsel %vm4865, %v4611, 0
        %v4981 = vsel %vm4865, %v4612, 0
        %v4984 = vsel %vm4865, %v4613, 0
        %v4987 = vsel %vm4865, %v4614, 0
        %v4990 = vsel %vm4865, %v4615, 0
        %v4993 = vsel %vm4865, %v4616, 0
        %v4996 = vsel %vm4865, %v4617, 0
        %v4999 = vsel %vm4865, %v4618, 0
        %v5002 = vsel %vm4865, %v4619, 0
        %v5005 = vsel %vm4865, %v4620, 0
        %v5008 = vsel %vm4865, %v4621, 0
        %v5011 = vsel %vm4865, %v4622, 0
        %v5014 = vsel %vm4865, %v4623, 0
        %v5017 = vsel %vm4865, %v4624, 0
        %v5020 = vsel %vm4865, %v4625, 0
        %v5023 = vsel %vm4865, %v4626, 0
        %v5026 = vsel %vm4865, %v4627, 0
        %v5029 = vsel %vm4865, %v4628, 0
        %v5032 = vsel %vm4865, %v4629, 0
        %v5035 = vsel %vm4865, %v4630, 0
        %v5038 = vsel %vm4865, %v4631, 0
        %v5041 = vsel %vm4865, %v4632, 0
        %v5044 = vsel %vm4865, %v4633, 0
        %v5047 = vsel %vm4865, %v4634, 0
        %v5050 = vsel %vm4865, %v4635, 0
        %v5053 = vsel %vm4865, %v4636, 0
        %v5056 = vsel %vm4865, %v4637, 0
        %v5059 = vsel %vm4865, %v4638, 0
        %v5062 = vsel %vm4865, %v4639, 0
        %v5065 = vsel %vm4865, %v4640, 0
        %v5068 = vsel %vm4865, %v4641, 0
        %v5071 = vsel %vm4865, %v4642, 0
        %v5074 = vsel %vm4865, %v4643, 0
        %v5077 = vsel %vm4865, %v4644, 0
        %v5080 = vsel %vm4865, %v4645, 0
        %v5083 = vsel %vm4865, %v4646, 0
        %v5086 = vsel %vm4865, %v4647, 0
        %v5089 = vsel %vm4865, %v4648, 0
        %v5092 = vsel %vm4865, %v4649, 0
        %v5095 = vsel %vm4865, %v4650, 0
        %v5098 = vsel %vm4865, %v4651, 0
        %v5101 = vsel %vm4865, %v4652, 0
        %v5104 = vsel %vm4865, %v4653, 0
        %v5107 = vsel %vm4865, %v4654, 0
        %v5110 = vsel %vm4865, %v4655, 0
        %v5113 = vsel %vm4865, %v4656, 0
        %v5116 = vsel %vm4865, %v4657, 0
        %v5119 = vsel %vm4865, %v4658, 0
        %v5122 = vsel %vm4865, %v4659, 0
        %v5125 = vsel %vm4865, %v4660, 0
        %v5128 = vsel %vm4865, %v4661, 0
        %v5131 = vsel %vm4865, %v4662, 0
        %v5134 = vsel %vm4865, %v4663, 0
        %v5137 = vsel %vm4865, %v4664, 0
        %v5140 = vsel %vm4865, %v4665, 0
        %v5143 = vsel %vm4865, %v4666, 0
        %v5146 = vsel %vm4865, %v4667, 0
        %v5149 = vsel %vm4865, %v4668, 0
        %v5152 = vsel %vm4865, %v4669, 0
        %v5155 = vsel %vm4865, %v4670, 0
        %v5158 = vsel %vm4865, %v4671, 0
        %v5161 = vsel %vm4865, %v4672, 0
        %v5164 = vsel %vm4865, %v4673, 0
        %v5167 = vsel %vm4865, %v4674, 0
        %v5170 = vsel %vm4865, %v4675, 0
        %v5173 = vsel %vm4865, %v4676, 0
        %v5176 = vsel %vm4865, %v4677, 0
        %v5179 = vsel %vm4865, %v4678, 0
        %v5182 = vsel %vm4865, %v4679, 0
        %v5185 = vsel %vm4865, %v4680, 0
        %v5188 = vsel %vm4865, %v4681, 0
        %v5191 = vsel %vm4865, %v4682, 0
        %v5194 = vsel %vm4865, %v4683, 0
        %v5197 = vsel %vm4865, %v4684, 0
        %v5200 = vsel %vm4865, %v4685, 0
        %v5203 = vsel %vm4865, %v4686, 0
        %v5206 = vsel %vm4865, %v4687, 0
        %v5209 = vsel %vm4865, %v4688, 0
        %v5212 = vsel %vm4865, %v4689, 0
        %v5215 = vsel %vm4865, %v4690, 0
        %v5218 = vsel %vm4865, %v4691, 0
        %v5221 = vsel %vm4865, %v4692, 0
        %v5224 = vsel %vm4865, %v4693, 0
        %v5227 = vsel %vm4865, %v4694, 0
        %v5230 = vsel %vm4865, %v4695, 0
        %v5233 = vsel %vm4865, %v4696, 0
        %v5236 = vsel %vm4865, %v4697, 0
        %v5239 = vsel %vm4865, %v4698, 0
        %v5242 = vsel %vm4865, %v4699, 0
        %v5245 = vsel %vm4865, %v4700, 0
        %v5248 = vsel %vm4865, %v4701, 0
        %v5251 = vsel %vm4865, %v4702, 0
        %v5254 = vsel %vm4865, %v4703, 0
        %v5257 = vsel %vm4865, %v4704, 0
        %v5260 = vsel %vm4865, %v4705, 0
        %v5263 = vsel %vm4865, %v4706, 0
        %v5266 = vsel %vm4865, %v4707, 0
        %v5269 = vsel %vm4865, %v4708, 0
        %v5272 = vsel %vm4865, %v4709, 0
        %v5275 = vsel %vm4865, %v4710, 0
        %v5278 = vsel %vm4865, %v4711, 0
        %v5281 = vsel %vm4865, %v4712, 0
        %v5284 = vsel %vm4865, %v4713, 0
        %v5287 = vsel %vm4865, %v4714, 0
        %v5290 = vsel %vm4865, %v4715, 0
        %v5293 = vsel %vm4865, %v4716, 0
        %v5296 = vsel %vm4865, %v4717, 0
        %v5299 = vsel %vm4865, %v4718, 0
        %v5302 = vsel %vm4865, %v4719, 0
        %v5305 = vsel %vm4865, %v4720, 0
        %v5308 = vsel %vm4865, %v4721, 0
        %v5311 = vsel %vm4865, %v4722, 0
        %v5314 = vsel %vm4865, %v4723, 0
        %v5317 = vsel %vm4865, %v4724, 0
        %v5320 = vsel %vm4865, %v4725, 0
        %v5323 = vsel %vm4865, %v4726, 0
        %v5326 = vsel %vm4865, %v4727, 0
        %v5329 = vsel %vm4865, %v4728, 0
        %v5332 = vsel %vm4865, %v4729, 0
        %v5335 = vsel %vm4865, %v4730, 0
        %v5338 = vsel %vm4865, %v4731, 0
        %v5341 = vsel %vm4865, %v4732, 0
        %v5344 = vsel %vm4865, %v4733, 0
        %v5347 = vsel %vm4865, %v4734, 0
        %v5350 = vsel %vm4865, %v4735, 0
        %v5353 = vsel %vm4865, %v4736, 0
        %v5356 = vsel %vm4865, %v4737, 0
        %v5359 = vsel %vm4865, %v4738, 0
        %v5362 = vsel %vm4865, %v4739, 0
        %v5365 = vsel %vm4865, %v4740, 0
        %v5368 = vsel %vm4865, %v4741, 0
        %v5371 = vsel %vm4865, %v4742, 0
        %v5374 = vsel %vm4865, %v4743, 0
        %v5377 = vsel %vm4865, %v4744, 0
        %v5380 = vsel %vm4865, %v4745, 0
        %v5383 = vsel %vm4865, %v4746, 0
        %v5386 = vsel %vm4865, %v4747, 0
        %v5389 = vsel %vm4865, %v4748, 0
        %v5392 = vsel %vm4865, %v4749, 0
        %v5395 = vsel %vm4865, %v4750, 0
        %v5398 = vsel %vm4865, %v4751, 0
        %v5401 = vsel %vm4865, %v4752, 0
        %v5404 = vsel %vm4865, %v4753, 0
        %v5407 = vsel %vm4865, %v4754, 0
        %v5410 = vsel %vm4865, %v4755, 0
        %v5413 = vsel %vm4865, %v4756, 0
        %v5416 = vsel %vm4865, %v4757, 0
        %v5419 = vsel %vm4865, %v4758, 0
        %v5422 = vsel %vm4865, %v4759, 0
        %v5425 = vsel %vm4865, %v4760, 0
        %v5428 = vsel %vm4865, %v4761, 0
        %v5431 = vsel %vm4865, %v4762, 0
        %v5434 = vsel %vm4865, %v4763, 0
        %v5437 = vsel %vm4865, %v4764, 0
        %v5440 = vsel %vm4865, %v4765, 0
        %v5443 = vsel %vm4865, %v4766, 0
        %v5446 = vsel %vm4865, %v4767, 0
        %v5449 = vsel %vm4865, %v4768, 0
        %v5452 = vsel %vm4865, %v4769, 0
        %v5455 = vsel %vm4865, %v4770, 0
        %v5458 = vsel %vm4865, %v4771, 0
        %v5461 = vsel %vm4865, %v4772, 0
        %v5464 = vsel %vm4865, %v4773, 0
        %v5467 = vsel %vm4865, %v4774, 0
        %v5470 = vsel %vm4865, %v4775, 0
        %v5473 = vsel %vm4865, %v4776, 0
        %v5476 = vsel %vm4865, %v4777, 0
        %v5479 = vsel %vm4865, %v4778, 0
        %v5482 = vsel %vm4865, %v4779, 0
        %v5485 = vsel %vm4865, %v4780, 0
        %v5488 = vsel %vm4865, %v4781, 0
        %v5491 = vsel %vm4865, %v4782, 0
        %v5494 = vsel %vm4865, %v4783, 0
        %v5497 = vsel %vm4865, %v4784, 0
        %v5500 = vsel %vm4865, %v4785, 0
        %v5503 = vsel %vm4865, %v4786, 0
        %v5506 = vsel %vm4865, %v4787, 0
        %v5509 = vsel %vm4865, %v4788, 0
        %v5512 = vsel %vm4865, %v4789, 0
        %v5515 = vsel %vm4865, %v4790, 0
        %v5518 = vsel %vm4865, %v4791, 0
        %v5521 = vsel %vm4865, %v4792, 0
        %v5524 = vsel %vm4865, %v4793, 0
        %v5527 = vsel %vm4865, %v4794, 0
        %v5530 = vsel %vm4865, %v4795, 0
        %v5533 = vsel %vm4865, %v4796, 0
        %v5536 = vsel %vm4865, %v4797, 0
        %v5539 = vsel %vm4865, %v4798, 0
        %v5542 = vsel %vm4865, %v4799, 0
        %v5545 = vsel %vm4865, %v4800, 0
        %v5548 = vsel %vm4865, %v4801, 0
        %v5551 = vsel %vm4865, %v4802, 0
        %v5554 = vsel %vm4865, %v4803, 0
        %v5557 = vsel %vm4865, %v4804, 0
        %v5560 = vsel %vm4865, %v4805, 0
        %v5563 = vsel %vm4865, %v4806, 0
        %v5566 = vsel %vm4865, %v4807, 0
        %v5569 = vsel %vm4865, %v4808, 0
        %v5572 = vsel %vm4865, %v4809, 0
        %v5575 = vsel %vm4865, %v4810, 0
        %v5578 = vsel %vm4865, %v4811, 0
        %v5581 = vsel %vm4865, %v4812, 0
        %v5584 = vsel %vm4865, %v4813, 0
        %v5587 = vsel %vm4865, %v4814, 0
        %v5590 = vsel %vm4865, %v4815, 0
        %v5593 = vsel %vm4865, %v4816, 0
        %v5596 = vsel %vm4865, %v4817, 0
        %v5599 = vsel %vm4865, %v4818, 0
        %v5602 = vsel %vm4865, %v4819, 0
        %v5605 = vsel %vm4865, %v4820, 0
        %v5608 = vsel %vm4865, %v4821, 0
        %v5611 = vsel %vm4865, %v4822, 0
        %v5614 = vsel %vm4865, %v4823, 0
        %v5617 = vsel %vm4865, %v4824, 0
        %v5620 = vsel %vm4865, %v4825, 0
        %v5623 = vsel %vm4865, %v4826, 0
        %v5626 = vsel %vm4865, %v4827, 0
        %v5629 = vsel %vm4865, %v4828, 0
        %v5632 = vsel %vm4865, %v4829, 0
        %5634 = vmatpush.bf16.msra.mxu0 0
        %5635 = vmatpush.bf16.msra.mxu0 0
        %5636 = vmatpush.bf16.msra.mxu0 0
        %5637 = vmatpush.bf16.msra.mxu0 0
        %5638 = vmatpush.bf16.msra.mxu0 %v4860
        %5639 = vmatpush.bf16.msra.mxu0 %v4859
        %5640 = vmatpush.bf16.msra.mxu0 %v4858
        %5641 = vmatpush.bf16.msra.mxu0 %v4857
        %5642 = vmatmul.bf16.gmra.mxu0 %v4867
        %v5643 = vpop.f32.mrf.mxu0
        %v5644 = vadd.f32 %v4840, %v5643
        %v5645 = vpop.f32.mrf.mxu0
        %v5646 = vadd.f32 %v4840, %v5645
        %5647 = vmatmul.bf16.gmra.mxu0 %v4870
        %v5648 = vpop.f32.mrf.mxu0
        %v5649 = vadd.f32 %v4840, %v5648
        %v5650 = vpop.f32.mrf.mxu0
        %v5651 = vadd.f32 %v4840, %v5650
        %5652 = vmatmul.bf16.gmra.mxu0 %v4873
        %v5653 = vpop.f32.mrf.mxu0
        %v5654 = vadd.f32 %v4840, %v5653
        %v5655 = vpop.f32.mrf.mxu0
        %v5656 = vadd.f32 %v4840, %v5655
        %5657 = vmatmul.bf16.gmra.mxu0 %v4876
        %v5658 = vpop.f32.mrf.mxu0
        %v5659 = vadd.f32 %v4840, %v5658
        %v5660 = vpop.f32.mrf.mxu0
        %v5661 = vadd.f32 %v4840, %v5660
        %5662 = vmatmul.bf16.gmra.mxu0 %v4879
        %v5663 = vpop.f32.mrf.mxu0
        %v5664 = vadd.f32 %v4840, %v5663
        %v5665 = vpop.f32.mrf.mxu0
        %v5666 = vadd.f32 %v4840, %v5665
        %5667 = vmatmul.bf16.gmra.mxu0 %v4882
        %v5668 = vpop.f32.mrf.mxu0
        %v5669 = vadd.f32 %v4840, %v5668
        %v5670 = vpop.f32.mrf.mxu0
        %v5671 = vadd.f32 %v4840, %v5670
        %5672 = vmatmul.bf16.gmra.mxu0 %v4885
        %v5673 = vpop.f32.mrf.mxu0
        %v5674 = vadd.f32 %v4840, %v5673
        %v5675 = vpop.f32.mrf.mxu0
        %v5676 = vadd.f32 %v4840, %v5675
        %5677 = vmatmul.bf16.gmra.mxu0 %v4888
        %v5678 = vpop.f32.mrf.mxu0
        %v5679 = vadd.f32 %v4840, %v5678
        %v5680 = vpop.f32.mrf.mxu0
        %v5681 = vadd.f32 %v4840, %v5680
        %5682 = vmatmul.bf16.gmra.mxu0 %v4891
        %v5683 = vpop.f32.mrf.mxu0
        %v5684 = vadd.f32 %v4840, %v5683
        %v5685 = vpop.f32.mrf.mxu0
        %v5686 = vadd.f32 %v4840, %v5685
        %5687 = vmatmul.bf16.gmra.mxu0 %v4894
        %v5688 = vpop.f32.mrf.mxu0
        %v5689 = vadd.f32 %v4840, %v5688
        %v5690 = vpop.f32.mrf.mxu0
        %v5691 = vadd.f32 %v4840, %v5690
        %5692 = vmatmul.bf16.gmra.mxu0 %v4897
        %v5693 = vpop.f32.mrf.mxu0
        %v5694 = vadd.f32 %v4840, %v5693
        %v5695 = vpop.f32.mrf.mxu0
        %v5696 = vadd.f32 %v4840, %v5695
        %5697 = vmatmul.bf16.gmra.mxu0 %v4900
        %v5698 = vpop.f32.mrf.mxu0
        %v5699 = vadd.f32 %v4840, %v5698
        %v5700 = vpop.f32.mrf.mxu0
        %v5701 = vadd.f32 %v4840, %v5700
        %5702 = vmatmul.bf16.gmra.mxu0 %v4903
        %v5703 = vpop.f32.mrf.mxu0
        %v5704 = vadd.f32 %v4840, %v5703
        %v5705 = vpop.f32.mrf.mxu0
        %v5706 = vadd.f32 %v4840, %v5705
        %5707 = vmatmul.bf16.gmra.mxu0 %v4906
        %v5708 = vpop.f32.mrf.mxu0
        %v5709 = vadd.f32 %v4840, %v5708
        %v5710 = vpop.f32.mrf.mxu0
        %v5711 = vadd.f32 %v4840, %v5710
        %5712 = vmatmul.bf16.gmra.mxu0 %v4909
        %v5713 = vpop.f32.mrf.mxu0
        %v5714 = vadd.f32 %v4840, %v5713
        %v5715 = vpop.f32.mrf.mxu0
        %v5716 = vadd.f32 %v4840, %v5715
        %5717 = vmatmul.bf16.gmra.mxu0 %v4912
        %v5718 = vpop.f32.mrf.mxu0
        %v5719 = vadd.f32 %v4840, %v5718
        %v5720 = vpop.f32.mrf.mxu0
        %v5721 = vadd.f32 %v4840, %v5720
        %5722 = vmatmul.bf16.gmra.mxu0 %v4915
        %v5723 = vpop.f32.mrf.mxu0
        %v5724 = vadd.f32 %v4840, %v5723
        %v5725 = vpop.f32.mrf.mxu0
        %v5726 = vadd.f32 %v4840, %v5725
        %5727 = vmatmul.bf16.gmra.mxu0 %v4918
        %v5728 = vpop.f32.mrf.mxu0
        %v5729 = vadd.f32 %v4840, %v5728
        %v5730 = vpop.f32.mrf.mxu0
        %v5731 = vadd.f32 %v4840, %v5730
        %5732 = vmatmul.bf16.gmra.mxu0 %v4921
        %v5733 = vpop.f32.mrf.mxu0
        %v5734 = vadd.f32 %v4840, %v5733
        %v5735 = vpop.f32.mrf.mxu0
        %v5736 = vadd.f32 %v4840, %v5735
        %5737 = vmatmul.bf16.gmra.mxu0 %v4924
        %v5738 = vpop.f32.mrf.mxu0
        %v5739 = vadd.f32 %v4840, %v5738
        %v5740 = vpop.f32.mrf.mxu0
        %v5741 = vadd.f32 %v4840, %v5740
        %5742 = vmatmul.bf16.gmra.mxu0 %v4927
        %v5743 = vpop.f32.mrf.mxu0
        %v5744 = vadd.f32 %v4840, %v5743
        %v5745 = vpop.f32.mrf.mxu0
        %v5746 = vadd.f32 %v4840, %v5745
        %5747 = vmatmul.bf16.gmra.mxu0 %v4930
        %v5748 = vpop.f32.mrf.mxu0
        %v5749 = vadd.f32 %v4840, %v5748
        %v5750 = vpop.f32.mrf.mxu0
        %v5751 = vadd.f32 %v4840, %v5750
        %5752 = vmatmul.bf16.gmra.mxu0 %v4933
        %v5753 = vpop.f32.mrf.mxu0
        %v5754 = vadd.f32 %v4840, %v5753
        %v5755 = vpop.f32.mrf.mxu0
        %v5756 = vadd.f32 %v4840, %v5755
        %5757 = vmatmul.bf16.gmra.mxu0 %v4936
        %v5758 = vpop.f32.mrf.mxu0
        %v5759 = vadd.f32 %v4840, %v5758
        %v5760 = vpop.f32.mrf.mxu0
        %v5761 = vadd.f32 %v4840, %v5760
        %5762 = vmatmul.bf16.gmra.mxu0 %v4939
        %v5763 = vpop.f32.mrf.mxu0
        %v5764 = vadd.f32 %v4840, %v5763
        %v5765 = vpop.f32.mrf.mxu0
        %v5766 = vadd.f32 %v4840, %v5765
        %5767 = vmatmul.bf16.gmra.mxu0 %v4942
        %v5768 = vpop.f32.mrf.mxu0
        %v5769 = vadd.f32 %v4840, %v5768
        %v5770 = vpop.f32.mrf.mxu0
        %v5771 = vadd.f32 %v4840, %v5770
        %5772 = vmatmul.bf16.gmra.mxu0 %v4945
        %v5773 = vpop.f32.mrf.mxu0
        %v5774 = vadd.f32 %v4840, %v5773
        %v5775 = vpop.f32.mrf.mxu0
        %v5776 = vadd.f32 %v4840, %v5775
        %5777 = vmatmul.bf16.gmra.mxu0 %v4948
        %v5778 = vpop.f32.mrf.mxu0
        %v5779 = vadd.f32 %v4840, %v5778
        %v5780 = vpop.f32.mrf.mxu0
        %v5781 = vadd.f32 %v4840, %v5780
        %5782 = vmatmul.bf16.gmra.mxu0 %v4951
        %v5783 = vpop.f32.mrf.mxu0
        %v5784 = vadd.f32 %v4840, %v5783
        %v5785 = vpop.f32.mrf.mxu0
        %v5786 = vadd.f32 %v4840, %v5785
        %5787 = vmatmul.bf16.gmra.mxu0 %v4954
        %v5788 = vpop.f32.mrf.mxu0
        %v5789 = vadd.f32 %v4840, %v5788
        %v5790 = vpop.f32.mrf.mxu0
        %v5791 = vadd.f32 %v4840, %v5790
        %5792 = vmatmul.bf16.gmra.mxu0 %v4957
        %v5793 = vpop.f32.mrf.mxu0
        %v5794 = vadd.f32 %v4840, %v5793
        %v5795 = vpop.f32.mrf.mxu0
        %v5796 = vadd.f32 %v4840, %v5795
        %5797 = vmatmul.bf16.gmra.mxu0 %v4960
        %v5798 = vpop.f32.mrf.mxu0
        %v5799 = vadd.f32 %v4840, %v5798
        %v5800 = vpop.f32.mrf.mxu0
        %v5801 = vadd.f32 %v4840, %v5800
        %5802 = vmatmul.bf16.gmra.mxu0 %v4963
        %v5803 = vpop.f32.mrf.mxu0
        %v5804 = vadd.f32 %v4840, %v5803
        %v5805 = vpop.f32.mrf.mxu0
        %v5806 = vadd.f32 %v4840, %v5805
        %5807 = vmatmul.bf16.gmra.mxu0 %v4966
        %v5808 = vpop.f32.mrf.mxu0
        %v5809 = vadd.f32 %v4840, %v5808
        %v5810 = vpop.f32.mrf.mxu0
        %v5811 = vadd.f32 %v4840, %v5810
        %5812 = vmatmul.bf16.gmra.mxu0 %v4969
        %v5813 = vpop.f32.mrf.mxu0
        %v5814 = vadd.f32 %v4840, %v5813
        %v5815 = vpop.f32.mrf.mxu0
        %v5816 = vadd.f32 %v4840, %v5815
        %5817 = vmatmul.bf16.gmra.mxu0 %v4972
        %v5818 = vpop.f32.mrf.mxu0
        %v5819 = vadd.f32 %v4840, %v5818
        %v5820 = vpop.f32.mrf.mxu0
        %v5821 = vadd.f32 %v4840, %v5820
        %5822 = vmatmul.bf16.gmra.mxu0 %v4975
        %v5823 = vpop.f32.mrf.mxu0
        %v5824 = vadd.f32 %v4840, %v5823
        %v5825 = vpop.f32.mrf.mxu0
        %v5826 = vadd.f32 %v4840, %v5825
        %5827 = vmatmul.bf16.gmra.mxu0 %v4978
        %v5828 = vpop.f32.mrf.mxu0
        %v5829 = vadd.f32 %v4840, %v5828
        %v5830 = vpop.f32.mrf.mxu0
        %v5831 = vadd.f32 %v4840, %v5830
        %5832 = vmatmul.bf16.gmra.mxu0 %v4981
        %v5833 = vpop.f32.mrf.mxu0
        %v5834 = vadd.f32 %v4840, %v5833
        %v5835 = vpop.f32.mrf.mxu0
        %v5836 = vadd.f32 %v4840, %v5835
        %5837 = vmatmul.bf16.gmra.mxu0 %v4984
        %v5838 = vpop.f32.mrf.mxu0
        %v5839 = vadd.f32 %v4840, %v5838
        %v5840 = vpop.f32.mrf.mxu0
        %v5841 = vadd.f32 %v4840, %v5840
        %5842 = vmatmul.bf16.gmra.mxu0 %v4987
        %v5843 = vpop.f32.mrf.mxu0
        %v5844 = vadd.f32 %v4840, %v5843
        %v5845 = vpop.f32.mrf.mxu0
        %v5846 = vadd.f32 %v4840, %v5845
        %5847 = vmatmul.bf16.gmra.mxu0 %v4990
        %v5848 = vpop.f32.mrf.mxu0
        %v5849 = vadd.f32 %v4840, %v5848
        %v5850 = vpop.f32.mrf.mxu0
        %v5851 = vadd.f32 %v4840, %v5850
        %5852 = vmatmul.bf16.gmra.mxu0 %v4993
        %v5853 = vpop.f32.mrf.mxu0
        %v5854 = vadd.f32 %v4840, %v5853
        %v5855 = vpop.f32.mrf.mxu0
        %v5856 = vadd.f32 %v4840, %v5855
        %5857 = vmatmul.bf16.gmra.mxu0 %v4996
        %v5858 = vpop.f32.mrf.mxu0
        %v5859 = vadd.f32 %v4840, %v5858
        %v5860 = vpop.f32.mrf.mxu0
        %v5861 = vadd.f32 %v4840, %v5860
        %5862 = vmatmul.bf16.gmra.mxu0 %v4999
        %v5863 = vpop.f32.mrf.mxu0
        %v5864 = vadd.f32 %v4840, %v5863
        %v5865 = vpop.f32.mrf.mxu0
        %v5866 = vadd.f32 %v4840, %v5865
        %5867 = vmatmul.bf16.gmra.mxu0 %v5002
        %v5868 = vpop.f32.mrf.mxu0
        %v5869 = vadd.f32 %v4840, %v5868
        %v5870 = vpop.f32.mrf.mxu0
        %v5871 = vadd.f32 %v4840, %v5870
        %5872 = vmatmul.bf16.gmra.mxu0 %v5005
        %v5873 = vpop.f32.mrf.mxu0
        %v5874 = vadd.f32 %v4840, %v5873
        %v5875 = vpop.f32.mrf.mxu0
        %v5876 = vadd.f32 %v4840, %v5875
        %5877 = vmatmul.bf16.gmra.mxu0 %v5008
        %v5878 = vpop.f32.mrf.mxu0
        %v5879 = vadd.f32 %v4840, %v5878
        %v5880 = vpop.f32.mrf.mxu0
        %v5881 = vadd.f32 %v4840, %v5880
        %5882 = vmatmul.bf16.gmra.mxu0 %v5011
        %v5883 = vpop.f32.mrf.mxu0
        %v5884 = vadd.f32 %v4840, %v5883
        %v5885 = vpop.f32.mrf.mxu0
        %v5886 = vadd.f32 %v4840, %v5885
        %5887 = vmatmul.bf16.gmra.mxu0 %v5014
        %v5888 = vpop.f32.mrf.mxu0
        %v5889 = vadd.f32 %v4840, %v5888
        %v5890 = vpop.f32.mrf.mxu0
        %v5891 = vadd.f32 %v4840, %v5890
        %5892 = vmatmul.bf16.gmra.mxu0 %v5017
        %v5893 = vpop.f32.mrf.mxu0
        %v5894 = vadd.f32 %v4840, %v5893
        %v5895 = vpop.f32.mrf.mxu0
        %v5896 = vadd.f32 %v4840, %v5895
        %5897 = vmatmul.bf16.gmra.mxu0 %v5020
        %v5898 = vpop.f32.mrf.mxu0
        %v5899 = vadd.f32 %v4840, %v5898
        %v5900 = vpop.f32.mrf.mxu0
        %v5901 = vadd.f32 %v4840, %v5900
        %5902 = vmatmul.bf16.gmra.mxu0 %v5023
        %v5903 = vpop.f32.mrf.mxu0
        %v5904 = vadd.f32 %v4840, %v5903
        %v5905 = vpop.f32.mrf.mxu0
        %v5906 = vadd.f32 %v4840, %v5905
        %5907 = vmatmul.bf16.gmra.mxu0 %v5026
        %v5908 = vpop.f32.mrf.mxu0
        %v5909 = vadd.f32 %v4840, %v5908
        %v5910 = vpop.f32.mrf.mxu0
        %v5911 = vadd.f32 %v4840, %v5910
        %5912 = vmatmul.bf16.gmra.mxu0 %v5029
        %v5913 = vpop.f32.mrf.mxu0
        %v5914 = vadd.f32 %v4840, %v5913
        %v5915 = vpop.f32.mrf.mxu0
        %v5916 = vadd.f32 %v4840, %v5915
        %5917 = vmatmul.bf16.gmra.mxu0 %v5032
        %v5918 = vpop.f32.mrf.mxu0
        %v5919 = vadd.f32 %v4840, %v5918
        %v5920 = vpop.f32.mrf.mxu0
        %v5921 = vadd.f32 %v4840, %v5920
        %5922 = vmatmul.bf16.gmra.mxu0 %v5035
        %v5923 = vpop.f32.mrf.mxu0
        %v5924 = vadd.f32 %v4840, %v5923
        %v5925 = vpop.f32.mrf.mxu0
        %v5926 = vadd.f32 %v4840, %v5925
        %5927 = vmatmul.bf16.gmra.mxu0 %v5038
        %v5928 = vpop.f32.mrf.mxu0
        %v5929 = vadd.f32 %v4840, %v5928
        %v5930 = vpop.f32.mrf.mxu0
        %v5931 = vadd.f32 %v4840, %v5930
        %5932 = vmatmul.bf16.gmra.mxu0 %v5041
        %v5933 = vpop.f32.mrf.mxu0
        %v5934 = vadd.f32 %v4840, %v5933
        %v5935 = vpop.f32.mrf.mxu0
        %v5936 = vadd.f32 %v4840, %v5935
        %5937 = vmatmul.bf16.gmra.mxu0 %v5044
        %v5938 = vpop.f32.mrf.mxu0
        %v5939 = vadd.f32 %v4840, %v5938
        %v5940 = vpop.f32.mrf.mxu0
        %v5941 = vadd.f32 %v4840, %v5940
        %5942 = vmatmul.bf16.gmra.mxu0 %v5047
        %v5943 = vpop.f32.mrf.mxu0
        %v5944 = vadd.f32 %v4840, %v5943
        %v5945 = vpop.f32.mrf.mxu0
        %v5946 = vadd.f32 %v4840, %v5945
        %5947 = vmatmul.bf16.gmra.mxu0 %v5050
        %v5948 = vpop.f32.mrf.mxu0
        %v5949 = vadd.f32 %v4840, %v5948
        %v5950 = vpop.f32.mrf.mxu0
        %v5951 = vadd.f32 %v4840, %v5950
        %5952 = vmatmul.bf16.gmra.mxu0 %v5053
        %v5953 = vpop.f32.mrf.mxu0
        %v5954 = vadd.f32 %v4840, %v5953
        %v5955 = vpop.f32.mrf.mxu0
        %v5956 = vadd.f32 %v4840, %v5955
        %5957 = vmatmul.bf16.gmra.mxu0 %v5056
        %v5958 = vpop.f32.mrf.mxu0
        %v5959 = vadd.f32 %v4840, %v5958
        %v5960 = vpop.f32.mrf.mxu0
        %v5961 = vadd.f32 %v4840, %v5960
        %5962 = vmatmul.bf16.gmra.mxu0 %v5059
        %v5963 = vpop.f32.mrf.mxu0
        %v5964 = vadd.f32 %v4840, %v5963
        %v5965 = vpop.f32.mrf.mxu0
        %v5966 = vadd.f32 %v4840, %v5965
        %5967 = vmatmul.bf16.gmra.mxu0 %v5062
        %v5968 = vpop.f32.mrf.mxu0
        %v5969 = vadd.f32 %v4840, %v5968
        %v5970 = vpop.f32.mrf.mxu0
        %v5971 = vadd.f32 %v4840, %v5970
        %5972 = vmatmul.bf16.gmra.mxu0 %v5065
        %v5973 = vpop.f32.mrf.mxu0
        %v5974 = vadd.f32 %v4840, %v5973
        %v5975 = vpop.f32.mrf.mxu0
        %v5976 = vadd.f32 %v4840, %v5975
        %5977 = vmatmul.bf16.gmra.mxu0 %v5068
        %v5978 = vpop.f32.mrf.mxu0
        %v5979 = vadd.f32 %v4840, %v5978
        %v5980 = vpop.f32.mrf.mxu0
        %v5981 = vadd.f32 %v4840, %v5980
        %5982 = vmatmul.bf16.gmra.mxu0 %v5071
        %v5983 = vpop.f32.mrf.mxu0
        %v5984 = vadd.f32 %v4840, %v5983
        %v5985 = vpop.f32.mrf.mxu0
        %v5986 = vadd.f32 %v4840, %v5985
        %5987 = vmatmul.bf16.gmra.mxu0 %v5074
        %v5988 = vpop.f32.mrf.mxu0
        %v5989 = vadd.f32 %v4840, %v5988
        %v5990 = vpop.f32.mrf.mxu0
        %v5991 = vadd.f32 %v4840, %v5990
        %5992 = vmatmul.bf16.gmra.mxu0 %v5077
        %v5993 = vpop.f32.mrf.mxu0
        %v5994 = vadd.f32 %v4840, %v5993
        %v5995 = vpop.f32.mrf.mxu0
        %v5996 = vadd.f32 %v4840, %v5995
        %5997 = vmatmul.bf16.gmra.mxu0 %v5080
        %v5998 = vpop.f32.mrf.mxu0
        %v5999 = vadd.f32 %v4840, %v5998
        %v6000 = vpop.f32.mrf.mxu0
        %v6001 = vadd.f32 %v4840, %v6000
        %6002 = vmatmul.bf16.gmra.mxu0 %v5083
        %v6003 = vpop.f32.mrf.mxu0
        %v6004 = vadd.f32 %v4840, %v6003
        %v6005 = vpop.f32.mrf.mxu0
        %v6006 = vadd.f32 %v4840, %v6005
        %6007 = vmatmul.bf16.gmra.mxu0 %v5086
        %v6008 = vpop.f32.mrf.mxu0
        %v6009 = vadd.f32 %v4840, %v6008
        %v6010 = vpop.f32.mrf.mxu0
        %v6011 = vadd.f32 %v4840, %v6010
        %6012 = vmatmul.bf16.gmra.mxu0 %v5089
        %v6013 = vpop.f32.mrf.mxu0
        %v6014 = vadd.f32 %v4840, %v6013
        %v6015 = vpop.f32.mrf.mxu0
        %v6016 = vadd.f32 %v4840, %v6015
        %6017 = vmatmul.bf16.gmra.mxu0 %v5092
        %v6018 = vpop.f32.mrf.mxu0
        %v6019 = vadd.f32 %v4840, %v6018
        %v6020 = vpop.f32.mrf.mxu0
        %v6021 = vadd.f32 %v4840, %v6020
        %6022 = vmatmul.bf16.gmra.mxu0 %v5095
        %v6023 = vpop.f32.mrf.mxu0
        %v6024 = vadd.f32 %v4840, %v6023
        %v6025 = vpop.f32.mrf.mxu0
        %v6026 = vadd.f32 %v4840, %v6025
        %6027 = vmatmul.bf16.gmra.mxu0 %v5098
        %v6028 = vpop.f32.mrf.mxu0
        %v6029 = vadd.f32 %v4840, %v6028
        %v6030 = vpop.f32.mrf.mxu0
        %v6031 = vadd.f32 %v4840, %v6030
        %6032 = vmatmul.bf16.gmra.mxu0 %v5101
        %v6033 = vpop.f32.mrf.mxu0
        %v6034 = vadd.f32 %v4840, %v6033
        %v6035 = vpop.f32.mrf.mxu0
        %v6036 = vadd.f32 %v4840, %v6035
        %6037 = vmatmul.bf16.gmra.mxu0 %v5104
        %v6038 = vpop.f32.mrf.mxu0
        %v6039 = vadd.f32 %v4840, %v6038
        %v6040 = vpop.f32.mrf.mxu0
        %v6041 = vadd.f32 %v4840, %v6040
        %6042 = vmatmul.bf16.gmra.mxu0 %v5107
        %v6043 = vpop.f32.mrf.mxu0
        %v6044 = vadd.f32 %v4840, %v6043
        %v6045 = vpop.f32.mrf.mxu0
        %v6046 = vadd.f32 %v4840, %v6045
        %6047 = vmatmul.bf16.gmra.mxu0 %v5110
        %v6048 = vpop.f32.mrf.mxu0
        %v6049 = vadd.f32 %v4840, %v6048
        %v6050 = vpop.f32.mrf.mxu0
        %v6051 = vadd.f32 %v4840, %v6050
        %6052 = vmatmul.bf16.gmra.mxu0 %v5113
        %v6053 = vpop.f32.mrf.mxu0
        %v6054 = vadd.f32 %v4840, %v6053
        %v6055 = vpop.f32.mrf.mxu0
        %v6056 = vadd.f32 %v4840, %v6055
        %6057 = vmatmul.bf16.gmra.mxu0 %v5116
        %v6058 = vpop.f32.mrf.mxu0
        %v6059 = vadd.f32 %v4840, %v6058
        %v6060 = vpop.f32.mrf.mxu0
        %v6061 = vadd.f32 %v4840, %v6060
        %6062 = vmatmul.bf16.gmra.mxu0 %v5119
        %v6063 = vpop.f32.mrf.mxu0
        %v6064 = vadd.f32 %v4840, %v6063
        %v6065 = vpop.f32.mrf.mxu0
        %v6066 = vadd.f32 %v4840, %v6065
        %6067 = vmatmul.bf16.gmra.mxu0 %v5122
        %v6068 = vpop.f32.mrf.mxu0
        %v6069 = vadd.f32 %v4840, %v6068
        %v6070 = vpop.f32.mrf.mxu0
        %v6071 = vadd.f32 %v4840, %v6070
        %6072 = vmatmul.bf16.gmra.mxu0 %v5125
        %v6073 = vpop.f32.mrf.mxu0
        %v6074 = vadd.f32 %v4840, %v6073
        %v6075 = vpop.f32.mrf.mxu0
        %v6076 = vadd.f32 %v4840, %v6075
        %6077 = vmatmul.bf16.gmra.mxu0 %v5128
        %v6078 = vpop.f32.mrf.mxu0
        %v6079 = vadd.f32 %v4840, %v6078
        %v6080 = vpop.f32.mrf.mxu0
        %v6081 = vadd.f32 %v4840, %v6080
        %6082 = vmatmul.bf16.gmra.mxu0 %v5131
        %v6083 = vpop.f32.mrf.mxu0
        %v6084 = vadd.f32 %v4840, %v6083
        %v6085 = vpop.f32.mrf.mxu0
        %v6086 = vadd.f32 %v4840, %v6085
        %6087 = vmatmul.bf16.gmra.mxu0 %v5134
        %v6088 = vpop.f32.mrf.mxu0
        %v6089 = vadd.f32 %v4840, %v6088
        %v6090 = vpop.f32.mrf.mxu0
        %v6091 = vadd.f32 %v4840, %v6090
        %6092 = vmatmul.bf16.gmra.mxu0 %v5137
        %v6093 = vpop.f32.mrf.mxu0
        %v6094 = vadd.f32 %v4840, %v6093
        %v6095 = vpop.f32.mrf.mxu0
        %v6096 = vadd.f32 %v4840, %v6095
        %6097 = vmatmul.bf16.gmra.mxu0 %v5140
        %v6098 = vpop.f32.mrf.mxu0
        %v6099 = vadd.f32 %v4840, %v6098
        %v6100 = vpop.f32.mrf.mxu0
        %v6101 = vadd.f32 %v4840, %v6100
        %6102 = vmatmul.bf16.gmra.mxu0 %v5143
        %v6103 = vpop.f32.mrf.mxu0
        %v6104 = vadd.f32 %v4840, %v6103
        %v6105 = vpop.f32.mrf.mxu0
        %v6106 = vadd.f32 %v4840, %v6105
        %6107 = vmatmul.bf16.gmra.mxu0 %v5146
        %v6108 = vpop.f32.mrf.mxu0
        %v6109 = vadd.f32 %v4840, %v6108
        %v6110 = vpop.f32.mrf.mxu0
        %v6111 = vadd.f32 %v4840, %v6110
        %6112 = vmatmul.bf16.gmra.mxu0 %v5149
        %v6113 = vpop.f32.mrf.mxu0
        %v6114 = vadd.f32 %v4840, %v6113
        %v6115 = vpop.f32.mrf.mxu0
        %v6116 = vadd.f32 %v4840, %v6115
        %6117 = vmatmul.bf16.gmra.mxu0 %v5152
        %v6118 = vpop.f32.mrf.mxu0
        %v6119 = vadd.f32 %v4840, %v6118
        %v6120 = vpop.f32.mrf.mxu0
        %v6121 = vadd.f32 %v4840, %v6120
        %6122 = vmatmul.bf16.gmra.mxu0 %v5155
        %v6123 = vpop.f32.mrf.mxu0
        %v6124 = vadd.f32 %v4840, %v6123
        %v6125 = vpop.f32.mrf.mxu0
        %v6126 = vadd.f32 %v4840, %v6125
        %6127 = vmatmul.bf16.gmra.mxu0 %v5158
        %v6128 = vpop.f32.mrf.mxu0
        %v6129 = vadd.f32 %v4840, %v6128
        %v6130 = vpop.f32.mrf.mxu0
        %v6131 = vadd.f32 %v4840, %v6130
        %6132 = vmatmul.bf16.gmra.mxu0 %v5161
        %v6133 = vpop.f32.mrf.mxu0
        %v6134 = vadd.f32 %v4840, %v6133
        %v6135 = vpop.f32.mrf.mxu0
        %v6136 = vadd.f32 %v4840, %v6135
        %6137 = vmatmul.bf16.gmra.mxu0 %v5164
        %v6138 = vpop.f32.mrf.mxu0
        %v6139 = vadd.f32 %v4840, %v6138
        %v6140 = vpop.f32.mrf.mxu0
        %v6141 = vadd.f32 %v4840, %v6140
        %6142 = vmatmul.bf16.gmra.mxu0 %v5167
        %v6143 = vpop.f32.mrf.mxu0
        %v6144 = vadd.f32 %v4840, %v6143
        %v6145 = vpop.f32.mrf.mxu0
        %v6146 = vadd.f32 %v4840, %v6145
        %6147 = vmatmul.bf16.gmra.mxu0 %v5170
        %v6148 = vpop.f32.mrf.mxu0
        %v6149 = vadd.f32 %v4840, %v6148
        %v6150 = vpop.f32.mrf.mxu0
        %v6151 = vadd.f32 %v4840, %v6150
        %6152 = vmatmul.bf16.gmra.mxu0 %v5173
        %v6153 = vpop.f32.mrf.mxu0
        %v6154 = vadd.f32 %v4840, %v6153
        %v6155 = vpop.f32.mrf.mxu0
        %v6156 = vadd.f32 %v4840, %v6155
        %6157 = vmatmul.bf16.gmra.mxu0 %v5176
        %v6158 = vpop.f32.mrf.mxu0
        %v6159 = vadd.f32 %v4840, %v6158
        %v6160 = vpop.f32.mrf.mxu0
        %v6161 = vadd.f32 %v4840, %v6160
        %6162 = vmatmul.bf16.gmra.mxu0 %v5179
        %v6163 = vpop.f32.mrf.mxu0
        %v6164 = vadd.f32 %v4840, %v6163
        %v6165 = vpop.f32.mrf.mxu0
        %v6166 = vadd.f32 %v4840, %v6165
        %6167 = vmatmul.bf16.gmra.mxu0 %v5182
        %v6168 = vpop.f32.mrf.mxu0
        %v6169 = vadd.f32 %v4840, %v6168
        %v6170 = vpop.f32.mrf.mxu0
        %v6171 = vadd.f32 %v4840, %v6170
        %6172 = vmatmul.bf16.gmra.mxu0 %v5185
        %v6173 = vpop.f32.mrf.mxu0
        %v6174 = vadd.f32 %v4840, %v6173
        %v6175 = vpop.f32.mrf.mxu0
        %v6176 = vadd.f32 %v4840, %v6175
        %6177 = vmatmul.bf16.gmra.mxu0 %v5188
        %v6178 = vpop.f32.mrf.mxu0
        %v6179 = vadd.f32 %v4840, %v6178
        %v6180 = vpop.f32.mrf.mxu0
        %v6181 = vadd.f32 %v4840, %v6180
        %6182 = vmatmul.bf16.gmra.mxu0 %v5191
        %v6183 = vpop.f32.mrf.mxu0
        %v6184 = vadd.f32 %v4840, %v6183
        %v6185 = vpop.f32.mrf.mxu0
        %v6186 = vadd.f32 %v4840, %v6185
        %6187 = vmatmul.bf16.gmra.mxu0 %v5194
        %v6188 = vpop.f32.mrf.mxu0
        %v6189 = vadd.f32 %v4840, %v6188
        %v6190 = vpop.f32.mrf.mxu0
        %v6191 = vadd.f32 %v4840, %v6190
        %6192 = vmatmul.bf16.gmra.mxu0 %v5197
        %v6193 = vpop.f32.mrf.mxu0
        %v6194 = vadd.f32 %v4840, %v6193
        %v6195 = vpop.f32.mrf.mxu0
        %v6196 = vadd.f32 %v4840, %v6195
        %6197 = vmatmul.bf16.gmra.mxu0 %v5200
        %v6198 = vpop.f32.mrf.mxu0
        %v6199 = vadd.f32 %v4840, %v6198
        %v6200 = vpop.f32.mrf.mxu0
        %v6201 = vadd.f32 %v4840, %v6200
        %6202 = vmatmul.bf16.gmra.mxu0 %v5203
        %v6203 = vpop.f32.mrf.mxu0
        %v6204 = vadd.f32 %v4840, %v6203
        %v6205 = vpop.f32.mrf.mxu0
        %v6206 = vadd.f32 %v4840, %v6205
        %6207 = vmatmul.bf16.gmra.mxu0 %v5206
        %v6208 = vpop.f32.mrf.mxu0
        %v6209 = vadd.f32 %v4840, %v6208
        %v6210 = vpop.f32.mrf.mxu0
        %v6211 = vadd.f32 %v4840, %v6210
        %6212 = vmatmul.bf16.gmra.mxu0 %v5209
        %v6213 = vpop.f32.mrf.mxu0
        %v6214 = vadd.f32 %v4840, %v6213
        %v6215 = vpop.f32.mrf.mxu0
        %v6216 = vadd.f32 %v4840, %v6215
        %6217 = vmatmul.bf16.gmra.mxu0 %v5212
        %v6218 = vpop.f32.mrf.mxu0
        %v6219 = vadd.f32 %v4840, %v6218
        %v6220 = vpop.f32.mrf.mxu0
        %v6221 = vadd.f32 %v4840, %v6220
        %6222 = vmatmul.bf16.gmra.mxu0 %v5215
        %v6223 = vpop.f32.mrf.mxu0
        %v6224 = vadd.f32 %v4840, %v6223
        %v6225 = vpop.f32.mrf.mxu0
        %v6226 = vadd.f32 %v4840, %v6225
        %6227 = vmatmul.bf16.gmra.mxu0 %v5218
        %v6228 = vpop.f32.mrf.mxu0
        %v6229 = vadd.f32 %v4840, %v6228
        %v6230 = vpop.f32.mrf.mxu0
        %v6231 = vadd.f32 %v4840, %v6230
        %6232 = vmatmul.bf16.gmra.mxu0 %v5221
        %v6233 = vpop.f32.mrf.mxu0
        %v6234 = vadd.f32 %v4840, %v6233
        %v6235 = vpop.f32.mrf.mxu0
        %v6236 = vadd.f32 %v4840, %v6235
        %6237 = vmatmul.bf16.gmra.mxu0 %v5224
        %v6238 = vpop.f32.mrf.mxu0
        %v6239 = vadd.f32 %v4840, %v6238
        %v6240 = vpop.f32.mrf.mxu0
        %v6241 = vadd.f32 %v4840, %v6240
        %6242 = vmatmul.bf16.gmra.mxu0 %v5227
        %v6243 = vpop.f32.mrf.mxu0
        %v6244 = vadd.f32 %v4840, %v6243
        %v6245 = vpop.f32.mrf.mxu0
        %v6246 = vadd.f32 %v4840, %v6245
        %6247 = vmatmul.bf16.gmra.mxu0 %v5230
        %v6248 = vpop.f32.mrf.mxu0
        %v6249 = vadd.f32 %v4840, %v6248
        %v6250 = vpop.f32.mrf.mxu0
        %v6251 = vadd.f32 %v4840, %v6250
        %6252 = vmatmul.bf16.gmra.mxu0 %v5233
        %v6253 = vpop.f32.mrf.mxu0
        %v6254 = vadd.f32 %v4840, %v6253
        %v6255 = vpop.f32.mrf.mxu0
        %v6256 = vadd.f32 %v4840, %v6255
        %6257 = vmatmul.bf16.gmra.mxu0 %v5236
        %v6258 = vpop.f32.mrf.mxu0
        %v6259 = vadd.f32 %v4840, %v6258
        %v6260 = vpop.f32.mrf.mxu0
        %v6261 = vadd.f32 %v4840, %v6260
        %6262 = vmatmul.bf16.gmra.mxu0 %v5239
        %v6263 = vpop.f32.mrf.mxu0
        %v6264 = vadd.f32 %v4840, %v6263
        %v6265 = vpop.f32.mrf.mxu0
        %v6266 = vadd.f32 %v4840, %v6265
        %6267 = vmatmul.bf16.gmra.mxu0 %v5242
        %v6268 = vpop.f32.mrf.mxu0
        %v6269 = vadd.f32 %v4840, %v6268
        %v6270 = vpop.f32.mrf.mxu0
        %v6271 = vadd.f32 %v4840, %v6270
        %6272 = vmatmul.bf16.gmra.mxu0 %v5245
        %v6273 = vpop.f32.mrf.mxu0
        %v6274 = vadd.f32 %v4840, %v6273
        %v6275 = vpop.f32.mrf.mxu0
        %v6276 = vadd.f32 %v4840, %v6275
        %6277 = vmatmul.bf16.gmra.mxu0 %v5248
        %v6278 = vpop.f32.mrf.mxu0
        %v6279 = vadd.f32 %v4840, %v6278
        %v6280 = vpop.f32.mrf.mxu0
        %v6281 = vadd.f32 %v4840, %v6280
        %6282 = vmatmul.bf16.gmra.mxu0 %v5251
        %v6283 = vpop.f32.mrf.mxu0
        %v6284 = vadd.f32 %v4840, %v6283
        %v6285 = vpop.f32.mrf.mxu0
        %v6286 = vadd.f32 %v4840, %v6285
        %6287 = vmatmul.bf16.gmra.mxu0 %v5254
        %v6288 = vpop.f32.mrf.mxu0
        %v6289 = vadd.f32 %v4840, %v6288
        %v6290 = vpop.f32.mrf.mxu0
        %v6291 = vadd.f32 %v4840, %v6290
        %6292 = vmatmul.bf16.gmra.mxu0 %v5257
        %v6293 = vpop.f32.mrf.mxu0
        %v6294 = vadd.f32 %v4840, %v6293
        %v6295 = vpop.f32.mrf.mxu0
        %v6296 = vadd.f32 %v4840, %v6295
        %6297 = vmatmul.bf16.gmra.mxu0 %v5260
        %v6298 = vpop.f32.mrf.mxu0
        %v6299 = vadd.f32 %v4840, %v6298
        %v6300 = vpop.f32.mrf.mxu0
        %v6301 = vadd.f32 %v4840, %v6300
        %6302 = vmatmul.bf16.gmra.mxu0 %v5263
        %v6303 = vpop.f32.mrf.mxu0
        %v6304 = vadd.f32 %v4840, %v6303
        %v6305 = vpop.f32.mrf.mxu0
        %v6306 = vadd.f32 %v4840, %v6305
        %6307 = vmatmul.bf16.gmra.mxu0 %v5266
        %v6308 = vpop.f32.mrf.mxu0
        %v6309 = vadd.f32 %v4840, %v6308
        %v6310 = vpop.f32.mrf.mxu0
        %v6311 = vadd.f32 %v4840, %v6310
        %6312 = vmatmul.bf16.gmra.mxu0 %v5269
        %v6313 = vpop.f32.mrf.mxu0
        %v6314 = vadd.f32 %v4840, %v6313
        %v6315 = vpop.f32.mrf.mxu0
        %v6316 = vadd.f32 %v4840, %v6315
        %6317 = vmatmul.bf16.gmra.mxu0 %v5272
        %v6318 = vpop.f32.mrf.mxu0
        %v6319 = vadd.f32 %v4840, %v6318
        %v6320 = vpop.f32.mrf.mxu0
        %v6321 = vadd.f32 %v4840, %v6320
        %6322 = vmatmul.bf16.gmra.mxu0 %v5275
        %v6323 = vpop.f32.mrf.mxu0
        %v6324 = vadd.f32 %v4840, %v6323
        %v6325 = vpop.f32.mrf.mxu0
        %v6326 = vadd.f32 %v4840, %v6325
        %6327 = vmatmul.bf16.gmra.mxu0 %v5278
        %v6328 = vpop.f32.mrf.mxu0
        %v6329 = vadd.f32 %v4840, %v6328
        %v6330 = vpop.f32.mrf.mxu0
        %v6331 = vadd.f32 %v4840, %v6330
        %6332 = vmatmul.bf16.gmra.mxu0 %v5281
        %v6333 = vpop.f32.mrf.mxu0
        %v6334 = vadd.f32 %v4840, %v6333
        %v6335 = vpop.f32.mrf.mxu0
        %v6336 = vadd.f32 %v4840, %v6335
        %6337 = vmatmul.bf16.gmra.mxu0 %v5284
        %v6338 = vpop.f32.mrf.mxu0
        %v6339 = vadd.f32 %v4840, %v6338
        %v6340 = vpop.f32.mrf.mxu0
        %v6341 = vadd.f32 %v4840, %v6340
        %6342 = vmatmul.bf16.gmra.mxu0 %v5287
        %v6343 = vpop.f32.mrf.mxu0
        %v6344 = vadd.f32 %v4840, %v6343
        %v6345 = vpop.f32.mrf.mxu0
        %v6346 = vadd.f32 %v4840, %v6345
        %6347 = vmatmul.bf16.gmra.mxu0 %v5290
        %v6348 = vpop.f32.mrf.mxu0
        %v6349 = vadd.f32 %v4840, %v6348
        %v6350 = vpop.f32.mrf.mxu0
        %v6351 = vadd.f32 %v4840, %v6350
        %6352 = vmatmul.bf16.gmra.mxu0 %v5293
        %v6353 = vpop.f32.mrf.mxu0
        %v6354 = vadd.f32 %v4840, %v6353
        %v6355 = vpop.f32.mrf.mxu0
        %v6356 = vadd.f32 %v4840, %v6355
        %6357 = vmatmul.bf16.gmra.mxu0 %v5296
        %v6358 = vpop.f32.mrf.mxu0
        %v6359 = vadd.f32 %v4840, %v6358
        %v6360 = vpop.f32.mrf.mxu0
        %v6361 = vadd.f32 %v4840, %v6360
        %6362 = vmatmul.bf16.gmra.mxu0 %v5299
        %v6363 = vpop.f32.mrf.mxu0
        %v6364 = vadd.f32 %v4840, %v6363
        %v6365 = vpop.f32.mrf.mxu0
        %v6366 = vadd.f32 %v4840, %v6365
        %6367 = vmatmul.bf16.gmra.mxu0 %v5302
        %v6368 = vpop.f32.mrf.mxu0
        %v6369 = vadd.f32 %v4840, %v6368
        %v6370 = vpop.f32.mrf.mxu0
        %v6371 = vadd.f32 %v4840, %v6370
        %6372 = vmatmul.bf16.gmra.mxu0 %v5305
        %v6373 = vpop.f32.mrf.mxu0
        %v6374 = vadd.f32 %v4840, %v6373
        %v6375 = vpop.f32.mrf.mxu0
        %v6376 = vadd.f32 %v4840, %v6375
        %6377 = vmatmul.bf16.gmra.mxu0 %v5308
        %v6378 = vpop.f32.mrf.mxu0
        %v6379 = vadd.f32 %v4840, %v6378
        %v6380 = vpop.f32.mrf.mxu0
        %v6381 = vadd.f32 %v4840, %v6380
        %6382 = vmatmul.bf16.gmra.mxu0 %v5311
        %v6383 = vpop.f32.mrf.mxu0
        %v6384 = vadd.f32 %v4840, %v6383
        %v6385 = vpop.f32.mrf.mxu0
        %v6386 = vadd.f32 %v4840, %v6385
        %6387 = vmatmul.bf16.gmra.mxu0 %v5314
        %v6388 = vpop.f32.mrf.mxu0
        %v6389 = vadd.f32 %v4840, %v6388
        %v6390 = vpop.f32.mrf.mxu0
        %v6391 = vadd.f32 %v4840, %v6390
        %6392 = vmatmul.bf16.gmra.mxu0 %v5317
        %v6393 = vpop.f32.mrf.mxu0
        %v6394 = vadd.f32 %v4840, %v6393
        %v6395 = vpop.f32.mrf.mxu0
        %v6396 = vadd.f32 %v4840, %v6395
        %6397 = vmatmul.bf16.gmra.mxu0 %v5320
        %v6398 = vpop.f32.mrf.mxu0
        %v6399 = vadd.f32 %v4840, %v6398
        %v6400 = vpop.f32.mrf.mxu0
        %v6401 = vadd.f32 %v4840, %v6400
        %6402 = vmatmul.bf16.gmra.mxu0 %v5323
        %v6403 = vpop.f32.mrf.mxu0
        %v6404 = vadd.f32 %v4840, %v6403
        %v6405 = vpop.f32.mrf.mxu0
        %v6406 = vadd.f32 %v4840, %v6405
        %6407 = vmatmul.bf16.gmra.mxu0 %v5326
        %v6408 = vpop.f32.mrf.mxu0
        %v6409 = vadd.f32 %v4840, %v6408
        %v6410 = vpop.f32.mrf.mxu0
        %v6411 = vadd.f32 %v4840, %v6410
        %6412 = vmatmul.bf16.gmra.mxu0 %v5329
        %v6413 = vpop.f32.mrf.mxu0
        %v6414 = vadd.f32 %v4840, %v6413
        %v6415 = vpop.f32.mrf.mxu0
        %v6416 = vadd.f32 %v4840, %v6415
        %6417 = vmatmul.bf16.gmra.mxu0 %v5332
        %v6418 = vpop.f32.mrf.mxu0
        %v6419 = vadd.f32 %v4840, %v6418
        %v6420 = vpop.f32.mrf.mxu0
        %v6421 = vadd.f32 %v4840, %v6420
        %6422 = vmatmul.bf16.gmra.mxu0 %v5335
        %v6423 = vpop.f32.mrf.mxu0
        %v6424 = vadd.f32 %v4840, %v6423
        %v6425 = vpop.f32.mrf.mxu0
        %v6426 = vadd.f32 %v4840, %v6425
        %6427 = vmatmul.bf16.gmra.mxu0 %v5338
        %v6428 = vpop.f32.mrf.mxu0
        %v6429 = vadd.f32 %v4840, %v6428
        %v6430 = vpop.f32.mrf.mxu0
        %v6431 = vadd.f32 %v4840, %v6430
        %6432 = vmatmul.bf16.gmra.mxu0 %v5341
        %v6433 = vpop.f32.mrf.mxu0
        %v6434 = vadd.f32 %v4840, %v6433
        %v6435 = vpop.f32.mrf.mxu0
        %v6436 = vadd.f32 %v4840, %v6435
        %6437 = vmatmul.bf16.gmra.mxu0 %v5344
        %v6438 = vpop.f32.mrf.mxu0
        %v6439 = vadd.f32 %v4840, %v6438
        %v6440 = vpop.f32.mrf.mxu0
        %v6441 = vadd.f32 %v4840, %v6440
        %6442 = vmatmul.bf16.gmra.mxu0 %v5347
        %v6443 = vpop.f32.mrf.mxu0
        %v6444 = vadd.f32 %v4840, %v6443
        %v6445 = vpop.f32.mrf.mxu0
        %v6446 = vadd.f32 %v4840, %v6445
        %6447 = vmatmul.bf16.gmra.mxu0 %v5350
        %v6448 = vpop.f32.mrf.mxu0
        %v6449 = vadd.f32 %v4840, %v6448
        %v6450 = vpop.f32.mrf.mxu0
        %v6451 = vadd.f32 %v4840, %v6450
        %6452 = vmatmul.bf16.gmra.mxu0 %v5353
        %v6453 = vpop.f32.mrf.mxu0
        %v6454 = vadd.f32 %v4840, %v6453
        %v6455 = vpop.f32.mrf.mxu0
        %v6456 = vadd.f32 %v4840, %v6455
        %6457 = vmatmul.bf16.gmra.mxu0 %v5356
        %v6458 = vpop.f32.mrf.mxu0
        %v6459 = vadd.f32 %v4840, %v6458
        %v6460 = vpop.f32.mrf.mxu0
        %v6461 = vadd.f32 %v4840, %v6460
        %6462 = vmatmul.bf16.gmra.mxu0 %v5359
        %v6463 = vpop.f32.mrf.mxu0
        %v6464 = vadd.f32 %v4840, %v6463
        %v6465 = vpop.f32.mrf.mxu0
        %v6466 = vadd.f32 %v4840, %v6465
        %6467 = vmatmul.bf16.gmra.mxu0 %v5362
        %v6468 = vpop.f32.mrf.mxu0
        %v6469 = vadd.f32 %v4840, %v6468
        %v6470 = vpop.f32.mrf.mxu0
        %v6471 = vadd.f32 %v4840, %v6470
        %6472 = vmatmul.bf16.gmra.mxu0 %v5365
        %v6473 = vpop.f32.mrf.mxu0
        %v6474 = vadd.f32 %v4840, %v6473
        %v6475 = vpop.f32.mrf.mxu0
        %v6476 = vadd.f32 %v4840, %v6475
        %6477 = vmatmul.bf16.gmra.mxu0 %v5368
        %v6478 = vpop.f32.mrf.mxu0
        %v6479 = vadd.f32 %v4840, %v6478
        %v6480 = vpop.f32.mrf.mxu0
        %v6481 = vadd.f32 %v4840, %v6480
        %6482 = vmatmul.bf16.gmra.mxu0 %v5371
        %v6483 = vpop.f32.mrf.mxu0
        %v6484 = vadd.f32 %v4840, %v6483
        %v6485 = vpop.f32.mrf.mxu0
        %v6486 = vadd.f32 %v4840, %v6485
        %6487 = vmatmul.bf16.gmra.mxu0 %v5374
        %v6488 = vpop.f32.mrf.mxu0
        %v6489 = vadd.f32 %v4840, %v6488
        %v6490 = vpop.f32.mrf.mxu0
        %v6491 = vadd.f32 %v4840, %v6490
        %6492 = vmatmul.bf16.gmra.mxu0 %v5377
        %v6493 = vpop.f32.mrf.mxu0
        %v6494 = vadd.f32 %v4840, %v6493
        %v6495 = vpop.f32.mrf.mxu0
        %v6496 = vadd.f32 %v4840, %v6495
        %6497 = vmatmul.bf16.gmra.mxu0 %v5380
        %v6498 = vpop.f32.mrf.mxu0
        %v6499 = vadd.f32 %v4840, %v6498
        %v6500 = vpop.f32.mrf.mxu0
        %v6501 = vadd.f32 %v4840, %v6500
        %6502 = vmatmul.bf16.gmra.mxu0 %v5383
        %v6503 = vpop.f32.mrf.mxu0
        %v6504 = vadd.f32 %v4840, %v6503
        %v6505 = vpop.f32.mrf.mxu0
        %v6506 = vadd.f32 %v4840, %v6505
        %6507 = vmatmul.bf16.gmra.mxu0 %v5386
        %v6508 = vpop.f32.mrf.mxu0
        %v6509 = vadd.f32 %v4840, %v6508
        %v6510 = vpop.f32.mrf.mxu0
        %v6511 = vadd.f32 %v4840, %v6510
        %6512 = vmatmul.bf16.gmra.mxu0 %v5389
        %v6513 = vpop.f32.mrf.mxu0
        %v6514 = vadd.f32 %v4840, %v6513
        %v6515 = vpop.f32.mrf.mxu0
        %v6516 = vadd.f32 %v4840, %v6515
        %6517 = vmatmul.bf16.gmra.mxu0 %v5392
        %v6518 = vpop.f32.mrf.mxu0
        %v6519 = vadd.f32 %v4840, %v6518
        %v6520 = vpop.f32.mrf.mxu0
        %v6521 = vadd.f32 %v4840, %v6520
        %6522 = vmatmul.bf16.gmra.mxu0 %v5395
        %v6523 = vpop.f32.mrf.mxu0
        %v6524 = vadd.f32 %v4840, %v6523
        %v6525 = vpop.f32.mrf.mxu0
        %v6526 = vadd.f32 %v4840, %v6525
        %6527 = vmatmul.bf16.gmra.mxu0 %v5398
        %v6528 = vpop.f32.mrf.mxu0
        %v6529 = vadd.f32 %v4840, %v6528
        %v6530 = vpop.f32.mrf.mxu0
        %v6531 = vadd.f32 %v4840, %v6530
        %6532 = vmatmul.bf16.gmra.mxu0 %v5401
        %v6533 = vpop.f32.mrf.mxu0
        %v6534 = vadd.f32 %v4840, %v6533
        %v6535 = vpop.f32.mrf.mxu0
        %v6536 = vadd.f32 %v4840, %v6535
        %6537 = vmatmul.bf16.gmra.mxu0 %v5404
        %v6538 = vpop.f32.mrf.mxu0
        %v6539 = vadd.f32 %v4840, %v6538
        %v6540 = vpop.f32.mrf.mxu0
        %v6541 = vadd.f32 %v4840, %v6540
        %6542 = vmatmul.bf16.gmra.mxu0 %v5407
        %v6543 = vpop.f32.mrf.mxu0
        %v6544 = vadd.f32 %v4840, %v6543
        %v6545 = vpop.f32.mrf.mxu0
        %v6546 = vadd.f32 %v4840, %v6545
        %6547 = vmatmul.bf16.gmra.mxu0 %v5410
        %v6548 = vpop.f32.mrf.mxu0
        %v6549 = vadd.f32 %v4840, %v6548
        %v6550 = vpop.f32.mrf.mxu0
        %v6551 = vadd.f32 %v4840, %v6550
        %6552 = vmatmul.bf16.gmra.mxu0 %v5413
        %v6553 = vpop.f32.mrf.mxu0
        %v6554 = vadd.f32 %v4840, %v6553
        %v6555 = vpop.f32.mrf.mxu0
        %v6556 = vadd.f32 %v4840, %v6555
        %6557 = vmatmul.bf16.gmra.mxu0 %v5416
        %v6558 = vpop.f32.mrf.mxu0
        %v6559 = vadd.f32 %v4840, %v6558
        %v6560 = vpop.f32.mrf.mxu0
        %v6561 = vadd.f32 %v4840, %v6560
        %6562 = vmatmul.bf16.gmra.mxu0 %v5419
        %v6563 = vpop.f32.mrf.mxu0
        %v6564 = vadd.f32 %v4840, %v6563
        %v6565 = vpop.f32.mrf.mxu0
        %v6566 = vadd.f32 %v4840, %v6565
        %6567 = vmatmul.bf16.gmra.mxu0 %v5422
        %v6568 = vpop.f32.mrf.mxu0
        %v6569 = vadd.f32 %v4840, %v6568
        %v6570 = vpop.f32.mrf.mxu0
        %v6571 = vadd.f32 %v4840, %v6570
        %6572 = vmatmul.bf16.gmra.mxu0 %v5425
        %v6573 = vpop.f32.mrf.mxu0
        %v6574 = vadd.f32 %v4840, %v6573
        %v6575 = vpop.f32.mrf.mxu0
        %v6576 = vadd.f32 %v4840, %v6575
        %6577 = vmatmul.bf16.gmra.mxu0 %v5428
        %v6578 = vpop.f32.mrf.mxu0
        %v6579 = vadd.f32 %v4840, %v6578
        %v6580 = vpop.f32.mrf.mxu0
        %v6581 = vadd.f32 %v4840, %v6580
        %6582 = vmatmul.bf16.gmra.mxu0 %v5431
        %v6583 = vpop.f32.mrf.mxu0
        %v6584 = vadd.f32 %v4840, %v6583
        %v6585 = vpop.f32.mrf.mxu0
        %v6586 = vadd.f32 %v4840, %v6585
        %6587 = vmatmul.bf16.gmra.mxu0 %v5434
        %v6588 = vpop.f32.mrf.mxu0
        %v6589 = vadd.f32 %v4840, %v6588
        %v6590 = vpop.f32.mrf.mxu0
        %v6591 = vadd.f32 %v4840, %v6590
        %6592 = vmatmul.bf16.gmra.mxu0 %v5437
        %v6593 = vpop.f32.mrf.mxu0
        %v6594 = vadd.f32 %v4840, %v6593
        %v6595 = vpop.f32.mrf.mxu0
        %v6596 = vadd.f32 %v4840, %v6595
        %6597 = vmatmul.bf16.gmra.mxu0 %v5440
        %v6598 = vpop.f32.mrf.mxu0
        %v6599 = vadd.f32 %v4840, %v6598
        %v6600 = vpop.f32.mrf.mxu0
        %v6601 = vadd.f32 %v4840, %v6600
        %6602 = vmatmul.bf16.gmra.mxu0 %v5443
        %v6603 = vpop.f32.mrf.mxu0
        %v6604 = vadd.f32 %v4840, %v6603
        %v6605 = vpop.f32.mrf.mxu0
        %v6606 = vadd.f32 %v4840, %v6605
        %6607 = vmatmul.bf16.gmra.mxu0 %v5446
        %v6608 = vpop.f32.mrf.mxu0
        %v6609 = vadd.f32 %v4840, %v6608
        %v6610 = vpop.f32.mrf.mxu0
        %v6611 = vadd.f32 %v4840, %v6610
        %6612 = vmatmul.bf16.gmra.mxu0 %v5449
        %v6613 = vpop.f32.mrf.mxu0
        %v6614 = vadd.f32 %v4840, %v6613
        %v6615 = vpop.f32.mrf.mxu0
        %v6616 = vadd.f32 %v4840, %v6615
        %6617 = vmatmul.bf16.gmra.mxu0 %v5452
        %v6618 = vpop.f32.mrf.mxu0
        %v6619 = vadd.f32 %v4840, %v6618
        %v6620 = vpop.f32.mrf.mxu0
        %v6621 = vadd.f32 %v4840, %v6620
        %6622 = vmatmul.bf16.gmra.mxu0 %v5455
        %v6623 = vpop.f32.mrf.mxu0
        %v6624 = vadd.f32 %v4840, %v6623
        %v6625 = vpop.f32.mrf.mxu0
        %v6626 = vadd.f32 %v4840, %v6625
        %6627 = vmatmul.bf16.gmra.mxu0 %v5458
        %v6628 = vpop.f32.mrf.mxu0
        %v6629 = vadd.f32 %v4840, %v6628
        %v6630 = vpop.f32.mrf.mxu0
        %v6631 = vadd.f32 %v4840, %v6630
        %6632 = vmatmul.bf16.gmra.mxu0 %v5461
        %v6633 = vpop.f32.mrf.mxu0
        %v6634 = vadd.f32 %v4840, %v6633
        %v6635 = vpop.f32.mrf.mxu0
        %v6636 = vadd.f32 %v4840, %v6635
        %6637 = vmatmul.bf16.gmra.mxu0 %v5464
        %v6638 = vpop.f32.mrf.mxu0
        %v6639 = vadd.f32 %v4840, %v6638
        %v6640 = vpop.f32.mrf.mxu0
        %v6641 = vadd.f32 %v4840, %v6640
        %6642 = vmatmul.bf16.gmra.mxu0 %v5467
        %v6643 = vpop.f32.mrf.mxu0
        %v6644 = vadd.f32 %v4840, %v6643
        %v6645 = vpop.f32.mrf.mxu0
        %v6646 = vadd.f32 %v4840, %v6645
        %6647 = vmatmul.bf16.gmra.mxu0 %v5470
        %v6648 = vpop.f32.mrf.mxu0
        %v6649 = vadd.f32 %v4840, %v6648
        %v6650 = vpop.f32.mrf.mxu0
        %v6651 = vadd.f32 %v4840, %v6650
        %6652 = vmatmul.bf16.gmra.mxu0 %v5473
        %v6653 = vpop.f32.mrf.mxu0
        %v6654 = vadd.f32 %v4840, %v6653
        %v6655 = vpop.f32.mrf.mxu0
        %v6656 = vadd.f32 %v4840, %v6655
        %6657 = vmatmul.bf16.gmra.mxu0 %v5476
        %v6658 = vpop.f32.mrf.mxu0
        %v6659 = vadd.f32 %v4840, %v6658
        %v6660 = vpop.f32.mrf.mxu0
        %v6661 = vadd.f32 %v4840, %v6660
        %6662 = vmatmul.bf16.gmra.mxu0 %v5479
        %v6663 = vpop.f32.mrf.mxu0
        %v6664 = vadd.f32 %v4840, %v6663
        %v6665 = vpop.f32.mrf.mxu0
        %v6666 = vadd.f32 %v4840, %v6665
        %6667 = vmatmul.bf16.gmra.mxu0 %v5482
        %v6668 = vpop.f32.mrf.mxu0
        %v6669 = vadd.f32 %v4840, %v6668
        %v6670 = vpop.f32.mrf.mxu0
        %v6671 = vadd.f32 %v4840, %v6670
        %6672 = vmatmul.bf16.gmra.mxu0 %v5485
        %v6673 = vpop.f32.mrf.mxu0
        %v6674 = vadd.f32 %v4840, %v6673
        %v6675 = vpop.f32.mrf.mxu0
        %v6676 = vadd.f32 %v4840, %v6675
        %6677 = vmatmul.bf16.gmra.mxu0 %v5488
        %v6678 = vpop.f32.mrf.mxu0
        %v6679 = vadd.f32 %v4840, %v6678
        %v6680 = vpop.f32.mrf.mxu0
        %v6681 = vadd.f32 %v4840, %v6680
        %6682 = vmatmul.bf16.gmra.mxu0 %v5491
        %v6683 = vpop.f32.mrf.mxu0
        %v6684 = vadd.f32 %v4840, %v6683
        %v6685 = vpop.f32.mrf.mxu0
        %v6686 = vadd.f32 %v4840, %v6685
        %6687 = vmatmul.bf16.gmra.mxu0 %v5494
        %v6688 = vpop.f32.mrf.mxu0
        %v6689 = vadd.f32 %v4840, %v6688
        %v6690 = vpop.f32.mrf.mxu0
        %v6691 = vadd.f32 %v4840, %v6690
        %6692 = vmatmul.bf16.gmra.mxu0 %v5497
        %v6693 = vpop.f32.mrf.mxu0
        %v6694 = vadd.f32 %v4840, %v6693
        %v6695 = vpop.f32.mrf.mxu0
        %v6696 = vadd.f32 %v4840, %v6695
        %6697 = vmatmul.bf16.gmra.mxu0 %v5500
        %v6698 = vpop.f32.mrf.mxu0
        %v6699 = vadd.f32 %v4840, %v6698
        %v6700 = vpop.f32.mrf.mxu0
        %v6701 = vadd.f32 %v4840, %v6700
        %6702 = vmatmul.bf16.gmra.mxu0 %v5503
        %v6703 = vpop.f32.mrf.mxu0
        %v6704 = vadd.f32 %v4840, %v6703
        %v6705 = vpop.f32.mrf.mxu0
        %v6706 = vadd.f32 %v4840, %v6705
        %6707 = vmatmul.bf16.gmra.mxu0 %v5506
        %v6708 = vpop.f32.mrf.mxu0
        %v6709 = vadd.f32 %v4840, %v6708
        %v6710 = vpop.f32.mrf.mxu0
        %v6711 = vadd.f32 %v4840, %v6710
        %6712 = vmatmul.bf16.gmra.mxu0 %v5509
        %v6713 = vpop.f32.mrf.mxu0
        %v6714 = vadd.f32 %v4840, %v6713
        %v6715 = vpop.f32.mrf.mxu0
        %v6716 = vadd.f32 %v4840, %v6715
        %6717 = vmatmul.bf16.gmra.mxu0 %v5512
        %v6718 = vpop.f32.mrf.mxu0
        %v6719 = vadd.f32 %v4840, %v6718
        %v6720 = vpop.f32.mrf.mxu0
        %v6721 = vadd.f32 %v4840, %v6720
        %6722 = vmatmul.bf16.gmra.mxu0 %v5515
        %v6723 = vpop.f32.mrf.mxu0
        %v6724 = vadd.f32 %v4840, %v6723
        %v6725 = vpop.f32.mrf.mxu0
        %v6726 = vadd.f32 %v4840, %v6725
        %6727 = vmatmul.bf16.gmra.mxu0 %v5518
        %v6728 = vpop.f32.mrf.mxu0
        %v6729 = vadd.f32 %v4840, %v6728
        %v6730 = vpop.f32.mrf.mxu0
        %v6731 = vadd.f32 %v4840, %v6730
        %6732 = vmatmul.bf16.gmra.mxu0 %v5521
        %v6733 = vpop.f32.mrf.mxu0
        %v6734 = vadd.f32 %v4840, %v6733
        %v6735 = vpop.f32.mrf.mxu0
        %v6736 = vadd.f32 %v4840, %v6735
        %6737 = vmatmul.bf16.gmra.mxu0 %v5524
        %v6738 = vpop.f32.mrf.mxu0
        %v6739 = vadd.f32 %v4840, %v6738
        %v6740 = vpop.f32.mrf.mxu0
        %v6741 = vadd.f32 %v4840, %v6740
        %6742 = vmatmul.bf16.gmra.mxu0 %v5527
        %v6743 = vpop.f32.mrf.mxu0
        %v6744 = vadd.f32 %v4840, %v6743
        %v6745 = vpop.f32.mrf.mxu0
        %v6746 = vadd.f32 %v4840, %v6745
        %6747 = vmatmul.bf16.gmra.mxu0 %v5530
        %v6748 = vpop.f32.mrf.mxu0
        %v6749 = vadd.f32 %v4840, %v6748
        %v6750 = vpop.f32.mrf.mxu0
        %v6751 = vadd.f32 %v4840, %v6750
        %6752 = vmatmul.bf16.gmra.mxu0 %v5533
        %v6753 = vpop.f32.mrf.mxu0
        %v6754 = vadd.f32 %v4840, %v6753
        %v6755 = vpop.f32.mrf.mxu0
        %v6756 = vadd.f32 %v4840, %v6755
        %6757 = vmatmul.bf16.gmra.mxu0 %v5536
        %v6758 = vpop.f32.mrf.mxu0
        %v6759 = vadd.f32 %v4840, %v6758
        %v6760 = vpop.f32.mrf.mxu0
        %v6761 = vadd.f32 %v4840, %v6760
        %6762 = vmatmul.bf16.gmra.mxu0 %v5539
        %v6763 = vpop.f32.mrf.mxu0
        %v6764 = vadd.f32 %v4840, %v6763
        %v6765 = vpop.f32.mrf.mxu0
        %v6766 = vadd.f32 %v4840, %v6765
        %6767 = vmatmul.bf16.gmra.mxu0 %v5542
        %v6768 = vpop.f32.mrf.mxu0
        %v6769 = vadd.f32 %v4840, %v6768
        %v6770 = vpop.f32.mrf.mxu0
        %v6771 = vadd.f32 %v4840, %v6770
        %6772 = vmatmul.bf16.gmra.mxu0 %v5545
        %v6773 = vpop.f32.mrf.mxu0
        %v6774 = vadd.f32 %v4840, %v6773
        %v6775 = vpop.f32.mrf.mxu0
        %v6776 = vadd.f32 %v4840, %v6775
        %6777 = vmatmul.bf16.gmra.mxu0 %v5548
        %v6778 = vpop.f32.mrf.mxu0
        %v6779 = vadd.f32 %v4840, %v6778
        %v6780 = vpop.f32.mrf.mxu0
        %v6781 = vadd.f32 %v4840, %v6780
        %6782 = vmatmul.bf16.gmra.mxu0 %v5551
        %v6783 = vpop.f32.mrf.mxu0
        %v6784 = vadd.f32 %v4840, %v6783
        %v6785 = vpop.f32.mrf.mxu0
        %v6786 = vadd.f32 %v4840, %v6785
        %6787 = vmatmul.bf16.gmra.mxu0 %v5554
        %v6788 = vpop.f32.mrf.mxu0
        %v6789 = vadd.f32 %v4840, %v6788
        %v6790 = vpop.f32.mrf.mxu0
        %v6791 = vadd.f32 %v4840, %v6790
        %6792 = vmatmul.bf16.gmra.mxu0 %v5557
        %v6793 = vpop.f32.mrf.mxu0
        %v6794 = vadd.f32 %v4840, %v6793
        %v6795 = vpop.f32.mrf.mxu0
        %v6796 = vadd.f32 %v4840, %v6795
        %6797 = vmatmul.bf16.gmra.mxu0 %v5560
        %v6798 = vpop.f32.mrf.mxu0
        %v6799 = vadd.f32 %v4840, %v6798
        %v6800 = vpop.f32.mrf.mxu0
        %v6801 = vadd.f32 %v4840, %v6800
        %6802 = vmatmul.bf16.gmra.mxu0 %v5563
        %v6803 = vpop.f32.mrf.mxu0
        %v6804 = vadd.f32 %v4840, %v6803
        %v6805 = vpop.f32.mrf.mxu0
        %v6806 = vadd.f32 %v4840, %v6805
        %6807 = vmatmul.bf16.gmra.mxu0 %v5566
        %v6808 = vpop.f32.mrf.mxu0
        %v6809 = vadd.f32 %v4840, %v6808
        %v6810 = vpop.f32.mrf.mxu0
        %v6811 = vadd.f32 %v4840, %v6810
        %6812 = vmatmul.bf16.gmra.mxu0 %v5569
        %v6813 = vpop.f32.mrf.mxu0
        %v6814 = vadd.f32 %v4840, %v6813
        %v6815 = vpop.f32.mrf.mxu0
        %v6816 = vadd.f32 %v4840, %v6815
        %6817 = vmatmul.bf16.gmra.mxu0 %v5572
        %v6818 = vpop.f32.mrf.mxu0
        %v6819 = vadd.f32 %v4840, %v6818
        %v6820 = vpop.f32.mrf.mxu0
        %v6821 = vadd.f32 %v4840, %v6820
        %6822 = vmatmul.bf16.gmra.mxu0 %v5575
        %v6823 = vpop.f32.mrf.mxu0
        %v6824 = vadd.f32 %v4840, %v6823
        %v6825 = vpop.f32.mrf.mxu0
        %v6826 = vadd.f32 %v4840, %v6825
        %6827 = vmatmul.bf16.gmra.mxu0 %v5578
        %v6828 = vpop.f32.mrf.mxu0
        %v6829 = vadd.f32 %v4840, %v6828
        %v6830 = vpop.f32.mrf.mxu0
        %v6831 = vadd.f32 %v4840, %v6830
        %6832 = vmatmul.bf16.gmra.mxu0 %v5581
        %v6833 = vpop.f32.mrf.mxu0
        %v6834 = vadd.f32 %v4840, %v6833
        %v6835 = vpop.f32.mrf.mxu0
        %v6836 = vadd.f32 %v4840, %v6835
        %6837 = vmatmul.bf16.gmra.mxu0 %v5584
        %v6838 = vpop.f32.mrf.mxu0
        %v6839 = vadd.f32 %v4840, %v6838
        %v6840 = vpop.f32.mrf.mxu0
        %v6841 = vadd.f32 %v4840, %v6840
        %6842 = vmatmul.bf16.gmra.mxu0 %v5587
        %v6843 = vpop.f32.mrf.mxu0
        %v6844 = vadd.f32 %v4840, %v6843
        %v6845 = vpop.f32.mrf.mxu0
        %v6846 = vadd.f32 %v4840, %v6845
        %6847 = vmatmul.bf16.gmra.mxu0 %v5590
        %v6848 = vpop.f32.mrf.mxu0
        %v6849 = vadd.f32 %v4840, %v6848
        %v6850 = vpop.f32.mrf.mxu0
        %v6851 = vadd.f32 %v4840, %v6850
        %6852 = vmatmul.bf16.gmra.mxu0 %v5593
        %v6853 = vpop.f32.mrf.mxu0
        %v6854 = vadd.f32 %v4840, %v6853
        %v6855 = vpop.f32.mrf.mxu0
        %v6856 = vadd.f32 %v4840, %v6855
        %6857 = vmatmul.bf16.gmra.mxu0 %v5596
        %v6858 = vpop.f32.mrf.mxu0
        %v6859 = vadd.f32 %v4840, %v6858
        %v6860 = vpop.f32.mrf.mxu0
        %v6861 = vadd.f32 %v4840, %v6860
        %6862 = vmatmul.bf16.gmra.mxu0 %v5599
        %v6863 = vpop.f32.mrf.mxu0
        %v6864 = vadd.f32 %v4840, %v6863
        %v6865 = vpop.f32.mrf.mxu0
        %v6866 = vadd.f32 %v4840, %v6865
        %6867 = vmatmul.bf16.gmra.mxu0 %v5602
        %v6868 = vpop.f32.mrf.mxu0
        %v6869 = vadd.f32 %v4840, %v6868
        %v6870 = vpop.f32.mrf.mxu0
        %v6871 = vadd.f32 %v4840, %v6870
        %6872 = vmatmul.bf16.gmra.mxu0 %v5605
        %v6873 = vpop.f32.mrf.mxu0
        %v6874 = vadd.f32 %v4840, %v6873
        %v6875 = vpop.f32.mrf.mxu0
        %v6876 = vadd.f32 %v4840, %v6875
        %6877 = vmatmul.bf16.gmra.mxu0 %v5608
        %v6878 = vpop.f32.mrf.mxu0
        %v6879 = vadd.f32 %v4840, %v6878
        %v6880 = vpop.f32.mrf.mxu0
        %v6881 = vadd.f32 %v4840, %v6880
        %6882 = vmatmul.bf16.gmra.mxu0 %v5611
        %v6883 = vpop.f32.mrf.mxu0
        %v6884 = vadd.f32 %v4840, %v6883
        %v6885 = vpop.f32.mrf.mxu0
        %v6886 = vadd.f32 %v4840, %v6885
        %6887 = vmatmul.bf16.gmra.mxu0 %v5614
        %v6888 = vpop.f32.mrf.mxu0
        %v6889 = vadd.f32 %v4840, %v6888
        %v6890 = vpop.f32.mrf.mxu0
        %v6891 = vadd.f32 %v4840, %v6890
        %6892 = vmatmul.bf16.gmra.mxu0 %v5617
        %v6893 = vpop.f32.mrf.mxu0
        %v6894 = vadd.f32 %v4840, %v6893
        %v6895 = vpop.f32.mrf.mxu0
        %v6896 = vadd.f32 %v4840, %v6895
        %6897 = vmatmul.bf16.gmra.mxu0 %v5620
        %v6898 = vpop.f32.mrf.mxu0
        %v6899 = vadd.f32 %v4840, %v6898
        %v6900 = vpop.f32.mrf.mxu0
        %v6901 = vadd.f32 %v4840, %v6900
        %6902 = vmatmul.bf16.gmra.mxu0 %v5623
        %v6903 = vpop.f32.mrf.mxu0
        %v6904 = vadd.f32 %v4840, %v6903
        %v6905 = vpop.f32.mrf.mxu0
        %v6906 = vadd.f32 %v4840, %v6905
        %6907 = vmatmul.bf16.gmra.mxu0 %v5626
        %v6908 = vpop.f32.mrf.mxu0
        %v6909 = vadd.f32 %v4840, %v6908
        %v6910 = vpop.f32.mrf.mxu0
        %v6911 = vadd.f32 %v4840, %v6910
        %6912 = vmatmul.bf16.gmra.mxu0 %v5629
        %v6913 = vpop.f32.mrf.mxu0
        %v6914 = vadd.f32 %v4840, %v6913
        %v6915 = vpop.f32.mrf.mxu0
        %v6916 = vadd.f32 %v4840, %v6915
        %6917 = vmatmul.bf16.gmra.mxu0 %v5632
        %v6918 = vpop.f32.mrf.mxu0
        %v6919 = vadd.f32 %v4840, %v6918
        %v6920 = vpop.f32.mrf.mxu0
        %v6921 = vadd.f32 %v4840, %v6920
        %6922 = vdwg.mxu0
        %v6923 = vpack.c.bf16 %v5644, %v5644
        %v6924 = vpack.c.bf16 %v5646, %v5646
        %v6925 = vpack.c.bf16 %v5649, %v5649
        %v6926 = vpack.c.bf16 %v5651, %v5651
        %v6927 = vpack.c.bf16 %v5654, %v5654
        %v6928 = vpack.c.bf16 %v5656, %v5656
        %v6929 = vpack.c.bf16 %v5659, %v5659
        %v6930 = vpack.c.bf16 %v5661, %v5661
        %v6931 = vpack.c.bf16 %v5664, %v5664
        %v6932 = vpack.c.bf16 %v5666, %v5666
        %v6933 = vpack.c.bf16 %v5669, %v5669
        %v6934 = vpack.c.bf16 %v5671, %v5671
        %v6935 = vpack.c.bf16 %v5674, %v5674
        %v6936 = vpack.c.bf16 %v5676, %v5676
        %v6937 = vpack.c.bf16 %v5679, %v5679
        %v6938 = vpack.c.bf16 %v5681, %v5681
        %v6939 = vpack.c.bf16 %v5684, %v5684
        %v6940 = vpack.c.bf16 %v5686, %v5686
        %v6941 = vpack.c.bf16 %v5689, %v5689
        %v6942 = vpack.c.bf16 %v5691, %v5691
        %v6943 = vpack.c.bf16 %v5694, %v5694
        %v6944 = vpack.c.bf16 %v5696, %v5696
        %v6945 = vpack.c.bf16 %v5699, %v5699
        %v6946 = vpack.c.bf16 %v5701, %v5701
        %v6947 = vpack.c.bf16 %v5704, %v5704
        %v6948 = vpack.c.bf16 %v5706, %v5706
        %v6949 = vpack.c.bf16 %v5709, %v5709
        %v6950 = vpack.c.bf16 %v5711, %v5711
        %v6951 = vpack.c.bf16 %v5714, %v5714
        %v6952 = vpack.c.bf16 %v5716, %v5716
        %v6953 = vpack.c.bf16 %v5719, %v5719
        %v6954 = vpack.c.bf16 %v5721, %v5721
        %v6955 = vpack.c.bf16 %v5724, %v5724
        %v6956 = vpack.c.bf16 %v5726, %v5726
        %v6957 = vpack.c.bf16 %v5729, %v5729
        %v6958 = vpack.c.bf16 %v5731, %v5731
        %v6959 = vpack.c.bf16 %v5734, %v5734
        %v6960 = vpack.c.bf16 %v5736, %v5736
        %v6961 = vpack.c.bf16 %v5739, %v5739
        %v6962 = vpack.c.bf16 %v5741, %v5741
        %v6963 = vpack.c.bf16 %v5744, %v5744
        %v6964 = vpack.c.bf16 %v5746, %v5746
        %v6965 = vpack.c.bf16 %v5749, %v5749
        %v6966 = vpack.c.bf16 %v5751, %v5751
        %v6967 = vpack.c.bf16 %v5754, %v5754
        %v6968 = vpack.c.bf16 %v5756, %v5756
        %v6969 = vpack.c.bf16 %v5759, %v5759
        %v6970 = vpack.c.bf16 %v5761, %v5761
        %v6971 = vpack.c.bf16 %v5764, %v5764
        %v6972 = vpack.c.bf16 %v5766, %v5766
        %v6973 = vpack.c.bf16 %v5769, %v5769
        %v6974 = vpack.c.bf16 %v5771, %v5771
        %v6975 = vpack.c.bf16 %v5774, %v5774
        %v6976 = vpack.c.bf16 %v5776, %v5776
        %v6977 = vpack.c.bf16 %v5779, %v5779
        %v6978 = vpack.c.bf16 %v5781, %v5781
        %v6979 = vpack.c.bf16 %v5784, %v5784
        %v6980 = vpack.c.bf16 %v5786, %v5786
        %v6981 = vpack.c.bf16 %v5789, %v5789
        %v6982 = vpack.c.bf16 %v5791, %v5791
        %v6983 = vpack.c.bf16 %v5794, %v5794
        %v6984 = vpack.c.bf16 %v5796, %v5796
        %v6985 = vpack.c.bf16 %v5799, %v5799
        %v6986 = vpack.c.bf16 %v5801, %v5801
        %v6987 = vpack.c.bf16 %v5804, %v5804
        %v6988 = vpack.c.bf16 %v5806, %v5806
        %v6989 = vpack.c.bf16 %v5809, %v5809
        %v6990 = vpack.c.bf16 %v5811, %v5811
        %v6991 = vpack.c.bf16 %v5814, %v5814
        %v6992 = vpack.c.bf16 %v5816, %v5816
        %v6993 = vpack.c.bf16 %v5819, %v5819
        %v6994 = vpack.c.bf16 %v5821, %v5821
        %v6995 = vpack.c.bf16 %v5824, %v5824
        %v6996 = vpack.c.bf16 %v5826, %v5826
        %v6997 = vpack.c.bf16 %v5829, %v5829
        %v6998 = vpack.c.bf16 %v5831, %v5831
        %v6999 = vpack.c.bf16 %v5834, %v5834
        %v7000 = vpack.c.bf16 %v5836, %v5836
        %v7001 = vpack.c.bf16 %v5839, %v5839
        %v7002 = vpack.c.bf16 %v5841, %v5841
        %v7003 = vpack.c.bf16 %v5844, %v5844
        %v7004 = vpack.c.bf16 %v5846, %v5846
        %v7005 = vpack.c.bf16 %v5849, %v5849
        %v7006 = vpack.c.bf16 %v5851, %v5851
        %v7007 = vpack.c.bf16 %v5854, %v5854
        %v7008 = vpack.c.bf16 %v5856, %v5856
        %v7009 = vpack.c.bf16 %v5859, %v5859
        %v7010 = vpack.c.bf16 %v5861, %v5861
        %v7011 = vpack.c.bf16 %v5864, %v5864
        %v7012 = vpack.c.bf16 %v5866, %v5866
        %v7013 = vpack.c.bf16 %v5869, %v5869
        %v7014 = vpack.c.bf16 %v5871, %v5871
        %v7015 = vpack.c.bf16 %v5874, %v5874
        %v7016 = vpack.c.bf16 %v5876, %v5876
        %v7017 = vpack.c.bf16 %v5879, %v5879
        %v7018 = vpack.c.bf16 %v5881, %v5881
        %v7019 = vpack.c.bf16 %v5884, %v5884
        %v7020 = vpack.c.bf16 %v5886, %v5886
        %v7021 = vpack.c.bf16 %v5889, %v5889
        %v7022 = vpack.c.bf16 %v5891, %v5891
        %v7023 = vpack.c.bf16 %v5894, %v5894
        %v7024 = vpack.c.bf16 %v5896, %v5896
        %v7025 = vpack.c.bf16 %v5899, %v5899
        %v7026 = vpack.c.bf16 %v5901, %v5901
        %v7027 = vpack.c.bf16 %v5904, %v5904
        %v7028 = vpack.c.bf16 %v5906, %v5906
        %v7029 = vpack.c.bf16 %v5909, %v5909
        %v7030 = vpack.c.bf16 %v5911, %v5911
        %v7031 = vpack.c.bf16 %v5914, %v5914
        %v7032 = vpack.c.bf16 %v5916, %v5916
        %v7033 = vpack.c.bf16 %v5919, %v5919
        %v7034 = vpack.c.bf16 %v5921, %v5921
        %v7035 = vpack.c.bf16 %v5924, %v5924
        %v7036 = vpack.c.bf16 %v5926, %v5926
        %v7037 = vpack.c.bf16 %v5929, %v5929
        %v7038 = vpack.c.bf16 %v5931, %v5931
        %v7039 = vpack.c.bf16 %v5934, %v5934
        %v7040 = vpack.c.bf16 %v5936, %v5936
        %v7041 = vpack.c.bf16 %v5939, %v5939
        %v7042 = vpack.c.bf16 %v5941, %v5941
        %v7043 = vpack.c.bf16 %v5944, %v5944
        %v7044 = vpack.c.bf16 %v5946, %v5946
        %v7045 = vpack.c.bf16 %v5949, %v5949
        %v7046 = vpack.c.bf16 %v5951, %v5951
        %v7047 = vpack.c.bf16 %v5954, %v5954
        %v7048 = vpack.c.bf16 %v5956, %v5956
        %v7049 = vpack.c.bf16 %v5959, %v5959
        %v7050 = vpack.c.bf16 %v5961, %v5961
        %v7051 = vpack.c.bf16 %v5964, %v5964
        %v7052 = vpack.c.bf16 %v5966, %v5966
        %v7053 = vpack.c.bf16 %v5969, %v5969
        %v7054 = vpack.c.bf16 %v5971, %v5971
        %v7055 = vpack.c.bf16 %v5974, %v5974
        %v7056 = vpack.c.bf16 %v5976, %v5976
        %v7057 = vpack.c.bf16 %v5979, %v5979
        %v7058 = vpack.c.bf16 %v5981, %v5981
        %v7059 = vpack.c.bf16 %v5984, %v5984
        %v7060 = vpack.c.bf16 %v5986, %v5986
        %v7061 = vpack.c.bf16 %v5989, %v5989
        %v7062 = vpack.c.bf16 %v5991, %v5991
        %v7063 = vpack.c.bf16 %v5994, %v5994
        %v7064 = vpack.c.bf16 %v5996, %v5996
        %v7065 = vpack.c.bf16 %v5999, %v5999
        %v7066 = vpack.c.bf16 %v6001, %v6001
        %v7067 = vpack.c.bf16 %v6004, %v6004
        %v7068 = vpack.c.bf16 %v6006, %v6006
        %v7069 = vpack.c.bf16 %v6009, %v6009
        %v7070 = vpack.c.bf16 %v6011, %v6011
        %v7071 = vpack.c.bf16 %v6014, %v6014
        %v7072 = vpack.c.bf16 %v6016, %v6016
        %v7073 = vpack.c.bf16 %v6019, %v6019
        %v7074 = vpack.c.bf16 %v6021, %v6021
        %v7075 = vpack.c.bf16 %v6024, %v6024
        %v7076 = vpack.c.bf16 %v6026, %v6026
        %v7077 = vpack.c.bf16 %v6029, %v6029
        %v7078 = vpack.c.bf16 %v6031, %v6031
        %v7079 = vpack.c.bf16 %v6034, %v6034
        %v7080 = vpack.c.bf16 %v6036, %v6036
        %v7081 = vpack.c.bf16 %v6039, %v6039
        %v7082 = vpack.c.bf16 %v6041, %v6041
        %v7083 = vpack.c.bf16 %v6044, %v6044
        %v7084 = vpack.c.bf16 %v6046, %v6046
        %v7085 = vpack.c.bf16 %v6049, %v6049
        %v7086 = vpack.c.bf16 %v6051, %v6051
        %v7087 = vpack.c.bf16 %v6054, %v6054
        %v7088 = vpack.c.bf16 %v6056, %v6056
        %v7089 = vpack.c.bf16 %v6059, %v6059
        %v7090 = vpack.c.bf16 %v6061, %v6061
        %v7091 = vpack.c.bf16 %v6064, %v6064
        %v7092 = vpack.c.bf16 %v6066, %v6066
        %v7093 = vpack.c.bf16 %v6069, %v6069
        %v7094 = vpack.c.bf16 %v6071, %v6071
        %v7095 = vpack.c.bf16 %v6074, %v6074
        %v7096 = vpack.c.bf16 %v6076, %v6076
        %v7097 = vpack.c.bf16 %v6079, %v6079
        %v7098 = vpack.c.bf16 %v6081, %v6081
        %v7099 = vpack.c.bf16 %v6084, %v6084
        %v7100 = vpack.c.bf16 %v6086, %v6086
        %v7101 = vpack.c.bf16 %v6089, %v6089
        %v7102 = vpack.c.bf16 %v6091, %v6091
        %v7103 = vpack.c.bf16 %v6094, %v6094
        %v7104 = vpack.c.bf16 %v6096, %v6096
        %v7105 = vpack.c.bf16 %v6099, %v6099
        %v7106 = vpack.c.bf16 %v6101, %v6101
        %v7107 = vpack.c.bf16 %v6104, %v6104
        %v7108 = vpack.c.bf16 %v6106, %v6106
        %v7109 = vpack.c.bf16 %v6109, %v6109
        %v7110 = vpack.c.bf16 %v6111, %v6111
        %v7111 = vpack.c.bf16 %v6114, %v6114
        %v7112 = vpack.c.bf16 %v6116, %v6116
        %v7113 = vpack.c.bf16 %v6119, %v6119
        %v7114 = vpack.c.bf16 %v6121, %v6121
        %v7115 = vpack.c.bf16 %v6124, %v6124
        %v7116 = vpack.c.bf16 %v6126, %v6126
        %v7117 = vpack.c.bf16 %v6129, %v6129
        %v7118 = vpack.c.bf16 %v6131, %v6131
        %v7119 = vpack.c.bf16 %v6134, %v6134
        %v7120 = vpack.c.bf16 %v6136, %v6136
        %v7121 = vpack.c.bf16 %v6139, %v6139
        %v7122 = vpack.c.bf16 %v6141, %v6141
        %v7123 = vpack.c.bf16 %v6144, %v6144
        %v7124 = vpack.c.bf16 %v6146, %v6146
        %v7125 = vpack.c.bf16 %v6149, %v6149
        %v7126 = vpack.c.bf16 %v6151, %v6151
        %v7127 = vpack.c.bf16 %v6154, %v6154
        %v7128 = vpack.c.bf16 %v6156, %v6156
        %v7129 = vpack.c.bf16 %v6159, %v6159
        %v7130 = vpack.c.bf16 %v6161, %v6161
        %v7131 = vpack.c.bf16 %v6164, %v6164
        %v7132 = vpack.c.bf16 %v6166, %v6166
        %v7133 = vpack.c.bf16 %v6169, %v6169
        %v7134 = vpack.c.bf16 %v6171, %v6171
        %v7135 = vpack.c.bf16 %v6174, %v6174
        %v7136 = vpack.c.bf16 %v6176, %v6176
        %v7137 = vpack.c.bf16 %v6179, %v6179
        %v7138 = vpack.c.bf16 %v6181, %v6181
        %v7139 = vpack.c.bf16 %v6184, %v6184
        %v7140 = vpack.c.bf16 %v6186, %v6186
        %v7141 = vpack.c.bf16 %v6189, %v6189
        %v7142 = vpack.c.bf16 %v6191, %v6191
        %v7143 = vpack.c.bf16 %v6194, %v6194
        %v7144 = vpack.c.bf16 %v6196, %v6196
        %v7145 = vpack.c.bf16 %v6199, %v6199
        %v7146 = vpack.c.bf16 %v6201, %v6201
        %v7147 = vpack.c.bf16 %v6204, %v6204
        %v7148 = vpack.c.bf16 %v6206, %v6206
        %v7149 = vpack.c.bf16 %v6209, %v6209
        %v7150 = vpack.c.bf16 %v6211, %v6211
        %v7151 = vpack.c.bf16 %v6214, %v6214
        %v7152 = vpack.c.bf16 %v6216, %v6216
        %v7153 = vpack.c.bf16 %v6219, %v6219
        %v7154 = vpack.c.bf16 %v6221, %v6221
        %v7155 = vpack.c.bf16 %v6224, %v6224
        %v7156 = vpack.c.bf16 %v6226, %v6226
        %v7157 = vpack.c.bf16 %v6229, %v6229
        %v7158 = vpack.c.bf16 %v6231, %v6231
        %v7159 = vpack.c.bf16 %v6234, %v6234
        %v7160 = vpack.c.bf16 %v6236, %v6236
        %v7161 = vpack.c.bf16 %v6239, %v6239
        %v7162 = vpack.c.bf16 %v6241, %v6241
        %v7163 = vpack.c.bf16 %v6244, %v6244
        %v7164 = vpack.c.bf16 %v6246, %v6246
        %v7165 = vpack.c.bf16 %v6249, %v6249
        %v7166 = vpack.c.bf16 %v6251, %v6251
        %v7167 = vpack.c.bf16 %v6254, %v6254
        %v7168 = vpack.c.bf16 %v6256, %v6256
        %v7169 = vpack.c.bf16 %v6259, %v6259
        %v7170 = vpack.c.bf16 %v6261, %v6261
        %v7171 = vpack.c.bf16 %v6264, %v6264
        %v7172 = vpack.c.bf16 %v6266, %v6266
        %v7173 = vpack.c.bf16 %v6269, %v6269
        %v7174 = vpack.c.bf16 %v6271, %v6271
        %v7175 = vpack.c.bf16 %v6274, %v6274
        %v7176 = vpack.c.bf16 %v6276, %v6276
        %v7177 = vpack.c.bf16 %v6279, %v6279
        %v7178 = vpack.c.bf16 %v6281, %v6281
        %v7179 = vpack.c.bf16 %v6284, %v6284
        %v7180 = vpack.c.bf16 %v6286, %v6286
        %v7181 = vpack.c.bf16 %v6289, %v6289
        %v7182 = vpack.c.bf16 %v6291, %v6291
        %v7183 = vpack.c.bf16 %v6294, %v6294
        %v7184 = vpack.c.bf16 %v6296, %v6296
        %v7185 = vpack.c.bf16 %v6299, %v6299
        %v7186 = vpack.c.bf16 %v6301, %v6301
        %v7187 = vpack.c.bf16 %v6304, %v6304
        %v7188 = vpack.c.bf16 %v6306, %v6306
        %v7189 = vpack.c.bf16 %v6309, %v6309
        %v7190 = vpack.c.bf16 %v6311, %v6311
        %v7191 = vpack.c.bf16 %v6314, %v6314
        %v7192 = vpack.c.bf16 %v6316, %v6316
        %v7193 = vpack.c.bf16 %v6319, %v6319
        %v7194 = vpack.c.bf16 %v6321, %v6321
        %v7195 = vpack.c.bf16 %v6324, %v6324
        %v7196 = vpack.c.bf16 %v6326, %v6326
        %v7197 = vpack.c.bf16 %v6329, %v6329
        %v7198 = vpack.c.bf16 %v6331, %v6331
        %v7199 = vpack.c.bf16 %v6334, %v6334
        %v7200 = vpack.c.bf16 %v6336, %v6336
        %v7201 = vpack.c.bf16 %v6339, %v6339
        %v7202 = vpack.c.bf16 %v6341, %v6341
        %v7203 = vpack.c.bf16 %v6344, %v6344
        %v7204 = vpack.c.bf16 %v6346, %v6346
        %v7205 = vpack.c.bf16 %v6349, %v6349
        %v7206 = vpack.c.bf16 %v6351, %v6351
        %v7207 = vpack.c.bf16 %v6354, %v6354
        %v7208 = vpack.c.bf16 %v6356, %v6356
        %v7209 = vpack.c.bf16 %v6359, %v6359
        %v7210 = vpack.c.bf16 %v6361, %v6361
        %v7211 = vpack.c.bf16 %v6364, %v6364
        %v7212 = vpack.c.bf16 %v6366, %v6366
        %v7213 = vpack.c.bf16 %v6369, %v6369
        %v7214 = vpack.c.bf16 %v6371, %v6371
        %v7215 = vpack.c.bf16 %v6374, %v6374
        %v7216 = vpack.c.bf16 %v6376, %v6376
        %v7217 = vpack.c.bf16 %v6379, %v6379
        %v7218 = vpack.c.bf16 %v6381, %v6381
        %v7219 = vpack.c.bf16 %v6384, %v6384
        %v7220 = vpack.c.bf16 %v6386, %v6386
        %v7221 = vpack.c.bf16 %v6389, %v6389
        %v7222 = vpack.c.bf16 %v6391, %v6391
        %v7223 = vpack.c.bf16 %v6394, %v6394
        %v7224 = vpack.c.bf16 %v6396, %v6396
        %v7225 = vpack.c.bf16 %v6399, %v6399
        %v7226 = vpack.c.bf16 %v6401, %v6401
        %v7227 = vpack.c.bf16 %v6404, %v6404
        %v7228 = vpack.c.bf16 %v6406, %v6406
        %v7229 = vpack.c.bf16 %v6409, %v6409
        %v7230 = vpack.c.bf16 %v6411, %v6411
        %v7231 = vpack.c.bf16 %v6414, %v6414
        %v7232 = vpack.c.bf16 %v6416, %v6416
        %v7233 = vpack.c.bf16 %v6419, %v6419
        %v7234 = vpack.c.bf16 %v6421, %v6421
        %v7235 = vpack.c.bf16 %v6424, %v6424
        %v7236 = vpack.c.bf16 %v6426, %v6426
        %v7237 = vpack.c.bf16 %v6429, %v6429
        %v7238 = vpack.c.bf16 %v6431, %v6431
        %v7239 = vpack.c.bf16 %v6434, %v6434
        %v7240 = vpack.c.bf16 %v6436, %v6436
        %v7241 = vpack.c.bf16 %v6439, %v6439
        %v7242 = vpack.c.bf16 %v6441, %v6441
        %v7243 = vpack.c.bf16 %v6444, %v6444
        %v7244 = vpack.c.bf16 %v6446, %v6446
        %v7245 = vpack.c.bf16 %v6449, %v6449
        %v7246 = vpack.c.bf16 %v6451, %v6451
        %v7247 = vpack.c.bf16 %v6454, %v6454
        %v7248 = vpack.c.bf16 %v6456, %v6456
        %v7249 = vpack.c.bf16 %v6459, %v6459
        %v7250 = vpack.c.bf16 %v6461, %v6461
        %v7251 = vpack.c.bf16 %v6464, %v6464
        %v7252 = vpack.c.bf16 %v6466, %v6466
        %v7253 = vpack.c.bf16 %v6469, %v6469
        %v7254 = vpack.c.bf16 %v6471, %v6471
        %v7255 = vpack.c.bf16 %v6474, %v6474
        %v7256 = vpack.c.bf16 %v6476, %v6476
        %v7257 = vpack.c.bf16 %v6479, %v6479
        %v7258 = vpack.c.bf16 %v6481, %v6481
        %v7259 = vpack.c.bf16 %v6484, %v6484
        %v7260 = vpack.c.bf16 %v6486, %v6486
        %v7261 = vpack.c.bf16 %v6489, %v6489
        %v7262 = vpack.c.bf16 %v6491, %v6491
        %v7263 = vpack.c.bf16 %v6494, %v6494
        %v7264 = vpack.c.bf16 %v6496, %v6496
        %v7265 = vpack.c.bf16 %v6499, %v6499
        %v7266 = vpack.c.bf16 %v6501, %v6501
        %v7267 = vpack.c.bf16 %v6504, %v6504
        %v7268 = vpack.c.bf16 %v6506, %v6506
        %v7269 = vpack.c.bf16 %v6509, %v6509
        %v7270 = vpack.c.bf16 %v6511, %v6511
        %v7271 = vpack.c.bf16 %v6514, %v6514
        %v7272 = vpack.c.bf16 %v6516, %v6516
        %v7273 = vpack.c.bf16 %v6519, %v6519
        %v7274 = vpack.c.bf16 %v6521, %v6521
        %v7275 = vpack.c.bf16 %v6524, %v6524
        %v7276 = vpack.c.bf16 %v6526, %v6526
        %v7277 = vpack.c.bf16 %v6529, %v6529
        %v7278 = vpack.c.bf16 %v6531, %v6531
        %v7279 = vpack.c.bf16 %v6534, %v6534
        %v7280 = vpack.c.bf16 %v6536, %v6536
        %v7281 = vpack.c.bf16 %v6539, %v6539
        %v7282 = vpack.c.bf16 %v6541, %v6541
        %v7283 = vpack.c.bf16 %v6544, %v6544
        %v7284 = vpack.c.bf16 %v6546, %v6546
        %v7285 = vpack.c.bf16 %v6549, %v6549
        %v7286 = vpack.c.bf16 %v6551, %v6551
        %v7287 = vpack.c.bf16 %v6554, %v6554
        %v7288 = vpack.c.bf16 %v6556, %v6556
        %v7289 = vpack.c.bf16 %v6559, %v6559
        %v7290 = vpack.c.bf16 %v6561, %v6561
        %v7291 = vpack.c.bf16 %v6564, %v6564
        %v7292 = vpack.c.bf16 %v6566, %v6566
        %v7293 = vpack.c.bf16 %v6569, %v6569
        %v7294 = vpack.c.bf16 %v6571, %v6571
        %v7295 = vpack.c.bf16 %v6574, %v6574
        %v7296 = vpack.c.bf16 %v6576, %v6576
        %v7297 = vpack.c.bf16 %v6579, %v6579
        %v7298 = vpack.c.bf16 %v6581, %v6581
        %v7299 = vpack.c.bf16 %v6584, %v6584
        %v7300 = vpack.c.bf16 %v6586, %v6586
        %v7301 = vpack.c.bf16 %v6589, %v6589
        %v7302 = vpack.c.bf16 %v6591, %v6591
        %v7303 = vpack.c.bf16 %v6594, %v6594
        %v7304 = vpack.c.bf16 %v6596, %v6596
        %v7305 = vpack.c.bf16 %v6599, %v6599
        %v7306 = vpack.c.bf16 %v6601, %v6601
        %v7307 = vpack.c.bf16 %v6604, %v6604
        %v7308 = vpack.c.bf16 %v6606, %v6606
        %v7309 = vpack.c.bf16 %v6609, %v6609
        %v7310 = vpack.c.bf16 %v6611, %v6611
        %v7311 = vpack.c.bf16 %v6614, %v6614
        %v7312 = vpack.c.bf16 %v6616, %v6616
        %v7313 = vpack.c.bf16 %v6619, %v6619
        %v7314 = vpack.c.bf16 %v6621, %v6621
        %v7315 = vpack.c.bf16 %v6624, %v6624
        %v7316 = vpack.c.bf16 %v6626, %v6626
        %v7317 = vpack.c.bf16 %v6629, %v6629
        %v7318 = vpack.c.bf16 %v6631, %v6631
        %v7319 = vpack.c.bf16 %v6634, %v6634
        %v7320 = vpack.c.bf16 %v6636, %v6636
        %v7321 = vpack.c.bf16 %v6639, %v6639
        %v7322 = vpack.c.bf16 %v6641, %v6641
        %v7323 = vpack.c.bf16 %v6644, %v6644
        %v7324 = vpack.c.bf16 %v6646, %v6646
        %v7325 = vpack.c.bf16 %v6649, %v6649
        %v7326 = vpack.c.bf16 %v6651, %v6651
        %v7327 = vpack.c.bf16 %v6654, %v6654
        %v7328 = vpack.c.bf16 %v6656, %v6656
        %v7329 = vpack.c.bf16 %v6659, %v6659
        %v7330 = vpack.c.bf16 %v6661, %v6661
        %v7331 = vpack.c.bf16 %v6664, %v6664
        %v7332 = vpack.c.bf16 %v6666, %v6666
        %v7333 = vpack.c.bf16 %v6669, %v6669
        %v7334 = vpack.c.bf16 %v6671, %v6671
        %v7335 = vpack.c.bf16 %v6674, %v6674
        %v7336 = vpack.c.bf16 %v6676, %v6676
        %v7337 = vpack.c.bf16 %v6679, %v6679
        %v7338 = vpack.c.bf16 %v6681, %v6681
        %v7339 = vpack.c.bf16 %v6684, %v6684
        %v7340 = vpack.c.bf16 %v6686, %v6686
        %v7341 = vpack.c.bf16 %v6689, %v6689
        %v7342 = vpack.c.bf16 %v6691, %v6691
        %v7343 = vpack.c.bf16 %v6694, %v6694
        %v7344 = vpack.c.bf16 %v6696, %v6696
        %v7345 = vpack.c.bf16 %v6699, %v6699
        %v7346 = vpack.c.bf16 %v6701, %v6701
        %v7347 = vpack.c.bf16 %v6704, %v6704
        %v7348 = vpack.c.bf16 %v6706, %v6706
        %v7349 = vpack.c.bf16 %v6709, %v6709
        %v7350 = vpack.c.bf16 %v6711, %v6711
        %v7351 = vpack.c.bf16 %v6714, %v6714
        %v7352 = vpack.c.bf16 %v6716, %v6716
        %v7353 = vpack.c.bf16 %v6719, %v6719
        %v7354 = vpack.c.bf16 %v6721, %v6721
        %v7355 = vpack.c.bf16 %v6724, %v6724
        %v7356 = vpack.c.bf16 %v6726, %v6726
        %v7357 = vpack.c.bf16 %v6729, %v6729
        %v7358 = vpack.c.bf16 %v6731, %v6731
        %v7359 = vpack.c.bf16 %v6734, %v6734
        %v7360 = vpack.c.bf16 %v6736, %v6736
        %v7361 = vpack.c.bf16 %v6739, %v6739
        %v7362 = vpack.c.bf16 %v6741, %v6741
        %v7363 = vpack.c.bf16 %v6744, %v6744
        %v7364 = vpack.c.bf16 %v6746, %v6746
        %v7365 = vpack.c.bf16 %v6749, %v6749
        %v7366 = vpack.c.bf16 %v6751, %v6751
        %v7367 = vpack.c.bf16 %v6754, %v6754
        %v7368 = vpack.c.bf16 %v6756, %v6756
        %v7369 = vpack.c.bf16 %v6759, %v6759
        %v7370 = vpack.c.bf16 %v6761, %v6761
        %v7371 = vpack.c.bf16 %v6764, %v6764
        %v7372 = vpack.c.bf16 %v6766, %v6766
        %v7373 = vpack.c.bf16 %v6769, %v6769
        %v7374 = vpack.c.bf16 %v6771, %v6771
        %v7375 = vpack.c.bf16 %v6774, %v6774
        %v7376 = vpack.c.bf16 %v6776, %v6776
        %v7377 = vpack.c.bf16 %v6779, %v6779
        %v7378 = vpack.c.bf16 %v6781, %v6781
        %v7379 = vpack.c.bf16 %v6784, %v6784
        %v7380 = vpack.c.bf16 %v6786, %v6786
        %v7381 = vpack.c.bf16 %v6789, %v6789
        %v7382 = vpack.c.bf16 %v6791, %v6791
        %v7383 = vpack.c.bf16 %v6794, %v6794
        %v7384 = vpack.c.bf16 %v6796, %v6796
        %v7385 = vpack.c.bf16 %v6799, %v6799
        %v7386 = vpack.c.bf16 %v6801, %v6801
        %v7387 = vpack.c.bf16 %v6804, %v6804
        %v7388 = vpack.c.bf16 %v6806, %v6806
        %v7389 = vpack.c.bf16 %v6809, %v6809
        %v7390 = vpack.c.bf16 %v6811, %v6811
        %v7391 = vpack.c.bf16 %v6814, %v6814
        %v7392 = vpack.c.bf16 %v6816, %v6816
        %v7393 = vpack.c.bf16 %v6819, %v6819
        %v7394 = vpack.c.bf16 %v6821, %v6821
        %v7395 = vpack.c.bf16 %v6824, %v6824
        %v7396 = vpack.c.bf16 %v6826, %v6826
        %v7397 = vpack.c.bf16 %v6829, %v6829
        %v7398 = vpack.c.bf16 %v6831, %v6831
        %v7399 = vpack.c.bf16 %v6834, %v6834
        %v7400 = vpack.c.bf16 %v6836, %v6836
        %v7401 = vpack.c.bf16 %v6839, %v6839
        %v7402 = vpack.c.bf16 %v6841, %v6841
        %v7403 = vpack.c.bf16 %v6844, %v6844
        %v7404 = vpack.c.bf16 %v6846, %v6846
        %v7405 = vpack.c.bf16 %v6849, %v6849
        %v7406 = vpack.c.bf16 %v6851, %v6851
        %v7407 = vpack.c.bf16 %v6854, %v6854
        %v7408 = vpack.c.bf16 %v6856, %v6856
        %v7409 = vpack.c.bf16 %v6859, %v6859
        %v7410 = vpack.c.bf16 %v6861, %v6861
        %v7411 = vpack.c.bf16 %v6864, %v6864
        %v7412 = vpack.c.bf16 %v6866, %v6866
        %v7413 = vpack.c.bf16 %v6869, %v6869
        %v7414 = vpack.c.bf16 %v6871, %v6871
        %v7415 = vpack.c.bf16 %v6874, %v6874
        %v7416 = vpack.c.bf16 %v6876, %v6876
        %v7417 = vpack.c.bf16 %v6879, %v6879
        %v7418 = vpack.c.bf16 %v6881, %v6881
        %v7419 = vpack.c.bf16 %v6884, %v6884
        %v7420 = vpack.c.bf16 %v6886, %v6886
        %v7421 = vpack.c.bf16 %v6889, %v6889
        %v7422 = vpack.c.bf16 %v6891, %v6891
        %v7423 = vpack.c.bf16 %v6894, %v6894
        %v7424 = vpack.c.bf16 %v6896, %v6896
        %v7425 = vpack.c.bf16 %v6899, %v6899
        %v7426 = vpack.c.bf16 %v6901, %v6901
        %v7427 = vpack.c.bf16 %v6904, %v6904
        %v7428 = vpack.c.bf16 %v6906, %v6906
        %v7429 = vpack.c.bf16 %v6909, %v6909
        %v7430 = vpack.c.bf16 %v6911, %v6911
        %v7431 = vpack.c.bf16 %v6914, %v6914
        %v7432 = vpack.c.bf16 %v6916, %v6916
        %v7433 = vpack.c.bf16 %v6919, %v6919
        %v7434 = vpack.c.bf16 %v6921, %v6921
        %vm7435 = vcmask 125952
        %7436 = vst.msk [vmem:[%s172] sm:$0xf] %vm7435, %v6923
        %7437 = vst.msk [vmem:[%s172 + $0x4] sm:$0xf] %vm7435, %v6924
        %7438 = vst.msk [vmem:[%s172 + $0x8] sm:$0xf] %vm7435, %v6925
        %7439 = vst.msk [vmem:[%s172 + $0xc] sm:$0xf] %vm7435, %v6926
        %7440 = vst.msk [vmem:[%s172 + $0x10] sm:$0xf] %vm7435, %v6927
        %7441 = vst.msk [vmem:[%s172 + $0x14] sm:$0xf] %vm7435, %v6928
        %7442 = vst.msk [vmem:[%s172 + $0x18] sm:$0xf] %vm7435, %v6929
        %7443 = vst.msk [vmem:[%s172 + $0x1c] sm:$0xf] %vm7435, %v6930
        %7444 = vst.msk [vmem:[%s172 + $0x20] sm:$0xf] %vm7435, %v6931
        %7445 = vst.msk [vmem:[%s172 + $0x24] sm:$0xf] %vm7435, %v6932
        %7446 = vst.msk [vmem:[%s172 + $0x28] sm:$0xf] %vm7435, %v6933
        %7447 = vst.msk [vmem:[%s172 + $0x2c] sm:$0xf] %vm7435, %v6934
        %7448 = vst.msk [vmem:[%s172 + $0x30] sm:$0xf] %vm7435, %v6935
        %7449 = vst.msk [vmem:[%s172 + $0x34] sm:$0xf] %vm7435, %v6936
        %7450 = vst.msk [vmem:[%s172 + $0x38] sm:$0xf] %vm7435, %v6937
        %7451 = vst.msk [vmem:[%s172 + $0x3c] sm:$0xf] %vm7435, %v6938
        %7452 = vst.msk [vmem:[%s172 + $0x40] sm:$0xf] %vm7435, %v6939
        %7453 = vst.msk [vmem:[%s172 + $0x44] sm:$0xf] %vm7435, %v6940
        %7454 = vst.msk [vmem:[%s172 + $0x48] sm:$0xf] %vm7435, %v6941
        %7455 = vst.msk [vmem:[%s172 + $0x4c] sm:$0xf] %vm7435, %v6942
        %7456 = vst.msk [vmem:[%s172 + $0x50] sm:$0xf] %vm7435, %v6943
        %7457 = vst.msk [vmem:[%s172 + $0x54] sm:$0xf] %vm7435, %v6944
        %7458 = vst.msk [vmem:[%s172 + $0x58] sm:$0xf] %vm7435, %v6945
        %7459 = vst.msk [vmem:[%s172 + $0x5c] sm:$0xf] %vm7435, %v6946
        %7460 = vst.msk [vmem:[%s172 + $0x60] sm:$0xf] %vm7435, %v6947
        %7461 = vst.msk [vmem:[%s172 + $0x64] sm:$0xf] %vm7435, %v6948
        %7462 = vst.msk [vmem:[%s172 + $0x68] sm:$0xf] %vm7435, %v6949
        %7463 = vst.msk [vmem:[%s172 + $0x6c] sm:$0xf] %vm7435, %v6950
        %7464 = vst.msk [vmem:[%s172 + $0x70] sm:$0xf] %vm7435, %v6951
        %7465 = vst.msk [vmem:[%s172 + $0x74] sm:$0xf] %vm7435, %v6952
        %7466 = vst.msk [vmem:[%s172 + $0x78] sm:$0xf] %vm7435, %v6953
        %7467 = vst.msk [vmem:[%s172 + $0x7c] sm:$0xf] %vm7435, %v6954
        %7468 = vst.msk [vmem:[%s172 + $0x80] sm:$0xf] %vm7435, %v6955
        %7469 = vst.msk [vmem:[%s172 + $0x84] sm:$0xf] %vm7435, %v6956
        %7470 = vst.msk [vmem:[%s172 + $0x88] sm:$0xf] %vm7435, %v6957
        %7471 = vst.msk [vmem:[%s172 + $0x8c] sm:$0xf] %vm7435, %v6958
        %7472 = vst.msk [vmem:[%s172 + $0x90] sm:$0xf] %vm7435, %v6959
        %7473 = vst.msk [vmem:[%s172 + $0x94] sm:$0xf] %vm7435, %v6960
        %7474 = vst.msk [vmem:[%s172 + $0x98] sm:$0xf] %vm7435, %v6961
        %7475 = vst.msk [vmem:[%s172 + $0x9c] sm:$0xf] %vm7435, %v6962
        %7476 = vst.msk [vmem:[%s172 + $0xa0] sm:$0xf] %vm7435, %v6963
        %7477 = vst.msk [vmem:[%s172 + $0xa4] sm:$0xf] %vm7435, %v6964
        %7478 = vst.msk [vmem:[%s172 + $0xa8] sm:$0xf] %vm7435, %v6965
        %7479 = vst.msk [vmem:[%s172 + $0xac] sm:$0xf] %vm7435, %v6966
        %7480 = vst.msk [vmem:[%s172 + $0xb0] sm:$0xf] %vm7435, %v6967
        %7481 = vst.msk [vmem:[%s172 + $0xb4] sm:$0xf] %vm7435, %v6968
        %7482 = vst.msk [vmem:[%s172 + $0xb8] sm:$0xf] %vm7435, %v6969
        %7483 = vst.msk [vmem:[%s172 + $0xbc] sm:$0xf] %vm7435, %v6970
        %7484 = vst.msk [vmem:[%s172 + $0xc0] sm:$0xf] %vm7435, %v6971
        %7485 = vst.msk [vmem:[%s172 + $0xc4] sm:$0xf] %vm7435, %v6972
        %7486 = vst.msk [vmem:[%s172 + $0xc8] sm:$0xf] %vm7435, %v6973
        %7487 = vst.msk [vmem:[%s172 + $0xcc] sm:$0xf] %vm7435, %v6974
        %7488 = vst.msk [vmem:[%s172 + $0xd0] sm:$0xf] %vm7435, %v6975
        %7489 = vst.msk [vmem:[%s172 + $0xd4] sm:$0xf] %vm7435, %v6976
        %7490 = vst.msk [vmem:[%s172 + $0xd8] sm:$0xf] %vm7435, %v6977
        %7491 = vst.msk [vmem:[%s172 + $0xdc] sm:$0xf] %vm7435, %v6978
        %7492 = vst.msk [vmem:[%s172 + $0xe0] sm:$0xf] %vm7435, %v6979
        %7493 = vst.msk [vmem:[%s172 + $0xe4] sm:$0xf] %vm7435, %v6980
        %7494 = vst.msk [vmem:[%s172 + $0xe8] sm:$0xf] %vm7435, %v6981
        %7495 = vst.msk [vmem:[%s172 + $0xec] sm:$0xf] %vm7435, %v6982
        %7496 = vst.msk [vmem:[%s172 + $0xf0] sm:$0xf] %vm7435, %v6983
        %7497 = vst.msk [vmem:[%s172 + $0xf4] sm:$0xf] %vm7435, %v6984
        %7498 = vst.msk [vmem:[%s172 + $0xf8] sm:$0xf] %vm7435, %v6985
        %7499 = vst.msk [vmem:[%s172 + $0xfc] sm:$0xf] %vm7435, %v6986
        %7500 = vst.msk [vmem:[%s172 + $0x100] sm:$0xf] %vm7435, %v6987
        %7501 = vst.msk [vmem:[%s172 + $0x104] sm:$0xf] %vm7435, %v6988
        %7502 = vst.msk [vmem:[%s172 + $0x108] sm:$0xf] %vm7435, %v6989
        %7503 = vst.msk [vmem:[%s172 + $0x10c] sm:$0xf] %vm7435, %v6990
        %7504 = vst.msk [vmem:[%s172 + $0x110] sm:$0xf] %vm7435, %v6991
        %7505 = vst.msk [vmem:[%s172 + $0x114] sm:$0xf] %vm7435, %v6992
        %7506 = vst.msk [vmem:[%s172 + $0x118] sm:$0xf] %vm7435, %v6993
        %7507 = vst.msk [vmem:[%s172 + $0x11c] sm:$0xf] %vm7435, %v6994
        %7508 = vst.msk [vmem:[%s172 + $0x120] sm:$0xf] %vm7435, %v6995
        %7509 = vst.msk [vmem:[%s172 + $0x124] sm:$0xf] %vm7435, %v6996
        %7510 = vst.msk [vmem:[%s172 + $0x128] sm:$0xf] %vm7435, %v6997
        %7511 = vst.msk [vmem:[%s172 + $0x12c] sm:$0xf] %vm7435, %v6998
        %7512 = vst.msk [vmem:[%s172 + $0x130] sm:$0xf] %vm7435, %v6999
        %7513 = vst.msk [vmem:[%s172 + $0x134] sm:$0xf] %vm7435, %v7000
        %7514 = vst.msk [vmem:[%s172 + $0x138] sm:$0xf] %vm7435, %v7001
        %7515 = vst.msk [vmem:[%s172 + $0x13c] sm:$0xf] %vm7435, %v7002
        %7516 = vst.msk [vmem:[%s172 + $0x140] sm:$0xf] %vm7435, %v7003
        %7517 = vst.msk [vmem:[%s172 + $0x144] sm:$0xf] %vm7435, %v7004
        %7518 = vst.msk [vmem:[%s172 + $0x148] sm:$0xf] %vm7435, %v7005
        %7519 = vst.msk [vmem:[%s172 + $0x14c] sm:$0xf] %vm7435, %v7006
        %7520 = vst.msk [vmem:[%s172 + $0x150] sm:$0xf] %vm7435, %v7007
        %7521 = vst.msk [vmem:[%s172 + $0x154] sm:$0xf] %vm7435, %v7008
        %7522 = vst.msk [vmem:[%s172 + $0x158] sm:$0xf] %vm7435, %v7009
        %7523 = vst.msk [vmem:[%s172 + $0x15c] sm:$0xf] %vm7435, %v7010
        %7524 = vst.msk [vmem:[%s172 + $0x160] sm:$0xf] %vm7435, %v7011
        %7525 = vst.msk [vmem:[%s172 + $0x164] sm:$0xf] %vm7435, %v7012
        %7526 = vst.msk [vmem:[%s172 + $0x168] sm:$0xf] %vm7435, %v7013
        %7527 = vst.msk [vmem:[%s172 + $0x16c] sm:$0xf] %vm7435, %v7014
        %7528 = vst.msk [vmem:[%s172 + $0x170] sm:$0xf] %vm7435, %v7015
        %7529 = vst.msk [vmem:[%s172 + $0x174] sm:$0xf] %vm7435, %v7016
        %7530 = vst.msk [vmem:[%s172 + $0x178] sm:$0xf] %vm7435, %v7017
        %7531 = vst.msk [vmem:[%s172 + $0x17c] sm:$0xf] %vm7435, %v7018
        %7532 = vst.msk [vmem:[%s172 + $0x180] sm:$0xf] %vm7435, %v7019
        %7533 = vst.msk [vmem:[%s172 + $0x184] sm:$0xf] %vm7435, %v7020
        %7534 = vst.msk [vmem:[%s172 + $0x188] sm:$0xf] %vm7435, %v7021
        %7535 = vst.msk [vmem:[%s172 + $0x18c] sm:$0xf] %vm7435, %v7022
        %7536 = vst.msk [vmem:[%s172 + $0x190] sm:$0xf] %vm7435, %v7023
        %7537 = vst.msk [vmem:[%s172 + $0x194] sm:$0xf] %vm7435, %v7024
        %7538 = vst.msk [vmem:[%s172 + $0x198] sm:$0xf] %vm7435, %v7025
        %7539 = vst.msk [vmem:[%s172 + $0x19c] sm:$0xf] %vm7435, %v7026
        %7540 = vst.msk [vmem:[%s172 + $0x1a0] sm:$0xf] %vm7435, %v7027
        %7541 = vst.msk [vmem:[%s172 + $0x1a4] sm:$0xf] %vm7435, %v7028
        %7542 = vst.msk [vmem:[%s172 + $0x1a8] sm:$0xf] %vm7435, %v7029
        %7543 = vst.msk [vmem:[%s172 + $0x1ac] sm:$0xf] %vm7435, %v7030
        %7544 = vst.msk [vmem:[%s172 + $0x1b0] sm:$0xf] %vm7435, %v7031
        %7545 = vst.msk [vmem:[%s172 + $0x1b4] sm:$0xf] %vm7435, %v7032
        %7546 = vst.msk [vmem:[%s172 + $0x1b8] sm:$0xf] %vm7435, %v7033
        %7547 = vst.msk [vmem:[%s172 + $0x1bc] sm:$0xf] %vm7435, %v7034
        %7548 = vst.msk [vmem:[%s172 + $0x1c0] sm:$0xf] %vm7435, %v7035
        %7549 = vst.msk [vmem:[%s172 + $0x1c4] sm:$0xf] %vm7435, %v7036
        %7550 = vst.msk [vmem:[%s172 + $0x1c8] sm:$0xf] %vm7435, %v7037
        %7551 = vst.msk [vmem:[%s172 + $0x1cc] sm:$0xf] %vm7435, %v7038
        %7552 = vst.msk [vmem:[%s172 + $0x1d0] sm:$0xf] %vm7435, %v7039
        %7553 = vst.msk [vmem:[%s172 + $0x1d4] sm:$0xf] %vm7435, %v7040
        %7554 = vst.msk [vmem:[%s172 + $0x1d8] sm:$0xf] %vm7435, %v7041
        %7555 = vst.msk [vmem:[%s172 + $0x1dc] sm:$0xf] %vm7435, %v7042
        %7556 = vst.msk [vmem:[%s172 + $0x1e0] sm:$0xf] %vm7435, %v7043
        %7557 = vst.msk [vmem:[%s172 + $0x1e4] sm:$0xf] %vm7435, %v7044
        %7558 = vst.msk [vmem:[%s172 + $0x1e8] sm:$0xf] %vm7435, %v7045
        %7559 = vst.msk [vmem:[%s172 + $0x1ec] sm:$0xf] %vm7435, %v7046
        %7560 = vst.msk [vmem:[%s172 + $0x1f0] sm:$0xf] %vm7435, %v7047
        %7561 = vst.msk [vmem:[%s172 + $0x1f4] sm:$0xf] %vm7435, %v7048
        %7562 = vst.msk [vmem:[%s172 + $0x1f8] sm:$0xf] %vm7435, %v7049
        %7563 = vst.msk [vmem:[%s172 + $0x1fc] sm:$0xf] %vm7435, %v7050
        %7564 = vst.msk [vmem:[%s172 + $0x200] sm:$0xf] %vm7435, %v7051
        %7565 = vst.msk [vmem:[%s172 + $0x204] sm:$0xf] %vm7435, %v7052
        %7566 = vst.msk [vmem:[%s172 + $0x208] sm:$0xf] %vm7435, %v7053
        %7567 = vst.msk [vmem:[%s172 + $0x20c] sm:$0xf] %vm7435, %v7054
        %7568 = vst.msk [vmem:[%s172 + $0x210] sm:$0xf] %vm7435, %v7055
        %7569 = vst.msk [vmem:[%s172 + $0x214] sm:$0xf] %vm7435, %v7056
        %7570 = vst.msk [vmem:[%s172 + $0x218] sm:$0xf] %vm7435, %v7057
        %7571 = vst.msk [vmem:[%s172 + $0x21c] sm:$0xf] %vm7435, %v7058
        %7572 = vst.msk [vmem:[%s172 + $0x220] sm:$0xf] %vm7435, %v7059
        %7573 = vst.msk [vmem:[%s172 + $0x224] sm:$0xf] %vm7435, %v7060
        %7574 = vst.msk [vmem:[%s172 + $0x228] sm:$0xf] %vm7435, %v7061
        %7575 = vst.msk [vmem:[%s172 + $0x22c] sm:$0xf] %vm7435, %v7062
        %7576 = vst.msk [vmem:[%s172 + $0x230] sm:$0xf] %vm7435, %v7063
        %7577 = vst.msk [vmem:[%s172 + $0x234] sm:$0xf] %vm7435, %v7064
        %7578 = vst.msk [vmem:[%s172 + $0x238] sm:$0xf] %vm7435, %v7065
        %7579 = vst.msk [vmem:[%s172 + $0x23c] sm:$0xf] %vm7435, %v7066
        %7580 = vst.msk [vmem:[%s172 + $0x240] sm:$0xf] %vm7435, %v7067
        %7581 = vst.msk [vmem:[%s172 + $0x244] sm:$0xf] %vm7435, %v7068
        %7582 = vst.msk [vmem:[%s172 + $0x248] sm:$0xf] %vm7435, %v7069
        %7583 = vst.msk [vmem:[%s172 + $0x24c] sm:$0xf] %vm7435, %v7070
        %7584 = vst.msk [vmem:[%s172 + $0x250] sm:$0xf] %vm7435, %v7071
        %7585 = vst.msk [vmem:[%s172 + $0x254] sm:$0xf] %vm7435, %v7072
        %7586 = vst.msk [vmem:[%s172 + $0x258] sm:$0xf] %vm7435, %v7073
        %7587 = vst.msk [vmem:[%s172 + $0x25c] sm:$0xf] %vm7435, %v7074
        %7588 = vst.msk [vmem:[%s172 + $0x260] sm:$0xf] %vm7435, %v7075
        %7589 = vst.msk [vmem:[%s172 + $0x264] sm:$0xf] %vm7435, %v7076
        %7590 = vst.msk [vmem:[%s172 + $0x268] sm:$0xf] %vm7435, %v7077
        %7591 = vst.msk [vmem:[%s172 + $0x26c] sm:$0xf] %vm7435, %v7078
        %7592 = vst.msk [vmem:[%s172 + $0x270] sm:$0xf] %vm7435, %v7079
        %7593 = vst.msk [vmem:[%s172 + $0x274] sm:$0xf] %vm7435, %v7080
        %7594 = vst.msk [vmem:[%s172 + $0x278] sm:$0xf] %vm7435, %v7081
        %7595 = vst.msk [vmem:[%s172 + $0x27c] sm:$0xf] %vm7435, %v7082
        %7596 = vst.msk [vmem:[%s172 + $0x280] sm:$0xf] %vm7435, %v7083
        %7597 = vst.msk [vmem:[%s172 + $0x284] sm:$0xf] %vm7435, %v7084
        %7598 = vst.msk [vmem:[%s172 + $0x288] sm:$0xf] %vm7435, %v7085
        %7599 = vst.msk [vmem:[%s172 + $0x28c] sm:$0xf] %vm7435, %v7086
        %7600 = vst.msk [vmem:[%s172 + $0x290] sm:$0xf] %vm7435, %v7087
        %7601 = vst.msk [vmem:[%s172 + $0x294] sm:$0xf] %vm7435, %v7088
        %7602 = vst.msk [vmem:[%s172 + $0x298] sm:$0xf] %vm7435, %v7089
        %7603 = vst.msk [vmem:[%s172 + $0x29c] sm:$0xf] %vm7435, %v7090
        %7604 = vst.msk [vmem:[%s172 + $0x2a0] sm:$0xf] %vm7435, %v7091
        %7605 = vst.msk [vmem:[%s172 + $0x2a4] sm:$0xf] %vm7435, %v7092
        %7606 = vst.msk [vmem:[%s172 + $0x2a8] sm:$0xf] %vm7435, %v7093
        %7607 = vst.msk [vmem:[%s172 + $0x2ac] sm:$0xf] %vm7435, %v7094
        %7608 = vst.msk [vmem:[%s172 + $0x2b0] sm:$0xf] %vm7435, %v7095
        %7609 = vst.msk [vmem:[%s172 + $0x2b4] sm:$0xf] %vm7435, %v7096
        %7610 = vst.msk [vmem:[%s172 + $0x2b8] sm:$0xf] %vm7435, %v7097
        %7611 = vst.msk [vmem:[%s172 + $0x2bc] sm:$0xf] %vm7435, %v7098
        %7612 = vst.msk [vmem:[%s172 + $0x2c0] sm:$0xf] %vm7435, %v7099
        %7613 = vst.msk [vmem:[%s172 + $0x2c4] sm:$0xf] %vm7435, %v7100
        %7614 = vst.msk [vmem:[%s172 + $0x2c8] sm:$0xf] %vm7435, %v7101
        %7615 = vst.msk [vmem:[%s172 + $0x2cc] sm:$0xf] %vm7435, %v7102
        %7616 = vst.msk [vmem:[%s172 + $0x2d0] sm:$0xf] %vm7435, %v7103
        %7617 = vst.msk [vmem:[%s172 + $0x2d4] sm:$0xf] %vm7435, %v7104
        %7618 = vst.msk [vmem:[%s172 + $0x2d8] sm:$0xf] %vm7435, %v7105
        %7619 = vst.msk [vmem:[%s172 + $0x2dc] sm:$0xf] %vm7435, %v7106
        %7620 = vst.msk [vmem:[%s172 + $0x2e0] sm:$0xf] %vm7435, %v7107
        %7621 = vst.msk [vmem:[%s172 + $0x2e4] sm:$0xf] %vm7435, %v7108
        %7622 = vst.msk [vmem:[%s172 + $0x2e8] sm:$0xf] %vm7435, %v7109
        %7623 = vst.msk [vmem:[%s172 + $0x2ec] sm:$0xf] %vm7435, %v7110
        %7624 = vst.msk [vmem:[%s172 + $0x2f0] sm:$0xf] %vm7435, %v7111
        %7625 = vst.msk [vmem:[%s172 + $0x2f4] sm:$0xf] %vm7435, %v7112
        %7626 = vst.msk [vmem:[%s172 + $0x2f8] sm:$0xf] %vm7435, %v7113
        %7627 = vst.msk [vmem:[%s172 + $0x2fc] sm:$0xf] %vm7435, %v7114
        %7628 = vst.msk [vmem:[%s172 + $0x300] sm:$0xf] %vm7435, %v7115
        %7629 = vst.msk [vmem:[%s172 + $0x304] sm:$0xf] %vm7435, %v7116
        %7630 = vst.msk [vmem:[%s172 + $0x308] sm:$0xf] %vm7435, %v7117
        %7631 = vst.msk [vmem:[%s172 + $0x30c] sm:$0xf] %vm7435, %v7118
        %7632 = vst.msk [vmem:[%s172 + $0x310] sm:$0xf] %vm7435, %v7119
        %7633 = vst.msk [vmem:[%s172 + $0x314] sm:$0xf] %vm7435, %v7120
        %7634 = vst.msk [vmem:[%s172 + $0x318] sm:$0xf] %vm7435, %v7121
        %7635 = vst.msk [vmem:[%s172 + $0x31c] sm:$0xf] %vm7435, %v7122
        %7636 = vst.msk [vmem:[%s172 + $0x320] sm:$0xf] %vm7435, %v7123
        %7637 = vst.msk [vmem:[%s172 + $0x324] sm:$0xf] %vm7435, %v7124
        %7638 = vst.msk [vmem:[%s172 + $0x328] sm:$0xf] %vm7435, %v7125
        %7639 = vst.msk [vmem:[%s172 + $0x32c] sm:$0xf] %vm7435, %v7126
        %7640 = vst.msk [vmem:[%s172 + $0x330] sm:$0xf] %vm7435, %v7127
        %7641 = vst.msk [vmem:[%s172 + $0x334] sm:$0xf] %vm7435, %v7128
        %7642 = vst.msk [vmem:[%s172 + $0x338] sm:$0xf] %vm7435, %v7129
        %7643 = vst.msk [vmem:[%s172 + $0x33c] sm:$0xf] %vm7435, %v7130
        %7644 = vst.msk [vmem:[%s172 + $0x340] sm:$0xf] %vm7435, %v7131
        %7645 = vst.msk [vmem:[%s172 + $0x344] sm:$0xf] %vm7435, %v7132
        %7646 = vst.msk [vmem:[%s172 + $0x348] sm:$0xf] %vm7435, %v7133
        %7647 = vst.msk [vmem:[%s172 + $0x34c] sm:$0xf] %vm7435, %v7134
        %7648 = vst.msk [vmem:[%s172 + $0x350] sm:$0xf] %vm7435, %v7135
        %7649 = vst.msk [vmem:[%s172 + $0x354] sm:$0xf] %vm7435, %v7136
        %7650 = vst.msk [vmem:[%s172 + $0x358] sm:$0xf] %vm7435, %v7137
        %7651 = vst.msk [vmem:[%s172 + $0x35c] sm:$0xf] %vm7435, %v7138
        %7652 = vst.msk [vmem:[%s172 + $0x360] sm:$0xf] %vm7435, %v7139
        %7653 = vst.msk [vmem:[%s172 + $0x364] sm:$0xf] %vm7435, %v7140
        %7654 = vst.msk [vmem:[%s172 + $0x368] sm:$0xf] %vm7435, %v7141
        %7655 = vst.msk [vmem:[%s172 + $0x36c] sm:$0xf] %vm7435, %v7142
        %7656 = vst.msk [vmem:[%s172 + $0x370] sm:$0xf] %vm7435, %v7143
        %7657 = vst.msk [vmem:[%s172 + $0x374] sm:$0xf] %vm7435, %v7144
        %7658 = vst.msk [vmem:[%s172 + $0x378] sm:$0xf] %vm7435, %v7145
        %7659 = vst.msk [vmem:[%s172 + $0x37c] sm:$0xf] %vm7435, %v7146
        %7660 = vst.msk [vmem:[%s172 + $0x380] sm:$0xf] %vm7435, %v7147
        %7661 = vst.msk [vmem:[%s172 + $0x384] sm:$0xf] %vm7435, %v7148
        %7662 = vst.msk [vmem:[%s172 + $0x388] sm:$0xf] %vm7435, %v7149
        %7663 = vst.msk [vmem:[%s172 + $0x38c] sm:$0xf] %vm7435, %v7150
        %7664 = vst.msk [vmem:[%s172 + $0x390] sm:$0xf] %vm7435, %v7151
        %7665 = vst.msk [vmem:[%s172 + $0x394] sm:$0xf] %vm7435, %v7152
        %7666 = vst.msk [vmem:[%s172 + $0x398] sm:$0xf] %vm7435, %v7153
        %7667 = vst.msk [vmem:[%s172 + $0x39c] sm:$0xf] %vm7435, %v7154
        %7668 = vst.msk [vmem:[%s172 + $0x3a0] sm:$0xf] %vm7435, %v7155
        %7669 = vst.msk [vmem:[%s172 + $0x3a4] sm:$0xf] %vm7435, %v7156
        %7670 = vst.msk [vmem:[%s172 + $0x3a8] sm:$0xf] %vm7435, %v7157
        %7671 = vst.msk [vmem:[%s172 + $0x3ac] sm:$0xf] %vm7435, %v7158
        %7672 = vst.msk [vmem:[%s172 + $0x3b0] sm:$0xf] %vm7435, %v7159
        %7673 = vst.msk [vmem:[%s172 + $0x3b4] sm:$0xf] %vm7435, %v7160
        %7674 = vst.msk [vmem:[%s172 + $0x3b8] sm:$0xf] %vm7435, %v7161
        %7675 = vst.msk [vmem:[%s172 + $0x3bc] sm:$0xf] %vm7435, %v7162
        %7676 = vst.msk [vmem:[%s172 + $0x3c0] sm:$0xf] %vm7435, %v7163
        %7677 = vst.msk [vmem:[%s172 + $0x3c4] sm:$0xf] %vm7435, %v7164
        %7678 = vst.msk [vmem:[%s172 + $0x3c8] sm:$0xf] %vm7435, %v7165
        %7679 = vst.msk [vmem:[%s172 + $0x3cc] sm:$0xf] %vm7435, %v7166
        %7680 = vst.msk [vmem:[%s172 + $0x3d0] sm:$0xf] %vm7435, %v7167
        %7681 = vst.msk [vmem:[%s172 + $0x3d4] sm:$0xf] %vm7435, %v7168
        %7682 = vst.msk [vmem:[%s172 + $0x3d8] sm:$0xf] %vm7435, %v7169
        %7683 = vst.msk [vmem:[%s172 + $0x3dc] sm:$0xf] %vm7435, %v7170
        %7684 = vst.msk [vmem:[%s172 + $0x3e0] sm:$0xf] %vm7435, %v7171
        %7685 = vst.msk [vmem:[%s172 + $0x3e4] sm:$0xf] %vm7435, %v7172
        %7686 = vst.msk [vmem:[%s172 + $0x3e8] sm:$0xf] %vm7435, %v7173
        %7687 = vst.msk [vmem:[%s172 + $0x3ec] sm:$0xf] %vm7435, %v7174
        %7688 = vst.msk [vmem:[%s172 + $0x3f0] sm:$0xf] %vm7435, %v7175
        %7689 = vst.msk [vmem:[%s172 + $0x3f4] sm:$0xf] %vm7435, %v7176
        %7690 = vst.msk [vmem:[%s172 + $0x3f8] sm:$0xf] %vm7435, %v7177
        %7691 = vst.msk [vmem:[%s172 + $0x3fc] sm:$0xf] %vm7435, %v7178
        %7692 = vst.msk [vmem:[%s172 + $0x400] sm:$0xf] %vm7435, %v7179
        %7693 = vst.msk [vmem:[%s172 + $0x404] sm:$0xf] %vm7435, %v7180
        %7694 = vst.msk [vmem:[%s172 + $0x408] sm:$0xf] %vm7435, %v7181
        %7695 = vst.msk [vmem:[%s172 + $0x40c] sm:$0xf] %vm7435, %v7182
        %7696 = vst.msk [vmem:[%s172 + $0x410] sm:$0xf] %vm7435, %v7183
        %7697 = vst.msk [vmem:[%s172 + $0x414] sm:$0xf] %vm7435, %v7184
        %7698 = vst.msk [vmem:[%s172 + $0x418] sm:$0xf] %vm7435, %v7185
        %7699 = vst.msk [vmem:[%s172 + $0x41c] sm:$0xf] %vm7435, %v7186
        %7700 = vst.msk [vmem:[%s172 + $0x420] sm:$0xf] %vm7435, %v7187
        %7701 = vst.msk [vmem:[%s172 + $0x424] sm:$0xf] %vm7435, %v7188
        %7702 = vst.msk [vmem:[%s172 + $0x428] sm:$0xf] %vm7435, %v7189
        %7703 = vst.msk [vmem:[%s172 + $0x42c] sm:$0xf] %vm7435, %v7190
        %7704 = vst.msk [vmem:[%s172 + $0x430] sm:$0xf] %vm7435, %v7191
        %7705 = vst.msk [vmem:[%s172 + $0x434] sm:$0xf] %vm7435, %v7192
        %7706 = vst.msk [vmem:[%s172 + $0x438] sm:$0xf] %vm7435, %v7193
        %7707 = vst.msk [vmem:[%s172 + $0x43c] sm:$0xf] %vm7435, %v7194
        %7708 = vst.msk [vmem:[%s172 + $0x440] sm:$0xf] %vm7435, %v7195
        %7709 = vst.msk [vmem:[%s172 + $0x444] sm:$0xf] %vm7435, %v7196
        %7710 = vst.msk [vmem:[%s172 + $0x448] sm:$0xf] %vm7435, %v7197
        %7711 = vst.msk [vmem:[%s172 + $0x44c] sm:$0xf] %vm7435, %v7198
        %7712 = vst.msk [vmem:[%s172 + $0x450] sm:$0xf] %vm7435, %v7199
        %7713 = vst.msk [vmem:[%s172 + $0x454] sm:$0xf] %vm7435, %v7200
        %7714 = vst.msk [vmem:[%s172 + $0x458] sm:$0xf] %vm7435, %v7201
        %7715 = vst.msk [vmem:[%s172 + $0x45c] sm:$0xf] %vm7435, %v7202
        %7716 = vst.msk [vmem:[%s172 + $0x460] sm:$0xf] %vm7435, %v7203
        %7717 = vst.msk [vmem:[%s172 + $0x464] sm:$0xf] %vm7435, %v7204
        %7718 = vst.msk [vmem:[%s172 + $0x468] sm:$0xf] %vm7435, %v7205
        %7719 = vst.msk [vmem:[%s172 + $0x46c] sm:$0xf] %vm7435, %v7206
        %7720 = vst.msk [vmem:[%s172 + $0x470] sm:$0xf] %vm7435, %v7207
        %7721 = vst.msk [vmem:[%s172 + $0x474] sm:$0xf] %vm7435, %v7208
        %7722 = vst.msk [vmem:[%s172 + $0x478] sm:$0xf] %vm7435, %v7209
        %7723 = vst.msk [vmem:[%s172 + $0x47c] sm:$0xf] %vm7435, %v7210
        %7724 = vst.msk [vmem:[%s172 + $0x480] sm:$0xf] %vm7435, %v7211
        %7725 = vst.msk [vmem:[%s172 + $0x484] sm:$0xf] %vm7435, %v7212
        %7726 = vst.msk [vmem:[%s172 + $0x488] sm:$0xf] %vm7435, %v7213
        %7727 = vst.msk [vmem:[%s172 + $0x48c] sm:$0xf] %vm7435, %v7214
        %7728 = vst.msk [vmem:[%s172 + $0x490] sm:$0xf] %vm7435, %v7215
        %7729 = vst.msk [vmem:[%s172 + $0x494] sm:$0xf] %vm7435, %v7216
        %7730 = vst.msk [vmem:[%s172 + $0x498] sm:$0xf] %vm7435, %v7217
        %7731 = vst.msk [vmem:[%s172 + $0x49c] sm:$0xf] %vm7435, %v7218
        %7732 = vst.msk [vmem:[%s172 + $0x4a0] sm:$0xf] %vm7435, %v7219
        %7733 = vst.msk [vmem:[%s172 + $0x4a4] sm:$0xf] %vm7435, %v7220
        %7734 = vst.msk [vmem:[%s172 + $0x4a8] sm:$0xf] %vm7435, %v7221
        %7735 = vst.msk [vmem:[%s172 + $0x4ac] sm:$0xf] %vm7435, %v7222
        %7736 = vst.msk [vmem:[%s172 + $0x4b0] sm:$0xf] %vm7435, %v7223
        %7737 = vst.msk [vmem:[%s172 + $0x4b4] sm:$0xf] %vm7435, %v7224
        %7738 = vst.msk [vmem:[%s172 + $0x4b8] sm:$0xf] %vm7435, %v7225
        %7739 = vst.msk [vmem:[%s172 + $0x4bc] sm:$0xf] %vm7435, %v7226
        %7740 = vst.msk [vmem:[%s172 + $0x4c0] sm:$0xf] %vm7435, %v7227
        %7741 = vst.msk [vmem:[%s172 + $0x4c4] sm:$0xf] %vm7435, %v7228
        %7742 = vst.msk [vmem:[%s172 + $0x4c8] sm:$0xf] %vm7435, %v7229
        %7743 = vst.msk [vmem:[%s172 + $0x4cc] sm:$0xf] %vm7435, %v7230
        %7744 = vst.msk [vmem:[%s172 + $0x4d0] sm:$0xf] %vm7435, %v7231
        %7745 = vst.msk [vmem:[%s172 + $0x4d4] sm:$0xf] %vm7435, %v7232
        %7746 = vst.msk [vmem:[%s172 + $0x4d8] sm:$0xf] %vm7435, %v7233
        %7747 = vst.msk [vmem:[%s172 + $0x4dc] sm:$0xf] %vm7435, %v7234
        %7748 = vst.msk [vmem:[%s172 + $0x4e0] sm:$0xf] %vm7435, %v7235
        %7749 = vst.msk [vmem:[%s172 + $0x4e4] sm:$0xf] %vm7435, %v7236
        %7750 = vst.msk [vmem:[%s172 + $0x4e8] sm:$0xf] %vm7435, %v7237
        %7751 = vst.msk [vmem:[%s172 + $0x4ec] sm:$0xf] %vm7435, %v7238
        %7752 = vst.msk [vmem:[%s172 + $0x4f0] sm:$0xf] %vm7435, %v7239
        %7753 = vst.msk [vmem:[%s172 + $0x4f4] sm:$0xf] %vm7435, %v7240
        %7754 = vst.msk [vmem:[%s172 + $0x4f8] sm:$0xf] %vm7435, %v7241
        %7755 = vst.msk [vmem:[%s172 + $0x4fc] sm:$0xf] %vm7435, %v7242
        %7756 = vst.msk [vmem:[%s172 + $0x500] sm:$0xf] %vm7435, %v7243
        %7757 = vst.msk [vmem:[%s172 + $0x504] sm:$0xf] %vm7435, %v7244
        %7758 = vst.msk [vmem:[%s172 + $0x508] sm:$0xf] %vm7435, %v7245
        %7759 = vst.msk [vmem:[%s172 + $0x50c] sm:$0xf] %vm7435, %v7246
        %7760 = vst.msk [vmem:[%s172 + $0x510] sm:$0xf] %vm7435, %v7247
        %7761 = vst.msk [vmem:[%s172 + $0x514] sm:$0xf] %vm7435, %v7248
        %7762 = vst.msk [vmem:[%s172 + $0x518] sm:$0xf] %vm7435, %v7249
        %7763 = vst.msk [vmem:[%s172 + $0x51c] sm:$0xf] %vm7435, %v7250
        %7764 = vst.msk [vmem:[%s172 + $0x520] sm:$0xf] %vm7435, %v7251
        %7765 = vst.msk [vmem:[%s172 + $0x524] sm:$0xf] %vm7435, %v7252
        %7766 = vst.msk [vmem:[%s172 + $0x528] sm:$0xf] %vm7435, %v7253
        %7767 = vst.msk [vmem:[%s172 + $0x52c] sm:$0xf] %vm7435, %v7254
        %7768 = vst.msk [vmem:[%s172 + $0x530] sm:$0xf] %vm7435, %v7255
        %7769 = vst.msk [vmem:[%s172 + $0x534] sm:$0xf] %vm7435, %v7256
        %7770 = vst.msk [vmem:[%s172 + $0x538] sm:$0xf] %vm7435, %v7257
        %7771 = vst.msk [vmem:[%s172 + $0x53c] sm:$0xf] %vm7435, %v7258
        %7772 = vst.msk [vmem:[%s172 + $0x540] sm:$0xf] %vm7435, %v7259
        %7773 = vst.msk [vmem:[%s172 + $0x544] sm:$0xf] %vm7435, %v7260
        %7774 = vst.msk [vmem:[%s172 + $0x548] sm:$0xf] %vm7435, %v7261
        %7775 = vst.msk [vmem:[%s172 + $0x54c] sm:$0xf] %vm7435, %v7262
        %7776 = vst.msk [vmem:[%s172 + $0x550] sm:$0xf] %vm7435, %v7263
        %7777 = vst.msk [vmem:[%s172 + $0x554] sm:$0xf] %vm7435, %v7264
        %7778 = vst.msk [vmem:[%s172 + $0x558] sm:$0xf] %vm7435, %v7265
        %7779 = vst.msk [vmem:[%s172 + $0x55c] sm:$0xf] %vm7435, %v7266
        %7780 = vst.msk [vmem:[%s172 + $0x560] sm:$0xf] %vm7435, %v7267
        %7781 = vst.msk [vmem:[%s172 + $0x564] sm:$0xf] %vm7435, %v7268
        %7782 = vst.msk [vmem:[%s172 + $0x568] sm:$0xf] %vm7435, %v7269
        %7783 = vst.msk [vmem:[%s172 + $0x56c] sm:$0xf] %vm7435, %v7270
        %7784 = vst.msk [vmem:[%s172 + $0x570] sm:$0xf] %vm7435, %v7271
        %7785 = vst.msk [vmem:[%s172 + $0x574] sm:$0xf] %vm7435, %v7272
        %7786 = vst.msk [vmem:[%s172 + $0x578] sm:$0xf] %vm7435, %v7273
        %7787 = vst.msk [vmem:[%s172 + $0x57c] sm:$0xf] %vm7435, %v7274
        %7788 = vst.msk [vmem:[%s172 + $0x580] sm:$0xf] %vm7435, %v7275
        %7789 = vst.msk [vmem:[%s172 + $0x584] sm:$0xf] %vm7435, %v7276
        %7790 = vst.msk [vmem:[%s172 + $0x588] sm:$0xf] %vm7435, %v7277
        %7791 = vst.msk [vmem:[%s172 + $0x58c] sm:$0xf] %vm7435, %v7278
        %7792 = vst.msk [vmem:[%s172 + $0x590] sm:$0xf] %vm7435, %v7279
        %7793 = vst.msk [vmem:[%s172 + $0x594] sm:$0xf] %vm7435, %v7280
        %7794 = vst.msk [vmem:[%s172 + $0x598] sm:$0xf] %vm7435, %v7281
        %7795 = vst.msk [vmem:[%s172 + $0x59c] sm:$0xf] %vm7435, %v7282
        %7796 = vst.msk [vmem:[%s172 + $0x5a0] sm:$0xf] %vm7435, %v7283
        %7797 = vst.msk [vmem:[%s172 + $0x5a4] sm:$0xf] %vm7435, %v7284
        %7798 = vst.msk [vmem:[%s172 + $0x5a8] sm:$0xf] %vm7435, %v7285
        %7799 = vst.msk [vmem:[%s172 + $0x5ac] sm:$0xf] %vm7435, %v7286
        %7800 = vst.msk [vmem:[%s172 + $0x5b0] sm:$0xf] %vm7435, %v7287
        %7801 = vst.msk [vmem:[%s172 + $0x5b4] sm:$0xf] %vm7435, %v7288
        %7802 = vst.msk [vmem:[%s172 + $0x5b8] sm:$0xf] %vm7435, %v7289
        %7803 = vst.msk [vmem:[%s172 + $0x5bc] sm:$0xf] %vm7435, %v7290
        %7804 = vst.msk [vmem:[%s172 + $0x5c0] sm:$0xf] %vm7435, %v7291
        %7805 = vst.msk [vmem:[%s172 + $0x5c4] sm:$0xf] %vm7435, %v7292
        %7806 = vst.msk [vmem:[%s172 + $0x5c8] sm:$0xf] %vm7435, %v7293
        %7807 = vst.msk [vmem:[%s172 + $0x5cc] sm:$0xf] %vm7435, %v7294
        %7808 = vst.msk [vmem:[%s172 + $0x5d0] sm:$0xf] %vm7435, %v7295
        %7809 = vst.msk [vmem:[%s172 + $0x5d4] sm:$0xf] %vm7435, %v7296
        %7810 = vst.msk [vmem:[%s172 + $0x5d8] sm:$0xf] %vm7435, %v7297
        %7811 = vst.msk [vmem:[%s172 + $0x5dc] sm:$0xf] %vm7435, %v7298
        %7812 = vst.msk [vmem:[%s172 + $0x5e0] sm:$0xf] %vm7435, %v7299
        %7813 = vst.msk [vmem:[%s172 + $0x5e4] sm:$0xf] %vm7435, %v7300
        %7814 = vst.msk [vmem:[%s172 + $0x5e8] sm:$0xf] %vm7435, %v7301
        %7815 = vst.msk [vmem:[%s172 + $0x5ec] sm:$0xf] %vm7435, %v7302
        %7816 = vst.msk [vmem:[%s172 + $0x5f0] sm:$0xf] %vm7435, %v7303
        %7817 = vst.msk [vmem:[%s172 + $0x5f4] sm:$0xf] %vm7435, %v7304
        %7818 = vst.msk [vmem:[%s172 + $0x5f8] sm:$0xf] %vm7435, %v7305
        %7819 = vst.msk [vmem:[%s172 + $0x5fc] sm:$0xf] %vm7435, %v7306
        %7820 = vst.msk [vmem:[%s172 + $0x600] sm:$0xf] %vm7435, %v7307
        %7821 = vst.msk [vmem:[%s172 + $0x604] sm:$0xf] %vm7435, %v7308
        %7822 = vst.msk [vmem:[%s172 + $0x608] sm:$0xf] %vm7435, %v7309
        %7823 = vst.msk [vmem:[%s172 + $0x60c] sm:$0xf] %vm7435, %v7310
        %7824 = vst.msk [vmem:[%s172 + $0x610] sm:$0xf] %vm7435, %v7311
        %7825 = vst.msk [vmem:[%s172 + $0x614] sm:$0xf] %vm7435, %v7312
        %7826 = vst.msk [vmem:[%s172 + $0x618] sm:$0xf] %vm7435, %v7313
        %7827 = vst.msk [vmem:[%s172 + $0x61c] sm:$0xf] %vm7435, %v7314
        %7828 = vst.msk [vmem:[%s172 + $0x620] sm:$0xf] %vm7435, %v7315
        %7829 = vst.msk [vmem:[%s172 + $0x624] sm:$0xf] %vm7435, %v7316
        %7830 = vst.msk [vmem:[%s172 + $0x628] sm:$0xf] %vm7435, %v7317
        %7831 = vst.msk [vmem:[%s172 + $0x62c] sm:$0xf] %vm7435, %v7318
        %7832 = vst.msk [vmem:[%s172 + $0x630] sm:$0xf] %vm7435, %v7319
        %7833 = vst.msk [vmem:[%s172 + $0x634] sm:$0xf] %vm7435, %v7320
        %7834 = vst.msk [vmem:[%s172 + $0x638] sm:$0xf] %vm7435, %v7321
        %7835 = vst.msk [vmem:[%s172 + $0x63c] sm:$0xf] %vm7435, %v7322
        %7836 = vst.msk [vmem:[%s172 + $0x640] sm:$0xf] %vm7435, %v7323
        %7837 = vst.msk [vmem:[%s172 + $0x644] sm:$0xf] %vm7435, %v7324
        %7838 = vst.msk [vmem:[%s172 + $0x648] sm:$0xf] %vm7435, %v7325
        %7839 = vst.msk [vmem:[%s172 + $0x64c] sm:$0xf] %vm7435, %v7326
        %7840 = vst.msk [vmem:[%s172 + $0x650] sm:$0xf] %vm7435, %v7327
        %7841 = vst.msk [vmem:[%s172 + $0x654] sm:$0xf] %vm7435, %v7328
        %7842 = vst.msk [vmem:[%s172 + $0x658] sm:$0xf] %vm7435, %v7329
        %7843 = vst.msk [vmem:[%s172 + $0x65c] sm:$0xf] %vm7435, %v7330
        %7844 = vst.msk [vmem:[%s172 + $0x660] sm:$0xf] %vm7435, %v7331
        %7845 = vst.msk [vmem:[%s172 + $0x664] sm:$0xf] %vm7435, %v7332
        %7846 = vst.msk [vmem:[%s172 + $0x668] sm:$0xf] %vm7435, %v7333
        %7847 = vst.msk [vmem:[%s172 + $0x66c] sm:$0xf] %vm7435, %v7334
        %7848 = vst.msk [vmem:[%s172 + $0x670] sm:$0xf] %vm7435, %v7335
        %7849 = vst.msk [vmem:[%s172 + $0x674] sm:$0xf] %vm7435, %v7336
        %7850 = vst.msk [vmem:[%s172 + $0x678] sm:$0xf] %vm7435, %v7337
        %7851 = vst.msk [vmem:[%s172 + $0x67c] sm:$0xf] %vm7435, %v7338
        %7852 = vst.msk [vmem:[%s172 + $0x680] sm:$0xf] %vm7435, %v7339
        %7853 = vst.msk [vmem:[%s172 + $0x684] sm:$0xf] %vm7435, %v7340
        %7854 = vst.msk [vmem:[%s172 + $0x688] sm:$0xf] %vm7435, %v7341
        %7855 = vst.msk [vmem:[%s172 + $0x68c] sm:$0xf] %vm7435, %v7342
        %7856 = vst.msk [vmem:[%s172 + $0x690] sm:$0xf] %vm7435, %v7343
        %7857 = vst.msk [vmem:[%s172 + $0x694] sm:$0xf] %vm7435, %v7344
        %7858 = vst.msk [vmem:[%s172 + $0x698] sm:$0xf] %vm7435, %v7345
        %7859 = vst.msk [vmem:[%s172 + $0x69c] sm:$0xf] %vm7435, %v7346
        %7860 = vst.msk [vmem:[%s172 + $0x6a0] sm:$0xf] %vm7435, %v7347
        %7861 = vst.msk [vmem:[%s172 + $0x6a4] sm:$0xf] %vm7435, %v7348
        %7862 = vst.msk [vmem:[%s172 + $0x6a8] sm:$0xf] %vm7435, %v7349
        %7863 = vst.msk [vmem:[%s172 + $0x6ac] sm:$0xf] %vm7435, %v7350
        %7864 = vst.msk [vmem:[%s172 + $0x6b0] sm:$0xf] %vm7435, %v7351
        %7865 = vst.msk [vmem:[%s172 + $0x6b4] sm:$0xf] %vm7435, %v7352
        %7866 = vst.msk [vmem:[%s172 + $0x6b8] sm:$0xf] %vm7435, %v7353
        %7867 = vst.msk [vmem:[%s172 + $0x6bc] sm:$0xf] %vm7435, %v7354
        %7868 = vst.msk [vmem:[%s172 + $0x6c0] sm:$0xf] %vm7435, %v7355
        %7869 = vst.msk [vmem:[%s172 + $0x6c4] sm:$0xf] %vm7435, %v7356
        %7870 = vst.msk [vmem:[%s172 + $0x6c8] sm:$0xf] %vm7435, %v7357
        %7871 = vst.msk [vmem:[%s172 + $0x6cc] sm:$0xf] %vm7435, %v7358
        %7872 = vst.msk [vmem:[%s172 + $0x6d0] sm:$0xf] %vm7435, %v7359
        %7873 = vst.msk [vmem:[%s172 + $0x6d4] sm:$0xf] %vm7435, %v7360
        %7874 = vst.msk [vmem:[%s172 + $0x6d8] sm:$0xf] %vm7435, %v7361
        %7875 = vst.msk [vmem:[%s172 + $0x6dc] sm:$0xf] %vm7435, %v7362
        %7876 = vst.msk [vmem:[%s172 + $0x6e0] sm:$0xf] %vm7435, %v7363
        %7877 = vst.msk [vmem:[%s172 + $0x6e4] sm:$0xf] %vm7435, %v7364
        %7878 = vst.msk [vmem:[%s172 + $0x6e8] sm:$0xf] %vm7435, %v7365
        %7879 = vst.msk [vmem:[%s172 + $0x6ec] sm:$0xf] %vm7435, %v7366
        %7880 = vst.msk [vmem:[%s172 + $0x6f0] sm:$0xf] %vm7435, %v7367
        %7881 = vst.msk [vmem:[%s172 + $0x6f4] sm:$0xf] %vm7435, %v7368
        %7882 = vst.msk [vmem:[%s172 + $0x6f8] sm:$0xf] %vm7435, %v7369
        %7883 = vst.msk [vmem:[%s172 + $0x6fc] sm:$0xf] %vm7435, %v7370
        %7884 = vst.msk [vmem:[%s172 + $0x700] sm:$0xf] %vm7435, %v7371
        %7885 = vst.msk [vmem:[%s172 + $0x704] sm:$0xf] %vm7435, %v7372
        %7886 = vst.msk [vmem:[%s172 + $0x708] sm:$0xf] %vm7435, %v7373
        %7887 = vst.msk [vmem:[%s172 + $0x70c] sm:$0xf] %vm7435, %v7374
        %7888 = vst.msk [vmem:[%s172 + $0x710] sm:$0xf] %vm7435, %v7375
        %7889 = vst.msk [vmem:[%s172 + $0x714] sm:$0xf] %vm7435, %v7376
        %7890 = vst.msk [vmem:[%s172 + $0x718] sm:$0xf] %vm7435, %v7377
        %7891 = vst.msk [vmem:[%s172 + $0x71c] sm:$0xf] %vm7435, %v7378
        %7892 = vst.msk [vmem:[%s172 + $0x720] sm:$0xf] %vm7435, %v7379
        %7893 = vst.msk [vmem:[%s172 + $0x724] sm:$0xf] %vm7435, %v7380
        %7894 = vst.msk [vmem:[%s172 + $0x728] sm:$0xf] %vm7435, %v7381
        %7895 = vst.msk [vmem:[%s172 + $0x72c] sm:$0xf] %vm7435, %v7382
        %7896 = vst.msk [vmem:[%s172 + $0x730] sm:$0xf] %vm7435, %v7383
        %7897 = vst.msk [vmem:[%s172 + $0x734] sm:$0xf] %vm7435, %v7384
        %7898 = vst.msk [vmem:[%s172 + $0x738] sm:$0xf] %vm7435, %v7385
        %7899 = vst.msk [vmem:[%s172 + $0x73c] sm:$0xf] %vm7435, %v7386
        %7900 = vst.msk [vmem:[%s172 + $0x740] sm:$0xf] %vm7435, %v7387
        %7901 = vst.msk [vmem:[%s172 + $0x744] sm:$0xf] %vm7435, %v7388
        %7902 = vst.msk [vmem:[%s172 + $0x748] sm:$0xf] %vm7435, %v7389
        %7903 = vst.msk [vmem:[%s172 + $0x74c] sm:$0xf] %vm7435, %v7390
        %7904 = vst.msk [vmem:[%s172 + $0x750] sm:$0xf] %vm7435, %v7391
        %7905 = vst.msk [vmem:[%s172 + $0x754] sm:$0xf] %vm7435, %v7392
        %7906 = vst.msk [vmem:[%s172 + $0x758] sm:$0xf] %vm7435, %v7393
        %7907 = vst.msk [vmem:[%s172 + $0x75c] sm:$0xf] %vm7435, %v7394
        %7908 = vst.msk [vmem:[%s172 + $0x760] sm:$0xf] %vm7435, %v7395
        %7909 = vst.msk [vmem:[%s172 + $0x764] sm:$0xf] %vm7435, %v7396
        %7910 = vst.msk [vmem:[%s172 + $0x768] sm:$0xf] %vm7435, %v7397
        %7911 = vst.msk [vmem:[%s172 + $0x76c] sm:$0xf] %vm7435, %v7398
        %7912 = vst.msk [vmem:[%s172 + $0x770] sm:$0xf] %vm7435, %v7399
        %7913 = vst.msk [vmem:[%s172 + $0x774] sm:$0xf] %vm7435, %v7400
        %7914 = vst.msk [vmem:[%s172 + $0x778] sm:$0xf] %vm7435, %v7401
        %7915 = vst.msk [vmem:[%s172 + $0x77c] sm:$0xf] %vm7435, %v7402
        %7916 = vst.msk [vmem:[%s172 + $0x780] sm:$0xf] %vm7435, %v7403
        %7917 = vst.msk [vmem:[%s172 + $0x784] sm:$0xf] %vm7435, %v7404
        %7918 = vst.msk [vmem:[%s172 + $0x788] sm:$0xf] %vm7435, %v7405
        %7919 = vst.msk [vmem:[%s172 + $0x78c] sm:$0xf] %vm7435, %v7406
        %7920 = vst.msk [vmem:[%s172 + $0x790] sm:$0xf] %vm7435, %v7407
        %7921 = vst.msk [vmem:[%s172 + $0x794] sm:$0xf] %vm7435, %v7408
        %7922 = vst.msk [vmem:[%s172 + $0x798] sm:$0xf] %vm7435, %v7409
        %7923 = vst.msk [vmem:[%s172 + $0x79c] sm:$0xf] %vm7435, %v7410
        %7924 = vst.msk [vmem:[%s172 + $0x7a0] sm:$0xf] %vm7435, %v7411
        %7925 = vst.msk [vmem:[%s172 + $0x7a4] sm:$0xf] %vm7435, %v7412
        %7926 = vst.msk [vmem:[%s172 + $0x7a8] sm:$0xf] %vm7435, %v7413
        %7927 = vst.msk [vmem:[%s172 + $0x7ac] sm:$0xf] %vm7435, %v7414
        %7928 = vst.msk [vmem:[%s172 + $0x7b0] sm:$0xf] %vm7435, %v7415
        %7929 = vst.msk [vmem:[%s172 + $0x7b4] sm:$0xf] %vm7435, %v7416
        %7930 = vst.msk [vmem:[%s172 + $0x7b8] sm:$0xf] %vm7435, %v7417
        %7931 = vst.msk [vmem:[%s172 + $0x7bc] sm:$0xf] %vm7435, %v7418
        %7932 = vst.msk [vmem:[%s172 + $0x7c0] sm:$0xf] %vm7435, %v7419
        %7933 = vst.msk [vmem:[%s172 + $0x7c4] sm:$0xf] %vm7435, %v7420
        %7934 = vst.msk [vmem:[%s172 + $0x7c8] sm:$0xf] %vm7435, %v7421
        %7935 = vst.msk [vmem:[%s172 + $0x7cc] sm:$0xf] %vm7435, %v7422
        %7936 = vst.msk [vmem:[%s172 + $0x7d0] sm:$0xf] %vm7435, %v7423
        %7937 = vst.msk [vmem:[%s172 + $0x7d4] sm:$0xf] %vm7435, %v7424
        %7938 = vst.msk [vmem:[%s172 + $0x7d8] sm:$0xf] %vm7435, %v7425
        %7939 = vst.msk [vmem:[%s172 + $0x7dc] sm:$0xf] %vm7435, %v7426
        %7940 = vst.msk [vmem:[%s172 + $0x7e0] sm:$0xf] %vm7435, %v7427
        %7941 = vst.msk [vmem:[%s172 + $0x7e4] sm:$0xf] %vm7435, %v7428
        %7942 = vst.msk [vmem:[%s172 + $0x7e8] sm:$0xf] %vm7435, %v7429
        %7943 = vst.msk [vmem:[%s172 + $0x7ec] sm:$0xf] %vm7435, %v7430
        %7944 = vst.msk [vmem:[%s172 + $0x7f0] sm:$0xf] %vm7435, %v7431
        %7945 = vst.msk [vmem:[%s172 + $0x7f4] sm:$0xf] %vm7435, %v7432
        %7946 = vst.msk [vmem:[%s172 + $0x7f8] sm:$0xf] %vm7435, %v7433
        %7947 = vst.msk [vmem:[%s172 + $0x7fc] sm:$0xf] %vm7435, %v7434
        %s7948 = sand.u32 %s90, 1
        %s7949 = sand.u32 %s90, 1
        %s7950 = smul.addr %s7949, 2048
        %s7951 = scalar_lea.vmem [#allocation2], %s7950
        // Predicated region
        $region33: #{sequential_forward.1} parent=31 // pred_check
          %p7952 = pneg %p100
        $region34: #{sequential_forward.1} parent=31 // pred_check_branch
          %7954 = sbr.rel (%p7952) target = $region36
        $region35: #{sequential_forward.1} parent=31 // pred_region
          %s7955 = smul.u32 512, %s14
          %s7956 = ssub.s32 1029, %s7955
          %p7957 = scmp.lt.s32.totalorder %s7956, 512
          %s7958 = scalar_select %p7957, %s7956, 512
          %s7959 = smul.u32 4, %s7958
          %p7960 = scmp.ne.s32.totalorder 0, %s7959
          %s7961 = smul.addr %s7955, 4
          %s7962 = scalar_lea.vmem %s3, %s7961
          // Predicated region
          $region37: #{sequential_forward.1} parent=35 // pred_check
            %p7963 = pneg %p7960
          $region38: #{sequential_forward.1} parent=35 // pred_check_branch
            %7965 = sbr.rel (%p7963) target = $region40
          $region39: #{sequential_forward.1} parent=35 // pred_region
            // Predicated region
            $region41: #{sequential_forward.1} parent=39 // pred_check
              _
            $region42: #{sequential_forward.1} parent=39 // pred_check_branch
              %7967 = sbr.rel target = $region44
            $region43: #{sequential_forward.1} parent=39 // pred_region
              // Predicated region
              $region63: #{sequential_forward.1} parent=43 // pred_check
                _
              $region64: #{sequential_forward.1} parent=43 // pred_check_branch
                %8079 = sbr.rel (0) target = $region66
              $region65: #{sequential_forward.1} parent=43 // pred_region
                %s8081 = ssub.s32 16, 1
                %s8082 = sshrl.u32 %s7958, 5
                // While loop
                $region67: #{sequential_forward.1} parent=65 // loop_pre_header
                  _
                $region68: #{sequential_forward.1} parent=65 // loop_header
                  %s8084 = sphi 0, %s8086
                  %p8085 = scmp.ge.s32.totalorder %s8084, %s8082
                  %s8089 = sphi 0, %s8158
                  %s8090 = sphi %s7951, %s8161
                  %s8091 = sphi %s7962, %s8162
                $region69: #{sequential_forward.1} parent=65 // loop_header_branch
                  %8088 = sbr.rel (%p8085) target = $region73
                $region70: #{sequential_forward.1} parent=65 // loop_body
                  %v8092 = vld [vmem:[%s8090] sm:%s8081]
                  %8093 = vst [vmem:[%s8091] sm:%s8081] %v8092
                  %v8094 = vld [vmem:[%s8090 + $0x4] sm:%s8081]
                  %8095 = vst [vmem:[%s8091 + $0x4] sm:%s8081] %v8094
                  %v8096 = vld [vmem:[%s8090 + $0x8] sm:%s8081]
                  %8097 = vst [vmem:[%s8091 + $0x8] sm:%s8081] %v8096
                  %v8098 = vld [vmem:[%s8090 + $0xc] sm:%s8081]
                  %8099 = vst [vmem:[%s8091 + $0xc] sm:%s8081] %v8098
                  %v8100 = vld [vmem:[%s8090 + $0x10] sm:%s8081]
                  %8101 = vst [vmem:[%s8091 + $0x10] sm:%s8081] %v8100
                  %v8102 = vld [vmem:[%s8090 + $0x14] sm:%s8081]
                  %8103 = vst [vmem:[%s8091 + $0x14] sm:%s8081] %v8102
                  %v8104 = vld [vmem:[%s8090 + $0x18] sm:%s8081]
                  %8105 = vst [vmem:[%s8091 + $0x18] sm:%s8081] %v8104
                  %v8106 = vld [vmem:[%s8090 + $0x1c] sm:%s8081]
                  %8107 = vst [vmem:[%s8091 + $0x1c] sm:%s8081] %v8106
                  %v8108 = vld [vmem:[%s8090 + $0x20] sm:%s8081]
                  %8109 = vst [vmem:[%s8091 + $0x20] sm:%s8081] %v8108
                  %v8110 = vld [vmem:[%s8090 + $0x24] sm:%s8081]
                  %8111 = vst [vmem:[%s8091 + $0x24] sm:%s8081] %v8110
                  %v8112 = vld [vmem:[%s8090 + $0x28] sm:%s8081]
                  %8113 = vst [vmem:[%s8091 + $0x28] sm:%s8081] %v8112
                  %v8114 = vld [vmem:[%s8090 + $0x2c] sm:%s8081]
                  %8115 = vst [vmem:[%s8091 + $0x2c] sm:%s8081] %v8114
                  %v8116 = vld [vmem:[%s8090 + $0x30] sm:%s8081]
                  %8117 = vst [vmem:[%s8091 + $0x30] sm:%s8081] %v8116
                  %v8118 = vld [vmem:[%s8090 + $0x34] sm:%s8081]
                  %8119 = vst [vmem:[%s8091 + $0x34] sm:%s8081] %v8118
                  %v8120 = vld [vmem:[%s8090 + $0x38] sm:%s8081]
                  %8121 = vst [vmem:[%s8091 + $0x38] sm:%s8081] %v8120
                  %v8122 = vld [vmem:[%s8090 + $0x3c] sm:%s8081]
                  %8123 = vst [vmem:[%s8091 + $0x3c] sm:%s8081] %v8122
                  %v8124 = vld [vmem:[%s8090 + $0x40] sm:%s8081]
                  %8125 = vst [vmem:[%s8091 + $0x40] sm:%s8081] %v8124
                  %v8126 = vld [vmem:[%s8090 + $0x44] sm:%s8081]
                  %8127 = vst [vmem:[%s8091 + $0x44] sm:%s8081] %v8126
                  %v8128 = vld [vmem:[%s8090 + $0x48] sm:%s8081]
                  %8129 = vst [vmem:[%s8091 + $0x48] sm:%s8081] %v8128
                  %v8130 = vld [vmem:[%s8090 + $0x4c] sm:%s8081]
                  %8131 = vst [vmem:[%s8091 + $0x4c] sm:%s8081] %v8130
                  %v8132 = vld [vmem:[%s8090 + $0x50] sm:%s8081]
                  %8133 = vst [vmem:[%s8091 + $0x50] sm:%s8081] %v8132
                  %v8134 = vld [vmem:[%s8090 + $0x54] sm:%s8081]
                  %8135 = vst [vmem:[%s8091 + $0x54] sm:%s8081] %v8134
                  %v8136 = vld [vmem:[%s8090 + $0x58] sm:%s8081]
                  %8137 = vst [vmem:[%s8091 + $0x58] sm:%s8081] %v8136
                  %v8138 = vld [vmem:[%s8090 + $0x5c] sm:%s8081]
                  %8139 = vst [vmem:[%s8091 + $0x5c] sm:%s8081] %v8138
                  %v8140 = vld [vmem:[%s8090 + $0x60] sm:%s8081]
                  %8141 = vst [vmem:[%s8091 + $0x60] sm:%s8081] %v8140
                  %v8142 = vld [vmem:[%s8090 + $0x64] sm:%s8081]
                  %8143 = vst [vmem:[%s8091 + $0x64] sm:%s8081] %v8142
                  %v8144 = vld [vmem:[%s8090 + $0x68] sm:%s8081]
                  %8145 = vst [vmem:[%s8091 + $0x68] sm:%s8081] %v8144
                  %v8146 = vld [vmem:[%s8090 + $0x6c] sm:%s8081]
                  %8147 = vst [vmem:[%s8091 + $0x6c] sm:%s8081] %v8146
                  %v8148 = vld [vmem:[%s8090 + $0x70] sm:%s8081]
                  %8149 = vst [vmem:[%s8091 + $0x70] sm:%s8081] %v8148
                  %v8150 = vld [vmem:[%s8090 + $0x74] sm:%s8081]
                  %8151 = vst [vmem:[%s8091 + $0x74] sm:%s8081] %v8150
                  %v8152 = vld [vmem:[%s8090 + $0x78] sm:%s8081]
                  %8153 = vst [vmem:[%s8091 + $0x78] sm:%s8081] %v8152
                  %v8154 = vld [vmem:[%s8090 + $0x7c] sm:%s8081]
                  %8155 = vst [vmem:[%s8091 + $0x7c] sm:%s8081] %v8154
                  %s8156 = sadd.s32 1, %s8089
                  %p8157 = scmp.ge.s32.totalorder %s8156, %s8082
                  %s8158 = scalar_select %p8157, 0, %s8156
                  %s8159 = smul.u32 %s8158, 128
                  %s8160 = smul.u32 %s8158, 128
                  %s8161 = scalar_lea.vmem %s7951, %s8159 [#allocation2]
                  %s8162 = scalar_lea.vmem %s7962, %s8160
                $region71: #{sequential_forward.1} parent=65 // loop_footer
                  %s8086 = sadd.s32 %s8084, 1
                $region72: #{sequential_forward.1} parent=65 // loop_footer_branch
                  %8083 = sbr.rel target = $region68
                $region73: #{sequential_forward.1} parent=65 // loop_exit
                  _
                %s8163 = sshrl.u32 %s7958, 5
                %s8164 = sand.u32 %s7958, 31
                %s8165 = smul.u32 %s8163, 32
                %s8166 = smul.u32 4, %s8165
                %s8167 = scalar_lea.vmem %s7951, %s8166 [#allocation2]
                %s8168 = smul.u32 4, %s8165
                %s8169 = scalar_lea.vmem %s7962, %s8168
                // While loop
                $region74: #{sequential_forward.1} parent=65 // loop_pre_header
                  _
                $region75: #{sequential_forward.1} parent=65 // loop_header
                  %s8171 = sphi 0, %s8173
                  %p8172 = scmp.ge.s32.totalorder %s8171, %s8164
                  %s8176 = sphi 0, %s8183
                  %s8177 = sphi %s8167, %s8186
                  %s8178 = sphi %s8169, %s8187
                $region76: #{sequential_forward.1} parent=65 // loop_header_branch
                  %8175 = sbr.rel (%p8172) target = $region80
                $region77: #{sequential_forward.1} parent=65 // loop_body
                  %v8179 = vld [vmem:[%s8177] sm:%s8081]
                  %8180 = vst [vmem:[%s8178] sm:%s8081] %v8179
                  %s8181 = sadd.s32 1, %s8176
                  %p8182 = scmp.ge.s32.totalorder %s8181, %s8164
                  %s8183 = scalar_select %p8182, 0, %s8181
                  %s8184 = smul.u32 %s8183, 4
                  %s8185 = smul.u32 %s8183, 4
                  %s8186 = scalar_lea.vmem %s8167, %s8184 [#allocation2]
                  %s8187 = scalar_lea.vmem %s8169, %s8185
                $region78: #{sequential_forward.1} parent=65 // loop_footer
                  %s8173 = sadd.s32 %s8171, 1
                $region79: #{sequential_forward.1} parent=65 // loop_footer_branch
                  %8170 = sbr.rel target = $region75
                $region80: #{sequential_forward.1} parent=65 // loop_exit
                  _
              $region66: #{sequential_forward.1} parent=43 // pred_fallthru
                _
            $region44: #{sequential_forward.1} parent=39 // pred_fallthru
              _
            // Predicated region
            $region45: #{sequential_forward.1} parent=39 // pred_check
              _
            $region46: #{sequential_forward.1} parent=39 // pred_check_branch
              %7969 = sbr.rel (0) target = $region48
            $region47: #{sequential_forward.1} parent=39 // pred_region
              %s7971 = ssub.s32 16, 1
              %s7972 = sshrl.u32 %s7958, 5
              // While loop
              $region49: #{sequential_forward.1} parent=47 // loop_pre_header
                _
              $region50: #{sequential_forward.1} parent=47 // loop_header
                %s7974 = sphi 0, %s7976
                %p7975 = scmp.ge.s32.totalorder %s7974, %s7972
                %s7979 = sphi 0, %s8048
                %s7980 = sphi %s7951, %s8051
                %s7981 = sphi %s7962, %s8052
              $region51: #{sequential_forward.1} parent=47 // loop_header_branch
                %7978 = sbr.rel (%p7975) target = $region55
              $region52: #{sequential_forward.1} parent=47 // loop_body
                %v7982 = vld [vmem:[%s7980] sm:%s7971]
                %7983 = vst [vmem:[%s7981] sm:%s7971] %v7982
                %v7984 = vld [vmem:[%s7980 + $0x4] sm:%s7971]
                %7985 = vst [vmem:[%s7981 + $0x4] sm:%s7971] %v7984
                %v7986 = vld [vmem:[%s7980 + $0x8] sm:%s7971]
                %7987 = vst [vmem:[%s7981 + $0x8] sm:%s7971] %v7986
                %v7988 = vld [vmem:[%s7980 + $0xc] sm:%s7971]
                %7989 = vst [vmem:[%s7981 + $0xc] sm:%s7971] %v7988
                %v7990 = vld [vmem:[%s7980 + $0x10] sm:%s7971]
                %7991 = vst [vmem:[%s7981 + $0x10] sm:%s7971] %v7990
                %v7992 = vld [vmem:[%s7980 + $0x14] sm:%s7971]
                %7993 = vst [vmem:[%s7981 + $0x14] sm:%s7971] %v7992
                %v7994 = vld [vmem:[%s7980 + $0x18] sm:%s7971]
                %7995 = vst [vmem:[%s7981 + $0x18] sm:%s7971] %v7994
                %v7996 = vld [vmem:[%s7980 + $0x1c] sm:%s7971]
                %7997 = vst [vmem:[%s7981 + $0x1c] sm:%s7971] %v7996
                %v7998 = vld [vmem:[%s7980 + $0x20] sm:%s7971]
                %7999 = vst [vmem:[%s7981 + $0x20] sm:%s7971] %v7998
                %v8000 = vld [vmem:[%s7980 + $0x24] sm:%s7971]
                %8001 = vst [vmem:[%s7981 + $0x24] sm:%s7971] %v8000
                %v8002 = vld [vmem:[%s7980 + $0x28] sm:%s7971]
                %8003 = vst [vmem:[%s7981 + $0x28] sm:%s7971] %v8002
                %v8004 = vld [vmem:[%s7980 + $0x2c] sm:%s7971]
                %8005 = vst [vmem:[%s7981 + $0x2c] sm:%s7971] %v8004
                %v8006 = vld [vmem:[%s7980 + $0x30] sm:%s7971]
                %8007 = vst [vmem:[%s7981 + $0x30] sm:%s7971] %v8006
                %v8008 = vld [vmem:[%s7980 + $0x34] sm:%s7971]
                %8009 = vst [vmem:[%s7981 + $0x34] sm:%s7971] %v8008
                %v8010 = vld [vmem:[%s7980 + $0x38] sm:%s7971]
                %8011 = vst [vmem:[%s7981 + $0x38] sm:%s7971] %v8010
                %v8012 = vld [vmem:[%s7980 + $0x3c] sm:%s7971]
                %8013 = vst [vmem:[%s7981 + $0x3c] sm:%s7971] %v8012
                %v8014 = vld [vmem:[%s7980 + $0x40] sm:%s7971]
                %8015 = vst [vmem:[%s7981 + $0x40] sm:%s7971] %v8014
                %v8016 = vld [vmem:[%s7980 + $0x44] sm:%s7971]
                %8017 = vst [vmem:[%s7981 + $0x44] sm:%s7971] %v8016
                %v8018 = vld [vmem:[%s7980 + $0x48] sm:%s7971]
                %8019 = vst [vmem:[%s7981 + $0x48] sm:%s7971] %v8018
                %v8020 = vld [vmem:[%s7980 + $0x4c] sm:%s7971]
                %8021 = vst [vmem:[%s7981 + $0x4c] sm:%s7971] %v8020
                %v8022 = vld [vmem:[%s7980 + $0x50] sm:%s7971]
                %8023 = vst [vmem:[%s7981 + $0x50] sm:%s7971] %v8022
                %v8024 = vld [vmem:[%s7980 + $0x54] sm:%s7971]
                %8025 = vst [vmem:[%s7981 + $0x54] sm:%s7971] %v8024
                %v8026 = vld [vmem:[%s7980 + $0x58] sm:%s7971]
                %8027 = vst [vmem:[%s7981 + $0x58] sm:%s7971] %v8026
                %v8028 = vld [vmem:[%s7980 + $0x5c] sm:%s7971]
                %8029 = vst [vmem:[%s7981 + $0x5c] sm:%s7971] %v8028
                %v8030 = vld [vmem:[%s7980 + $0x60] sm:%s7971]
                %8031 = vst [vmem:[%s7981 + $0x60] sm:%s7971] %v8030
                %v8032 = vld [vmem:[%s7980 + $0x64] sm:%s7971]
                %8033 = vst [vmem:[%s7981 + $0x64] sm:%s7971] %v8032
                %v8034 = vld [vmem:[%s7980 + $0x68] sm:%s7971]
                %8035 = vst [vmem:[%s7981 + $0x68] sm:%s7971] %v8034
                %v8036 = vld [vmem:[%s7980 + $0x6c] sm:%s7971]
                %8037 = vst [vmem:[%s7981 + $0x6c] sm:%s7971] %v8036
                %v8038 = vld [vmem:[%s7980 + $0x70] sm:%s7971]
                %8039 = vst [vmem:[%s7981 + $0x70] sm:%s7971] %v8038
                %v8040 = vld [vmem:[%s7980 + $0x74] sm:%s7971]
                %8041 = vst [vmem:[%s7981 + $0x74] sm:%s7971] %v8040
                %v8042 = vld [vmem:[%s7980 + $0x78] sm:%s7971]
                %8043 = vst [vmem:[%s7981 + $0x78] sm:%s7971] %v8042
                %v8044 = vld [vmem:[%s7980 + $0x7c] sm:%s7971]
                %8045 = vst [vmem:[%s7981 + $0x7c] sm:%s7971] %v8044
                %s8046 = sadd.s32 1, %s7979
                %p8047 = scmp.ge.s32.totalorder %s8046, %s7972
                %s8048 = scalar_select %p8047, 0, %s8046
                %s8049 = smul.u32 %s8048, 128
                %s8050 = smul.u32 %s8048, 128
                %s8051 = scalar_lea.vmem %s7951, %s8049 [#allocation2]
                %s8052 = scalar_lea.vmem %s7962, %s8050
              $region53: #{sequential_forward.1} parent=47 // loop_footer
                %s7976 = sadd.s32 %s7974, 1
              $region54: #{sequential_forward.1} parent=47 // loop_footer_branch
                %7973 = sbr.rel target = $region50
              $region55: #{sequential_forward.1} parent=47 // loop_exit
                _
              %s8053 = sshrl.u32 %s7958, 5
              %s8054 = sand.u32 %s7958, 31
              %s8055 = smul.u32 %s8053, 32
              %s8056 = smul.u32 4, %s8055
              %s8057 = scalar_lea.vmem %s7951, %s8056 [#allocation2]
              %s8058 = smul.u32 4, %s8055
              %s8059 = scalar_lea.vmem %s7962, %s8058
              // While loop
              $region56: #{sequential_forward.1} parent=47 // loop_pre_header
                _
              $region57: #{sequential_forward.1} parent=47 // loop_header
                %s8061 = sphi 0, %s8063
                %p8062 = scmp.ge.s32.totalorder %s8061, %s8054
                %s8066 = sphi 0, %s8073
                %s8067 = sphi %s8057, %s8076
                %s8068 = sphi %s8059, %s8077
              $region58: #{sequential_forward.1} parent=47 // loop_header_branch
                %8065 = sbr.rel (%p8062) target = $region62
              $region59: #{sequential_forward.1} parent=47 // loop_body
                %v8069 = vld [vmem:[%s8067] sm:%s7971]
                %8070 = vst [vmem:[%s8068] sm:%s7971] %v8069
                %s8071 = sadd.s32 1, %s8066
                %p8072 = scmp.ge.s32.totalorder %s8071, %s8054
                %s8073 = scalar_select %p8072, 0, %s8071
                %s8074 = smul.u32 %s8073, 4
                %s8075 = smul.u32 %s8073, 4
                %s8076 = scalar_lea.vmem %s8057, %s8074 [#allocation2]
                %s8077 = scalar_lea.vmem %s8059, %s8075
              $region60: #{sequential_forward.1} parent=47 // loop_footer
                %s8063 = sadd.s32 %s8061, 1
              $region61: #{sequential_forward.1} parent=47 // loop_footer_branch
                %8060 = sbr.rel target = $region57
              $region62: #{sequential_forward.1} parent=47 // loop_exit
                _
            $region48: #{sequential_forward.1} parent=39 // pred_fallthru
              _
          $region40: #{sequential_forward.1} parent=35 // pred_fallthru
            _
          %8188 = vnop
        $region36: #{sequential_forward.1} parent=31 // pred_fallthru
          _
      $region32: #{sequential_forward.1} parent=5 // pred_fallthru
        _
      %p8189 = scmp.le.s32.totalorder 2, %s9
      // Predicated region
      $region81: #{sequential_forward.1} parent=5 // pred_check
        %p8190 = pneg %p8189
      $region82: #{sequential_forward.1} parent=5 // pred_check_branch
        %8192 = sbr.rel (%p8190) target = $region84
      $region83: #{sequential_forward.1} parent=5 // pred_region
        %s8193 = ssub.s32 %s9, 2
        // Predicated region
        $region85: #{sequential_forward.1} parent=83 // pred_check
          %p8194 = pneg %p106
        $region86: #{sequential_forward.1} parent=83 // pred_check_branch
          %8196 = sbr.rel (%p8194) target = $region88
        $region87: #{sequential_forward.1} parent=83 // pred_region
          %s8197 = sand.u32 %s91, 1
          %s8198 = sand.u32 %s91, 1
          %s8199 = smul.addr %s8198, 2048
          %s8200 = scalar_lea.vmem [#allocation2], %s8199
        $region88: #{sequential_forward.1} parent=83 // pred_fallthru
          _
      $region84: #{sequential_forward.1} parent=5 // pred_fallthru
        _
    $region6: #{sequential_forward.1} parent=1 // loop_footer
      %s13 = sadd.s32 1, %s9
    $region7: #{sequential_forward.1} parent=1 // loop_footer_branch
      %8 = sbr.rel target = $region3
    $region8: #{sequential_forward.1} parent=1 // loop_exit
      _

</llo_original>
